<compile_context>
chip_gen: v6e
topology: v6e:2x2x1
jax: 0.10.0
libtpu: 0.0.40
codegen_flags: <defaults>
</compile_context>

<pallas_src>
import functools

import jax
import jax.numpy as jnp
import numpy as np
from jax import lax
from jax.experimental import pallas as pl
from jax.experimental.pallas import tpu as pltpu


def _leaky_relu(x, negative_slope=0.01):
    # matches torch.nn.LeakyReLU default negative_slope=0.01
    return jnp.where(x > 0, x, negative_slope * x)


def _flowfield_kernel(x_ref,
                      w1x_ref, w1e_ref, b1_ref,
                      w2_ref, b2_ref,
                      w3_ref, b3_ref,
                      w4_ref, b4_ref,
                      w5_ref, b5_ref,
                      w6t_ref, b6_ref,
                      w7_ref, b7_ref,
                      out_ref,
                      *, num_freqs, input_dim):
    F = num_freqs
    D = input_dim

    x = x_ref[...]                    # (TN, 1+D) f32, columns = [t, xt_0..xt_{D-1}]
    t = x[:, 0:1]                     # (TN, 1)

    # Fused time embedding: [cos(f*t), sin(f*t)] == sin(freq2*t + phase) with
    # freq2 = 2*pi*[0..F-1, 0..F-1], phase = [pi/2]*F ++ [0]*F (built from an
    # iota, so no extra input stream / DMA for constants).
    idx = lax.broadcasted_iota(jnp.int32, (1, 2 * F), 1)
    is_cos = idx < F
    fidx = jnp.where(is_cos, idx, idx - F).astype(jnp.float32)
    freq2 = (2.0 * np.pi) * fidx
    phase = is_cos.astype(jnp.float32) * (np.pi / 2.0)
    temb = jnp.sin(t * freq2 + phase)               # (TN, 2F) - one EUP pass

    # ---- Layer 1 ----
    # Time-embedding part on the MXU (bf16 operands, f32 accumulation).
    h = jnp.dot(temb.astype(jnp.bfloat16), w1e_ref[...],
                preferred_element_type=jnp.float32)           # (TN, H)
    # xt part on the VPU: D broadcast FMAs (tiny K stays off the MXU).
    w1x = w1x_ref[...]                                        # (D, H) f32
    for d in range(D):
        h = h + x[:, 1 + d:2 + d] * w1x[d:d + 1, :]
    h = _leaky_relu(h + b1_ref[...])

    # ---- Layers 2..5: the MXU-bound (H,H) chain, bf16 in / f32 accum ----
    def lin(v, w_ref, b_ref):
        return jnp.dot(v.astype(jnp.bfloat16), w_ref[...],
                       preferred_element_type=jnp.float32) + b_ref[...]

    h = _leaky_relu(lin(h, w2_ref, b2_ref))
    h = _leaky_relu(lin(h, w3_ref, b3_ref))
    h = _leaky_relu(lin(h, w4_ref, b4_ref))
    h = _leaky_relu(lin(h, w5_ref, b5_ref))                   # (TN, H) f32

    # ---- Layer 6 (H -> D): off the MXU, one XLU lane-reduce per column ----
    w6t = w6t_ref[...]                                        # (D, H) f32
    b6 = b6_ref[...]                                          # (1, D)
    h6 = []
    for j in range(D):
        c = jnp.sum(h * w6t[j:j + 1, :], axis=-1, keepdims=True)  # (TN, 1)
        h6.append(_leaky_relu(c + b6[:, j:j + 1]))

    # ---- Layer 7 (D -> D): VPU broadcast FMAs, no activation ----
    w7 = w7_ref[...]                                          # (D, D)
    out = h6[0] * w7[0:1, :] + b7_ref[...]
    for k in range(1, D):
        out = out + h6[k] * w7[k:k + 1, :]

    out_ref[...] = out.astype(out_ref.dtype)


def _round_up(x, m):
    return (x + m - 1) // m * m


def _cores_per_chip():
    """TensorCores hidden behind one JAX device (megacore v4/v5p, v7x => 2)."""
    try:
        kind = jax.devices()[0].device_kind.lower()
    except Exception:
        return 1
    if "lite" in kind or "v5e" in kind or "v6e" in kind:
        return 1
    for tag in ("v7", "v5p", "v4"):
        if tag in kind:
            return 2
    return 1


def _pick_tiling(n, num_hidden, tile_n=None):
    """Return (tile_n, padded_n): tile_n multiple of 8, padded_n = steps*tile_n."""
    if tile_n is not None:
        assert tile_n % 8 == 0, "tile_n must be a multiple of 8"
        return tile_n, _round_up(n, tile_n)

    # VMEM budget: stay well under v5e's 16 MiB default scoped limit.
    # Per-row bytes: lane-padded + double-buffered in/out streams
    # (2 streams * 2 buffers * 128 lanes * 4B) + a few live activation copies
    # of width H (f32 + bf16).  Resident weights (double-buffered bf16) are
    # subtracted from the budget.
    per_row = 2 * 2 * 128 * 4 + 10 * num_hidden
    budget = 12 * 1024 * 1024
    budget -= 2 * (4 * num_hidden * num_hidden + 64 * num_hidden) * 2
    max_tile = max(8, (max(budget, per_row * 8) // per_row) // 8 * 8)

    n8 = _round_up(n, 8)
    cores = _cores_per_chip()
    if cores > 1:
        # 2-TC chips: >=2 steps and a multiple of the core count (no tail
        # imbalance when dimension_semantics shards the grid across TCs).
        steps = max(cores, -(-n8 // max_tile))
        steps = _round_up(steps, cores)
    else:
        # Single-TC chips: the grid is a sequential loop -> one maximal tile
        # whenever it fits the VMEM budget.
        steps = max(1, -(-n8 // max_tile))
    tile = _round_up(-(-n8 // steps), 8)
    return tile, steps * tile


def flowfield_forward(xt, t, params, *, num_freqs, tile_n=None):
    """xt: (N, input_dim), t: (N, 1). Returns (N, input_dim) float32."""
    N, input_dim = xt.shape
    assert t.shape == (N, 1)

    (w1, b1), (w2, b2), (w3, b3), (w4, b4), (w5, b5), (w6, b6), (w7, b7) = params
    num_hidden = w1.shape[1]
    assert w1.shape[0] == input_dim + 2 * num_freqs

    tile_n, n_pad = _pick_tiling(N, num_hidden, tile_n)

    # Single batch-dependent input stream: [t, xt] -> (n_pad, 1+D).
    x_in = jnp.concatenate([t, xt], axis=1).astype(jnp.float32)
    if n_pad != N:
        x_in = jnp.pad(x_in, ((0, n_pad - N), (0, 0)))

    def row(b):
        return b.reshape(1, -1).astype(jnp.float32)

    bf16 = jnp.bfloat16
    flat = [
        w1[:input_dim].astype(jnp.float32),   # (D, H)  layer-1 x part (VPU)
        w1[input_dim:].astype(bf16),          # (2F, H) layer-1 emb part (MXU)
        row(b1),
        w2.astype(bf16), row(b2),
        w3.astype(bf16), row(b3),
        w4.astype(bf16), row(b4),
        w5.astype(bf16), row(b5),
        w6.T.astype(jnp.float32), row(b6),    # (D, H)  layer-6 (XLU reduce)
        w7.astype(jnp.float32), row(b7),      # (D, D)  layer-7 (VPU)
    ]

    grid = (n_pad // tile_n,)
    x_spec = pl.BlockSpec((tile_n, 1 + input_dim), lambda i: (i, 0))
    # Grid-invariant params: block == full array, always block (0, 0).
    param_specs = [pl.BlockSpec(p.shape, lambda i: (0, 0)) for p in flat]
    out_spec = pl.BlockSpec((tile_n, input_dim), lambda i: (i, 0))

    H, D, F = num_hidden, input_dim, num_freqs
    flops_per_row = (2 * (2 * F) * H + 2 * D * H      # layer 1 (MXU + VPU)
                     + 4 * 2 * H * H                  # layers 2..5 (MXU)
                     + 2 * H * D + 2 * D * D)         # layers 6, 7 (XLU/VPU)
    cost = pl.CostEstimate(
        flops=n_pad * flops_per_row,
        transcendentals=n_pad * 2 * F,
        bytes_accessed=n_pad * (1 + 2 * D) * 4
        + sum(int(np.prod(p.shape)) * p.dtype.itemsize for p in flat),
    )

    kernel = functools.partial(
        _flowfield_kernel, num_freqs=num_freqs, input_dim=input_dim)

    out = pl.pallas_call(
        kernel,
        out_shape=jax.ShapeDtypeStruct((n_pad, input_dim), jnp.float32),
        grid_spec=pltpu.PrefetchScalarGridSpec(
            num_scalar_prefetch=0,
            grid=grid,
            in_specs=[x_spec] + param_specs,
            out_specs=out_spec,
        ),
        compiler_params=pltpu.CompilerParams(
            dimension_semantics=("parallel",)),
        cost_estimate=cost,
    )(x_in, *flat)

    return out[:N] if n_pad != N else out


def init_params(key, input_dim, num_hidden, num_freqs):
    """Deterministic init mimicking nn.Linear's U(-1/sqrt(fan_in), 1/sqrt(fan_in)).
    Weights are stored as (in, out), i.e. already transposed vs. PyTorch."""
    dims = [
        (input_dim + 2 * num_freqs, num_hidden),
        (num_hidden, num_hidden),
        (num_hidden, num_hidden),
        (num_hidden, num_hidden),
        (num_hidden, num_hidden),
        (num_hidden, input_dim),
        (input_dim, input_dim),
    ]
    params = []
    for (fan_in, fan_out) in dims:
        key, kw, kb = jax.random.split(key, 3)
        bound = 1.0 / np.sqrt(fan_in)
        w = jax.random.uniform(kw, (fan_in, fan_out), jnp.float32, -bound, bound)
        b = jax.random.uniform(kb, (fan_out,), jnp.float32, -bound, bound)
        params.append((w, b))
    return params


def flowfield_reference(xt, t, params, *, num_freqs):
    """Plain-JAX reference reproducing the PyTorch forward exactly (f32)."""
    freq = 2.0 * jnp.arange(num_freqs, dtype=jnp.float32) * jnp.pi
    tf = t * freq                                     # (N, F)
    temb = jnp.concatenate([jnp.cos(tf), jnp.sin(tf)], axis=-1)
    h = jnp.concatenate([xt, temb], axis=1)
    for i, (w, b) in enumerate(params):
        h = h @ w + b
        if i < len(params) - 1:
            h = _leaky_relu(h)
    return h


if __name__ == "__main__":
    # Small shapes consistent with the module's forward.
    N = 256
    input_dim = 2
    num_hidden = 128
    num_freqs = 10

    key = jax.random.PRNGKey(0)
    kx, kt, kp = jax.random.split(key, 3)
    xt = jax.random.normal(kx, (N, input_dim), jnp.float32)
    t = jax.random.uniform(kt, (N, 1), jnp.float32)
    params = init_params(kp, input_dim, num_hidden, num_freqs)

    out = flowfield_forward(xt, t, params, num_freqs=num_freqs)
    out = np.asarray(jax.block_until_ready(out))

    ref = np.asarray(
        jax.block_until_ready(
            flowfield_reference(xt, t, params, num_freqs=num_freqs)))

    # bf16 MXU operands -> compare at bf16-level tolerance relative to the
    # output scale (the deep LeakyReLU stack shrinks magnitudes, so a pure
    # rtol/atol at 1e-5 is no longer appropriate).
    scale = float(np.max(np.abs(ref))) + 1e-12
    np.testing.assert_allclose(out, ref, rtol=5e-2, atol=5e-2 * scale)
    assert out.shape == (N, input_dim)

    print("KERNEL_OK")
</pallas_src>

<mosaic_0001>
module attributes {stable_mosaic.version = 11 : i64} {
  func.func @_flowfield_kernel(%arg0: i32, %arg1: memref<256x3xf32, #tpu.memory_space<vmem>>, %arg2: memref<2x128xf32, #tpu.memory_space<vmem>>, %arg3: memref<20x128xbf16, #tpu.memory_space<vmem>>, %arg4: memref<1x128xf32, #tpu.memory_space<vmem>>, %arg5: memref<128x128xbf16, #tpu.memory_space<vmem>>, %arg6: memref<1x128xf32, #tpu.memory_space<vmem>>, %arg7: memref<128x128xbf16, #tpu.memory_space<vmem>>, %arg8: memref<1x128xf32, #tpu.memory_space<vmem>>, %arg9: memref<128x128xbf16, #tpu.memory_space<vmem>>, %arg10: memref<1x128xf32, #tpu.memory_space<vmem>>, %arg11: memref<128x128xbf16, #tpu.memory_space<vmem>>, %arg12: memref<1x128xf32, #tpu.memory_space<vmem>>, %arg13: memref<2x128xf32, #tpu.memory_space<vmem>>, %arg14: memref<1x2xf32, #tpu.memory_space<vmem>>, %arg15: memref<2x2xf32, #tpu.memory_space<vmem>>, %arg16: memref<1x2xf32, #tpu.memory_space<vmem>>, %arg17: memref<256x2xf32, #tpu.memory_space<vmem>>) attributes {dimension_semantics = [#tpu.dimension_semantics<parallel>], iteration_bounds = array<i64: 1>, scalar_prefetch = 0 : i64, scratch_operands = 0 : i64, tpu.core_type = #tpu.core_type<tc>, window_params = [{transform_indices = @transform_0, window_bounds = array<i64: 256, 3>}, {pipeline_mode = #tpu.pipeline_mode<synchronous>, transform_indices = @transform_1, window_bounds = array<i64: 2, 128>}, {pipeline_mode = #tpu.pipeline_mode<synchronous>, transform_indices = @transform_2, window_bounds = array<i64: 20, 128>}, {pipeline_mode = #tpu.pipeline_mode<synchronous>, transform_indices = @transform_3, window_bounds = array<i64: 1, 128>}, {pipeline_mode = #tpu.pipeline_mode<synchronous>, transform_indices = @transform_4, window_bounds = array<i64: 128, 128>}, {pipeline_mode = #tpu.pipeline_mode<synchronous>, transform_indices = @transform_5, window_bounds = array<i64: 1, 128>}, {pipeline_mode = #tpu.pipeline_mode<synchronous>, transform_indices = @transform_6, window_bounds = array<i64: 128, 128>}, {pipeline_mode = #tpu.pipeline_mode<synchronous>, transform_indices = @transform_7, window_bounds = array<i64: 1, 128>}, {pipeline_mode = #tpu.pipeline_mode<synchronous>, transform_indices = @transform_8, window_bounds = array<i64: 128, 128>}, {pipeline_mode = #tpu.pipeline_mode<synchronous>, transform_indices = @transform_9, window_bounds = array<i64: 1, 128>}, {pipeline_mode = #tpu.pipeline_mode<synchronous>, transform_indices = @transform_10, window_bounds = array<i64: 128, 128>}, {pipeline_mode = #tpu.pipeline_mode<synchronous>, transform_indices = @transform_11, window_bounds = array<i64: 1, 128>}, {pipeline_mode = #tpu.pipeline_mode<synchronous>, transform_indices = @transform_12, window_bounds = array<i64: 2, 128>}, {pipeline_mode = #tpu.pipeline_mode<synchronous>, transform_indices = @transform_13, window_bounds = array<i64: 1, 2>}, {pipeline_mode = #tpu.pipeline_mode<synchronous>, transform_indices = @transform_14, window_bounds = array<i64: 2, 2>}, {pipeline_mode = #tpu.pipeline_mode<synchronous>, transform_indices = @transform_15, window_bounds = array<i64: 1, 2>}, {transform_indices = @transform_16, window_bounds = array<i64: 256, 2>}]} {
    %c0 = arith.constant 0 : index
    %c0_0 = arith.constant 0 : index
    %0 = vector.load %arg1[%c0, %c0_0] : memref<256x3xf32, #tpu.memory_space<vmem>>, vector<256x3xf32>
    %1 = vector.extract_strided_slice %0 {offsets = [0, 0], sizes = [256, 1], strides = [1, 1]} : vector<256x3xf32> to vector<256x1xf32>
    %2 = tpu.iota {dimensions = array<i32: 1>} : vector<1x20xi32>
    %c10_i32 = arith.constant 10 : i32
    %3 = vector.broadcast %c10_i32 : i32 to vector<1x20xi32>
    %4 = arith.cmpi slt, %2, %3 : vector<1x20xi32>
    %c10_i32_1 = arith.constant 10 : i32
    %5 = vector.broadcast %c10_i32_1 : i32 to vector<1x20xi32>
    %6 = arith.subi %2, %5 : vector<1x20xi32>
    %7 = arith.select %4, %2, %6 : vector<1x20xi1>, vector<1x20xi32>
    %8 = arith.sitofp %7 : vector<1x20xi32> to vector<1x20xf32>
    %cst = arith.constant 6.28318548 : f32
    %9 = vector.broadcast %cst : f32 to vector<1x20xf32>
    %10 = arith.mulf %9, %8 : vector<1x20xf32>
    %11 = arith.extui %4 : vector<1x20xi1> to vector<1x20xi32>
    %12 = arith.sitofp %11 : vector<1x20xi32> to vector<1x20xf32>
    %cst_2 = arith.constant 1.57079637 : f32
    %13 = vector.broadcast %cst_2 : f32 to vector<1x20xf32>
    %14 = arith.mulf %12, %13 : vector<1x20xf32>
    %15 = vector.broadcast %1 : vector<256x1xf32> to vector<256x20xf32>
    %16 = vector.broadcast %10 : vector<1x20xf32> to vector<256x20xf32>
    %17 = arith.mulf %15, %16 : vector<256x20xf32>
    %18 = vector.broadcast %14 : vector<1x20xf32> to vector<256x20xf32>
    %19 = arith.addf %17, %18 : vector<256x20xf32>
    %20 = math.sin %19 : vector<256x20xf32>
    %21 = arith.truncf %20 : vector<256x20xf32> to vector<256x20xbf16>
    %c0_3 = arith.constant 0 : index
    %c0_4 = arith.constant 0 : index
    %22 = vector.load %arg3[%c0_3, %c0_4] : memref<20x128xbf16, #tpu.memory_space<vmem>>, vector<20x128xbf16>
    %cst_5 = arith.constant dense<0.000000e+00> : vector<256x128xf32>
    %23 = tpu.matmul %21, %22, %cst_5 {dimension_numbers = #tpu.dot_dimension_numbers<[1], [0], [0], [1], [0, 0, 1, 1], [], []>} : vector<256x20xbf16>, vector<20x128xbf16>, vector<256x128xf32> -> vector<256x128xf32>
    %c0_6 = arith.constant 0 : index
    %c0_7 = arith.constant 0 : index
    %24 = vector.load %arg2[%c0_6, %c0_7] : memref<2x128xf32, #tpu.memory_space<vmem>>, vector<2x128xf32>
    %25 = vector.extract_strided_slice %0 {offsets = [0, 1], sizes = [256, 1], strides = [1, 1]} : vector<256x3xf32> to vector<256x1xf32>
    %26 = vector.extract_strided_slice %24 {offsets = [0, 0], sizes = [1, 128], strides = [1, 1]} : vector<2x128xf32> to vector<1x128xf32>
    %27 = vector.broadcast %25 : vector<256x1xf32> to vector<256x128xf32>
    %28 = vector.broadcast %26 : vector<1x128xf32> to vector<256x128xf32>
    %29 = arith.mulf %27, %28 : vector<256x128xf32>
    %30 = arith.addf %23, %29 : vector<256x128xf32>
    %31 = vector.extract_strided_slice %0 {offsets = [0, 2], sizes = [256, 1], strides = [1, 1]} : vector<256x3xf32> to vector<256x1xf32>
    %32 = vector.extract_strided_slice %24 {offsets = [1, 0], sizes = [1, 128], strides = [1, 1]} : vector<2x128xf32> to vector<1x128xf32>
    %33 = vector.broadcast %31 : vector<256x1xf32> to vector<256x128xf32>
    %34 = vector.broadcast %32 : vector<1x128xf32> to vector<256x128xf32>
    %35 = arith.mulf %33, %34 : vector<256x128xf32>
    %36 = arith.addf %30, %35 : vector<256x128xf32>
    %c0_8 = arith.constant 0 : index
    %c0_9 = arith.constant 0 : index
    %37 = vector.load %arg4[%c0_8, %c0_9] : memref<1x128xf32, #tpu.memory_space<vmem>>, vector<1x128xf32>
    %38 = vector.broadcast %37 : vector<1x128xf32> to vector<256x128xf32>
    %39 = arith.addf %36, %38 : vector<256x128xf32>
    %cst_10 = arith.constant 0.000000e+00 : f32
    %40 = vector.broadcast %cst_10 : f32 to vector<256x128xf32>
    %41 = arith.cmpf ogt, %39, %40 : vector<256x128xf32>
    %cst_11 = arith.constant 0.00999999977 : f32
    %42 = vector.broadcast %cst_11 : f32 to vector<256x128xf32>
    %43 = arith.mulf %42, %39 : vector<256x128xf32>
    %44 = arith.select %41, %39, %43 : vector<256x128xi1>, vector<256x128xf32>
    %45 = arith.truncf %44 : vector<256x128xf32> to vector<256x128xbf16>
    %c0_12 = arith.constant 0 : index
    %c0_13 = arith.constant 0 : index
    %46 = vector.load %arg5[%c0_12, %c0_13] : memref<128x128xbf16, #tpu.memory_space<vmem>>, vector<128x128xbf16>
    %cst_14 = arith.constant dense<0.000000e+00> : vector<256x128xf32>
    %47 = tpu.matmul %45, %46, %cst_14 {dimension_numbers = #tpu.dot_dimension_numbers<[1], [0], [0], [1], [0, 0, 1, 1], [], []>} : vector<256x128xbf16>, vector<128x128xbf16>, vector<256x128xf32> -> vector<256x128xf32>
    %c0_15 = arith.constant 0 : index
    %c0_16 = arith.constant 0 : index
    %48 = vector.load %arg6[%c0_15, %c0_16] : memref<1x128xf32, #tpu.memory_space<vmem>>, vector<1x128xf32>
    %49 = vector.broadcast %48 : vector<1x128xf32> to vector<256x128xf32>
    %50 = arith.addf %47, %49 : vector<256x128xf32>
    %cst_17 = arith.constant 0.000000e+00 : f32
    %51 = vector.broadcast %cst_17 : f32 to vector<256x128xf32>
    %52 = arith.cmpf ogt, %50, %51 : vector<256x128xf32>
    %cst_18 = arith.constant 0.00999999977 : f32
    %53 = vector.broadcast %cst_18 : f32 to vector<256x128xf32>
    %54 = arith.mulf %53, %50 : vector<256x128xf32>
    %55 = arith.select %52, %50, %54 : vector<256x128xi1>, vector<256x128xf32>
    %56 = arith.truncf %55 : vector<256x128xf32> to vector<256x128xbf16>
    %c0_19 = arith.constant 0 : index
    %c0_20 = arith.constant 0 : index
    %57 = vector.load %arg7[%c0_19, %c0_20] : memref<128x128xbf16, #tpu.memory_space<vmem>>, vector<128x128xbf16>
    %cst_21 = arith.constant dense<0.000000e+00> : vector<256x128xf32>
    %58 = tpu.matmul %56, %57, %cst_21 {dimension_numbers = #tpu.dot_dimension_numbers<[1], [0], [0], [1], [0, 0, 1, 1], [], []>} : vector<256x128xbf16>, vector<128x128xbf16>, vector<256x128xf32> -> vector<256x128xf32>
    %c0_22 = arith.constant 0 : index
    %c0_23 = arith.constant 0 : index
    %59 = vector.load %arg8[%c0_22, %c0_23] : memref<1x128xf32, #tpu.memory_space<vmem>>, vector<1x128xf32>
    %60 = vector.broadcast %59 : vector<1x128xf32> to vector<256x128xf32>
    %61 = arith.addf %58, %60 : vector<256x128xf32>
    %cst_24 = arith.constant 0.000000e+00 : f32
    %62 = vector.broadcast %cst_24 : f32 to vector<256x128xf32>
    %63 = arith.cmpf ogt, %61, %62 : vector<256x128xf32>
    %cst_25 = arith.constant 0.00999999977 : f32
    %64 = vector.broadcast %cst_25 : f32 to vector<256x128xf32>
    %65 = arith.mulf %64, %61 : vector<256x128xf32>
    %66 = arith.select %63, %61, %65 : vector<256x128xi1>, vector<256x128xf32>
    %67 = arith.truncf %66 : vector<256x128xf32> to vector<256x128xbf16>
    %c0_26 = arith.constant 0 : index
    %c0_27 = arith.constant 0 : index
    %68 = vector.load %arg9[%c0_26, %c0_27] : memref<128x128xbf16, #tpu.memory_space<vmem>>, vector<128x128xbf16>
    %cst_28 = arith.constant dense<0.000000e+00> : vector<256x128xf32>
    %69 = tpu.matmul %67, %68, %cst_28 {dimension_numbers = #tpu.dot_dimension_numbers<[1], [0], [0], [1], [0, 0, 1, 1], [], []>} : vector<256x128xbf16>, vector<128x128xbf16>, vector<256x128xf32> -> vector<256x128xf32>
    %c0_29 = arith.constant 0 : index
    %c0_30 = arith.constant 0 : index
    %70 = vector.load %arg10[%c0_29, %c0_30] : memref<1x128xf32, #tpu.memory_space<vmem>>, vector<1x128xf32>
    %71 = vector.broadcast %70 : vector<1x128xf32> to vector<256x128xf32>
    %72 = arith.addf %69, %71 : vector<256x128xf32>
    %cst_31 = arith.constant 0.000000e+00 : f32
    %73 = vector.broadcast %cst_31 : f32 to vector<256x128xf32>
    %74 = arith.cmpf ogt, %72, %73 : vector<256x128xf32>
    %cst_32 = arith.constant 0.00999999977 : f32
    %75 = vector.broadcast %cst_32 : f32 to vector<256x128xf32>
    %76 = arith.mulf %75, %72 : vector<256x128xf32>
    %77 = arith.select %74, %72, %76 : vector<256x128xi1>, vector<256x128xf32>
    %78 = arith.truncf %77 : vector<256x128xf32> to vector<256x128xbf16>
    %c0_33 = arith.constant 0 : index
    %c0_34 = arith.constant 0 : index
    %79 = vector.load %arg11[%c0_33, %c0_34] : memref<128x128xbf16, #tpu.memory_space<vmem>>, vector<128x128xbf16>
    %cst_35 = arith.constant dense<0.000000e+00> : vector<256x128xf32>
    %80 = tpu.matmul %78, %79, %cst_35 {dimension_numbers = #tpu.dot_dimension_numbers<[1], [0], [0], [1], [0, 0, 1, 1], [], []>} : vector<256x128xbf16>, vector<128x128xbf16>, vector<256x128xf32> -> vector<256x128xf32>
    %c0_36 = arith.constant 0 : index
    %c0_37 = arith.constant 0 : index
    %81 = vector.load %arg12[%c0_36, %c0_37] : memref<1x128xf32, #tpu.memory_space<vmem>>, vector<1x128xf32>
    %82 = vector.broadcast %81 : vector<1x128xf32> to vector<256x128xf32>
    %83 = arith.addf %80, %82 : vector<256x128xf32>
    %cst_38 = arith.constant 0.000000e+00 : f32
    %84 = vector.broadcast %cst_38 : f32 to vector<256x128xf32>
    %85 = arith.cmpf ogt, %83, %84 : vector<256x128xf32>
    %cst_39 = arith.constant 0.00999999977 : f32
    %86 = vector.broadcast %cst_39 : f32 to vector<256x128xf32>
    %87 = arith.mulf %86, %83 : vector<256x128xf32>
    %88 = arith.select %85, %83, %87 : vector<256x128xi1>, vector<256x128xf32>
    %c0_40 = arith.constant 0 : index
    %c0_41 = arith.constant 0 : index
    %89 = vector.load %arg13[%c0_40, %c0_41] : memref<2x128xf32, #tpu.memory_space<vmem>>, vector<2x128xf32>
    %c0_42 = arith.constant 0 : index
    %c0_43 = arith.constant 0 : index
    %90 = vector.load %arg14[%c0_42, %c0_43] : memref<1x2xf32, #tpu.memory_space<vmem>>, vector<1x2xf32>
    %91 = vector.extract_strided_slice %89 {offsets = [0, 0], sizes = [1, 128], strides = [1, 1]} : vector<2x128xf32> to vector<1x128xf32>
    %92 = vector.broadcast %91 : vector<1x128xf32> to vector<256x128xf32>
    %93 = arith.mulf %88, %92 : vector<256x128xf32>
    %cst_44 = arith.constant dense<0.000000e+00> : vector<256xf32>
    %94 = vector.multi_reduction <add>, %93, %cst_44 [1] : vector<256x128xf32> to vector<256xf32>
    %95 = vector.shape_cast %94 : vector<256xf32> to vector<256x1xf32>
    %96 = vector.extract_strided_slice %90 {offsets = [0, 0], sizes = [1, 1], strides = [1, 1]} : vector<1x2xf32> to vector<1x1xf32>
    %97 = vector.broadcast %96 : vector<1x1xf32> to vector<256x1xf32>
    %98 = arith.addf %95, %97 : vector<256x1xf32>
    %cst_45 = arith.constant 0.000000e+00 : f32
    %99 = vector.broadcast %cst_45 : f32 to vector<256x1xf32>
    %100 = arith.cmpf ogt, %98, %99 : vector<256x1xf32>
    %cst_46 = arith.constant 0.00999999977 : f32
    %101 = vector.broadcast %cst_46 : f32 to vector<256x1xf32>
    %102 = arith.mulf %101, %98 : vector<256x1xf32>
    %103 = arith.select %100, %98, %102 : vector<256x1xi1>, vector<256x1xf32>
    %104 = vector.extract_strided_slice %89 {offsets = [1, 0], sizes = [1, 128], strides = [1, 1]} : vector<2x128xf32> to vector<1x128xf32>
    %105 = vector.broadcast %104 : vector<1x128xf32> to vector<256x128xf32>
    %106 = arith.mulf %88, %105 : vector<256x128xf32>
    %cst_47 = arith.constant dense<0.000000e+00> : vector<256xf32>
    %107 = vector.multi_reduction <add>, %106, %cst_47 [1] : vector<256x128xf32> to vector<256xf32>
    %108 = vector.shape_cast %107 : vector<256xf32> to vector<256x1xf32>
    %109 = vector.extract_strided_slice %90 {offsets = [0, 1], sizes = [1, 1], strides = [1, 1]} : vector<1x2xf32> to vector<1x1xf32>
    %110 = vector.broadcast %109 : vector<1x1xf32> to vector<256x1xf32>
    %111 = arith.addf %108, %110 : vector<256x1xf32>
    %cst_48 = arith.constant 0.000000e+00 : f32
    %112 = vector.broadcast %cst_48 : f32 to vector<256x1xf32>
    %113 = arith.cmpf ogt, %111, %112 : vector<256x1xf32>
    %cst_49 = arith.constant 0.00999999977 : f32
    %114 = vector.broadcast %cst_49 : f32 to vector<256x1xf32>
    %115 = arith.mulf %114, %111 : vector<256x1xf32>
    %116 = arith.select %113, %111, %115 : vector<256x1xi1>, vector<256x1xf32>
    %c0_50 = arith.constant 0 : index
    %c0_51 = arith.constant 0 : index
    %117 = vector.load %arg15[%c0_50, %c0_51] : memref<2x2xf32, #tpu.memory_space<vmem>>, vector<2x2xf32>
    %118 = vector.extract_strided_slice %117 {offsets = [0, 0], sizes = [1, 2], strides = [1, 1]} : vector<2x2xf32> to vector<1x2xf32>
    %119 = vector.broadcast %103 : vector<256x1xf32> to vector<256x2xf32>
    %120 = vector.broadcast %118 : vector<1x2xf32> to vector<256x2xf32>
    %121 = arith.mulf %119, %120 : vector<256x2xf32>
    %c0_52 = arith.constant 0 : index
    %c0_53 = arith.constant 0 : index
    %122 = vector.load %arg16[%c0_52, %c0_53] : memref<1x2xf32, #tpu.memory_space<vmem>>, vector<1x2xf32>
    %123 = vector.broadcast %122 : vector<1x2xf32> to vector<256x2xf32>
    %124 = arith.addf %121, %123 : vector<256x2xf32>
    %125 = vector.extract_strided_slice %117 {offsets = [1, 0], sizes = [1, 2], strides = [1, 1]} : vector<2x2xf32> to vector<1x2xf32>
    %126 = vector.broadcast %116 : vector<256x1xf32> to vector<256x2xf32>
    %127 = vector.broadcast %125 : vector<1x2xf32> to vector<256x2xf32>
    %128 = arith.mulf %126, %127 : vector<256x2xf32>
    %129 = arith.addf %124, %128 : vector<256x2xf32>
    %c0_54 = arith.constant 0 : index
    %c0_55 = arith.constant 0 : index
    %130 = vector.load %arg17[%c0_54, %c0_55] : memref<256x2xf32, #tpu.memory_space<vmem>>, vector<256x2xf32>
    tpu.vector_store %arg17[%c0_54, %c0_55], %129 {strides = array<i32>} : memref<256x2xf32, #tpu.memory_space<vmem>>, vector<256x2xf32>,
    return
  }
  func.func @transform_0(%arg0: i32) -> (i32, i32) {
    %c0_i32 = arith.constant 0 : i32
    %c0_i32_0 = arith.constant 0 : i32
    return %arg0, %c0_i32 : i32, i32
  }
  func.func @transform_1(%arg0: i32) -> (i32, i32) {
    %c0_i32 = arith.constant 0 : i32
    %c0_i32_0 = arith.constant 0 : i32
    %c0_i32_1 = arith.constant 0 : i32
    return %c0_i32, %c0_i32_0 : i32, i32
  }
  func.func @transform_2(%arg0: i32) -> (i32, i32) {
    %c0_i32 = arith.constant 0 : i32
    %c0_i32_0 = arith.constant 0 : i32
    %c0_i32_1 = arith.constant 0 : i32
    return %c0_i32, %c0_i32_0 : i32, i32
  }
  func.func @transform_3(%arg0: i32) -> (i32, i32) {
    %c0_i32 = arith.constant 0 : i32
    %c0_i32_0 = arith.constant 0 : i32
    %c0_i32_1 = arith.constant 0 : i32
    return %c0_i32, %c0_i32_0 : i32, i32
  }
  func.func @transform_4(%arg0: i32) -> (i32, i32) {
    %c0_i32 = arith.constant 0 : i32
    %c0_i32_0 = arith.constant 0 : i32
    %c0_i32_1 = arith.constant 0 : i32
    return %c0_i32, %c0_i32_0 : i32, i32
  }
  func.func @transform_5(%arg0: i32) -> (i32, i32) {
    %c0_i32 = arith.constant 0 : i32
    %c0_i32_0 = arith.constant 0 : i32
    %c0_i32_1 = arith.constant 0 : i32
    return %c0_i32, %c0_i32_0 : i32, i32
  }
  func.func @transform_6(%arg0: i32) -> (i32, i32) {
    %c0_i32 = arith.constant 0 : i32
    %c0_i32_0 = arith.constant 0 : i32
    %c0_i32_1 = arith.constant 0 : i32
    return %c0_i32, %c0_i32_0 : i32, i32
  }
  func.func @transform_7(%arg0: i32) -> (i32, i32) {
    %c0_i32 = arith.constant 0 : i32
    %c0_i32_0 = arith.constant 0 : i32
    %c0_i32_1 = arith.constant 0 : i32
    return %c0_i32, %c0_i32_0 : i32, i32
  }
  func.func @transform_8(%arg0: i32) -> (i32, i32) {
    %c0_i32 = arith.constant 0 : i32
    %c0_i32_0 = arith.constant 0 : i32
    %c0_i32_1 = arith.constant 0 : i32
    return %c0_i32, %c0_i32_0 : i32, i32
  }
  func.func @transform_9(%arg0: i32) -> (i32, i32) {
    %c0_i32 = arith.constant 0 : i32
    %c0_i32_0 = arith.constant 0 : i32
    %c0_i32_1 = arith.constant 0 : i32
    return %c0_i32, %c0_i32_0 : i32, i32
  }
  func.func @transform_10(%arg0: i32) -> (i32, i32) {
    %c0_i32 = arith.constant 0 : i32
    %c0_i32_0 = arith.constant 0 : i32
    %c0_i32_1 = arith.constant 0 : i32
    return %c0_i32, %c0_i32_0 : i32, i32
  }
  func.func @transform_11(%arg0: i32) -> (i32, i32) {
    %c0_i32 = arith.constant 0 : i32
    %c0_i32_0 = arith.constant 0 : i32
    %c0_i32_1 = arith.constant 0 : i32
    return %c0_i32, %c0_i32_0 : i32, i32
  }
  func.func @transform_12(%arg0: i32) -> (i32, i32) {
    %c0_i32 = arith.constant 0 : i32
    %c0_i32_0 = arith.constant 0 : i32
    %c0_i32_1 = arith.constant 0 : i32
    return %c0_i32, %c0_i32_0 : i32, i32
  }
  func.func @transform_13(%arg0: i32) -> (i32, i32) {
    %c0_i32 = arith.constant 0 : i32
    %c0_i32_0 = arith.constant 0 : i32
    %c0_i32_1 = arith.constant 0 : i32
    return %c0_i32, %c0_i32_0 : i32, i32
  }
  func.func @transform_14(%arg0: i32) -> (i32, i32) {
    %c0_i32 = arith.constant 0 : i32
    %c0_i32_0 = arith.constant 0 : i32
    %c0_i32_1 = arith.constant 0 : i32
    return %c0_i32, %c0_i32_0 : i32, i32
  }
  func.func @transform_15(%arg0: i32) -> (i32, i32) {
    %c0_i32 = arith.constant 0 : i32
    %c0_i32_0 = arith.constant 0 : i32
    %c0_i32_1 = arith.constant 0 : i32
    return %c0_i32, %c0_i32_0 : i32, i32
  }
  func.func @transform_16(%arg0: i32) -> (i32, i32) {
    %c0_i32 = arith.constant 0 : i32
    %c0_i32_0 = arith.constant 0 : i32
    return %arg0, %c0_i32 : i32, i32
  }
}

</mosaic_0001>

<llo_original>
// kernel: tpu_custom_call.1
$region0: #{tpu_custom_call.1}
  #allocation0 [shape = 'u32[]', space=smem, size = 0x4, offset = 0x4, fixed_abs, tag = 'smem constant byte address 0x4 - core index']
  #allocation1 [shape = 'u32[144,128]{1,0:T(1,128)}', space=vmem, size = 0x12000, scoped, tag = 'internal scratch']
  %s0 = inlined_call_operand.vmem [shape: f32[256,3], index: 0, kind: input, shape index: {}]
  %s1 = inlined_call_operand.vmem [shape: f32[2,128], index: 1, kind: input, shape index: {}]
  %s2 = inlined_call_operand.hbm [shape: bf16[20,128], index: 2, kind: input, shape index: {}]
  %s3 = inlined_call_operand.vmem [shape: f32[1,128], index: 3, kind: input, shape index: {}]
  %s4 = inlined_call_operand.vmem [shape: bf16[128,128], index: 4, kind: input, shape index: {}]
  %s5 = inlined_call_operand.vmem [shape: f32[1,128], index: 5, kind: input, shape index: {}]
  %s6 = inlined_call_operand.vmem [shape: bf16[128,128], index: 6, kind: input, shape index: {}]
  %s7 = inlined_call_operand.vmem [shape: f32[1,128], index: 7, kind: input, shape index: {}]
  %s8 = inlined_call_operand.vmem [shape: bf16[128,128], index: 8, kind: input, shape index: {}]
  %s9 = inlined_call_operand.vmem [shape: f32[1,128], index: 9, kind: input, shape index: {}]
  %s10 = inlined_call_operand.vmem [shape: bf16[128,128], index: 10, kind: input, shape index: {}]
  %s11 = inlined_call_operand.vmem [shape: f32[1,128], index: 11, kind: input, shape index: {}]
  %s12 = inlined_call_operand.vmem [shape: f32[2,128], index: 12, kind: input, shape index: {}]
  %s13 = inlined_call_operand.vmem [shape: f32[1,2], index: 13, kind: input, shape index: {}]
  %s14 = inlined_call_operand.vmem [shape: f32[2,2], index: 14, kind: input, shape index: {}]
  %s15 = inlined_call_operand.vmem [shape: f32[1,2], index: 15, kind: input, shape index: {}]
  %s16 = inlined_call_operand.vmem [shape: f32[256,2], index: 16, kind: output, shape index: {}]
  %s17 = sld [smem:[#allocation0]]
  $region78: #{tpu_custom_call.1} parent=0
    _
  %s19 = ssub.s32 1, %s17
  %s20 = scalar_select 0, %s19, %s17
  $region1: #{tpu_custom_call.1} parent=0
    #allocation2 [shape = 'u8[6144]{0}', space=vmem, size = 0x1800, scoped, tag = 'input window, operand 2, single buffered']
    #allocation3 [shape = 's32[1]{0}', space=sflag, size = 0x4, scoped, tag = 'scoped memory for tpu_custom_call.1']
    %21 = vsyncpa [#allocation3], 0
    // Predicated region
    $region2: #{tpu_custom_call.1} parent=1 // pred_check
      _
    $region3: #{tpu_custom_call.1} parent=1 // pred_check_branch
      %23 = sbr.rel (0) target = $region5
    $region4: #{tpu_custom_call.1} parent=1 // pred_region
      _
    $region5: #{tpu_custom_call.1} parent=1 // pred_fallthru
      _
    // Predicated region
    $region6: #{tpu_custom_call.1} parent=1 // pred_check
      _
    $region7: #{tpu_custom_call.1} parent=1 // pred_check_branch
      %25 = sbr.rel (0) target = $region9
    $region8: #{tpu_custom_call.1} parent=1 // pred_region
      _
    $region9: #{tpu_custom_call.1} parent=1 // pred_fallthru
      _
    // Predicated region
    $region10: #{tpu_custom_call.1} parent=1 // pred_check
      _
    $region11: #{tpu_custom_call.1} parent=1 // pred_check_branch
      %27 = sbr.rel (0) target = $region13
    $region12: #{tpu_custom_call.1} parent=1 // pred_region
      %s29 = ssub.s32 192, 192
      %30 = vsyncadd [#allocation3], %s29
      %s31 = sshll.u32 [#allocation2], 4
      %s32 = int_to_ptr.vmem [resolvable:$true] %s31
      %37 = dma.hbm_to_vmem [thread:$0]  %s2, 192, %s32, [#allocation3], 64, 64, 4
    $region13: #{tpu_custom_call.1} parent=1 // pred_fallthru
      _
    // Predicated region
    $region14: #{tpu_custom_call.1} parent=1 // pred_check
      _
    $region15: #{tpu_custom_call.1} parent=1 // pred_check_branch
      %39 = sbr.rel (0) target = $region17
    $region16: #{tpu_custom_call.1} parent=1 // pred_region
      _
    $region17: #{tpu_custom_call.1} parent=1 // pred_fallthru
      _
    // Predicated region
    $region18: #{tpu_custom_call.1} parent=1 // pred_check
      _
    $region19: #{tpu_custom_call.1} parent=1 // pred_check_branch
      %41 = sbr.rel (0) target = $region21
    $region20: #{tpu_custom_call.1} parent=1 // pred_region
      _
    $region21: #{tpu_custom_call.1} parent=1 // pred_fallthru
      _
    // Predicated region
    $region22: #{tpu_custom_call.1} parent=1 // pred_check
      _
    $region23: #{tpu_custom_call.1} parent=1 // pred_check_branch
      %43 = sbr.rel (0) target = $region25
    $region24: #{tpu_custom_call.1} parent=1 // pred_region
      _
    $region25: #{tpu_custom_call.1} parent=1 // pred_fallthru
      _
    // Predicated region
    $region26: #{tpu_custom_call.1} parent=1 // pred_check
      _
    $region27: #{tpu_custom_call.1} parent=1 // pred_check_branch
      %45 = sbr.rel (0) target = $region29
    $region28: #{tpu_custom_call.1} parent=1 // pred_region
      _
    $region29: #{tpu_custom_call.1} parent=1 // pred_fallthru
      _
    // Predicated region
    $region30: #{tpu_custom_call.1} parent=1 // pred_check
      _
    $region31: #{tpu_custom_call.1} parent=1 // pred_check_branch
      %47 = sbr.rel (0) target = $region33
    $region32: #{tpu_custom_call.1} parent=1 // pred_region
      _
    $region33: #{tpu_custom_call.1} parent=1 // pred_fallthru
      _
    // Predicated region
    $region34: #{tpu_custom_call.1} parent=1 // pred_check
      _
    $region35: #{tpu_custom_call.1} parent=1 // pred_check_branch
      %49 = sbr.rel (0) target = $region37
    $region36: #{tpu_custom_call.1} parent=1 // pred_region
      _
    $region37: #{tpu_custom_call.1} parent=1 // pred_fallthru
      _
    // Predicated region
    $region38: #{tpu_custom_call.1} parent=1 // pred_check
      _
    $region39: #{tpu_custom_call.1} parent=1 // pred_check_branch
      %51 = sbr.rel (0) target = $region41
    $region40: #{tpu_custom_call.1} parent=1 // pred_region
      _
    $region41: #{tpu_custom_call.1} parent=1 // pred_fallthru
      _
    // Predicated region
    $region42: #{tpu_custom_call.1} parent=1 // pred_check
      _
    $region43: #{tpu_custom_call.1} parent=1 // pred_check_branch
      %53 = sbr.rel (0) target = $region45
    $region44: #{tpu_custom_call.1} parent=1 // pred_region
      _
    $region45: #{tpu_custom_call.1} parent=1 // pred_fallthru
      _
    // Predicated region
    $region46: #{tpu_custom_call.1} parent=1 // pred_check
      _
    $region47: #{tpu_custom_call.1} parent=1 // pred_check_branch
      %55 = sbr.rel (0) target = $region49
    $region48: #{tpu_custom_call.1} parent=1 // pred_region
      _
    $region49: #{tpu_custom_call.1} parent=1 // pred_fallthru
      _
    // Predicated region
    $region50: #{tpu_custom_call.1} parent=1 // pred_check
      _
    $region51: #{tpu_custom_call.1} parent=1 // pred_check_branch
      %57 = sbr.rel (0) target = $region53
    $region52: #{tpu_custom_call.1} parent=1 // pred_region
      _
    $region53: #{tpu_custom_call.1} parent=1 // pred_fallthru
      _
    // Predicated region
    $region54: #{tpu_custom_call.1} parent=1 // pred_check
      _
    $region55: #{tpu_custom_call.1} parent=1 // pred_check_branch
      %59 = sbr.rel (0) target = $region57
    $region56: #{tpu_custom_call.1} parent=1 // pred_region
      _
    $region57: #{tpu_custom_call.1} parent=1 // pred_fallthru
      _
    // Predicated region
    $region58: #{tpu_custom_call.1} parent=1 // pred_check
      _
    $region59: #{tpu_custom_call.1} parent=1 // pred_check_branch
      %61 = sbr.rel (0) target = $region61
    $region60: #{tpu_custom_call.1} parent=1 // pred_region
      _
    $region61: #{tpu_custom_call.1} parent=1 // pred_fallthru
      _
    // Predicated region
    $region62: #{tpu_custom_call.1} parent=1 // pred_check
      _
    $region63: #{tpu_custom_call.1} parent=1 // pred_check_branch
      %63 = sbr.rel (0) target = $region65
    $region64: #{tpu_custom_call.1} parent=1 // pred_region
      _
    $region65: #{tpu_custom_call.1} parent=1 // pred_fallthru
      _
    // Predicated region
    $region66: #{tpu_custom_call.1} parent=1 // pred_check
      _
    $region67: #{tpu_custom_call.1} parent=1 // pred_check_branch
      %65 = sbr.rel (0) target = $region69
    $region68: #{tpu_custom_call.1} parent=1 // pred_region
      %66 = dma.done [#allocation3], 192
    $region69: #{tpu_custom_call.1} parent=1 // pred_fallthru
      _
    %v68 = vld [vmem:[%s0] sm:$0xff]
    %v69 = vld [vmem:[%s0 + $0x8] sm:$0xff]
    %v70 = vld [vmem:[%s0 + $0x10] sm:$0xff]
    %v71 = vld [vmem:[%s0 + $0x18] sm:$0xff]
    %v72 = vld [vmem:[%s0 + $0x20] sm:$0xff]
    %v73 = vld [vmem:[%s0 + $0x28] sm:$0xff]
    %v74 = vld [vmem:[%s0 + $0x30] sm:$0xff]
    %v75 = vld [vmem:[%s0 + $0x38] sm:$0xff]
    %v76 = vld [vmem:[%s0 + $0x40] sm:$0xff]
    %v77 = vld [vmem:[%s0 + $0x48] sm:$0xff]
    %v78 = vld [vmem:[%s0 + $0x50] sm:$0xff]
    %v79 = vld [vmem:[%s0 + $0x58] sm:$0xff]
    %v80 = vld [vmem:[%s0 + $0x60] sm:$0xff]
    %v81 = vld [vmem:[%s0 + $0x68] sm:$0xff]
    %v82 = vld [vmem:[%s0 + $0x70] sm:$0xff]
    %v83 = vld [vmem:[%s0 + $0x78] sm:$0xff]
    %v84 = vld [vmem:[%s0 + $0x80] sm:$0xff]
    %v85 = vld [vmem:[%s0 + $0x88] sm:$0xff]
    %v86 = vld [vmem:[%s0 + $0x90] sm:$0xff]
    %v87 = vld [vmem:[%s0 + $0x98] sm:$0xff]
    %v88 = vld [vmem:[%s0 + $0xa0] sm:$0xff]
    %v89 = vld [vmem:[%s0 + $0xa8] sm:$0xff]
    %v90 = vld [vmem:[%s0 + $0xb0] sm:$0xff]
    %v91 = vld [vmem:[%s0 + $0xb8] sm:$0xff]
    %v92 = vld [vmem:[%s0 + $0xc0] sm:$0xff]
    %v93 = vld [vmem:[%s0 + $0xc8] sm:$0xff]
    %v94 = vld [vmem:[%s0 + $0xd0] sm:$0xff]
    %v95 = vld [vmem:[%s0 + $0xd8] sm:$0xff]
    %v96 = vld [vmem:[%s0 + $0xe0] sm:$0xff]
    %v97 = vld [vmem:[%s0 + $0xe8] sm:$0xff]
    %v98 = vld [vmem:[%s0 + $0xf0] sm:$0xff]
    %v99 = vld [vmem:[%s0 + $0xf8] sm:$0xff]
    %v100 = vlaneseq
    %v101 = vand.u32 %v100, 127
    %vm102 = vcmp.lt.s32.totalorder %v101, 10
    %v103 = vsub.s32 %v101, 10
    %v104 = vsel %vm102, %v101, %v103
    %v105 = vcvt.s32.f32 %v104
    %v106 = vmul.f32 %v105, 6.2831855
    %v107 = vsel %vm102, 1, 0
    %v108 = vcvt.s32.f32 %v107
    %v109 = vmul.f32 %v108, 1.5707964
    %111 = vset.pattern.permute.xlu0 0
    %112 = vperm.xlu0 %111, %v68
    %v113 = vpop.permute.xlu0 %112
    %116 = vset.pattern.permute.xlu0 0
    %117 = vperm.xlu0 %116, %v69
    %v118 = vpop.permute.xlu0 %117
    %121 = vset.pattern.permute.xlu0 0
    %122 = vperm.xlu0 %121, %v70
    %v123 = vpop.permute.xlu0 %122
    %126 = vset.pattern.permute.xlu0 0
    %127 = vperm.xlu0 %126, %v71
    %v128 = vpop.permute.xlu0 %127
    %131 = vset.pattern.permute.xlu0 0
    %132 = vperm.xlu0 %131, %v72
    %v133 = vpop.permute.xlu0 %132
    %136 = vset.pattern.permute.xlu0 0
    %137 = vperm.xlu0 %136, %v73
    %v138 = vpop.permute.xlu0 %137
    %141 = vset.pattern.permute.xlu0 0
    %142 = vperm.xlu0 %141, %v74
    %v143 = vpop.permute.xlu0 %142
    %146 = vset.pattern.permute.xlu0 0
    %147 = vperm.xlu0 %146, %v75
    %v148 = vpop.permute.xlu0 %147
    %151 = vset.pattern.permute.xlu0 0
    %152 = vperm.xlu0 %151, %v76
    %v153 = vpop.permute.xlu0 %152
    %156 = vset.pattern.permute.xlu0 0
    %157 = vperm.xlu0 %156, %v77
    %v158 = vpop.permute.xlu0 %157
    %161 = vset.pattern.permute.xlu0 0
    %162 = vperm.xlu0 %161, %v78
    %v163 = vpop.permute.xlu0 %162
    %166 = vset.pattern.permute.xlu0 0
    %167 = vperm.xlu0 %166, %v79
    %v168 = vpop.permute.xlu0 %167
    %171 = vset.pattern.permute.xlu0 0
    %172 = vperm.xlu0 %171, %v80
    %v173 = vpop.permute.xlu0 %172
    %176 = vset.pattern.permute.xlu0 0
    %177 = vperm.xlu0 %176, %v81
    %v178 = vpop.permute.xlu0 %177
    %181 = vset.pattern.permute.xlu0 0
    %182 = vperm.xlu0 %181, %v82
    %v183 = vpop.permute.xlu0 %182
    %186 = vset.pattern.permute.xlu0 0
    %187 = vperm.xlu0 %186, %v83
    %v188 = vpop.permute.xlu0 %187
    %191 = vset.pattern.permute.xlu0 0
    %192 = vperm.xlu0 %191, %v84
    %v193 = vpop.permute.xlu0 %192
    %196 = vset.pattern.permute.xlu0 0
    %197 = vperm.xlu0 %196, %v85
    %v198 = vpop.permute.xlu0 %197
    %201 = vset.pattern.permute.xlu0 0
    %202 = vperm.xlu0 %201, %v86
    %v203 = vpop.permute.xlu0 %202
    %206 = vset.pattern.permute.xlu0 0
    %207 = vperm.xlu0 %206, %v87
    %v208 = vpop.permute.xlu0 %207
    %211 = vset.pattern.permute.xlu0 0
    %212 = vperm.xlu0 %211, %v88
    %v213 = vpop.permute.xlu0 %212
    %216 = vset.pattern.permute.xlu0 0
    %217 = vperm.xlu0 %216, %v89
    %v218 = vpop.permute.xlu0 %217
    %221 = vset.pattern.permute.xlu0 0
    %222 = vperm.xlu0 %221, %v90
    %v223 = vpop.permute.xlu0 %222
    %226 = vset.pattern.permute.xlu0 0
    %227 = vperm.xlu0 %226, %v91
    %v228 = vpop.permute.xlu0 %227
    %231 = vset.pattern.permute.xlu0 0
    %232 = vperm.xlu0 %231, %v92
    %v233 = vpop.permute.xlu0 %232
    %236 = vset.pattern.permute.xlu0 0
    %237 = vperm.xlu0 %236, %v93
    %v238 = vpop.permute.xlu0 %237
    %241 = vset.pattern.permute.xlu0 0
    %242 = vperm.xlu0 %241, %v94
    %v243 = vpop.permute.xlu0 %242
    %246 = vset.pattern.permute.xlu0 0
    %247 = vperm.xlu0 %246, %v95
    %v248 = vpop.permute.xlu0 %247
    %251 = vset.pattern.permute.xlu0 0
    %252 = vperm.xlu0 %251, %v96
    %v253 = vpop.permute.xlu0 %252
    %256 = vset.pattern.permute.xlu0 0
    %257 = vperm.xlu0 %256, %v97
    %v258 = vpop.permute.xlu0 %257
    %261 = vset.pattern.permute.xlu0 0
    %262 = vperm.xlu0 %261, %v98
    %v263 = vpop.permute.xlu0 %262
    %266 = vset.pattern.permute.xlu0 0
    %267 = vperm.xlu0 %266, %v99
    %v268 = vpop.permute.xlu0 %267
    %v270 = vmul.f32 %v113, %v106
    %v271 = vmul.f32 %v118, %v106
    %v272 = vmul.f32 %v123, %v106
    %v273 = vmul.f32 %v128, %v106
    %v274 = vmul.f32 %v133, %v106
    %v275 = vmul.f32 %v138, %v106
    %v276 = vmul.f32 %v143, %v106
    %v277 = vmul.f32 %v148, %v106
    %v278 = vmul.f32 %v153, %v106
    %v279 = vmul.f32 %v158, %v106
    %v280 = vmul.f32 %v163, %v106
    %v281 = vmul.f32 %v168, %v106
    %v282 = vmul.f32 %v173, %v106
    %v283 = vmul.f32 %v178, %v106
    %v284 = vmul.f32 %v183, %v106
    %v285 = vmul.f32 %v188, %v106
    %v286 = vmul.f32 %v193, %v106
    %v287 = vmul.f32 %v198, %v106
    %v288 = vmul.f32 %v203, %v106
    %v289 = vmul.f32 %v208, %v106
    %v290 = vmul.f32 %v213, %v106
    %v291 = vmul.f32 %v218, %v106
    %v292 = vmul.f32 %v223, %v106
    %v293 = vmul.f32 %v228, %v106
    %v294 = vmul.f32 %v233, %v106
    %v295 = vmul.f32 %v238, %v106
    %v296 = vmul.f32 %v243, %v106
    %v297 = vmul.f32 %v248, %v106
    %v298 = vmul.f32 %v253, %v106
    %v299 = vmul.f32 %v258, %v106
    %v300 = vmul.f32 %v263, %v106
    %v301 = vmul.f32 %v268, %v106
    %v302 = vadd.f32 %v270, %v109
    %v303 = vadd.f32 %v271, %v109
    %v304 = vadd.f32 %v272, %v109
    %v305 = vadd.f32 %v273, %v109
    %v306 = vadd.f32 %v274, %v109
    %v307 = vadd.f32 %v275, %v109
    %v308 = vadd.f32 %v276, %v109
    %v309 = vadd.f32 %v277, %v109
    %v310 = vadd.f32 %v278, %v109
    %v311 = vadd.f32 %v279, %v109
    %v312 = vadd.f32 %v280, %v109
    %v313 = vadd.f32 %v281, %v109
    %v314 = vadd.f32 %v282, %v109
    %v315 = vadd.f32 %v283, %v109
    %v316 = vadd.f32 %v284, %v109
    %v317 = vadd.f32 %v285, %v109
    %v318 = vadd.f32 %v286, %v109
    %v319 = vadd.f32 %v287, %v109
    %v320 = vadd.f32 %v288, %v109
    %v321 = vadd.f32 %v289, %v109
    %v322 = vadd.f32 %v290, %v109
    %v323 = vadd.f32 %v291, %v109
    %v324 = vadd.f32 %v292, %v109
    %v325 = vadd.f32 %v293, %v109
    %v326 = vadd.f32 %v294, %v109
    %v327 = vadd.f32 %v295, %v109
    %v328 = vadd.f32 %v296, %v109
    %v329 = vadd.f32 %v297, %v109
    %v330 = vadd.f32 %v298, %v109
    %v331 = vadd.f32 %v299, %v109
    %v332 = vadd.f32 %v300, %v109
    %v333 = vadd.f32 %v301, %v109
    %v334 = vand.u32 2147483647, %v302
    %vm335 = vcmp.le.f32.partialorder %v334, 0.7853982
    %vm336 = vcmp.lt.s32.totalorder %v302, 0
    %v337 = vand.u32 %v302, 2139095040
    %v338 = vshrl.u32 %v337, 23
    %v339 = vsub.s32 %v338, 127
    %v340 = vand.u32 2147483647, %v302
    %v341 = vand.u32 %v340, 8388607
    %v342 = vor.u32 %v341, 8388608
    %v343 = vsub.s32 0, %v342
    %v344 = vadd.s32 %v339, 1
    %vm345 = vcmp.gt.s32.totalorder %v344, 0
    %v346 = vsel %vm345, %v344, 0
    %v347 = vshrl.u32 %v346, 5
    %v348 = vand.u32 %v346, 31
    %v349 = vsub.s32 32, %v348
    %v350 = vshrl.u32 683565275, %v349
    %v351 = vshll.u32 683565275, %v348
    %v352 = vshrl.u32 2475754826, %v349
    %v353 = vor.u32 %v351, %v352
    %v354 = vshll.u32 2475754826, %v348
    %v355 = vshrl.u32 2131351028, %v349
    %v356 = vor.u32 %v354, %v355
    %v357 = vshll.u32 2131351028, %v348
    %v358 = vshrl.u32 2102212464, %v349
    %v359 = vor.u32 %v357, %v358
    %v360 = vshll.u32 2102212464, %v348
    %v361 = vshrl.u32 920167782, %v349
    %v362 = vor.u32 %v360, %v361
    %v363 = vshll.u32 920167782, %v348
    %v364 = vshrl.u32 1326507024, %v349
    %v365 = vor.u32 %v363, %v364
    %vm366 = vcmp.lt.s32.totalorder %v347, 1
    %vm367 = vcmp.lt.s32.totalorder %v347, 2
    %vm368 = vcmp.lt.s32.totalorder %v347, 3
    %vm369 = vcmp.lt.s32.totalorder %v347, 4
    %v370 = vsel %vm366, %v350, %v353
    %v371 = vsel %vm369, %v359, 2102212464
    %v372 = vsel %vm368, %v356, %v371
    %v373 = vsel %vm367, %v370, %v372
    %v374 = vsel %vm366, %v353, %v356
    %v375 = vsel %vm369, %v362, 920167782
    %v376 = vsel %vm368, %v359, %v375
    %v377 = vsel %vm367, %v374, %v376
    %v378 = vsel %vm366, %v356, %v359
    %v379 = vsel %vm369, %v365, 1326507024
    %v380 = vsel %vm368, %v362, %v379
    %v381 = vsel %vm367, %v378, %v380
    %v382 = vshll.u32 %v342, 8
    %v383 = vmul.u32.u64.compose %v382, %v381
    %v384 = vextract.low.u32 %v383
    %v385 = vextract.high.u32 %v383
    %v386 = vmul.u32.u64.compose %v382, %v377
    %v387 = vextract.low.u32 %v386
    %v388 = vextract.high.u32 %v386
    %v389 = vmul.u32 %v382, %v373
    %v390 = vadd.s32 %v385, %v387
    %vm391 = vc.u32 %v385, %v387
    %v392 = vadd.s32 %v388, 1
    %v393 = vsel %vm391, %v392, %v388
    %v394 = vadd.s32 %v389, %v393
    %v395 = vadd.s32 %v394, 536870912
    %v396 = vshrl.u32 %v395, 30
    %v397 = vshll.u32 %v396, 30
    %v398 = vsub.s32 %v394, %v397
    %vm399 = vcmp.lt.s32.totalorder %v398, 0
    %v400 = vsub.s32 0, %v398
    %v401 = vsel %vm399, %v400, %v398
    %v402 = vclz %v401
    %v403 = vsub.s32 %v402, 2
    %vm404 = vcmp.gt.s32.totalorder 0, %v403
    %v405 = vsel %vm404, 0, %v403
    %v406 = vsub.s32 32, %v405
    %v407 = vshll.u32 %v398, %v405
    %v408 = vshrl.u32 %v390, %v406
    %v409 = vor.u32 %v407, %v408
    %v410 = vsub.s32 4294967266, %v405
    %v411 = vadd.s32 %v410, 127
    %v412 = vshll.u32 %v411, 23
    %v413 = vor.u32 4788187, %v412
    %v414 = vand.u32 2147483647, %v413
    %v416 = vcvt.s32.f32 %v409
    %v417 = vmul.f32 %v416, %v414
    %v418 = vxor.u32 %v417, 2147483648
    %v419 = vsel %vm336, %v418, %v417
    %v420 = vsub.s32 4, %v396
    %v421 = vsel %vm336, %v420, %v396
    %v422 = vsel %vm335, %v302, %v419
    %v423 = vsel %vm335, 0, %v421
    %v424 = vcosq.f32.pop %v422
    %v425 = vsinq.f32.pop %v422
    %vm426 = vweird.f32 %v302
    %v427 = vadd.s32 %v423, 3
    %v428 = vand.u32 %v427, 3
    %vm429 = vcmp.lt.s32.totalorder %v428, 2
    %vm430 = vcmp.eq.s32.totalorder %v428, 0
    %v431 = vxor.u32 %v425, 2147483648
    %v432 = vsel %vm430, %v424, %v431
    %vm433 = vcmp.eq.s32.totalorder %v428, 2
    %v434 = vxor.u32 %v424, 2147483648
    %v435 = vsel %vm433, %v434, %v425
    %v436 = vsel %vm429, %v432, %v435
    %v437 = vsel %vm426, nan, %v436
    %v438 = vand.u32 2147483647, %v303
    %vm439 = vcmp.le.f32.partialorder %v438, 0.7853982
    %vm440 = vcmp.lt.s32.totalorder %v303, 0
    %v441 = vand.u32 %v303, 2139095040
    %v442 = vshrl.u32 %v441, 23
    %v443 = vsub.s32 %v442, 127
    %v444 = vand.u32 2147483647, %v303
    %v445 = vand.u32 %v444, 8388607
    %v446 = vor.u32 %v445, 8388608
    %v447 = vsub.s32 0, %v446
    %v448 = vadd.s32 %v443, 1
    %vm449 = vcmp.gt.s32.totalorder %v448, 0
    %v450 = vsel %vm449, %v448, 0
    %v451 = vshrl.u32 %v450, 5
    %v452 = vand.u32 %v450, 31
    %v453 = vsub.s32 32, %v452
    %v454 = vshrl.u32 683565275, %v453
    %v455 = vshll.u32 683565275, %v452
    %v456 = vshrl.u32 2475754826, %v453
    %v457 = vor.u32 %v455, %v456
    %v458 = vshll.u32 2475754826, %v452
    %v459 = vshrl.u32 2131351028, %v453
    %v460 = vor.u32 %v458, %v459
    %v461 = vshll.u32 2131351028, %v452
    %v462 = vshrl.u32 2102212464, %v453
    %v463 = vor.u32 %v461, %v462
    %v464 = vshll.u32 2102212464, %v452
    %v465 = vshrl.u32 920167782, %v453
    %v466 = vor.u32 %v464, %v465
    %v467 = vshll.u32 920167782, %v452
    %v468 = vshrl.u32 1326507024, %v453
    %v469 = vor.u32 %v467, %v468
    %vm470 = vcmp.lt.s32.totalorder %v451, 1
    %vm471 = vcmp.lt.s32.totalorder %v451, 2
    %vm472 = vcmp.lt.s32.totalorder %v451, 3
    %vm473 = vcmp.lt.s32.totalorder %v451, 4
    %v474 = vsel %vm470, %v454, %v457
    %v475 = vsel %vm473, %v463, 2102212464
    %v476 = vsel %vm472, %v460, %v475
    %v477 = vsel %vm471, %v474, %v476
    %v478 = vsel %vm470, %v457, %v460
    %v479 = vsel %vm473, %v466, 920167782
    %v480 = vsel %vm472, %v463, %v479
    %v481 = vsel %vm471, %v478, %v480
    %v482 = vsel %vm470, %v460, %v463
    %v483 = vsel %vm473, %v469, 1326507024
    %v484 = vsel %vm472, %v466, %v483
    %v485 = vsel %vm471, %v482, %v484
    %v486 = vshll.u32 %v446, 8
    %v487 = vmul.u32.u64.compose %v486, %v485
    %v488 = vextract.low.u32 %v487
    %v489 = vextract.high.u32 %v487
    %v490 = vmul.u32.u64.compose %v486, %v481
    %v491 = vextract.low.u32 %v490
    %v492 = vextract.high.u32 %v490
    %v493 = vmul.u32 %v486, %v477
    %v494 = vadd.s32 %v489, %v491
    %vm495 = vc.u32 %v489, %v491
    %v496 = vadd.s32 %v492, 1
    %v497 = vsel %vm495, %v496, %v492
    %v498 = vadd.s32 %v493, %v497
    %v499 = vadd.s32 %v498, 536870912
    %v500 = vshrl.u32 %v499, 30
    %v501 = vshll.u32 %v500, 30
    %v502 = vsub.s32 %v498, %v501
    %vm503 = vcmp.lt.s32.totalorder %v502, 0
    %v504 = vsub.s32 0, %v502
    %v505 = vsel %vm503, %v504, %v502
    %v506 = vclz %v505
    %v507 = vsub.s32 %v506, 2
    %vm508 = vcmp.gt.s32.totalorder 0, %v507
    %v509 = vsel %vm508, 0, %v507
    %v510 = vsub.s32 32, %v509
    %v511 = vshll.u32 %v502, %v509
    %v512 = vshrl.u32 %v494, %v510
    %v513 = vor.u32 %v511, %v512
    %v514 = vsub.s32 4294967266, %v509
    %v515 = vadd.s32 %v514, 127
    %v516 = vshll.u32 %v515, 23
    %v517 = vor.u32 4788187, %v516
    %v518 = vand.u32 2147483647, %v517
    %v520 = vcvt.s32.f32 %v513
    %v521 = vmul.f32 %v520, %v518
    %v522 = vxor.u32 %v521, 2147483648
    %v523 = vsel %vm440, %v522, %v521
    %v524 = vsub.s32 4, %v500
    %v525 = vsel %vm440, %v524, %v500
    %v526 = vsel %vm439, %v303, %v523
    %v527 = vsel %vm439, 0, %v525
    %v528 = vcosq.f32.pop %v526
    %v529 = vsinq.f32.pop %v526
    %vm530 = vweird.f32 %v303
    %v531 = vadd.s32 %v527, 3
    %v532 = vand.u32 %v531, 3
    %vm533 = vcmp.lt.s32.totalorder %v532, 2
    %vm534 = vcmp.eq.s32.totalorder %v532, 0
    %v535 = vxor.u32 %v529, 2147483648
    %v536 = vsel %vm534, %v528, %v535
    %vm537 = vcmp.eq.s32.totalorder %v532, 2
    %v538 = vxor.u32 %v528, 2147483648
    %v539 = vsel %vm537, %v538, %v529
    %v540 = vsel %vm533, %v536, %v539
    %v541 = vsel %vm530, nan, %v540
    %v542 = vand.u32 2147483647, %v304
    %vm543 = vcmp.le.f32.partialorder %v542, 0.7853982
    %vm544 = vcmp.lt.s32.totalorder %v304, 0
    %v545 = vand.u32 %v304, 2139095040
    %v546 = vshrl.u32 %v545, 23
    %v547 = vsub.s32 %v546, 127
    %v548 = vand.u32 2147483647, %v304
    %v549 = vand.u32 %v548, 8388607
    %v550 = vor.u32 %v549, 8388608
    %v551 = vsub.s32 0, %v550
    %v552 = vadd.s32 %v547, 1
    %vm553 = vcmp.gt.s32.totalorder %v552, 0
    %v554 = vsel %vm553, %v552, 0
    %v555 = vshrl.u32 %v554, 5
    %v556 = vand.u32 %v554, 31
    %v557 = vsub.s32 32, %v556
    %v558 = vshrl.u32 683565275, %v557
    %v559 = vshll.u32 683565275, %v556
    %v560 = vshrl.u32 2475754826, %v557
    %v561 = vor.u32 %v559, %v560
    %v562 = vshll.u32 2475754826, %v556
    %v563 = vshrl.u32 2131351028, %v557
    %v564 = vor.u32 %v562, %v563
    %v565 = vshll.u32 2131351028, %v556
    %v566 = vshrl.u32 2102212464, %v557
    %v567 = vor.u32 %v565, %v566
    %v568 = vshll.u32 2102212464, %v556
    %v569 = vshrl.u32 920167782, %v557
    %v570 = vor.u32 %v568, %v569
    %v571 = vshll.u32 920167782, %v556
    %v572 = vshrl.u32 1326507024, %v557
    %v573 = vor.u32 %v571, %v572
    %vm574 = vcmp.lt.s32.totalorder %v555, 1
    %vm575 = vcmp.lt.s32.totalorder %v555, 2
    %vm576 = vcmp.lt.s32.totalorder %v555, 3
    %vm577 = vcmp.lt.s32.totalorder %v555, 4
    %v578 = vsel %vm574, %v558, %v561
    %v579 = vsel %vm577, %v567, 2102212464
    %v580 = vsel %vm576, %v564, %v579
    %v581 = vsel %vm575, %v578, %v580
    %v582 = vsel %vm574, %v561, %v564
    %v583 = vsel %vm577, %v570, 920167782
    %v584 = vsel %vm576, %v567, %v583
    %v585 = vsel %vm575, %v582, %v584
    %v586 = vsel %vm574, %v564, %v567
    %v587 = vsel %vm577, %v573, 1326507024
    %v588 = vsel %vm576, %v570, %v587
    %v589 = vsel %vm575, %v586, %v588
    %v590 = vshll.u32 %v550, 8
    %v591 = vmul.u32.u64.compose %v590, %v589
    %v592 = vextract.low.u32 %v591
    %v593 = vextract.high.u32 %v591
    %v594 = vmul.u32.u64.compose %v590, %v585
    %v595 = vextract.low.u32 %v594
    %v596 = vextract.high.u32 %v594
    %v597 = vmul.u32 %v590, %v581
    %v598 = vadd.s32 %v593, %v595
    %vm599 = vc.u32 %v593, %v595
    %v600 = vadd.s32 %v596, 1
    %v601 = vsel %vm599, %v600, %v596
    %v602 = vadd.s32 %v597, %v601
    %v603 = vadd.s32 %v602, 536870912
    %v604 = vshrl.u32 %v603, 30
    %v605 = vshll.u32 %v604, 30
    %v606 = vsub.s32 %v602, %v605
    %vm607 = vcmp.lt.s32.totalorder %v606, 0
    %v608 = vsub.s32 0, %v606
    %v609 = vsel %vm607, %v608, %v606
    %v610 = vclz %v609
    %v611 = vsub.s32 %v610, 2
    %vm612 = vcmp.gt.s32.totalorder 0, %v611
    %v613 = vsel %vm612, 0, %v611
    %v614 = vsub.s32 32, %v613
    %v615 = vshll.u32 %v606, %v613
    %v616 = vshrl.u32 %v598, %v614
    %v617 = vor.u32 %v615, %v616
    %v618 = vsub.s32 4294967266, %v613
    %v619 = vadd.s32 %v618, 127
    %v620 = vshll.u32 %v619, 23
    %v621 = vor.u32 4788187, %v620
    %v622 = vand.u32 2147483647, %v621
    %v624 = vcvt.s32.f32 %v617
    %v625 = vmul.f32 %v624, %v622
    %v626 = vxor.u32 %v625, 2147483648
    %v627 = vsel %vm544, %v626, %v625
    %v628 = vsub.s32 4, %v604
    %v629 = vsel %vm544, %v628, %v604
    %v630 = vsel %vm543, %v304, %v627
    %v631 = vsel %vm543, 0, %v629
    %v632 = vcosq.f32.pop %v630
    %v633 = vsinq.f32.pop %v630
    %vm634 = vweird.f32 %v304
    %v635 = vadd.s32 %v631, 3
    %v636 = vand.u32 %v635, 3
    %vm637 = vcmp.lt.s32.totalorder %v636, 2
    %vm638 = vcmp.eq.s32.totalorder %v636, 0
    %v639 = vxor.u32 %v633, 2147483648
    %v640 = vsel %vm638, %v632, %v639
    %vm641 = vcmp.eq.s32.totalorder %v636, 2
    %v642 = vxor.u32 %v632, 2147483648
    %v643 = vsel %vm641, %v642, %v633
    %v644 = vsel %vm637, %v640, %v643
    %v645 = vsel %vm634, nan, %v644
    %v646 = vand.u32 2147483647, %v305
    %vm647 = vcmp.le.f32.partialorder %v646, 0.7853982
    %vm648 = vcmp.lt.s32.totalorder %v305, 0
    %v649 = vand.u32 %v305, 2139095040
    %v650 = vshrl.u32 %v649, 23
    %v651 = vsub.s32 %v650, 127
    %v652 = vand.u32 2147483647, %v305
    %v653 = vand.u32 %v652, 8388607
    %v654 = vor.u32 %v653, 8388608
    %v655 = vsub.s32 0, %v654
    %v656 = vadd.s32 %v651, 1
    %vm657 = vcmp.gt.s32.totalorder %v656, 0
    %v658 = vsel %vm657, %v656, 0
    %v659 = vshrl.u32 %v658, 5
    %v660 = vand.u32 %v658, 31
    %v661 = vsub.s32 32, %v660
    %v662 = vshrl.u32 683565275, %v661
    %v663 = vshll.u32 683565275, %v660
    %v664 = vshrl.u32 2475754826, %v661
    %v665 = vor.u32 %v663, %v664
    %v666 = vshll.u32 2475754826, %v660
    %v667 = vshrl.u32 2131351028, %v661
    %v668 = vor.u32 %v666, %v667
    %v669 = vshll.u32 2131351028, %v660
    %v670 = vshrl.u32 2102212464, %v661
    %v671 = vor.u32 %v669, %v670
    %v672 = vshll.u32 2102212464, %v660
    %v673 = vshrl.u32 920167782, %v661
    %v674 = vor.u32 %v672, %v673
    %v675 = vshll.u32 920167782, %v660
    %v676 = vshrl.u32 1326507024, %v661
    %v677 = vor.u32 %v675, %v676
    %vm678 = vcmp.lt.s32.totalorder %v659, 1
    %vm679 = vcmp.lt.s32.totalorder %v659, 2
    %vm680 = vcmp.lt.s32.totalorder %v659, 3
    %vm681 = vcmp.lt.s32.totalorder %v659, 4
    %v682 = vsel %vm678, %v662, %v665
    %v683 = vsel %vm681, %v671, 2102212464
    %v684 = vsel %vm680, %v668, %v683
    %v685 = vsel %vm679, %v682, %v684
    %v686 = vsel %vm678, %v665, %v668
    %v687 = vsel %vm681, %v674, 920167782
    %v688 = vsel %vm680, %v671, %v687
    %v689 = vsel %vm679, %v686, %v688
    %v690 = vsel %vm678, %v668, %v671
    %v691 = vsel %vm681, %v677, 1326507024
    %v692 = vsel %vm680, %v674, %v691
    %v693 = vsel %vm679, %v690, %v692
    %v694 = vshll.u32 %v654, 8
    %v695 = vmul.u32.u64.compose %v694, %v693
    %v696 = vextract.low.u32 %v695
    %v697 = vextract.high.u32 %v695
    %v698 = vmul.u32.u64.compose %v694, %v689
    %v699 = vextract.low.u32 %v698
    %v700 = vextract.high.u32 %v698
    %v701 = vmul.u32 %v694, %v685
    %v702 = vadd.s32 %v697, %v699
    %vm703 = vc.u32 %v697, %v699
    %v704 = vadd.s32 %v700, 1
    %v705 = vsel %vm703, %v704, %v700
    %v706 = vadd.s32 %v701, %v705
    %v707 = vadd.s32 %v706, 536870912
    %v708 = vshrl.u32 %v707, 30
    %v709 = vshll.u32 %v708, 30
    %v710 = vsub.s32 %v706, %v709
    %vm711 = vcmp.lt.s32.totalorder %v710, 0
    %v712 = vsub.s32 0, %v710
    %v713 = vsel %vm711, %v712, %v710
    %v714 = vclz %v713
    %v715 = vsub.s32 %v714, 2
    %vm716 = vcmp.gt.s32.totalorder 0, %v715
    %v717 = vsel %vm716, 0, %v715
    %v718 = vsub.s32 32, %v717
    %v719 = vshll.u32 %v710, %v717
    %v720 = vshrl.u32 %v702, %v718
    %v721 = vor.u32 %v719, %v720
    %v722 = vsub.s32 4294967266, %v717
    %v723 = vadd.s32 %v722, 127
    %v724 = vshll.u32 %v723, 23
    %v725 = vor.u32 4788187, %v724
    %v726 = vand.u32 2147483647, %v725
    %v728 = vcvt.s32.f32 %v721
    %v729 = vmul.f32 %v728, %v726
    %v730 = vxor.u32 %v729, 2147483648
    %v731 = vsel %vm648, %v730, %v729
    %v732 = vsub.s32 4, %v708
    %v733 = vsel %vm648, %v732, %v708
    %v734 = vsel %vm647, %v305, %v731
    %v735 = vsel %vm647, 0, %v733
    %v736 = vcosq.f32.pop %v734
    %v737 = vsinq.f32.pop %v734
    %vm738 = vweird.f32 %v305
    %v739 = vadd.s32 %v735, 3
    %v740 = vand.u32 %v739, 3
    %vm741 = vcmp.lt.s32.totalorder %v740, 2
    %vm742 = vcmp.eq.s32.totalorder %v740, 0
    %v743 = vxor.u32 %v737, 2147483648
    %v744 = vsel %vm742, %v736, %v743
    %vm745 = vcmp.eq.s32.totalorder %v740, 2
    %v746 = vxor.u32 %v736, 2147483648
    %v747 = vsel %vm745, %v746, %v737
    %v748 = vsel %vm741, %v744, %v747
    %v749 = vsel %vm738, nan, %v748
    %v750 = vand.u32 2147483647, %v306
    %vm751 = vcmp.le.f32.partialorder %v750, 0.7853982
    %vm752 = vcmp.lt.s32.totalorder %v306, 0
    %v753 = vand.u32 %v306, 2139095040
    %v754 = vshrl.u32 %v753, 23
    %v755 = vsub.s32 %v754, 127
    %v756 = vand.u32 2147483647, %v306
    %v757 = vand.u32 %v756, 8388607
    %v758 = vor.u32 %v757, 8388608
    %v759 = vsub.s32 0, %v758
    %v760 = vadd.s32 %v755, 1
    %vm761 = vcmp.gt.s32.totalorder %v760, 0
    %v762 = vsel %vm761, %v760, 0
    %v763 = vshrl.u32 %v762, 5
    %v764 = vand.u32 %v762, 31
    %v765 = vsub.s32 32, %v764
    %v766 = vshrl.u32 683565275, %v765
    %v767 = vshll.u32 683565275, %v764
    %v768 = vshrl.u32 2475754826, %v765
    %v769 = vor.u32 %v767, %v768
    %v770 = vshll.u32 2475754826, %v764
    %v771 = vshrl.u32 2131351028, %v765
    %v772 = vor.u32 %v770, %v771
    %v773 = vshll.u32 2131351028, %v764
    %v774 = vshrl.u32 2102212464, %v765
    %v775 = vor.u32 %v773, %v774
    %v776 = vshll.u32 2102212464, %v764
    %v777 = vshrl.u32 920167782, %v765
    %v778 = vor.u32 %v776, %v777
    %v779 = vshll.u32 920167782, %v764
    %v780 = vshrl.u32 1326507024, %v765
    %v781 = vor.u32 %v779, %v780
    %vm782 = vcmp.lt.s32.totalorder %v763, 1
    %vm783 = vcmp.lt.s32.totalorder %v763, 2
    %vm784 = vcmp.lt.s32.totalorder %v763, 3
    %vm785 = vcmp.lt.s32.totalorder %v763, 4
    %v786 = vsel %vm782, %v766, %v769
    %v787 = vsel %vm785, %v775, 2102212464
    %v788 = vsel %vm784, %v772, %v787
    %v789 = vsel %vm783, %v786, %v788
    %v790 = vsel %vm782, %v769, %v772
    %v791 = vsel %vm785, %v778, 920167782
    %v792 = vsel %vm784, %v775, %v791
    %v793 = vsel %vm783, %v790, %v792
    %v794 = vsel %vm782, %v772, %v775
    %v795 = vsel %vm785, %v781, 1326507024
    %v796 = vsel %vm784, %v778, %v795
    %v797 = vsel %vm783, %v794, %v796
    %v798 = vshll.u32 %v758, 8
    %v799 = vmul.u32.u64.compose %v798, %v797
    %v800 = vextract.low.u32 %v799
    %v801 = vextract.high.u32 %v799
    %v802 = vmul.u32.u64.compose %v798, %v793
    %v803 = vextract.low.u32 %v802
    %v804 = vextract.high.u32 %v802
    %v805 = vmul.u32 %v798, %v789
    %v806 = vadd.s32 %v801, %v803
    %vm807 = vc.u32 %v801, %v803
    %v808 = vadd.s32 %v804, 1
    %v809 = vsel %vm807, %v808, %v804
    %v810 = vadd.s32 %v805, %v809
    %v811 = vadd.s32 %v810, 536870912
    %v812 = vshrl.u32 %v811, 30
    %v813 = vshll.u32 %v812, 30
    %v814 = vsub.s32 %v810, %v813
    %vm815 = vcmp.lt.s32.totalorder %v814, 0
    %v816 = vsub.s32 0, %v814
    %v817 = vsel %vm815, %v816, %v814
    %v818 = vclz %v817
    %v819 = vsub.s32 %v818, 2
    %vm820 = vcmp.gt.s32.totalorder 0, %v819
    %v821 = vsel %vm820, 0, %v819
    %v822 = vsub.s32 32, %v821
    %v823 = vshll.u32 %v814, %v821
    %v824 = vshrl.u32 %v806, %v822
    %v825 = vor.u32 %v823, %v824
    %v826 = vsub.s32 4294967266, %v821
    %v827 = vadd.s32 %v826, 127
    %v828 = vshll.u32 %v827, 23
    %v829 = vor.u32 4788187, %v828
    %v830 = vand.u32 2147483647, %v829
    %v832 = vcvt.s32.f32 %v825
    %v833 = vmul.f32 %v832, %v830
    %v834 = vxor.u32 %v833, 2147483648
    %v835 = vsel %vm752, %v834, %v833
    %v836 = vsub.s32 4, %v812
    %v837 = vsel %vm752, %v836, %v812
    %v838 = vsel %vm751, %v306, %v835
    %v839 = vsel %vm751, 0, %v837
    %v840 = vcosq.f32.pop %v838
    %v841 = vsinq.f32.pop %v838
    %vm842 = vweird.f32 %v306
    %v843 = vadd.s32 %v839, 3
    %v844 = vand.u32 %v843, 3
    %vm845 = vcmp.lt.s32.totalorder %v844, 2
    %vm846 = vcmp.eq.s32.totalorder %v844, 0
    %v847 = vxor.u32 %v841, 2147483648
    %v848 = vsel %vm846, %v840, %v847
    %vm849 = vcmp.eq.s32.totalorder %v844, 2
    %v850 = vxor.u32 %v840, 2147483648
    %v851 = vsel %vm849, %v850, %v841
    %v852 = vsel %vm845, %v848, %v851
    %v853 = vsel %vm842, nan, %v852
    %v854 = vand.u32 2147483647, %v307
    %vm855 = vcmp.le.f32.partialorder %v854, 0.7853982
    %vm856 = vcmp.lt.s32.totalorder %v307, 0
    %v857 = vand.u32 %v307, 2139095040
    %v858 = vshrl.u32 %v857, 23
    %v859 = vsub.s32 %v858, 127
    %v860 = vand.u32 2147483647, %v307
    %v861 = vand.u32 %v860, 8388607
    %v862 = vor.u32 %v861, 8388608
    %v863 = vsub.s32 0, %v862
    %v864 = vadd.s32 %v859, 1
    %vm865 = vcmp.gt.s32.totalorder %v864, 0
    %v866 = vsel %vm865, %v864, 0
    %v867 = vshrl.u32 %v866, 5
    %v868 = vand.u32 %v866, 31
    %v869 = vsub.s32 32, %v868
    %v870 = vshrl.u32 683565275, %v869
    %v871 = vshll.u32 683565275, %v868
    %v872 = vshrl.u32 2475754826, %v869
    %v873 = vor.u32 %v871, %v872
    %v874 = vshll.u32 2475754826, %v868
    %v875 = vshrl.u32 2131351028, %v869
    %v876 = vor.u32 %v874, %v875
    %v877 = vshll.u32 2131351028, %v868
    %v878 = vshrl.u32 2102212464, %v869
    %v879 = vor.u32 %v877, %v878
    %v880 = vshll.u32 2102212464, %v868
    %v881 = vshrl.u32 920167782, %v869
    %v882 = vor.u32 %v880, %v881
    %v883 = vshll.u32 920167782, %v868
    %v884 = vshrl.u32 1326507024, %v869
    %v885 = vor.u32 %v883, %v884
    %vm886 = vcmp.lt.s32.totalorder %v867, 1
    %vm887 = vcmp.lt.s32.totalorder %v867, 2
    %vm888 = vcmp.lt.s32.totalorder %v867, 3
    %vm889 = vcmp.lt.s32.totalorder %v867, 4
    %v890 = vsel %vm886, %v870, %v873
    %v891 = vsel %vm889, %v879, 2102212464
    %v892 = vsel %vm888, %v876, %v891
    %v893 = vsel %vm887, %v890, %v892
    %v894 = vsel %vm886, %v873, %v876
    %v895 = vsel %vm889, %v882, 920167782
    %v896 = vsel %vm888, %v879, %v895
    %v897 = vsel %vm887, %v894, %v896
    %v898 = vsel %vm886, %v876, %v879
    %v899 = vsel %vm889, %v885, 1326507024
    %v900 = vsel %vm888, %v882, %v899
    %v901 = vsel %vm887, %v898, %v900
    %v902 = vshll.u32 %v862, 8
    %v903 = vmul.u32.u64.compose %v902, %v901
    %v904 = vextract.low.u32 %v903
    %v905 = vextract.high.u32 %v903
    %v906 = vmul.u32.u64.compose %v902, %v897
    %v907 = vextract.low.u32 %v906
    %v908 = vextract.high.u32 %v906
    %v909 = vmul.u32 %v902, %v893
    %v910 = vadd.s32 %v905, %v907
    %vm911 = vc.u32 %v905, %v907
    %v912 = vadd.s32 %v908, 1
    %v913 = vsel %vm911, %v912, %v908
    %v914 = vadd.s32 %v909, %v913
    %v915 = vadd.s32 %v914, 536870912
    %v916 = vshrl.u32 %v915, 30
    %v917 = vshll.u32 %v916, 30
    %v918 = vsub.s32 %v914, %v917
    %vm919 = vcmp.lt.s32.totalorder %v918, 0
    %v920 = vsub.s32 0, %v918
    %v921 = vsel %vm919, %v920, %v918
    %v922 = vclz %v921
    %v923 = vsub.s32 %v922, 2
    %vm924 = vcmp.gt.s32.totalorder 0, %v923
    %v925 = vsel %vm924, 0, %v923
    %v926 = vsub.s32 32, %v925
    %v927 = vshll.u32 %v918, %v925
    %v928 = vshrl.u32 %v910, %v926
    %v929 = vor.u32 %v927, %v928
    %v930 = vsub.s32 4294967266, %v925
    %v931 = vadd.s32 %v930, 127
    %v932 = vshll.u32 %v931, 23
    %v933 = vor.u32 4788187, %v932
    %v934 = vand.u32 2147483647, %v933
    %v936 = vcvt.s32.f32 %v929
    %v937 = vmul.f32 %v936, %v934
    %v938 = vxor.u32 %v937, 2147483648
    %v939 = vsel %vm856, %v938, %v937
    %v940 = vsub.s32 4, %v916
    %v941 = vsel %vm856, %v940, %v916
    %v942 = vsel %vm855, %v307, %v939
    %v943 = vsel %vm855, 0, %v941
    %v944 = vcosq.f32.pop %v942
    %v945 = vsinq.f32.pop %v942
    %vm946 = vweird.f32 %v307
    %v947 = vadd.s32 %v943, 3
    %v948 = vand.u32 %v947, 3
    %vm949 = vcmp.lt.s32.totalorder %v948, 2
    %vm950 = vcmp.eq.s32.totalorder %v948, 0
    %v951 = vxor.u32 %v945, 2147483648
    %v952 = vsel %vm950, %v944, %v951
    %vm953 = vcmp.eq.s32.totalorder %v948, 2
    %v954 = vxor.u32 %v944, 2147483648
    %v955 = vsel %vm953, %v954, %v945
    %v956 = vsel %vm949, %v952, %v955
    %v957 = vsel %vm946, nan, %v956
    %v958 = vand.u32 2147483647, %v308
    %vm959 = vcmp.le.f32.partialorder %v958, 0.7853982
    %vm960 = vcmp.lt.s32.totalorder %v308, 0
    %v961 = vand.u32 %v308, 2139095040
    %v962 = vshrl.u32 %v961, 23
    %v963 = vsub.s32 %v962, 127
    %v964 = vand.u32 2147483647, %v308
    %v965 = vand.u32 %v964, 8388607
    %v966 = vor.u32 %v965, 8388608
    %v967 = vsub.s32 0, %v966
    %v968 = vadd.s32 %v963, 1
    %vm969 = vcmp.gt.s32.totalorder %v968, 0
    %v970 = vsel %vm969, %v968, 0
    %v971 = vshrl.u32 %v970, 5
    %v972 = vand.u32 %v970, 31
    %v973 = vsub.s32 32, %v972
    %v974 = vshrl.u32 683565275, %v973
    %v975 = vshll.u32 683565275, %v972
    %v976 = vshrl.u32 2475754826, %v973
    %v977 = vor.u32 %v975, %v976
    %v978 = vshll.u32 2475754826, %v972
    %v979 = vshrl.u32 2131351028, %v973
    %v980 = vor.u32 %v978, %v979
    %v981 = vshll.u32 2131351028, %v972
    %v982 = vshrl.u32 2102212464, %v973
    %v983 = vor.u32 %v981, %v982
    %v984 = vshll.u32 2102212464, %v972
    %v985 = vshrl.u32 920167782, %v973
    %v986 = vor.u32 %v984, %v985
    %v987 = vshll.u32 920167782, %v972
    %v988 = vshrl.u32 1326507024, %v973
    %v989 = vor.u32 %v987, %v988
    %vm990 = vcmp.lt.s32.totalorder %v971, 1
    %vm991 = vcmp.lt.s32.totalorder %v971, 2
    %vm992 = vcmp.lt.s32.totalorder %v971, 3
    %vm993 = vcmp.lt.s32.totalorder %v971, 4
    %v994 = vsel %vm990, %v974, %v977
    %v995 = vsel %vm993, %v983, 2102212464
    %v996 = vsel %vm992, %v980, %v995
    %v997 = vsel %vm991, %v994, %v996
    %v998 = vsel %vm990, %v977, %v980
    %v999 = vsel %vm993, %v986, 920167782
    %v1000 = vsel %vm992, %v983, %v999
    %v1001 = vsel %vm991, %v998, %v1000
    %v1002 = vsel %vm990, %v980, %v983
    %v1003 = vsel %vm993, %v989, 1326507024
    %v1004 = vsel %vm992, %v986, %v1003
    %v1005 = vsel %vm991, %v1002, %v1004
    %v1006 = vshll.u32 %v966, 8
    %v1007 = vmul.u32.u64.compose %v1006, %v1005
    %v1008 = vextract.low.u32 %v1007
    %v1009 = vextract.high.u32 %v1007
    %v1010 = vmul.u32.u64.compose %v1006, %v1001
    %v1011 = vextract.low.u32 %v1010
    %v1012 = vextract.high.u32 %v1010
    %v1013 = vmul.u32 %v1006, %v997
    %v1014 = vadd.s32 %v1009, %v1011
    %vm1015 = vc.u32 %v1009, %v1011
    %v1016 = vadd.s32 %v1012, 1
    %v1017 = vsel %vm1015, %v1016, %v1012
    %v1018 = vadd.s32 %v1013, %v1017
    %v1019 = vadd.s32 %v1018, 536870912
    %v1020 = vshrl.u32 %v1019, 30
    %v1021 = vshll.u32 %v1020, 30
    %v1022 = vsub.s32 %v1018, %v1021
    %vm1023 = vcmp.lt.s32.totalorder %v1022, 0
    %v1024 = vsub.s32 0, %v1022
    %v1025 = vsel %vm1023, %v1024, %v1022
    %v1026 = vclz %v1025
    %v1027 = vsub.s32 %v1026, 2
    %vm1028 = vcmp.gt.s32.totalorder 0, %v1027
    %v1029 = vsel %vm1028, 0, %v1027
    %v1030 = vsub.s32 32, %v1029
    %v1031 = vshll.u32 %v1022, %v1029
    %v1032 = vshrl.u32 %v1014, %v1030
    %v1033 = vor.u32 %v1031, %v1032
    %v1034 = vsub.s32 4294967266, %v1029
    %v1035 = vadd.s32 %v1034, 127
    %v1036 = vshll.u32 %v1035, 23
    %v1037 = vor.u32 4788187, %v1036
    %v1038 = vand.u32 2147483647, %v1037
    %v1040 = vcvt.s32.f32 %v1033
    %v1041 = vmul.f32 %v1040, %v1038
    %v1042 = vxor.u32 %v1041, 2147483648
    %v1043 = vsel %vm960, %v1042, %v1041
    %v1044 = vsub.s32 4, %v1020
    %v1045 = vsel %vm960, %v1044, %v1020
    %v1046 = vsel %vm959, %v308, %v1043
    %v1047 = vsel %vm959, 0, %v1045
    %v1048 = vcosq.f32.pop %v1046
    %v1049 = vsinq.f32.pop %v1046
    %vm1050 = vweird.f32 %v308
    %v1051 = vadd.s32 %v1047, 3
    %v1052 = vand.u32 %v1051, 3
    %vm1053 = vcmp.lt.s32.totalorder %v1052, 2
    %vm1054 = vcmp.eq.s32.totalorder %v1052, 0
    %v1055 = vxor.u32 %v1049, 2147483648
    %v1056 = vsel %vm1054, %v1048, %v1055
    %vm1057 = vcmp.eq.s32.totalorder %v1052, 2
    %v1058 = vxor.u32 %v1048, 2147483648
    %v1059 = vsel %vm1057, %v1058, %v1049
    %v1060 = vsel %vm1053, %v1056, %v1059
    %v1061 = vsel %vm1050, nan, %v1060
    %v1062 = vand.u32 2147483647, %v309
    %vm1063 = vcmp.le.f32.partialorder %v1062, 0.7853982
    %vm1064 = vcmp.lt.s32.totalorder %v309, 0
    %v1065 = vand.u32 %v309, 2139095040
    %v1066 = vshrl.u32 %v1065, 23
    %v1067 = vsub.s32 %v1066, 127
    %v1068 = vand.u32 2147483647, %v309
    %v1069 = vand.u32 %v1068, 8388607
    %v1070 = vor.u32 %v1069, 8388608
    %v1071 = vsub.s32 0, %v1070
    %v1072 = vadd.s32 %v1067, 1
    %vm1073 = vcmp.gt.s32.totalorder %v1072, 0
    %v1074 = vsel %vm1073, %v1072, 0
    %v1075 = vshrl.u32 %v1074, 5
    %v1076 = vand.u32 %v1074, 31
    %v1077 = vsub.s32 32, %v1076
    %v1078 = vshrl.u32 683565275, %v1077
    %v1079 = vshll.u32 683565275, %v1076
    %v1080 = vshrl.u32 2475754826, %v1077
    %v1081 = vor.u32 %v1079, %v1080
    %v1082 = vshll.u32 2475754826, %v1076
    %v1083 = vshrl.u32 2131351028, %v1077
    %v1084 = vor.u32 %v1082, %v1083
    %v1085 = vshll.u32 2131351028, %v1076
    %v1086 = vshrl.u32 2102212464, %v1077
    %v1087 = vor.u32 %v1085, %v1086
    %v1088 = vshll.u32 2102212464, %v1076
    %v1089 = vshrl.u32 920167782, %v1077
    %v1090 = vor.u32 %v1088, %v1089
    %v1091 = vshll.u32 920167782, %v1076
    %v1092 = vshrl.u32 1326507024, %v1077
    %v1093 = vor.u32 %v1091, %v1092
    %vm1094 = vcmp.lt.s32.totalorder %v1075, 1
    %vm1095 = vcmp.lt.s32.totalorder %v1075, 2
    %vm1096 = vcmp.lt.s32.totalorder %v1075, 3
    %vm1097 = vcmp.lt.s32.totalorder %v1075, 4
    %v1098 = vsel %vm1094, %v1078, %v1081
    %v1099 = vsel %vm1097, %v1087, 2102212464
    %v1100 = vsel %vm1096, %v1084, %v1099
    %v1101 = vsel %vm1095, %v1098, %v1100
    %v1102 = vsel %vm1094, %v1081, %v1084
    %v1103 = vsel %vm1097, %v1090, 920167782
    %v1104 = vsel %vm1096, %v1087, %v1103
    %v1105 = vsel %vm1095, %v1102, %v1104
    %v1106 = vsel %vm1094, %v1084, %v1087
    %v1107 = vsel %vm1097, %v1093, 1326507024
    %v1108 = vsel %vm1096, %v1090, %v1107
    %v1109 = vsel %vm1095, %v1106, %v1108
    %v1110 = vshll.u32 %v1070, 8
    %v1111 = vmul.u32.u64.compose %v1110, %v1109
    %v1112 = vextract.low.u32 %v1111
    %v1113 = vextract.high.u32 %v1111
    %v1114 = vmul.u32.u64.compose %v1110, %v1105
    %v1115 = vextract.low.u32 %v1114
    %v1116 = vextract.high.u32 %v1114
    %v1117 = vmul.u32 %v1110, %v1101
    %v1118 = vadd.s32 %v1113, %v1115
    %vm1119 = vc.u32 %v1113, %v1115
    %v1120 = vadd.s32 %v1116, 1
    %v1121 = vsel %vm1119, %v1120, %v1116
    %v1122 = vadd.s32 %v1117, %v1121
    %v1123 = vadd.s32 %v1122, 536870912
    %v1124 = vshrl.u32 %v1123, 30
    %v1125 = vshll.u32 %v1124, 30
    %v1126 = vsub.s32 %v1122, %v1125
    %vm1127 = vcmp.lt.s32.totalorder %v1126, 0
    %v1128 = vsub.s32 0, %v1126
    %v1129 = vsel %vm1127, %v1128, %v1126
    %v1130 = vclz %v1129
    %v1131 = vsub.s32 %v1130, 2
    %vm1132 = vcmp.gt.s32.totalorder 0, %v1131
    %v1133 = vsel %vm1132, 0, %v1131
    %v1134 = vsub.s32 32, %v1133
    %v1135 = vshll.u32 %v1126, %v1133
    %v1136 = vshrl.u32 %v1118, %v1134
    %v1137 = vor.u32 %v1135, %v1136
    %v1138 = vsub.s32 4294967266, %v1133
    %v1139 = vadd.s32 %v1138, 127
    %v1140 = vshll.u32 %v1139, 23
    %v1141 = vor.u32 4788187, %v1140
    %v1142 = vand.u32 2147483647, %v1141
    %v1144 = vcvt.s32.f32 %v1137
    %v1145 = vmul.f32 %v1144, %v1142
    %v1146 = vxor.u32 %v1145, 2147483648
    %v1147 = vsel %vm1064, %v1146, %v1145
    %v1148 = vsub.s32 4, %v1124
    %v1149 = vsel %vm1064, %v1148, %v1124
    %v1150 = vsel %vm1063, %v309, %v1147
    %v1151 = vsel %vm1063, 0, %v1149
    %v1152 = vcosq.f32.pop %v1150
    %v1153 = vsinq.f32.pop %v1150
    %vm1154 = vweird.f32 %v309
    %v1155 = vadd.s32 %v1151, 3
    %v1156 = vand.u32 %v1155, 3
    %vm1157 = vcmp.lt.s32.totalorder %v1156, 2
    %vm1158 = vcmp.eq.s32.totalorder %v1156, 0
    %v1159 = vxor.u32 %v1153, 2147483648
    %v1160 = vsel %vm1158, %v1152, %v1159
    %vm1161 = vcmp.eq.s32.totalorder %v1156, 2
    %v1162 = vxor.u32 %v1152, 2147483648
    %v1163 = vsel %vm1161, %v1162, %v1153
    %v1164 = vsel %vm1157, %v1160, %v1163
    %v1165 = vsel %vm1154, nan, %v1164
    %v1166 = vand.u32 2147483647, %v310
    %vm1167 = vcmp.le.f32.partialorder %v1166, 0.7853982
    %vm1168 = vcmp.lt.s32.totalorder %v310, 0
    %v1169 = vand.u32 %v310, 2139095040
    %v1170 = vshrl.u32 %v1169, 23
    %v1171 = vsub.s32 %v1170, 127
    %v1172 = vand.u32 2147483647, %v310
    %v1173 = vand.u32 %v1172, 8388607
    %v1174 = vor.u32 %v1173, 8388608
    %v1175 = vsub.s32 0, %v1174
    %v1176 = vadd.s32 %v1171, 1
    %vm1177 = vcmp.gt.s32.totalorder %v1176, 0
    %v1178 = vsel %vm1177, %v1176, 0
    %v1179 = vshrl.u32 %v1178, 5
    %v1180 = vand.u32 %v1178, 31
    %v1181 = vsub.s32 32, %v1180
    %v1182 = vshrl.u32 683565275, %v1181
    %v1183 = vshll.u32 683565275, %v1180
    %v1184 = vshrl.u32 2475754826, %v1181
    %v1185 = vor.u32 %v1183, %v1184
    %v1186 = vshll.u32 2475754826, %v1180
    %v1187 = vshrl.u32 2131351028, %v1181
    %v1188 = vor.u32 %v1186, %v1187
    %v1189 = vshll.u32 2131351028, %v1180
    %v1190 = vshrl.u32 2102212464, %v1181
    %v1191 = vor.u32 %v1189, %v1190
    %v1192 = vshll.u32 2102212464, %v1180
    %v1193 = vshrl.u32 920167782, %v1181
    %v1194 = vor.u32 %v1192, %v1193
    %v1195 = vshll.u32 920167782, %v1180
    %v1196 = vshrl.u32 1326507024, %v1181
    %v1197 = vor.u32 %v1195, %v1196
    %vm1198 = vcmp.lt.s32.totalorder %v1179, 1
    %vm1199 = vcmp.lt.s32.totalorder %v1179, 2
    %vm1200 = vcmp.lt.s32.totalorder %v1179, 3
    %vm1201 = vcmp.lt.s32.totalorder %v1179, 4
    %v1202 = vsel %vm1198, %v1182, %v1185
    %v1203 = vsel %vm1201, %v1191, 2102212464
    %v1204 = vsel %vm1200, %v1188, %v1203
    %v1205 = vsel %vm1199, %v1202, %v1204
    %v1206 = vsel %vm1198, %v1185, %v1188
    %v1207 = vsel %vm1201, %v1194, 920167782
    %v1208 = vsel %vm1200, %v1191, %v1207
    %v1209 = vsel %vm1199, %v1206, %v1208
    %v1210 = vsel %vm1198, %v1188, %v1191
    %v1211 = vsel %vm1201, %v1197, 1326507024
    %v1212 = vsel %vm1200, %v1194, %v1211
    %v1213 = vsel %vm1199, %v1210, %v1212
    %v1214 = vshll.u32 %v1174, 8
    %v1215 = vmul.u32.u64.compose %v1214, %v1213
    %v1216 = vextract.low.u32 %v1215
    %v1217 = vextract.high.u32 %v1215
    %v1218 = vmul.u32.u64.compose %v1214, %v1209
    %v1219 = vextract.low.u32 %v1218
    %v1220 = vextract.high.u32 %v1218
    %v1221 = vmul.u32 %v1214, %v1205
    %v1222 = vadd.s32 %v1217, %v1219
    %vm1223 = vc.u32 %v1217, %v1219
    %v1224 = vadd.s32 %v1220, 1
    %v1225 = vsel %vm1223, %v1224, %v1220
    %v1226 = vadd.s32 %v1221, %v1225
    %v1227 = vadd.s32 %v1226, 536870912
    %v1228 = vshrl.u32 %v1227, 30
    %v1229 = vshll.u32 %v1228, 30
    %v1230 = vsub.s32 %v1226, %v1229
    %vm1231 = vcmp.lt.s32.totalorder %v1230, 0
    %v1232 = vsub.s32 0, %v1230
    %v1233 = vsel %vm1231, %v1232, %v1230
    %v1234 = vclz %v1233
    %v1235 = vsub.s32 %v1234, 2
    %vm1236 = vcmp.gt.s32.totalorder 0, %v1235
    %v1237 = vsel %vm1236, 0, %v1235
    %v1238 = vsub.s32 32, %v1237
    %v1239 = vshll.u32 %v1230, %v1237
    %v1240 = vshrl.u32 %v1222, %v1238
    %v1241 = vor.u32 %v1239, %v1240
    %v1242 = vsub.s32 4294967266, %v1237
    %v1243 = vadd.s32 %v1242, 127
    %v1244 = vshll.u32 %v1243, 23
    %v1245 = vor.u32 4788187, %v1244
    %v1246 = vand.u32 2147483647, %v1245
    %v1248 = vcvt.s32.f32 %v1241
    %v1249 = vmul.f32 %v1248, %v1246
    %v1250 = vxor.u32 %v1249, 2147483648
    %v1251 = vsel %vm1168, %v1250, %v1249
    %v1252 = vsub.s32 4, %v1228
    %v1253 = vsel %vm1168, %v1252, %v1228
    %v1254 = vsel %vm1167, %v310, %v1251
    %v1255 = vsel %vm1167, 0, %v1253
    %v1256 = vcosq.f32.pop %v1254
    %v1257 = vsinq.f32.pop %v1254
    %vm1258 = vweird.f32 %v310
    %v1259 = vadd.s32 %v1255, 3
    %v1260 = vand.u32 %v1259, 3
    %vm1261 = vcmp.lt.s32.totalorder %v1260, 2
    %vm1262 = vcmp.eq.s32.totalorder %v1260, 0
    %v1263 = vxor.u32 %v1257, 2147483648
    %v1264 = vsel %vm1262, %v1256, %v1263
    %vm1265 = vcmp.eq.s32.totalorder %v1260, 2
    %v1266 = vxor.u32 %v1256, 2147483648
    %v1267 = vsel %vm1265, %v1266, %v1257
    %v1268 = vsel %vm1261, %v1264, %v1267
    %v1269 = vsel %vm1258, nan, %v1268
    %v1270 = vand.u32 2147483647, %v311
    %vm1271 = vcmp.le.f32.partialorder %v1270, 0.7853982
    %vm1272 = vcmp.lt.s32.totalorder %v311, 0
    %v1273 = vand.u32 %v311, 2139095040
    %v1274 = vshrl.u32 %v1273, 23
    %v1275 = vsub.s32 %v1274, 127
    %v1276 = vand.u32 2147483647, %v311
    %v1277 = vand.u32 %v1276, 8388607
    %v1278 = vor.u32 %v1277, 8388608
    %v1279 = vsub.s32 0, %v1278
    %v1280 = vadd.s32 %v1275, 1
    %vm1281 = vcmp.gt.s32.totalorder %v1280, 0
    %v1282 = vsel %vm1281, %v1280, 0
    %v1283 = vshrl.u32 %v1282, 5
    %v1284 = vand.u32 %v1282, 31
    %v1285 = vsub.s32 32, %v1284
    %v1286 = vshrl.u32 683565275, %v1285
    %v1287 = vshll.u32 683565275, %v1284
    %v1288 = vshrl.u32 2475754826, %v1285
    %v1289 = vor.u32 %v1287, %v1288
    %v1290 = vshll.u32 2475754826, %v1284
    %v1291 = vshrl.u32 2131351028, %v1285
    %v1292 = vor.u32 %v1290, %v1291
    %v1293 = vshll.u32 2131351028, %v1284
    %v1294 = vshrl.u32 2102212464, %v1285
    %v1295 = vor.u32 %v1293, %v1294
    %v1296 = vshll.u32 2102212464, %v1284
    %v1297 = vshrl.u32 920167782, %v1285
    %v1298 = vor.u32 %v1296, %v1297
    %v1299 = vshll.u32 920167782, %v1284
    %v1300 = vshrl.u32 1326507024, %v1285
    %v1301 = vor.u32 %v1299, %v1300
    %vm1302 = vcmp.lt.s32.totalorder %v1283, 1
    %vm1303 = vcmp.lt.s32.totalorder %v1283, 2
    %vm1304 = vcmp.lt.s32.totalorder %v1283, 3
    %vm1305 = vcmp.lt.s32.totalorder %v1283, 4
    %v1306 = vsel %vm1302, %v1286, %v1289
    %v1307 = vsel %vm1305, %v1295, 2102212464
    %v1308 = vsel %vm1304, %v1292, %v1307
    %v1309 = vsel %vm1303, %v1306, %v1308
    %v1310 = vsel %vm1302, %v1289, %v1292
    %v1311 = vsel %vm1305, %v1298, 920167782
    %v1312 = vsel %vm1304, %v1295, %v1311
    %v1313 = vsel %vm1303, %v1310, %v1312
    %v1314 = vsel %vm1302, %v1292, %v1295
    %v1315 = vsel %vm1305, %v1301, 1326507024
    %v1316 = vsel %vm1304, %v1298, %v1315
    %v1317 = vsel %vm1303, %v1314, %v1316
    %v1318 = vshll.u32 %v1278, 8
    %v1319 = vmul.u32.u64.compose %v1318, %v1317
    %v1320 = vextract.low.u32 %v1319
    %v1321 = vextract.high.u32 %v1319
    %v1322 = vmul.u32.u64.compose %v1318, %v1313
    %v1323 = vextract.low.u32 %v1322
    %v1324 = vextract.high.u32 %v1322
    %v1325 = vmul.u32 %v1318, %v1309
    %v1326 = vadd.s32 %v1321, %v1323
    %vm1327 = vc.u32 %v1321, %v1323
    %v1328 = vadd.s32 %v1324, 1
    %v1329 = vsel %vm1327, %v1328, %v1324
    %v1330 = vadd.s32 %v1325, %v1329
    %v1331 = vadd.s32 %v1330, 536870912
    %v1332 = vshrl.u32 %v1331, 30
    %v1333 = vshll.u32 %v1332, 30
    %v1334 = vsub.s32 %v1330, %v1333
    %vm1335 = vcmp.lt.s32.totalorder %v1334, 0
    %v1336 = vsub.s32 0, %v1334
    %v1337 = vsel %vm1335, %v1336, %v1334
    %v1338 = vclz %v1337
    %v1339 = vsub.s32 %v1338, 2
    %vm1340 = vcmp.gt.s32.totalorder 0, %v1339
    %v1341 = vsel %vm1340, 0, %v1339
    %v1342 = vsub.s32 32, %v1341
    %v1343 = vshll.u32 %v1334, %v1341
    %v1344 = vshrl.u32 %v1326, %v1342
    %v1345 = vor.u32 %v1343, %v1344
    %v1346 = vsub.s32 4294967266, %v1341
    %v1347 = vadd.s32 %v1346, 127
    %v1348 = vshll.u32 %v1347, 23
    %v1349 = vor.u32 4788187, %v1348
    %v1350 = vand.u32 2147483647, %v1349
    %v1352 = vcvt.s32.f32 %v1345
    %v1353 = vmul.f32 %v1352, %v1350
    %v1354 = vxor.u32 %v1353, 2147483648
    %v1355 = vsel %vm1272, %v1354, %v1353
    %v1356 = vsub.s32 4, %v1332
    %v1357 = vsel %vm1272, %v1356, %v1332
    %v1358 = vsel %vm1271, %v311, %v1355
    %v1359 = vsel %vm1271, 0, %v1357
    %v1360 = vcosq.f32.pop %v1358
    %v1361 = vsinq.f32.pop %v1358
    %vm1362 = vweird.f32 %v311
    %v1363 = vadd.s32 %v1359, 3
    %v1364 = vand.u32 %v1363, 3
    %vm1365 = vcmp.lt.s32.totalorder %v1364, 2
    %vm1366 = vcmp.eq.s32.totalorder %v1364, 0
    %v1367 = vxor.u32 %v1361, 2147483648
    %v1368 = vsel %vm1366, %v1360, %v1367
    %vm1369 = vcmp.eq.s32.totalorder %v1364, 2
    %v1370 = vxor.u32 %v1360, 2147483648
    %v1371 = vsel %vm1369, %v1370, %v1361
    %v1372 = vsel %vm1365, %v1368, %v1371
    %v1373 = vsel %vm1362, nan, %v1372
    %v1374 = vand.u32 2147483647, %v312
    %vm1375 = vcmp.le.f32.partialorder %v1374, 0.7853982
    %vm1376 = vcmp.lt.s32.totalorder %v312, 0
    %v1377 = vand.u32 %v312, 2139095040
    %v1378 = vshrl.u32 %v1377, 23
    %v1379 = vsub.s32 %v1378, 127
    %v1380 = vand.u32 2147483647, %v312
    %v1381 = vand.u32 %v1380, 8388607
    %v1382 = vor.u32 %v1381, 8388608
    %v1383 = vsub.s32 0, %v1382
    %v1384 = vadd.s32 %v1379, 1
    %vm1385 = vcmp.gt.s32.totalorder %v1384, 0
    %v1386 = vsel %vm1385, %v1384, 0
    %v1387 = vshrl.u32 %v1386, 5
    %v1388 = vand.u32 %v1386, 31
    %v1389 = vsub.s32 32, %v1388
    %v1390 = vshrl.u32 683565275, %v1389
    %v1391 = vshll.u32 683565275, %v1388
    %v1392 = vshrl.u32 2475754826, %v1389
    %v1393 = vor.u32 %v1391, %v1392
    %v1394 = vshll.u32 2475754826, %v1388
    %v1395 = vshrl.u32 2131351028, %v1389
    %v1396 = vor.u32 %v1394, %v1395
    %v1397 = vshll.u32 2131351028, %v1388
    %v1398 = vshrl.u32 2102212464, %v1389
    %v1399 = vor.u32 %v1397, %v1398
    %v1400 = vshll.u32 2102212464, %v1388
    %v1401 = vshrl.u32 920167782, %v1389
    %v1402 = vor.u32 %v1400, %v1401
    %v1403 = vshll.u32 920167782, %v1388
    %v1404 = vshrl.u32 1326507024, %v1389
    %v1405 = vor.u32 %v1403, %v1404
    %vm1406 = vcmp.lt.s32.totalorder %v1387, 1
    %vm1407 = vcmp.lt.s32.totalorder %v1387, 2
    %vm1408 = vcmp.lt.s32.totalorder %v1387, 3
    %vm1409 = vcmp.lt.s32.totalorder %v1387, 4
    %v1410 = vsel %vm1406, %v1390, %v1393
    %v1411 = vsel %vm1409, %v1399, 2102212464
    %v1412 = vsel %vm1408, %v1396, %v1411
    %v1413 = vsel %vm1407, %v1410, %v1412
    %v1414 = vsel %vm1406, %v1393, %v1396
    %v1415 = vsel %vm1409, %v1402, 920167782
    %v1416 = vsel %vm1408, %v1399, %v1415
    %v1417 = vsel %vm1407, %v1414, %v1416
    %v1418 = vsel %vm1406, %v1396, %v1399
    %v1419 = vsel %vm1409, %v1405, 1326507024
    %v1420 = vsel %vm1408, %v1402, %v1419
    %v1421 = vsel %vm1407, %v1418, %v1420
    %v1422 = vshll.u32 %v1382, 8
    %v1423 = vmul.u32.u64.compose %v1422, %v1421
    %v1424 = vextract.low.u32 %v1423
    %v1425 = vextract.high.u32 %v1423
    %v1426 = vmul.u32.u64.compose %v1422, %v1417
    %v1427 = vextract.low.u32 %v1426
    %v1428 = vextract.high.u32 %v1426
    %v1429 = vmul.u32 %v1422, %v1413
    %v1430 = vadd.s32 %v1425, %v1427
    %vm1431 = vc.u32 %v1425, %v1427
    %v1432 = vadd.s32 %v1428, 1
    %v1433 = vsel %vm1431, %v1432, %v1428
    %v1434 = vadd.s32 %v1429, %v1433
    %v1435 = vadd.s32 %v1434, 536870912
    %v1436 = vshrl.u32 %v1435, 30
    %v1437 = vshll.u32 %v1436, 30
    %v1438 = vsub.s32 %v1434, %v1437
    %vm1439 = vcmp.lt.s32.totalorder %v1438, 0
    %v1440 = vsub.s32 0, %v1438
    %v1441 = vsel %vm1439, %v1440, %v1438
    %v1442 = vclz %v1441
    %v1443 = vsub.s32 %v1442, 2
    %vm1444 = vcmp.gt.s32.totalorder 0, %v1443
    %v1445 = vsel %vm1444, 0, %v1443
    %v1446 = vsub.s32 32, %v1445
    %v1447 = vshll.u32 %v1438, %v1445
    %v1448 = vshrl.u32 %v1430, %v1446
    %v1449 = vor.u32 %v1447, %v1448
    %v1450 = vsub.s32 4294967266, %v1445
    %v1451 = vadd.s32 %v1450, 127
    %v1452 = vshll.u32 %v1451, 23
    %v1453 = vor.u32 4788187, %v1452
    %v1454 = vand.u32 2147483647, %v1453
    %v1456 = vcvt.s32.f32 %v1449
    %v1457 = vmul.f32 %v1456, %v1454
    %v1458 = vxor.u32 %v1457, 2147483648
    %v1459 = vsel %vm1376, %v1458, %v1457
    %v1460 = vsub.s32 4, %v1436
    %v1461 = vsel %vm1376, %v1460, %v1436
    %v1462 = vsel %vm1375, %v312, %v1459
    %v1463 = vsel %vm1375, 0, %v1461
    %v1464 = vcosq.f32.pop %v1462
    %v1465 = vsinq.f32.pop %v1462
    %vm1466 = vweird.f32 %v312
    %v1467 = vadd.s32 %v1463, 3
    %v1468 = vand.u32 %v1467, 3
    %vm1469 = vcmp.lt.s32.totalorder %v1468, 2
    %vm1470 = vcmp.eq.s32.totalorder %v1468, 0
    %v1471 = vxor.u32 %v1465, 2147483648
    %v1472 = vsel %vm1470, %v1464, %v1471
    %vm1473 = vcmp.eq.s32.totalorder %v1468, 2
    %v1474 = vxor.u32 %v1464, 2147483648
    %v1475 = vsel %vm1473, %v1474, %v1465
    %v1476 = vsel %vm1469, %v1472, %v1475
    %v1477 = vsel %vm1466, nan, %v1476
    %v1478 = vand.u32 2147483647, %v313
    %vm1479 = vcmp.le.f32.partialorder %v1478, 0.7853982
    %vm1480 = vcmp.lt.s32.totalorder %v313, 0
    %v1481 = vand.u32 %v313, 2139095040
    %v1482 = vshrl.u32 %v1481, 23
    %v1483 = vsub.s32 %v1482, 127
    %v1484 = vand.u32 2147483647, %v313
    %v1485 = vand.u32 %v1484, 8388607
    %v1486 = vor.u32 %v1485, 8388608
    %v1487 = vsub.s32 0, %v1486
    %v1488 = vadd.s32 %v1483, 1
    %vm1489 = vcmp.gt.s32.totalorder %v1488, 0
    %v1490 = vsel %vm1489, %v1488, 0
    %v1491 = vshrl.u32 %v1490, 5
    %v1492 = vand.u32 %v1490, 31
    %v1493 = vsub.s32 32, %v1492
    %v1494 = vshrl.u32 683565275, %v1493
    %v1495 = vshll.u32 683565275, %v1492
    %v1496 = vshrl.u32 2475754826, %v1493
    %v1497 = vor.u32 %v1495, %v1496
    %v1498 = vshll.u32 2475754826, %v1492
    %v1499 = vshrl.u32 2131351028, %v1493
    %v1500 = vor.u32 %v1498, %v1499
    %v1501 = vshll.u32 2131351028, %v1492
    %v1502 = vshrl.u32 2102212464, %v1493
    %v1503 = vor.u32 %v1501, %v1502
    %v1504 = vshll.u32 2102212464, %v1492
    %v1505 = vshrl.u32 920167782, %v1493
    %v1506 = vor.u32 %v1504, %v1505
    %v1507 = vshll.u32 920167782, %v1492
    %v1508 = vshrl.u32 1326507024, %v1493
    %v1509 = vor.u32 %v1507, %v1508
    %vm1510 = vcmp.lt.s32.totalorder %v1491, 1
    %vm1511 = vcmp.lt.s32.totalorder %v1491, 2
    %vm1512 = vcmp.lt.s32.totalorder %v1491, 3
    %vm1513 = vcmp.lt.s32.totalorder %v1491, 4
    %v1514 = vsel %vm1510, %v1494, %v1497
    %v1515 = vsel %vm1513, %v1503, 2102212464
    %v1516 = vsel %vm1512, %v1500, %v1515
    %v1517 = vsel %vm1511, %v1514, %v1516
    %v1518 = vsel %vm1510, %v1497, %v1500
    %v1519 = vsel %vm1513, %v1506, 920167782
    %v1520 = vsel %vm1512, %v1503, %v1519
    %v1521 = vsel %vm1511, %v1518, %v1520
    %v1522 = vsel %vm1510, %v1500, %v1503
    %v1523 = vsel %vm1513, %v1509, 1326507024
    %v1524 = vsel %vm1512, %v1506, %v1523
    %v1525 = vsel %vm1511, %v1522, %v1524
    %v1526 = vshll.u32 %v1486, 8
    %v1527 = vmul.u32.u64.compose %v1526, %v1525
    %v1528 = vextract.low.u32 %v1527
    %v1529 = vextract.high.u32 %v1527
    %v1530 = vmul.u32.u64.compose %v1526, %v1521
    %v1531 = vextract.low.u32 %v1530
    %v1532 = vextract.high.u32 %v1530
    %v1533 = vmul.u32 %v1526, %v1517
    %v1534 = vadd.s32 %v1529, %v1531
    %vm1535 = vc.u32 %v1529, %v1531
    %v1536 = vadd.s32 %v1532, 1
    %v1537 = vsel %vm1535, %v1536, %v1532
    %v1538 = vadd.s32 %v1533, %v1537
    %v1539 = vadd.s32 %v1538, 536870912
    %v1540 = vshrl.u32 %v1539, 30
    %v1541 = vshll.u32 %v1540, 30
    %v1542 = vsub.s32 %v1538, %v1541
    %vm1543 = vcmp.lt.s32.totalorder %v1542, 0
    %v1544 = vsub.s32 0, %v1542
    %v1545 = vsel %vm1543, %v1544, %v1542
    %v1546 = vclz %v1545
    %v1547 = vsub.s32 %v1546, 2
    %vm1548 = vcmp.gt.s32.totalorder 0, %v1547
    %v1549 = vsel %vm1548, 0, %v1547
    %v1550 = vsub.s32 32, %v1549
    %v1551 = vshll.u32 %v1542, %v1549
    %v1552 = vshrl.u32 %v1534, %v1550
    %v1553 = vor.u32 %v1551, %v1552
    %v1554 = vsub.s32 4294967266, %v1549
    %v1555 = vadd.s32 %v1554, 127
    %v1556 = vshll.u32 %v1555, 23
    %v1557 = vor.u32 4788187, %v1556
    %v1558 = vand.u32 2147483647, %v1557
    %v1560 = vcvt.s32.f32 %v1553
    %v1561 = vmul.f32 %v1560, %v1558
    %v1562 = vxor.u32 %v1561, 2147483648
    %v1563 = vsel %vm1480, %v1562, %v1561
    %v1564 = vsub.s32 4, %v1540
    %v1565 = vsel %vm1480, %v1564, %v1540
    %v1566 = vsel %vm1479, %v313, %v1563
    %v1567 = vsel %vm1479, 0, %v1565
    %v1568 = vcosq.f32.pop %v1566
    %v1569 = vsinq.f32.pop %v1566
    %vm1570 = vweird.f32 %v313
    %v1571 = vadd.s32 %v1567, 3
    %v1572 = vand.u32 %v1571, 3
    %vm1573 = vcmp.lt.s32.totalorder %v1572, 2
    %vm1574 = vcmp.eq.s32.totalorder %v1572, 0
    %v1575 = vxor.u32 %v1569, 2147483648
    %v1576 = vsel %vm1574, %v1568, %v1575
    %vm1577 = vcmp.eq.s32.totalorder %v1572, 2
    %v1578 = vxor.u32 %v1568, 2147483648
    %v1579 = vsel %vm1577, %v1578, %v1569
    %v1580 = vsel %vm1573, %v1576, %v1579
    %v1581 = vsel %vm1570, nan, %v1580
    %v1582 = vand.u32 2147483647, %v314
    %vm1583 = vcmp.le.f32.partialorder %v1582, 0.7853982
    %vm1584 = vcmp.lt.s32.totalorder %v314, 0
    %v1585 = vand.u32 %v314, 2139095040
    %v1586 = vshrl.u32 %v1585, 23
    %v1587 = vsub.s32 %v1586, 127
    %v1588 = vand.u32 2147483647, %v314
    %v1589 = vand.u32 %v1588, 8388607
    %v1590 = vor.u32 %v1589, 8388608
    %v1591 = vsub.s32 0, %v1590
    %v1592 = vadd.s32 %v1587, 1
    %vm1593 = vcmp.gt.s32.totalorder %v1592, 0
    %v1594 = vsel %vm1593, %v1592, 0
    %v1595 = vshrl.u32 %v1594, 5
    %v1596 = vand.u32 %v1594, 31
    %v1597 = vsub.s32 32, %v1596
    %v1598 = vshrl.u32 683565275, %v1597
    %v1599 = vshll.u32 683565275, %v1596
    %v1600 = vshrl.u32 2475754826, %v1597
    %v1601 = vor.u32 %v1599, %v1600
    %v1602 = vshll.u32 2475754826, %v1596
    %v1603 = vshrl.u32 2131351028, %v1597
    %v1604 = vor.u32 %v1602, %v1603
    %v1605 = vshll.u32 2131351028, %v1596
    %v1606 = vshrl.u32 2102212464, %v1597
    %v1607 = vor.u32 %v1605, %v1606
    %v1608 = vshll.u32 2102212464, %v1596
    %v1609 = vshrl.u32 920167782, %v1597
    %v1610 = vor.u32 %v1608, %v1609
    %v1611 = vshll.u32 920167782, %v1596
    %v1612 = vshrl.u32 1326507024, %v1597
    %v1613 = vor.u32 %v1611, %v1612
    %vm1614 = vcmp.lt.s32.totalorder %v1595, 1
    %vm1615 = vcmp.lt.s32.totalorder %v1595, 2
    %vm1616 = vcmp.lt.s32.totalorder %v1595, 3
    %vm1617 = vcmp.lt.s32.totalorder %v1595, 4
    %v1618 = vsel %vm1614, %v1598, %v1601
    %v1619 = vsel %vm1617, %v1607, 2102212464
    %v1620 = vsel %vm1616, %v1604, %v1619
    %v1621 = vsel %vm1615, %v1618, %v1620
    %v1622 = vsel %vm1614, %v1601, %v1604
    %v1623 = vsel %vm1617, %v1610, 920167782
    %v1624 = vsel %vm1616, %v1607, %v1623
    %v1625 = vsel %vm1615, %v1622, %v1624
    %v1626 = vsel %vm1614, %v1604, %v1607
    %v1627 = vsel %vm1617, %v1613, 1326507024
    %v1628 = vsel %vm1616, %v1610, %v1627
    %v1629 = vsel %vm1615, %v1626, %v1628
    %v1630 = vshll.u32 %v1590, 8
    %v1631 = vmul.u32.u64.compose %v1630, %v1629
    %v1632 = vextract.low.u32 %v1631
    %v1633 = vextract.high.u32 %v1631
    %v1634 = vmul.u32.u64.compose %v1630, %v1625
    %v1635 = vextract.low.u32 %v1634
    %v1636 = vextract.high.u32 %v1634
    %v1637 = vmul.u32 %v1630, %v1621
    %v1638 = vadd.s32 %v1633, %v1635
    %vm1639 = vc.u32 %v1633, %v1635
    %v1640 = vadd.s32 %v1636, 1
    %v1641 = vsel %vm1639, %v1640, %v1636
    %v1642 = vadd.s32 %v1637, %v1641
    %v1643 = vadd.s32 %v1642, 536870912
    %v1644 = vshrl.u32 %v1643, 30
    %v1645 = vshll.u32 %v1644, 30
    %v1646 = vsub.s32 %v1642, %v1645
    %vm1647 = vcmp.lt.s32.totalorder %v1646, 0
    %v1648 = vsub.s32 0, %v1646
    %v1649 = vsel %vm1647, %v1648, %v1646
    %v1650 = vclz %v1649
    %v1651 = vsub.s32 %v1650, 2
    %vm1652 = vcmp.gt.s32.totalorder 0, %v1651
    %v1653 = vsel %vm1652, 0, %v1651
    %v1654 = vsub.s32 32, %v1653
    %v1655 = vshll.u32 %v1646, %v1653
    %v1656 = vshrl.u32 %v1638, %v1654
    %v1657 = vor.u32 %v1655, %v1656
    %v1658 = vsub.s32 4294967266, %v1653
    %v1659 = vadd.s32 %v1658, 127
    %v1660 = vshll.u32 %v1659, 23
    %v1661 = vor.u32 4788187, %v1660
    %v1662 = vand.u32 2147483647, %v1661
    %v1664 = vcvt.s32.f32 %v1657
    %v1665 = vmul.f32 %v1664, %v1662
    %v1666 = vxor.u32 %v1665, 2147483648
    %v1667 = vsel %vm1584, %v1666, %v1665
    %v1668 = vsub.s32 4, %v1644
    %v1669 = vsel %vm1584, %v1668, %v1644
    %v1670 = vsel %vm1583, %v314, %v1667
    %v1671 = vsel %vm1583, 0, %v1669
    %v1672 = vcosq.f32.pop %v1670
    %v1673 = vsinq.f32.pop %v1670
    %vm1674 = vweird.f32 %v314
    %v1675 = vadd.s32 %v1671, 3
    %v1676 = vand.u32 %v1675, 3
    %vm1677 = vcmp.lt.s32.totalorder %v1676, 2
    %vm1678 = vcmp.eq.s32.totalorder %v1676, 0
    %v1679 = vxor.u32 %v1673, 2147483648
    %v1680 = vsel %vm1678, %v1672, %v1679
    %vm1681 = vcmp.eq.s32.totalorder %v1676, 2
    %v1682 = vxor.u32 %v1672, 2147483648
    %v1683 = vsel %vm1681, %v1682, %v1673
    %v1684 = vsel %vm1677, %v1680, %v1683
    %v1685 = vsel %vm1674, nan, %v1684
    %v1686 = vand.u32 2147483647, %v315
    %vm1687 = vcmp.le.f32.partialorder %v1686, 0.7853982
    %vm1688 = vcmp.lt.s32.totalorder %v315, 0
    %v1689 = vand.u32 %v315, 2139095040
    %v1690 = vshrl.u32 %v1689, 23
    %v1691 = vsub.s32 %v1690, 127
    %v1692 = vand.u32 2147483647, %v315
    %v1693 = vand.u32 %v1692, 8388607
    %v1694 = vor.u32 %v1693, 8388608
    %v1695 = vsub.s32 0, %v1694
    %v1696 = vadd.s32 %v1691, 1
    %vm1697 = vcmp.gt.s32.totalorder %v1696, 0
    %v1698 = vsel %vm1697, %v1696, 0
    %v1699 = vshrl.u32 %v1698, 5
    %v1700 = vand.u32 %v1698, 31
    %v1701 = vsub.s32 32, %v1700
    %v1702 = vshrl.u32 683565275, %v1701
    %v1703 = vshll.u32 683565275, %v1700
    %v1704 = vshrl.u32 2475754826, %v1701
    %v1705 = vor.u32 %v1703, %v1704
    %v1706 = vshll.u32 2475754826, %v1700
    %v1707 = vshrl.u32 2131351028, %v1701
    %v1708 = vor.u32 %v1706, %v1707
    %v1709 = vshll.u32 2131351028, %v1700
    %v1710 = vshrl.u32 2102212464, %v1701
    %v1711 = vor.u32 %v1709, %v1710
    %v1712 = vshll.u32 2102212464, %v1700
    %v1713 = vshrl.u32 920167782, %v1701
    %v1714 = vor.u32 %v1712, %v1713
    %v1715 = vshll.u32 920167782, %v1700
    %v1716 = vshrl.u32 1326507024, %v1701
    %v1717 = vor.u32 %v1715, %v1716
    %vm1718 = vcmp.lt.s32.totalorder %v1699, 1
    %vm1719 = vcmp.lt.s32.totalorder %v1699, 2
    %vm1720 = vcmp.lt.s32.totalorder %v1699, 3
    %vm1721 = vcmp.lt.s32.totalorder %v1699, 4
    %v1722 = vsel %vm1718, %v1702, %v1705
    %v1723 = vsel %vm1721, %v1711, 2102212464
    %v1724 = vsel %vm1720, %v1708, %v1723
    %v1725 = vsel %vm1719, %v1722, %v1724
    %v1726 = vsel %vm1718, %v1705, %v1708
    %v1727 = vsel %vm1721, %v1714, 920167782
    %v1728 = vsel %vm1720, %v1711, %v1727
    %v1729 = vsel %vm1719, %v1726, %v1728
    %v1730 = vsel %vm1718, %v1708, %v1711
    %v1731 = vsel %vm1721, %v1717, 1326507024
    %v1732 = vsel %vm1720, %v1714, %v1731
    %v1733 = vsel %vm1719, %v1730, %v1732
    %v1734 = vshll.u32 %v1694, 8
    %v1735 = vmul.u32.u64.compose %v1734, %v1733
    %v1736 = vextract.low.u32 %v1735
    %v1737 = vextract.high.u32 %v1735
    %v1738 = vmul.u32.u64.compose %v1734, %v1729
    %v1739 = vextract.low.u32 %v1738
    %v1740 = vextract.high.u32 %v1738
    %v1741 = vmul.u32 %v1734, %v1725
    %v1742 = vadd.s32 %v1737, %v1739
    %vm1743 = vc.u32 %v1737, %v1739
    %v1744 = vadd.s32 %v1740, 1
    %v1745 = vsel %vm1743, %v1744, %v1740
    %v1746 = vadd.s32 %v1741, %v1745
    %v1747 = vadd.s32 %v1746, 536870912
    %v1748 = vshrl.u32 %v1747, 30
    %v1749 = vshll.u32 %v1748, 30
    %v1750 = vsub.s32 %v1746, %v1749
    %vm1751 = vcmp.lt.s32.totalorder %v1750, 0
    %v1752 = vsub.s32 0, %v1750
    %v1753 = vsel %vm1751, %v1752, %v1750
    %v1754 = vclz %v1753
    %v1755 = vsub.s32 %v1754, 2
    %vm1756 = vcmp.gt.s32.totalorder 0, %v1755
    %v1757 = vsel %vm1756, 0, %v1755
    %v1758 = vsub.s32 32, %v1757
    %v1759 = vshll.u32 %v1750, %v1757
    %v1760 = vshrl.u32 %v1742, %v1758
    %v1761 = vor.u32 %v1759, %v1760
    %v1762 = vsub.s32 4294967266, %v1757
    %v1763 = vadd.s32 %v1762, 127
    %v1764 = vshll.u32 %v1763, 23
    %v1765 = vor.u32 4788187, %v1764
    %v1766 = vand.u32 2147483647, %v1765
    %v1768 = vcvt.s32.f32 %v1761
    %v1769 = vmul.f32 %v1768, %v1766
    %v1770 = vxor.u32 %v1769, 2147483648
    %v1771 = vsel %vm1688, %v1770, %v1769
    %v1772 = vsub.s32 4, %v1748
    %v1773 = vsel %vm1688, %v1772, %v1748
    %v1774 = vsel %vm1687, %v315, %v1771
    %v1775 = vsel %vm1687, 0, %v1773
    %v1776 = vcosq.f32.pop %v1774
    %v1777 = vsinq.f32.pop %v1774
    %vm1778 = vweird.f32 %v315
    %v1779 = vadd.s32 %v1775, 3
    %v1780 = vand.u32 %v1779, 3
    %vm1781 = vcmp.lt.s32.totalorder %v1780, 2
    %vm1782 = vcmp.eq.s32.totalorder %v1780, 0
    %v1783 = vxor.u32 %v1777, 2147483648
    %v1784 = vsel %vm1782, %v1776, %v1783
    %vm1785 = vcmp.eq.s32.totalorder %v1780, 2
    %v1786 = vxor.u32 %v1776, 2147483648
    %v1787 = vsel %vm1785, %v1786, %v1777
    %v1788 = vsel %vm1781, %v1784, %v1787
    %v1789 = vsel %vm1778, nan, %v1788
    %v1790 = vand.u32 2147483647, %v316
    %vm1791 = vcmp.le.f32.partialorder %v1790, 0.7853982
    %vm1792 = vcmp.lt.s32.totalorder %v316, 0
    %v1793 = vand.u32 %v316, 2139095040
    %v1794 = vshrl.u32 %v1793, 23
    %v1795 = vsub.s32 %v1794, 127
    %v1796 = vand.u32 2147483647, %v316
    %v1797 = vand.u32 %v1796, 8388607
    %v1798 = vor.u32 %v1797, 8388608
    %v1799 = vsub.s32 0, %v1798
    %v1800 = vadd.s32 %v1795, 1
    %vm1801 = vcmp.gt.s32.totalorder %v1800, 0
    %v1802 = vsel %vm1801, %v1800, 0
    %v1803 = vshrl.u32 %v1802, 5
    %v1804 = vand.u32 %v1802, 31
    %v1805 = vsub.s32 32, %v1804
    %v1806 = vshrl.u32 683565275, %v1805
    %v1807 = vshll.u32 683565275, %v1804
    %v1808 = vshrl.u32 2475754826, %v1805
    %v1809 = vor.u32 %v1807, %v1808
    %v1810 = vshll.u32 2475754826, %v1804
    %v1811 = vshrl.u32 2131351028, %v1805
    %v1812 = vor.u32 %v1810, %v1811
    %v1813 = vshll.u32 2131351028, %v1804
    %v1814 = vshrl.u32 2102212464, %v1805
    %v1815 = vor.u32 %v1813, %v1814
    %v1816 = vshll.u32 2102212464, %v1804
    %v1817 = vshrl.u32 920167782, %v1805
    %v1818 = vor.u32 %v1816, %v1817
    %v1819 = vshll.u32 920167782, %v1804
    %v1820 = vshrl.u32 1326507024, %v1805
    %v1821 = vor.u32 %v1819, %v1820
    %vm1822 = vcmp.lt.s32.totalorder %v1803, 1
    %vm1823 = vcmp.lt.s32.totalorder %v1803, 2
    %vm1824 = vcmp.lt.s32.totalorder %v1803, 3
    %vm1825 = vcmp.lt.s32.totalorder %v1803, 4
    %v1826 = vsel %vm1822, %v1806, %v1809
    %v1827 = vsel %vm1825, %v1815, 2102212464
    %v1828 = vsel %vm1824, %v1812, %v1827
    %v1829 = vsel %vm1823, %v1826, %v1828
    %v1830 = vsel %vm1822, %v1809, %v1812
    %v1831 = vsel %vm1825, %v1818, 920167782
    %v1832 = vsel %vm1824, %v1815, %v1831
    %v1833 = vsel %vm1823, %v1830, %v1832
    %v1834 = vsel %vm1822, %v1812, %v1815
    %v1835 = vsel %vm1825, %v1821, 1326507024
    %v1836 = vsel %vm1824, %v1818, %v1835
    %v1837 = vsel %vm1823, %v1834, %v1836
    %v1838 = vshll.u32 %v1798, 8
    %v1839 = vmul.u32.u64.compose %v1838, %v1837
    %v1840 = vextract.low.u32 %v1839
    %v1841 = vextract.high.u32 %v1839
    %v1842 = vmul.u32.u64.compose %v1838, %v1833
    %v1843 = vextract.low.u32 %v1842
    %v1844 = vextract.high.u32 %v1842
    %v1845 = vmul.u32 %v1838, %v1829
    %v1846 = vadd.s32 %v1841, %v1843
    %vm1847 = vc.u32 %v1841, %v1843
    %v1848 = vadd.s32 %v1844, 1
    %v1849 = vsel %vm1847, %v1848, %v1844
    %v1850 = vadd.s32 %v1845, %v1849
    %v1851 = vadd.s32 %v1850, 536870912
    %v1852 = vshrl.u32 %v1851, 30
    %v1853 = vshll.u32 %v1852, 30
    %v1854 = vsub.s32 %v1850, %v1853
    %vm1855 = vcmp.lt.s32.totalorder %v1854, 0
    %v1856 = vsub.s32 0, %v1854
    %v1857 = vsel %vm1855, %v1856, %v1854
    %v1858 = vclz %v1857
    %v1859 = vsub.s32 %v1858, 2
    %vm1860 = vcmp.gt.s32.totalorder 0, %v1859
    %v1861 = vsel %vm1860, 0, %v1859
    %v1862 = vsub.s32 32, %v1861
    %v1863 = vshll.u32 %v1854, %v1861
    %v1864 = vshrl.u32 %v1846, %v1862
    %v1865 = vor.u32 %v1863, %v1864
    %v1866 = vsub.s32 4294967266, %v1861
    %v1867 = vadd.s32 %v1866, 127
    %v1868 = vshll.u32 %v1867, 23
    %v1869 = vor.u32 4788187, %v1868
    %v1870 = vand.u32 2147483647, %v1869
    %v1872 = vcvt.s32.f32 %v1865
    %v1873 = vmul.f32 %v1872, %v1870
    %v1874 = vxor.u32 %v1873, 2147483648
    %v1875 = vsel %vm1792, %v1874, %v1873
    %v1876 = vsub.s32 4, %v1852
    %v1877 = vsel %vm1792, %v1876, %v1852
    %v1878 = vsel %vm1791, %v316, %v1875
    %v1879 = vsel %vm1791, 0, %v1877
    %v1880 = vcosq.f32.pop %v1878
    %v1881 = vsinq.f32.pop %v1878
    %vm1882 = vweird.f32 %v316
    %v1883 = vadd.s32 %v1879, 3
    %v1884 = vand.u32 %v1883, 3
    %vm1885 = vcmp.lt.s32.totalorder %v1884, 2
    %vm1886 = vcmp.eq.s32.totalorder %v1884, 0
    %v1887 = vxor.u32 %v1881, 2147483648
    %v1888 = vsel %vm1886, %v1880, %v1887
    %vm1889 = vcmp.eq.s32.totalorder %v1884, 2
    %v1890 = vxor.u32 %v1880, 2147483648
    %v1891 = vsel %vm1889, %v1890, %v1881
    %v1892 = vsel %vm1885, %v1888, %v1891
    %v1893 = vsel %vm1882, nan, %v1892
    %v1894 = vand.u32 2147483647, %v317
    %vm1895 = vcmp.le.f32.partialorder %v1894, 0.7853982
    %vm1896 = vcmp.lt.s32.totalorder %v317, 0
    %v1897 = vand.u32 %v317, 2139095040
    %v1898 = vshrl.u32 %v1897, 23
    %v1899 = vsub.s32 %v1898, 127
    %v1900 = vand.u32 2147483647, %v317
    %v1901 = vand.u32 %v1900, 8388607
    %v1902 = vor.u32 %v1901, 8388608
    %v1903 = vsub.s32 0, %v1902
    %v1904 = vadd.s32 %v1899, 1
    %vm1905 = vcmp.gt.s32.totalorder %v1904, 0
    %v1906 = vsel %vm1905, %v1904, 0
    %v1907 = vshrl.u32 %v1906, 5
    %v1908 = vand.u32 %v1906, 31
    %v1909 = vsub.s32 32, %v1908
    %v1910 = vshrl.u32 683565275, %v1909
    %v1911 = vshll.u32 683565275, %v1908
    %v1912 = vshrl.u32 2475754826, %v1909
    %v1913 = vor.u32 %v1911, %v1912
    %v1914 = vshll.u32 2475754826, %v1908
    %v1915 = vshrl.u32 2131351028, %v1909
    %v1916 = vor.u32 %v1914, %v1915
    %v1917 = vshll.u32 2131351028, %v1908
    %v1918 = vshrl.u32 2102212464, %v1909
    %v1919 = vor.u32 %v1917, %v1918
    %v1920 = vshll.u32 2102212464, %v1908
    %v1921 = vshrl.u32 920167782, %v1909
    %v1922 = vor.u32 %v1920, %v1921
    %v1923 = vshll.u32 920167782, %v1908
    %v1924 = vshrl.u32 1326507024, %v1909
    %v1925 = vor.u32 %v1923, %v1924
    %vm1926 = vcmp.lt.s32.totalorder %v1907, 1
    %vm1927 = vcmp.lt.s32.totalorder %v1907, 2
    %vm1928 = vcmp.lt.s32.totalorder %v1907, 3
    %vm1929 = vcmp.lt.s32.totalorder %v1907, 4
    %v1930 = vsel %vm1926, %v1910, %v1913
    %v1931 = vsel %vm1929, %v1919, 2102212464
    %v1932 = vsel %vm1928, %v1916, %v1931
    %v1933 = vsel %vm1927, %v1930, %v1932
    %v1934 = vsel %vm1926, %v1913, %v1916
    %v1935 = vsel %vm1929, %v1922, 920167782
    %v1936 = vsel %vm1928, %v1919, %v1935
    %v1937 = vsel %vm1927, %v1934, %v1936
    %v1938 = vsel %vm1926, %v1916, %v1919
    %v1939 = vsel %vm1929, %v1925, 1326507024
    %v1940 = vsel %vm1928, %v1922, %v1939
    %v1941 = vsel %vm1927, %v1938, %v1940
    %v1942 = vshll.u32 %v1902, 8
    %v1943 = vmul.u32.u64.compose %v1942, %v1941
    %v1944 = vextract.low.u32 %v1943
    %v1945 = vextract.high.u32 %v1943
    %v1946 = vmul.u32.u64.compose %v1942, %v1937
    %v1947 = vextract.low.u32 %v1946
    %v1948 = vextract.high.u32 %v1946
    %v1949 = vmul.u32 %v1942, %v1933
    %v1950 = vadd.s32 %v1945, %v1947
    %vm1951 = vc.u32 %v1945, %v1947
    %v1952 = vadd.s32 %v1948, 1
    %v1953 = vsel %vm1951, %v1952, %v1948
    %v1954 = vadd.s32 %v1949, %v1953
    %v1955 = vadd.s32 %v1954, 536870912
    %v1956 = vshrl.u32 %v1955, 30
    %v1957 = vshll.u32 %v1956, 30
    %v1958 = vsub.s32 %v1954, %v1957
    %vm1959 = vcmp.lt.s32.totalorder %v1958, 0
    %v1960 = vsub.s32 0, %v1958
    %v1961 = vsel %vm1959, %v1960, %v1958
    %v1962 = vclz %v1961
    %v1963 = vsub.s32 %v1962, 2
    %vm1964 = vcmp.gt.s32.totalorder 0, %v1963
    %v1965 = vsel %vm1964, 0, %v1963
    %v1966 = vsub.s32 32, %v1965
    %v1967 = vshll.u32 %v1958, %v1965
    %v1968 = vshrl.u32 %v1950, %v1966
    %v1969 = vor.u32 %v1967, %v1968
    %v1970 = vsub.s32 4294967266, %v1965
    %v1971 = vadd.s32 %v1970, 127
    %v1972 = vshll.u32 %v1971, 23
    %v1973 = vor.u32 4788187, %v1972
    %v1974 = vand.u32 2147483647, %v1973
    %v1976 = vcvt.s32.f32 %v1969
    %v1977 = vmul.f32 %v1976, %v1974
    %v1978 = vxor.u32 %v1977, 2147483648
    %v1979 = vsel %vm1896, %v1978, %v1977
    %v1980 = vsub.s32 4, %v1956
    %v1981 = vsel %vm1896, %v1980, %v1956
    %v1982 = vsel %vm1895, %v317, %v1979
    %v1983 = vsel %vm1895, 0, %v1981
    %v1984 = vcosq.f32.pop %v1982
    %v1985 = vsinq.f32.pop %v1982
    %vm1986 = vweird.f32 %v317
    %v1987 = vadd.s32 %v1983, 3
    %v1988 = vand.u32 %v1987, 3
    %vm1989 = vcmp.lt.s32.totalorder %v1988, 2
    %vm1990 = vcmp.eq.s32.totalorder %v1988, 0
    %v1991 = vxor.u32 %v1985, 2147483648
    %v1992 = vsel %vm1990, %v1984, %v1991
    %vm1993 = vcmp.eq.s32.totalorder %v1988, 2
    %v1994 = vxor.u32 %v1984, 2147483648
    %v1995 = vsel %vm1993, %v1994, %v1985
    %v1996 = vsel %vm1989, %v1992, %v1995
    %v1997 = vsel %vm1986, nan, %v1996
    %v1998 = vand.u32 2147483647, %v318
    %vm1999 = vcmp.le.f32.partialorder %v1998, 0.7853982
    %vm2000 = vcmp.lt.s32.totalorder %v318, 0
    %v2001 = vand.u32 %v318, 2139095040
    %v2002 = vshrl.u32 %v2001, 23
    %v2003 = vsub.s32 %v2002, 127
    %v2004 = vand.u32 2147483647, %v318
    %v2005 = vand.u32 %v2004, 8388607
    %v2006 = vor.u32 %v2005, 8388608
    %v2007 = vsub.s32 0, %v2006
    %v2008 = vadd.s32 %v2003, 1
    %vm2009 = vcmp.gt.s32.totalorder %v2008, 0
    %v2010 = vsel %vm2009, %v2008, 0
    %v2011 = vshrl.u32 %v2010, 5
    %v2012 = vand.u32 %v2010, 31
    %v2013 = vsub.s32 32, %v2012
    %v2014 = vshrl.u32 683565275, %v2013
    %v2015 = vshll.u32 683565275, %v2012
    %v2016 = vshrl.u32 2475754826, %v2013
    %v2017 = vor.u32 %v2015, %v2016
    %v2018 = vshll.u32 2475754826, %v2012
    %v2019 = vshrl.u32 2131351028, %v2013
    %v2020 = vor.u32 %v2018, %v2019
    %v2021 = vshll.u32 2131351028, %v2012
    %v2022 = vshrl.u32 2102212464, %v2013
    %v2023 = vor.u32 %v2021, %v2022
    %v2024 = vshll.u32 2102212464, %v2012
    %v2025 = vshrl.u32 920167782, %v2013
    %v2026 = vor.u32 %v2024, %v2025
    %v2027 = vshll.u32 920167782, %v2012
    %v2028 = vshrl.u32 1326507024, %v2013
    %v2029 = vor.u32 %v2027, %v2028
    %vm2030 = vcmp.lt.s32.totalorder %v2011, 1
    %vm2031 = vcmp.lt.s32.totalorder %v2011, 2
    %vm2032 = vcmp.lt.s32.totalorder %v2011, 3
    %vm2033 = vcmp.lt.s32.totalorder %v2011, 4
    %v2034 = vsel %vm2030, %v2014, %v2017
    %v2035 = vsel %vm2033, %v2023, 2102212464
    %v2036 = vsel %vm2032, %v2020, %v2035
    %v2037 = vsel %vm2031, %v2034, %v2036
    %v2038 = vsel %vm2030, %v2017, %v2020
    %v2039 = vsel %vm2033, %v2026, 920167782
    %v2040 = vsel %vm2032, %v2023, %v2039
    %v2041 = vsel %vm2031, %v2038, %v2040
    %v2042 = vsel %vm2030, %v2020, %v2023
    %v2043 = vsel %vm2033, %v2029, 1326507024
    %v2044 = vsel %vm2032, %v2026, %v2043
    %v2045 = vsel %vm2031, %v2042, %v2044
    %v2046 = vshll.u32 %v2006, 8
    %v2047 = vmul.u32.u64.compose %v2046, %v2045
    %v2048 = vextract.low.u32 %v2047
    %v2049 = vextract.high.u32 %v2047
    %v2050 = vmul.u32.u64.compose %v2046, %v2041
    %v2051 = vextract.low.u32 %v2050
    %v2052 = vextract.high.u32 %v2050
    %v2053 = vmul.u32 %v2046, %v2037
    %v2054 = vadd.s32 %v2049, %v2051
    %vm2055 = vc.u32 %v2049, %v2051
    %v2056 = vadd.s32 %v2052, 1
    %v2057 = vsel %vm2055, %v2056, %v2052
    %v2058 = vadd.s32 %v2053, %v2057
    %v2059 = vadd.s32 %v2058, 536870912
    %v2060 = vshrl.u32 %v2059, 30
    %v2061 = vshll.u32 %v2060, 30
    %v2062 = vsub.s32 %v2058, %v2061
    %vm2063 = vcmp.lt.s32.totalorder %v2062, 0
    %v2064 = vsub.s32 0, %v2062
    %v2065 = vsel %vm2063, %v2064, %v2062
    %v2066 = vclz %v2065
    %v2067 = vsub.s32 %v2066, 2
    %vm2068 = vcmp.gt.s32.totalorder 0, %v2067
    %v2069 = vsel %vm2068, 0, %v2067
    %v2070 = vsub.s32 32, %v2069
    %v2071 = vshll.u32 %v2062, %v2069
    %v2072 = vshrl.u32 %v2054, %v2070
    %v2073 = vor.u32 %v2071, %v2072
    %v2074 = vsub.s32 4294967266, %v2069
    %v2075 = vadd.s32 %v2074, 127
    %v2076 = vshll.u32 %v2075, 23
    %v2077 = vor.u32 4788187, %v2076
    %v2078 = vand.u32 2147483647, %v2077
    %v2080 = vcvt.s32.f32 %v2073
    %v2081 = vmul.f32 %v2080, %v2078
    %v2082 = vxor.u32 %v2081, 2147483648
    %v2083 = vsel %vm2000, %v2082, %v2081
    %v2084 = vsub.s32 4, %v2060
    %v2085 = vsel %vm2000, %v2084, %v2060
    %v2086 = vsel %vm1999, %v318, %v2083
    %v2087 = vsel %vm1999, 0, %v2085
    %v2088 = vcosq.f32.pop %v2086
    %v2089 = vsinq.f32.pop %v2086
    %vm2090 = vweird.f32 %v318
    %v2091 = vadd.s32 %v2087, 3
    %v2092 = vand.u32 %v2091, 3
    %vm2093 = vcmp.lt.s32.totalorder %v2092, 2
    %vm2094 = vcmp.eq.s32.totalorder %v2092, 0
    %v2095 = vxor.u32 %v2089, 2147483648
    %v2096 = vsel %vm2094, %v2088, %v2095
    %vm2097 = vcmp.eq.s32.totalorder %v2092, 2
    %v2098 = vxor.u32 %v2088, 2147483648
    %v2099 = vsel %vm2097, %v2098, %v2089
    %v2100 = vsel %vm2093, %v2096, %v2099
    %v2101 = vsel %vm2090, nan, %v2100
    %v2102 = vand.u32 2147483647, %v319
    %vm2103 = vcmp.le.f32.partialorder %v2102, 0.7853982
    %vm2104 = vcmp.lt.s32.totalorder %v319, 0
    %v2105 = vand.u32 %v319, 2139095040
    %v2106 = vshrl.u32 %v2105, 23
    %v2107 = vsub.s32 %v2106, 127
    %v2108 = vand.u32 2147483647, %v319
    %v2109 = vand.u32 %v2108, 8388607
    %v2110 = vor.u32 %v2109, 8388608
    %v2111 = vsub.s32 0, %v2110
    %v2112 = vadd.s32 %v2107, 1
    %vm2113 = vcmp.gt.s32.totalorder %v2112, 0
    %v2114 = vsel %vm2113, %v2112, 0
    %v2115 = vshrl.u32 %v2114, 5
    %v2116 = vand.u32 %v2114, 31
    %v2117 = vsub.s32 32, %v2116
    %v2118 = vshrl.u32 683565275, %v2117
    %v2119 = vshll.u32 683565275, %v2116
    %v2120 = vshrl.u32 2475754826, %v2117
    %v2121 = vor.u32 %v2119, %v2120
    %v2122 = vshll.u32 2475754826, %v2116
    %v2123 = vshrl.u32 2131351028, %v2117
    %v2124 = vor.u32 %v2122, %v2123
    %v2125 = vshll.u32 2131351028, %v2116
    %v2126 = vshrl.u32 2102212464, %v2117
    %v2127 = vor.u32 %v2125, %v2126
    %v2128 = vshll.u32 2102212464, %v2116
    %v2129 = vshrl.u32 920167782, %v2117
    %v2130 = vor.u32 %v2128, %v2129
    %v2131 = vshll.u32 920167782, %v2116
    %v2132 = vshrl.u32 1326507024, %v2117
    %v2133 = vor.u32 %v2131, %v2132
    %vm2134 = vcmp.lt.s32.totalorder %v2115, 1
    %vm2135 = vcmp.lt.s32.totalorder %v2115, 2
    %vm2136 = vcmp.lt.s32.totalorder %v2115, 3
    %vm2137 = vcmp.lt.s32.totalorder %v2115, 4
    %v2138 = vsel %vm2134, %v2118, %v2121
    %v2139 = vsel %vm2137, %v2127, 2102212464
    %v2140 = vsel %vm2136, %v2124, %v2139
    %v2141 = vsel %vm2135, %v2138, %v2140
    %v2142 = vsel %vm2134, %v2121, %v2124
    %v2143 = vsel %vm2137, %v2130, 920167782
    %v2144 = vsel %vm2136, %v2127, %v2143
    %v2145 = vsel %vm2135, %v2142, %v2144
    %v2146 = vsel %vm2134, %v2124, %v2127
    %v2147 = vsel %vm2137, %v2133, 1326507024
    %v2148 = vsel %vm2136, %v2130, %v2147
    %v2149 = vsel %vm2135, %v2146, %v2148
    %v2150 = vshll.u32 %v2110, 8
    %v2151 = vmul.u32.u64.compose %v2150, %v2149
    %v2152 = vextract.low.u32 %v2151
    %v2153 = vextract.high.u32 %v2151
    %v2154 = vmul.u32.u64.compose %v2150, %v2145
    %v2155 = vextract.low.u32 %v2154
    %v2156 = vextract.high.u32 %v2154
    %v2157 = vmul.u32 %v2150, %v2141
    %v2158 = vadd.s32 %v2153, %v2155
    %vm2159 = vc.u32 %v2153, %v2155
    %v2160 = vadd.s32 %v2156, 1
    %v2161 = vsel %vm2159, %v2160, %v2156
    %v2162 = vadd.s32 %v2157, %v2161
    %v2163 = vadd.s32 %v2162, 536870912
    %v2164 = vshrl.u32 %v2163, 30
    %v2165 = vshll.u32 %v2164, 30
    %v2166 = vsub.s32 %v2162, %v2165
    %vm2167 = vcmp.lt.s32.totalorder %v2166, 0
    %v2168 = vsub.s32 0, %v2166
    %v2169 = vsel %vm2167, %v2168, %v2166
    %v2170 = vclz %v2169
    %v2171 = vsub.s32 %v2170, 2
    %vm2172 = vcmp.gt.s32.totalorder 0, %v2171
    %v2173 = vsel %vm2172, 0, %v2171
    %v2174 = vsub.s32 32, %v2173
    %v2175 = vshll.u32 %v2166, %v2173
    %v2176 = vshrl.u32 %v2158, %v2174
    %v2177 = vor.u32 %v2175, %v2176
    %v2178 = vsub.s32 4294967266, %v2173
    %v2179 = vadd.s32 %v2178, 127
    %v2180 = vshll.u32 %v2179, 23
    %v2181 = vor.u32 4788187, %v2180
    %v2182 = vand.u32 2147483647, %v2181
    %v2184 = vcvt.s32.f32 %v2177
    %v2185 = vmul.f32 %v2184, %v2182
    %v2186 = vxor.u32 %v2185, 2147483648
    %v2187 = vsel %vm2104, %v2186, %v2185
    %v2188 = vsub.s32 4, %v2164
    %v2189 = vsel %vm2104, %v2188, %v2164
    %v2190 = vsel %vm2103, %v319, %v2187
    %v2191 = vsel %vm2103, 0, %v2189
    %v2192 = vcosq.f32.pop %v2190
    %v2193 = vsinq.f32.pop %v2190
    %vm2194 = vweird.f32 %v319
    %v2195 = vadd.s32 %v2191, 3
    %v2196 = vand.u32 %v2195, 3
    %vm2197 = vcmp.lt.s32.totalorder %v2196, 2
    %vm2198 = vcmp.eq.s32.totalorder %v2196, 0
    %v2199 = vxor.u32 %v2193, 2147483648
    %v2200 = vsel %vm2198, %v2192, %v2199
    %vm2201 = vcmp.eq.s32.totalorder %v2196, 2
    %v2202 = vxor.u32 %v2192, 2147483648
    %v2203 = vsel %vm2201, %v2202, %v2193
    %v2204 = vsel %vm2197, %v2200, %v2203
    %v2205 = vsel %vm2194, nan, %v2204
    %v2206 = vand.u32 2147483647, %v320
    %vm2207 = vcmp.le.f32.partialorder %v2206, 0.7853982
    %vm2208 = vcmp.lt.s32.totalorder %v320, 0
    %v2209 = vand.u32 %v320, 2139095040
    %v2210 = vshrl.u32 %v2209, 23
    %v2211 = vsub.s32 %v2210, 127
    %v2212 = vand.u32 2147483647, %v320
    %v2213 = vand.u32 %v2212, 8388607
    %v2214 = vor.u32 %v2213, 8388608
    %v2215 = vsub.s32 0, %v2214
    %v2216 = vadd.s32 %v2211, 1
    %vm2217 = vcmp.gt.s32.totalorder %v2216, 0
    %v2218 = vsel %vm2217, %v2216, 0
    %v2219 = vshrl.u32 %v2218, 5
    %v2220 = vand.u32 %v2218, 31
    %v2221 = vsub.s32 32, %v2220
    %v2222 = vshrl.u32 683565275, %v2221
    %v2223 = vshll.u32 683565275, %v2220
    %v2224 = vshrl.u32 2475754826, %v2221
    %v2225 = vor.u32 %v2223, %v2224
    %v2226 = vshll.u32 2475754826, %v2220
    %v2227 = vshrl.u32 2131351028, %v2221
    %v2228 = vor.u32 %v2226, %v2227
    %v2229 = vshll.u32 2131351028, %v2220
    %v2230 = vshrl.u32 2102212464, %v2221
    %v2231 = vor.u32 %v2229, %v2230
    %v2232 = vshll.u32 2102212464, %v2220
    %v2233 = vshrl.u32 920167782, %v2221
    %v2234 = vor.u32 %v2232, %v2233
    %v2235 = vshll.u32 920167782, %v2220
    %v2236 = vshrl.u32 1326507024, %v2221
    %v2237 = vor.u32 %v2235, %v2236
    %vm2238 = vcmp.lt.s32.totalorder %v2219, 1
    %vm2239 = vcmp.lt.s32.totalorder %v2219, 2
    %vm2240 = vcmp.lt.s32.totalorder %v2219, 3
    %vm2241 = vcmp.lt.s32.totalorder %v2219, 4
    %v2242 = vsel %vm2238, %v2222, %v2225
    %v2243 = vsel %vm2241, %v2231, 2102212464
    %v2244 = vsel %vm2240, %v2228, %v2243
    %v2245 = vsel %vm2239, %v2242, %v2244
    %v2246 = vsel %vm2238, %v2225, %v2228
    %v2247 = vsel %vm2241, %v2234, 920167782
    %v2248 = vsel %vm2240, %v2231, %v2247
    %v2249 = vsel %vm2239, %v2246, %v2248
    %v2250 = vsel %vm2238, %v2228, %v2231
    %v2251 = vsel %vm2241, %v2237, 1326507024
    %v2252 = vsel %vm2240, %v2234, %v2251
    %v2253 = vsel %vm2239, %v2250, %v2252
    %v2254 = vshll.u32 %v2214, 8
    %v2255 = vmul.u32.u64.compose %v2254, %v2253
    %v2256 = vextract.low.u32 %v2255
    %v2257 = vextract.high.u32 %v2255
    %v2258 = vmul.u32.u64.compose %v2254, %v2249
    %v2259 = vextract.low.u32 %v2258
    %v2260 = vextract.high.u32 %v2258
    %v2261 = vmul.u32 %v2254, %v2245
    %v2262 = vadd.s32 %v2257, %v2259
    %vm2263 = vc.u32 %v2257, %v2259
    %v2264 = vadd.s32 %v2260, 1
    %v2265 = vsel %vm2263, %v2264, %v2260
    %v2266 = vadd.s32 %v2261, %v2265
    %v2267 = vadd.s32 %v2266, 536870912
    %v2268 = vshrl.u32 %v2267, 30
    %v2269 = vshll.u32 %v2268, 30
    %v2270 = vsub.s32 %v2266, %v2269
    %vm2271 = vcmp.lt.s32.totalorder %v2270, 0
    %v2272 = vsub.s32 0, %v2270
    %v2273 = vsel %vm2271, %v2272, %v2270
    %v2274 = vclz %v2273
    %v2275 = vsub.s32 %v2274, 2
    %vm2276 = vcmp.gt.s32.totalorder 0, %v2275
    %v2277 = vsel %vm2276, 0, %v2275
    %v2278 = vsub.s32 32, %v2277
    %v2279 = vshll.u32 %v2270, %v2277
    %v2280 = vshrl.u32 %v2262, %v2278
    %v2281 = vor.u32 %v2279, %v2280
    %v2282 = vsub.s32 4294967266, %v2277
    %v2283 = vadd.s32 %v2282, 127
    %v2284 = vshll.u32 %v2283, 23
    %v2285 = vor.u32 4788187, %v2284
    %v2286 = vand.u32 2147483647, %v2285
    %v2288 = vcvt.s32.f32 %v2281
    %v2289 = vmul.f32 %v2288, %v2286
    %v2290 = vxor.u32 %v2289, 2147483648
    %v2291 = vsel %vm2208, %v2290, %v2289
    %v2292 = vsub.s32 4, %v2268
    %v2293 = vsel %vm2208, %v2292, %v2268
    %v2294 = vsel %vm2207, %v320, %v2291
    %v2295 = vsel %vm2207, 0, %v2293
    %v2296 = vcosq.f32.pop %v2294
    %v2297 = vsinq.f32.pop %v2294
    %vm2298 = vweird.f32 %v320
    %v2299 = vadd.s32 %v2295, 3
    %v2300 = vand.u32 %v2299, 3
    %vm2301 = vcmp.lt.s32.totalorder %v2300, 2
    %vm2302 = vcmp.eq.s32.totalorder %v2300, 0
    %v2303 = vxor.u32 %v2297, 2147483648
    %v2304 = vsel %vm2302, %v2296, %v2303
    %vm2305 = vcmp.eq.s32.totalorder %v2300, 2
    %v2306 = vxor.u32 %v2296, 2147483648
    %v2307 = vsel %vm2305, %v2306, %v2297
    %v2308 = vsel %vm2301, %v2304, %v2307
    %v2309 = vsel %vm2298, nan, %v2308
    %v2310 = vand.u32 2147483647, %v321
    %vm2311 = vcmp.le.f32.partialorder %v2310, 0.7853982
    %vm2312 = vcmp.lt.s32.totalorder %v321, 0
    %v2313 = vand.u32 %v321, 2139095040
    %v2314 = vshrl.u32 %v2313, 23
    %v2315 = vsub.s32 %v2314, 127
    %v2316 = vand.u32 2147483647, %v321
    %v2317 = vand.u32 %v2316, 8388607
    %v2318 = vor.u32 %v2317, 8388608
    %v2319 = vsub.s32 0, %v2318
    %v2320 = vadd.s32 %v2315, 1
    %vm2321 = vcmp.gt.s32.totalorder %v2320, 0
    %v2322 = vsel %vm2321, %v2320, 0
    %v2323 = vshrl.u32 %v2322, 5
    %v2324 = vand.u32 %v2322, 31
    %v2325 = vsub.s32 32, %v2324
    %v2326 = vshrl.u32 683565275, %v2325
    %v2327 = vshll.u32 683565275, %v2324
    %v2328 = vshrl.u32 2475754826, %v2325
    %v2329 = vor.u32 %v2327, %v2328
    %v2330 = vshll.u32 2475754826, %v2324
    %v2331 = vshrl.u32 2131351028, %v2325
    %v2332 = vor.u32 %v2330, %v2331
    %v2333 = vshll.u32 2131351028, %v2324
    %v2334 = vshrl.u32 2102212464, %v2325
    %v2335 = vor.u32 %v2333, %v2334
    %v2336 = vshll.u32 2102212464, %v2324
    %v2337 = vshrl.u32 920167782, %v2325
    %v2338 = vor.u32 %v2336, %v2337
    %v2339 = vshll.u32 920167782, %v2324
    %v2340 = vshrl.u32 1326507024, %v2325
    %v2341 = vor.u32 %v2339, %v2340
    %vm2342 = vcmp.lt.s32.totalorder %v2323, 1
    %vm2343 = vcmp.lt.s32.totalorder %v2323, 2
    %vm2344 = vcmp.lt.s32.totalorder %v2323, 3
    %vm2345 = vcmp.lt.s32.totalorder %v2323, 4
    %v2346 = vsel %vm2342, %v2326, %v2329
    %v2347 = vsel %vm2345, %v2335, 2102212464
    %v2348 = vsel %vm2344, %v2332, %v2347
    %v2349 = vsel %vm2343, %v2346, %v2348
    %v2350 = vsel %vm2342, %v2329, %v2332
    %v2351 = vsel %vm2345, %v2338, 920167782
    %v2352 = vsel %vm2344, %v2335, %v2351
    %v2353 = vsel %vm2343, %v2350, %v2352
    %v2354 = vsel %vm2342, %v2332, %v2335
    %v2355 = vsel %vm2345, %v2341, 1326507024
    %v2356 = vsel %vm2344, %v2338, %v2355
    %v2357 = vsel %vm2343, %v2354, %v2356
    %v2358 = vshll.u32 %v2318, 8
    %v2359 = vmul.u32.u64.compose %v2358, %v2357
    %v2360 = vextract.low.u32 %v2359
    %v2361 = vextract.high.u32 %v2359
    %v2362 = vmul.u32.u64.compose %v2358, %v2353
    %v2363 = vextract.low.u32 %v2362
    %v2364 = vextract.high.u32 %v2362
    %v2365 = vmul.u32 %v2358, %v2349
    %v2366 = vadd.s32 %v2361, %v2363
    %vm2367 = vc.u32 %v2361, %v2363
    %v2368 = vadd.s32 %v2364, 1
    %v2369 = vsel %vm2367, %v2368, %v2364
    %v2370 = vadd.s32 %v2365, %v2369
    %v2371 = vadd.s32 %v2370, 536870912
    %v2372 = vshrl.u32 %v2371, 30
    %v2373 = vshll.u32 %v2372, 30
    %v2374 = vsub.s32 %v2370, %v2373
    %vm2375 = vcmp.lt.s32.totalorder %v2374, 0
    %v2376 = vsub.s32 0, %v2374
    %v2377 = vsel %vm2375, %v2376, %v2374
    %v2378 = vclz %v2377
    %v2379 = vsub.s32 %v2378, 2
    %vm2380 = vcmp.gt.s32.totalorder 0, %v2379
    %v2381 = vsel %vm2380, 0, %v2379
    %v2382 = vsub.s32 32, %v2381
    %v2383 = vshll.u32 %v2374, %v2381
    %v2384 = vshrl.u32 %v2366, %v2382
    %v2385 = vor.u32 %v2383, %v2384
    %v2386 = vsub.s32 4294967266, %v2381
    %v2387 = vadd.s32 %v2386, 127
    %v2388 = vshll.u32 %v2387, 23
    %v2389 = vor.u32 4788187, %v2388
    %v2390 = vand.u32 2147483647, %v2389
    %v2392 = vcvt.s32.f32 %v2385
    %v2393 = vmul.f32 %v2392, %v2390
    %v2394 = vxor.u32 %v2393, 2147483648
    %v2395 = vsel %vm2312, %v2394, %v2393
    %v2396 = vsub.s32 4, %v2372
    %v2397 = vsel %vm2312, %v2396, %v2372
    %v2398 = vsel %vm2311, %v321, %v2395
    %v2399 = vsel %vm2311, 0, %v2397
    %v2400 = vcosq.f32.pop %v2398
    %v2401 = vsinq.f32.pop %v2398
    %vm2402 = vweird.f32 %v321
    %v2403 = vadd.s32 %v2399, 3
    %v2404 = vand.u32 %v2403, 3
    %vm2405 = vcmp.lt.s32.totalorder %v2404, 2
    %vm2406 = vcmp.eq.s32.totalorder %v2404, 0
    %v2407 = vxor.u32 %v2401, 2147483648
    %v2408 = vsel %vm2406, %v2400, %v2407
    %vm2409 = vcmp.eq.s32.totalorder %v2404, 2
    %v2410 = vxor.u32 %v2400, 2147483648
    %v2411 = vsel %vm2409, %v2410, %v2401
    %v2412 = vsel %vm2405, %v2408, %v2411
    %v2413 = vsel %vm2402, nan, %v2412
    %v2414 = vand.u32 2147483647, %v322
    %vm2415 = vcmp.le.f32.partialorder %v2414, 0.7853982
    %vm2416 = vcmp.lt.s32.totalorder %v322, 0
    %v2417 = vand.u32 %v322, 2139095040
    %v2418 = vshrl.u32 %v2417, 23
    %v2419 = vsub.s32 %v2418, 127
    %v2420 = vand.u32 2147483647, %v322
    %v2421 = vand.u32 %v2420, 8388607
    %v2422 = vor.u32 %v2421, 8388608
    %v2423 = vsub.s32 0, %v2422
    %v2424 = vadd.s32 %v2419, 1
    %vm2425 = vcmp.gt.s32.totalorder %v2424, 0
    %v2426 = vsel %vm2425, %v2424, 0
    %v2427 = vshrl.u32 %v2426, 5
    %v2428 = vand.u32 %v2426, 31
    %v2429 = vsub.s32 32, %v2428
    %v2430 = vshrl.u32 683565275, %v2429
    %v2431 = vshll.u32 683565275, %v2428
    %v2432 = vshrl.u32 2475754826, %v2429
    %v2433 = vor.u32 %v2431, %v2432
    %v2434 = vshll.u32 2475754826, %v2428
    %v2435 = vshrl.u32 2131351028, %v2429
    %v2436 = vor.u32 %v2434, %v2435
    %v2437 = vshll.u32 2131351028, %v2428
    %v2438 = vshrl.u32 2102212464, %v2429
    %v2439 = vor.u32 %v2437, %v2438
    %v2440 = vshll.u32 2102212464, %v2428
    %v2441 = vshrl.u32 920167782, %v2429
    %v2442 = vor.u32 %v2440, %v2441
    %v2443 = vshll.u32 920167782, %v2428
    %v2444 = vshrl.u32 1326507024, %v2429
    %v2445 = vor.u32 %v2443, %v2444
    %vm2446 = vcmp.lt.s32.totalorder %v2427, 1
    %vm2447 = vcmp.lt.s32.totalorder %v2427, 2
    %vm2448 = vcmp.lt.s32.totalorder %v2427, 3
    %vm2449 = vcmp.lt.s32.totalorder %v2427, 4
    %v2450 = vsel %vm2446, %v2430, %v2433
    %v2451 = vsel %vm2449, %v2439, 2102212464
    %v2452 = vsel %vm2448, %v2436, %v2451
    %v2453 = vsel %vm2447, %v2450, %v2452
    %v2454 = vsel %vm2446, %v2433, %v2436
    %v2455 = vsel %vm2449, %v2442, 920167782
    %v2456 = vsel %vm2448, %v2439, %v2455
    %v2457 = vsel %vm2447, %v2454, %v2456
    %v2458 = vsel %vm2446, %v2436, %v2439
    %v2459 = vsel %vm2449, %v2445, 1326507024
    %v2460 = vsel %vm2448, %v2442, %v2459
    %v2461 = vsel %vm2447, %v2458, %v2460
    %v2462 = vshll.u32 %v2422, 8
    %v2463 = vmul.u32.u64.compose %v2462, %v2461
    %v2464 = vextract.low.u32 %v2463
    %v2465 = vextract.high.u32 %v2463
    %v2466 = vmul.u32.u64.compose %v2462, %v2457
    %v2467 = vextract.low.u32 %v2466
    %v2468 = vextract.high.u32 %v2466
    %v2469 = vmul.u32 %v2462, %v2453
    %v2470 = vadd.s32 %v2465, %v2467
    %vm2471 = vc.u32 %v2465, %v2467
    %v2472 = vadd.s32 %v2468, 1
    %v2473 = vsel %vm2471, %v2472, %v2468
    %v2474 = vadd.s32 %v2469, %v2473
    %v2475 = vadd.s32 %v2474, 536870912
    %v2476 = vshrl.u32 %v2475, 30
    %v2477 = vshll.u32 %v2476, 30
    %v2478 = vsub.s32 %v2474, %v2477
    %vm2479 = vcmp.lt.s32.totalorder %v2478, 0
    %v2480 = vsub.s32 0, %v2478
    %v2481 = vsel %vm2479, %v2480, %v2478
    %v2482 = vclz %v2481
    %v2483 = vsub.s32 %v2482, 2
    %vm2484 = vcmp.gt.s32.totalorder 0, %v2483
    %v2485 = vsel %vm2484, 0, %v2483
    %v2486 = vsub.s32 32, %v2485
    %v2487 = vshll.u32 %v2478, %v2485
    %v2488 = vshrl.u32 %v2470, %v2486
    %v2489 = vor.u32 %v2487, %v2488
    %v2490 = vsub.s32 4294967266, %v2485
    %v2491 = vadd.s32 %v2490, 127
    %v2492 = vshll.u32 %v2491, 23
    %v2493 = vor.u32 4788187, %v2492
    %v2494 = vand.u32 2147483647, %v2493
    %v2496 = vcvt.s32.f32 %v2489
    %v2497 = vmul.f32 %v2496, %v2494
    %v2498 = vxor.u32 %v2497, 2147483648
    %v2499 = vsel %vm2416, %v2498, %v2497
    %v2500 = vsub.s32 4, %v2476
    %v2501 = vsel %vm2416, %v2500, %v2476
    %v2502 = vsel %vm2415, %v322, %v2499
    %v2503 = vsel %vm2415, 0, %v2501
    %v2504 = vcosq.f32.pop %v2502
    %v2505 = vsinq.f32.pop %v2502
    %vm2506 = vweird.f32 %v322
    %v2507 = vadd.s32 %v2503, 3
    %v2508 = vand.u32 %v2507, 3
    %vm2509 = vcmp.lt.s32.totalorder %v2508, 2
    %vm2510 = vcmp.eq.s32.totalorder %v2508, 0
    %v2511 = vxor.u32 %v2505, 2147483648
    %v2512 = vsel %vm2510, %v2504, %v2511
    %vm2513 = vcmp.eq.s32.totalorder %v2508, 2
    %v2514 = vxor.u32 %v2504, 2147483648
    %v2515 = vsel %vm2513, %v2514, %v2505
    %v2516 = vsel %vm2509, %v2512, %v2515
    %v2517 = vsel %vm2506, nan, %v2516
    %v2518 = vand.u32 2147483647, %v323
    %vm2519 = vcmp.le.f32.partialorder %v2518, 0.7853982
    %vm2520 = vcmp.lt.s32.totalorder %v323, 0
    %v2521 = vand.u32 %v323, 2139095040
    %v2522 = vshrl.u32 %v2521, 23
    %v2523 = vsub.s32 %v2522, 127
    %v2524 = vand.u32 2147483647, %v323
    %v2525 = vand.u32 %v2524, 8388607
    %v2526 = vor.u32 %v2525, 8388608
    %v2527 = vsub.s32 0, %v2526
    %v2528 = vadd.s32 %v2523, 1
    %vm2529 = vcmp.gt.s32.totalorder %v2528, 0
    %v2530 = vsel %vm2529, %v2528, 0
    %v2531 = vshrl.u32 %v2530, 5
    %v2532 = vand.u32 %v2530, 31
    %v2533 = vsub.s32 32, %v2532
    %v2534 = vshrl.u32 683565275, %v2533
    %v2535 = vshll.u32 683565275, %v2532
    %v2536 = vshrl.u32 2475754826, %v2533
    %v2537 = vor.u32 %v2535, %v2536
    %v2538 = vshll.u32 2475754826, %v2532
    %v2539 = vshrl.u32 2131351028, %v2533
    %v2540 = vor.u32 %v2538, %v2539
    %v2541 = vshll.u32 2131351028, %v2532
    %v2542 = vshrl.u32 2102212464, %v2533
    %v2543 = vor.u32 %v2541, %v2542
    %v2544 = vshll.u32 2102212464, %v2532
    %v2545 = vshrl.u32 920167782, %v2533
    %v2546 = vor.u32 %v2544, %v2545
    %v2547 = vshll.u32 920167782, %v2532
    %v2548 = vshrl.u32 1326507024, %v2533
    %v2549 = vor.u32 %v2547, %v2548
    %vm2550 = vcmp.lt.s32.totalorder %v2531, 1
    %vm2551 = vcmp.lt.s32.totalorder %v2531, 2
    %vm2552 = vcmp.lt.s32.totalorder %v2531, 3
    %vm2553 = vcmp.lt.s32.totalorder %v2531, 4
    %v2554 = vsel %vm2550, %v2534, %v2537
    %v2555 = vsel %vm2553, %v2543, 2102212464
    %v2556 = vsel %vm2552, %v2540, %v2555
    %v2557 = vsel %vm2551, %v2554, %v2556
    %v2558 = vsel %vm2550, %v2537, %v2540
    %v2559 = vsel %vm2553, %v2546, 920167782
    %v2560 = vsel %vm2552, %v2543, %v2559
    %v2561 = vsel %vm2551, %v2558, %v2560
    %v2562 = vsel %vm2550, %v2540, %v2543
    %v2563 = vsel %vm2553, %v2549, 1326507024
    %v2564 = vsel %vm2552, %v2546, %v2563
    %v2565 = vsel %vm2551, %v2562, %v2564
    %v2566 = vshll.u32 %v2526, 8
    %v2567 = vmul.u32.u64.compose %v2566, %v2565
    %v2568 = vextract.low.u32 %v2567
    %v2569 = vextract.high.u32 %v2567
    %v2570 = vmul.u32.u64.compose %v2566, %v2561
    %v2571 = vextract.low.u32 %v2570
    %v2572 = vextract.high.u32 %v2570
    %v2573 = vmul.u32 %v2566, %v2557
    %v2574 = vadd.s32 %v2569, %v2571
    %vm2575 = vc.u32 %v2569, %v2571
    %v2576 = vadd.s32 %v2572, 1
    %v2577 = vsel %vm2575, %v2576, %v2572
    %v2578 = vadd.s32 %v2573, %v2577
    %v2579 = vadd.s32 %v2578, 536870912
    %v2580 = vshrl.u32 %v2579, 30
    %v2581 = vshll.u32 %v2580, 30
    %v2582 = vsub.s32 %v2578, %v2581
    %vm2583 = vcmp.lt.s32.totalorder %v2582, 0
    %v2584 = vsub.s32 0, %v2582
    %v2585 = vsel %vm2583, %v2584, %v2582
    %v2586 = vclz %v2585
    %v2587 = vsub.s32 %v2586, 2
    %vm2588 = vcmp.gt.s32.totalorder 0, %v2587
    %v2589 = vsel %vm2588, 0, %v2587
    %v2590 = vsub.s32 32, %v2589
    %v2591 = vshll.u32 %v2582, %v2589
    %v2592 = vshrl.u32 %v2574, %v2590
    %v2593 = vor.u32 %v2591, %v2592
    %v2594 = vsub.s32 4294967266, %v2589
    %v2595 = vadd.s32 %v2594, 127
    %v2596 = vshll.u32 %v2595, 23
    %v2597 = vor.u32 4788187, %v2596
    %v2598 = vand.u32 2147483647, %v2597
    %v2600 = vcvt.s32.f32 %v2593
    %v2601 = vmul.f32 %v2600, %v2598
    %v2602 = vxor.u32 %v2601, 2147483648
    %v2603 = vsel %vm2520, %v2602, %v2601
    %v2604 = vsub.s32 4, %v2580
    %v2605 = vsel %vm2520, %v2604, %v2580
    %v2606 = vsel %vm2519, %v323, %v2603
    %v2607 = vsel %vm2519, 0, %v2605
    %v2608 = vcosq.f32.pop %v2606
    %v2609 = vsinq.f32.pop %v2606
    %vm2610 = vweird.f32 %v323
    %v2611 = vadd.s32 %v2607, 3
    %v2612 = vand.u32 %v2611, 3
    %vm2613 = vcmp.lt.s32.totalorder %v2612, 2
    %vm2614 = vcmp.eq.s32.totalorder %v2612, 0
    %v2615 = vxor.u32 %v2609, 2147483648
    %v2616 = vsel %vm2614, %v2608, %v2615
    %vm2617 = vcmp.eq.s32.totalorder %v2612, 2
    %v2618 = vxor.u32 %v2608, 2147483648
    %v2619 = vsel %vm2617, %v2618, %v2609
    %v2620 = vsel %vm2613, %v2616, %v2619
    %v2621 = vsel %vm2610, nan, %v2620
    %v2622 = vand.u32 2147483647, %v324
    %vm2623 = vcmp.le.f32.partialorder %v2622, 0.7853982
    %vm2624 = vcmp.lt.s32.totalorder %v324, 0
    %v2625 = vand.u32 %v324, 2139095040
    %v2626 = vshrl.u32 %v2625, 23
    %v2627 = vsub.s32 %v2626, 127
    %v2628 = vand.u32 2147483647, %v324
    %v2629 = vand.u32 %v2628, 8388607
    %v2630 = vor.u32 %v2629, 8388608
    %v2631 = vsub.s32 0, %v2630
    %v2632 = vadd.s32 %v2627, 1
    %vm2633 = vcmp.gt.s32.totalorder %v2632, 0
    %v2634 = vsel %vm2633, %v2632, 0
    %v2635 = vshrl.u32 %v2634, 5
    %v2636 = vand.u32 %v2634, 31
    %v2637 = vsub.s32 32, %v2636
    %v2638 = vshrl.u32 683565275, %v2637
    %v2639 = vshll.u32 683565275, %v2636
    %v2640 = vshrl.u32 2475754826, %v2637
    %v2641 = vor.u32 %v2639, %v2640
    %v2642 = vshll.u32 2475754826, %v2636
    %v2643 = vshrl.u32 2131351028, %v2637
    %v2644 = vor.u32 %v2642, %v2643
    %v2645 = vshll.u32 2131351028, %v2636
    %v2646 = vshrl.u32 2102212464, %v2637
    %v2647 = vor.u32 %v2645, %v2646
    %v2648 = vshll.u32 2102212464, %v2636
    %v2649 = vshrl.u32 920167782, %v2637
    %v2650 = vor.u32 %v2648, %v2649
    %v2651 = vshll.u32 920167782, %v2636
    %v2652 = vshrl.u32 1326507024, %v2637
    %v2653 = vor.u32 %v2651, %v2652
    %vm2654 = vcmp.lt.s32.totalorder %v2635, 1
    %vm2655 = vcmp.lt.s32.totalorder %v2635, 2
    %vm2656 = vcmp.lt.s32.totalorder %v2635, 3
    %vm2657 = vcmp.lt.s32.totalorder %v2635, 4
    %v2658 = vsel %vm2654, %v2638, %v2641
    %v2659 = vsel %vm2657, %v2647, 2102212464
    %v2660 = vsel %vm2656, %v2644, %v2659
    %v2661 = vsel %vm2655, %v2658, %v2660
    %v2662 = vsel %vm2654, %v2641, %v2644
    %v2663 = vsel %vm2657, %v2650, 920167782
    %v2664 = vsel %vm2656, %v2647, %v2663
    %v2665 = vsel %vm2655, %v2662, %v2664
    %v2666 = vsel %vm2654, %v2644, %v2647
    %v2667 = vsel %vm2657, %v2653, 1326507024
    %v2668 = vsel %vm2656, %v2650, %v2667
    %v2669 = vsel %vm2655, %v2666, %v2668
    %v2670 = vshll.u32 %v2630, 8
    %v2671 = vmul.u32.u64.compose %v2670, %v2669
    %v2672 = vextract.low.u32 %v2671
    %v2673 = vextract.high.u32 %v2671
    %v2674 = vmul.u32.u64.compose %v2670, %v2665
    %v2675 = vextract.low.u32 %v2674
    %v2676 = vextract.high.u32 %v2674
    %v2677 = vmul.u32 %v2670, %v2661
    %v2678 = vadd.s32 %v2673, %v2675
    %vm2679 = vc.u32 %v2673, %v2675
    %v2680 = vadd.s32 %v2676, 1
    %v2681 = vsel %vm2679, %v2680, %v2676
    %v2682 = vadd.s32 %v2677, %v2681
    %v2683 = vadd.s32 %v2682, 536870912
    %v2684 = vshrl.u32 %v2683, 30
    %v2685 = vshll.u32 %v2684, 30
    %v2686 = vsub.s32 %v2682, %v2685
    %vm2687 = vcmp.lt.s32.totalorder %v2686, 0
    %v2688 = vsub.s32 0, %v2686
    %v2689 = vsel %vm2687, %v2688, %v2686
    %v2690 = vclz %v2689
    %v2691 = vsub.s32 %v2690, 2
    %vm2692 = vcmp.gt.s32.totalorder 0, %v2691
    %v2693 = vsel %vm2692, 0, %v2691
    %v2694 = vsub.s32 32, %v2693
    %v2695 = vshll.u32 %v2686, %v2693
    %v2696 = vshrl.u32 %v2678, %v2694
    %v2697 = vor.u32 %v2695, %v2696
    %v2698 = vsub.s32 4294967266, %v2693
    %v2699 = vadd.s32 %v2698, 127
    %v2700 = vshll.u32 %v2699, 23
    %v2701 = vor.u32 4788187, %v2700
    %v2702 = vand.u32 2147483647, %v2701
    %v2704 = vcvt.s32.f32 %v2697
    %v2705 = vmul.f32 %v2704, %v2702
    %v2706 = vxor.u32 %v2705, 2147483648
    %v2707 = vsel %vm2624, %v2706, %v2705
    %v2708 = vsub.s32 4, %v2684
    %v2709 = vsel %vm2624, %v2708, %v2684
    %v2710 = vsel %vm2623, %v324, %v2707
    %v2711 = vsel %vm2623, 0, %v2709
    %v2712 = vcosq.f32.pop %v2710
    %v2713 = vsinq.f32.pop %v2710
    %vm2714 = vweird.f32 %v324
    %v2715 = vadd.s32 %v2711, 3
    %v2716 = vand.u32 %v2715, 3
    %vm2717 = vcmp.lt.s32.totalorder %v2716, 2
    %vm2718 = vcmp.eq.s32.totalorder %v2716, 0
    %v2719 = vxor.u32 %v2713, 2147483648
    %v2720 = vsel %vm2718, %v2712, %v2719
    %vm2721 = vcmp.eq.s32.totalorder %v2716, 2
    %v2722 = vxor.u32 %v2712, 2147483648
    %v2723 = vsel %vm2721, %v2722, %v2713
    %v2724 = vsel %vm2717, %v2720, %v2723
    %v2725 = vsel %vm2714, nan, %v2724
    %v2726 = vand.u32 2147483647, %v325
    %vm2727 = vcmp.le.f32.partialorder %v2726, 0.7853982
    %vm2728 = vcmp.lt.s32.totalorder %v325, 0
    %v2729 = vand.u32 %v325, 2139095040
    %v2730 = vshrl.u32 %v2729, 23
    %v2731 = vsub.s32 %v2730, 127
    %v2732 = vand.u32 2147483647, %v325
    %v2733 = vand.u32 %v2732, 8388607
    %v2734 = vor.u32 %v2733, 8388608
    %v2735 = vsub.s32 0, %v2734
    %v2736 = vadd.s32 %v2731, 1
    %vm2737 = vcmp.gt.s32.totalorder %v2736, 0
    %v2738 = vsel %vm2737, %v2736, 0
    %v2739 = vshrl.u32 %v2738, 5
    %v2740 = vand.u32 %v2738, 31
    %v2741 = vsub.s32 32, %v2740
    %v2742 = vshrl.u32 683565275, %v2741
    %v2743 = vshll.u32 683565275, %v2740
    %v2744 = vshrl.u32 2475754826, %v2741
    %v2745 = vor.u32 %v2743, %v2744
    %v2746 = vshll.u32 2475754826, %v2740
    %v2747 = vshrl.u32 2131351028, %v2741
    %v2748 = vor.u32 %v2746, %v2747
    %v2749 = vshll.u32 2131351028, %v2740
    %v2750 = vshrl.u32 2102212464, %v2741
    %v2751 = vor.u32 %v2749, %v2750
    %v2752 = vshll.u32 2102212464, %v2740
    %v2753 = vshrl.u32 920167782, %v2741
    %v2754 = vor.u32 %v2752, %v2753
    %v2755 = vshll.u32 920167782, %v2740
    %v2756 = vshrl.u32 1326507024, %v2741
    %v2757 = vor.u32 %v2755, %v2756
    %vm2758 = vcmp.lt.s32.totalorder %v2739, 1
    %vm2759 = vcmp.lt.s32.totalorder %v2739, 2
    %vm2760 = vcmp.lt.s32.totalorder %v2739, 3
    %vm2761 = vcmp.lt.s32.totalorder %v2739, 4
    %v2762 = vsel %vm2758, %v2742, %v2745
    %v2763 = vsel %vm2761, %v2751, 2102212464
    %v2764 = vsel %vm2760, %v2748, %v2763
    %v2765 = vsel %vm2759, %v2762, %v2764
    %v2766 = vsel %vm2758, %v2745, %v2748
    %v2767 = vsel %vm2761, %v2754, 920167782
    %v2768 = vsel %vm2760, %v2751, %v2767
    %v2769 = vsel %vm2759, %v2766, %v2768
    %v2770 = vsel %vm2758, %v2748, %v2751
    %v2771 = vsel %vm2761, %v2757, 1326507024
    %v2772 = vsel %vm2760, %v2754, %v2771
    %v2773 = vsel %vm2759, %v2770, %v2772
    %v2774 = vshll.u32 %v2734, 8
    %v2775 = vmul.u32.u64.compose %v2774, %v2773
    %v2776 = vextract.low.u32 %v2775
    %v2777 = vextract.high.u32 %v2775
    %v2778 = vmul.u32.u64.compose %v2774, %v2769
    %v2779 = vextract.low.u32 %v2778
    %v2780 = vextract.high.u32 %v2778
    %v2781 = vmul.u32 %v2774, %v2765
    %v2782 = vadd.s32 %v2777, %v2779
    %vm2783 = vc.u32 %v2777, %v2779
    %v2784 = vadd.s32 %v2780, 1
    %v2785 = vsel %vm2783, %v2784, %v2780
    %v2786 = vadd.s32 %v2781, %v2785
    %v2787 = vadd.s32 %v2786, 536870912
    %v2788 = vshrl.u32 %v2787, 30
    %v2789 = vshll.u32 %v2788, 30
    %v2790 = vsub.s32 %v2786, %v2789
    %vm2791 = vcmp.lt.s32.totalorder %v2790, 0
    %v2792 = vsub.s32 0, %v2790
    %v2793 = vsel %vm2791, %v2792, %v2790
    %v2794 = vclz %v2793
    %v2795 = vsub.s32 %v2794, 2
    %vm2796 = vcmp.gt.s32.totalorder 0, %v2795
    %v2797 = vsel %vm2796, 0, %v2795
    %v2798 = vsub.s32 32, %v2797
    %v2799 = vshll.u32 %v2790, %v2797
    %v2800 = vshrl.u32 %v2782, %v2798
    %v2801 = vor.u32 %v2799, %v2800
    %v2802 = vsub.s32 4294967266, %v2797
    %v2803 = vadd.s32 %v2802, 127
    %v2804 = vshll.u32 %v2803, 23
    %v2805 = vor.u32 4788187, %v2804
    %v2806 = vand.u32 2147483647, %v2805
    %v2808 = vcvt.s32.f32 %v2801
    %v2809 = vmul.f32 %v2808, %v2806
    %v2810 = vxor.u32 %v2809, 2147483648
    %v2811 = vsel %vm2728, %v2810, %v2809
    %v2812 = vsub.s32 4, %v2788
    %v2813 = vsel %vm2728, %v2812, %v2788
    %v2814 = vsel %vm2727, %v325, %v2811
    %v2815 = vsel %vm2727, 0, %v2813
    %v2816 = vcosq.f32.pop %v2814
    %v2817 = vsinq.f32.pop %v2814
    %vm2818 = vweird.f32 %v325
    %v2819 = vadd.s32 %v2815, 3
    %v2820 = vand.u32 %v2819, 3
    %vm2821 = vcmp.lt.s32.totalorder %v2820, 2
    %vm2822 = vcmp.eq.s32.totalorder %v2820, 0
    %v2823 = vxor.u32 %v2817, 2147483648
    %v2824 = vsel %vm2822, %v2816, %v2823
    %vm2825 = vcmp.eq.s32.totalorder %v2820, 2
    %v2826 = vxor.u32 %v2816, 2147483648
    %v2827 = vsel %vm2825, %v2826, %v2817
    %v2828 = vsel %vm2821, %v2824, %v2827
    %v2829 = vsel %vm2818, nan, %v2828
    %v2830 = vand.u32 2147483647, %v326
    %vm2831 = vcmp.le.f32.partialorder %v2830, 0.7853982
    %vm2832 = vcmp.lt.s32.totalorder %v326, 0
    %v2833 = vand.u32 %v326, 2139095040
    %v2834 = vshrl.u32 %v2833, 23
    %v2835 = vsub.s32 %v2834, 127
    %v2836 = vand.u32 2147483647, %v326
    %v2837 = vand.u32 %v2836, 8388607
    %v2838 = vor.u32 %v2837, 8388608
    %v2839 = vsub.s32 0, %v2838
    %v2840 = vadd.s32 %v2835, 1
    %vm2841 = vcmp.gt.s32.totalorder %v2840, 0
    %v2842 = vsel %vm2841, %v2840, 0
    %v2843 = vshrl.u32 %v2842, 5
    %v2844 = vand.u32 %v2842, 31
    %v2845 = vsub.s32 32, %v2844
    %v2846 = vshrl.u32 683565275, %v2845
    %v2847 = vshll.u32 683565275, %v2844
    %v2848 = vshrl.u32 2475754826, %v2845
    %v2849 = vor.u32 %v2847, %v2848
    %v2850 = vshll.u32 2475754826, %v2844
    %v2851 = vshrl.u32 2131351028, %v2845
    %v2852 = vor.u32 %v2850, %v2851
    %v2853 = vshll.u32 2131351028, %v2844
    %v2854 = vshrl.u32 2102212464, %v2845
    %v2855 = vor.u32 %v2853, %v2854
    %v2856 = vshll.u32 2102212464, %v2844
    %v2857 = vshrl.u32 920167782, %v2845
    %v2858 = vor.u32 %v2856, %v2857
    %v2859 = vshll.u32 920167782, %v2844
    %v2860 = vshrl.u32 1326507024, %v2845
    %v2861 = vor.u32 %v2859, %v2860
    %vm2862 = vcmp.lt.s32.totalorder %v2843, 1
    %vm2863 = vcmp.lt.s32.totalorder %v2843, 2
    %vm2864 = vcmp.lt.s32.totalorder %v2843, 3
    %vm2865 = vcmp.lt.s32.totalorder %v2843, 4
    %v2866 = vsel %vm2862, %v2846, %v2849
    %v2867 = vsel %vm2865, %v2855, 2102212464
    %v2868 = vsel %vm2864, %v2852, %v2867
    %v2869 = vsel %vm2863, %v2866, %v2868
    %v2870 = vsel %vm2862, %v2849, %v2852
    %v2871 = vsel %vm2865, %v2858, 920167782
    %v2872 = vsel %vm2864, %v2855, %v2871
    %v2873 = vsel %vm2863, %v2870, %v2872
    %v2874 = vsel %vm2862, %v2852, %v2855
    %v2875 = vsel %vm2865, %v2861, 1326507024
    %v2876 = vsel %vm2864, %v2858, %v2875
    %v2877 = vsel %vm2863, %v2874, %v2876
    %v2878 = vshll.u32 %v2838, 8
    %v2879 = vmul.u32.u64.compose %v2878, %v2877
    %v2880 = vextract.low.u32 %v2879
    %v2881 = vextract.high.u32 %v2879
    %v2882 = vmul.u32.u64.compose %v2878, %v2873
    %v2883 = vextract.low.u32 %v2882
    %v2884 = vextract.high.u32 %v2882
    %v2885 = vmul.u32 %v2878, %v2869
    %v2886 = vadd.s32 %v2881, %v2883
    %vm2887 = vc.u32 %v2881, %v2883
    %v2888 = vadd.s32 %v2884, 1
    %v2889 = vsel %vm2887, %v2888, %v2884
    %v2890 = vadd.s32 %v2885, %v2889
    %v2891 = vadd.s32 %v2890, 536870912
    %v2892 = vshrl.u32 %v2891, 30
    %v2893 = vshll.u32 %v2892, 30
    %v2894 = vsub.s32 %v2890, %v2893
    %vm2895 = vcmp.lt.s32.totalorder %v2894, 0
    %v2896 = vsub.s32 0, %v2894
    %v2897 = vsel %vm2895, %v2896, %v2894
    %v2898 = vclz %v2897
    %v2899 = vsub.s32 %v2898, 2
    %vm2900 = vcmp.gt.s32.totalorder 0, %v2899
    %v2901 = vsel %vm2900, 0, %v2899
    %v2902 = vsub.s32 32, %v2901
    %v2903 = vshll.u32 %v2894, %v2901
    %v2904 = vshrl.u32 %v2886, %v2902
    %v2905 = vor.u32 %v2903, %v2904
    %v2906 = vsub.s32 4294967266, %v2901
    %v2907 = vadd.s32 %v2906, 127
    %v2908 = vshll.u32 %v2907, 23
    %v2909 = vor.u32 4788187, %v2908
    %v2910 = vand.u32 2147483647, %v2909
    %v2912 = vcvt.s32.f32 %v2905
    %v2913 = vmul.f32 %v2912, %v2910
    %v2914 = vxor.u32 %v2913, 2147483648
    %v2915 = vsel %vm2832, %v2914, %v2913
    %v2916 = vsub.s32 4, %v2892
    %v2917 = vsel %vm2832, %v2916, %v2892
    %v2918 = vsel %vm2831, %v326, %v2915
    %v2919 = vsel %vm2831, 0, %v2917
    %v2920 = vcosq.f32.pop %v2918
    %v2921 = vsinq.f32.pop %v2918
    %vm2922 = vweird.f32 %v326
    %v2923 = vadd.s32 %v2919, 3
    %v2924 = vand.u32 %v2923, 3
    %vm2925 = vcmp.lt.s32.totalorder %v2924, 2
    %vm2926 = vcmp.eq.s32.totalorder %v2924, 0
    %v2927 = vxor.u32 %v2921, 2147483648
    %v2928 = vsel %vm2926, %v2920, %v2927
    %vm2929 = vcmp.eq.s32.totalorder %v2924, 2
    %v2930 = vxor.u32 %v2920, 2147483648
    %v2931 = vsel %vm2929, %v2930, %v2921
    %v2932 = vsel %vm2925, %v2928, %v2931
    %v2933 = vsel %vm2922, nan, %v2932
    %v2934 = vand.u32 2147483647, %v327
    %vm2935 = vcmp.le.f32.partialorder %v2934, 0.7853982
    %vm2936 = vcmp.lt.s32.totalorder %v327, 0
    %v2937 = vand.u32 %v327, 2139095040
    %v2938 = vshrl.u32 %v2937, 23
    %v2939 = vsub.s32 %v2938, 127
    %v2940 = vand.u32 2147483647, %v327
    %v2941 = vand.u32 %v2940, 8388607
    %v2942 = vor.u32 %v2941, 8388608
    %v2943 = vsub.s32 0, %v2942
    %v2944 = vadd.s32 %v2939, 1
    %vm2945 = vcmp.gt.s32.totalorder %v2944, 0
    %v2946 = vsel %vm2945, %v2944, 0
    %v2947 = vshrl.u32 %v2946, 5
    %v2948 = vand.u32 %v2946, 31
    %v2949 = vsub.s32 32, %v2948
    %v2950 = vshrl.u32 683565275, %v2949
    %v2951 = vshll.u32 683565275, %v2948
    %v2952 = vshrl.u32 2475754826, %v2949
    %v2953 = vor.u32 %v2951, %v2952
    %v2954 = vshll.u32 2475754826, %v2948
    %v2955 = vshrl.u32 2131351028, %v2949
    %v2956 = vor.u32 %v2954, %v2955
    %v2957 = vshll.u32 2131351028, %v2948
    %v2958 = vshrl.u32 2102212464, %v2949
    %v2959 = vor.u32 %v2957, %v2958
    %v2960 = vshll.u32 2102212464, %v2948
    %v2961 = vshrl.u32 920167782, %v2949
    %v2962 = vor.u32 %v2960, %v2961
    %v2963 = vshll.u32 920167782, %v2948
    %v2964 = vshrl.u32 1326507024, %v2949
    %v2965 = vor.u32 %v2963, %v2964
    %vm2966 = vcmp.lt.s32.totalorder %v2947, 1
    %vm2967 = vcmp.lt.s32.totalorder %v2947, 2
    %vm2968 = vcmp.lt.s32.totalorder %v2947, 3
    %vm2969 = vcmp.lt.s32.totalorder %v2947, 4
    %v2970 = vsel %vm2966, %v2950, %v2953
    %v2971 = vsel %vm2969, %v2959, 2102212464
    %v2972 = vsel %vm2968, %v2956, %v2971
    %v2973 = vsel %vm2967, %v2970, %v2972
    %v2974 = vsel %vm2966, %v2953, %v2956
    %v2975 = vsel %vm2969, %v2962, 920167782
    %v2976 = vsel %vm2968, %v2959, %v2975
    %v2977 = vsel %vm2967, %v2974, %v2976
    %v2978 = vsel %vm2966, %v2956, %v2959
    %v2979 = vsel %vm2969, %v2965, 1326507024
    %v2980 = vsel %vm2968, %v2962, %v2979
    %v2981 = vsel %vm2967, %v2978, %v2980
    %v2982 = vshll.u32 %v2942, 8
    %v2983 = vmul.u32.u64.compose %v2982, %v2981
    %v2984 = vextract.low.u32 %v2983
    %v2985 = vextract.high.u32 %v2983
    %v2986 = vmul.u32.u64.compose %v2982, %v2977
    %v2987 = vextract.low.u32 %v2986
    %v2988 = vextract.high.u32 %v2986
    %v2989 = vmul.u32 %v2982, %v2973
    %v2990 = vadd.s32 %v2985, %v2987
    %vm2991 = vc.u32 %v2985, %v2987
    %v2992 = vadd.s32 %v2988, 1
    %v2993 = vsel %vm2991, %v2992, %v2988
    %v2994 = vadd.s32 %v2989, %v2993
    %v2995 = vadd.s32 %v2994, 536870912
    %v2996 = vshrl.u32 %v2995, 30
    %v2997 = vshll.u32 %v2996, 30
    %v2998 = vsub.s32 %v2994, %v2997
    %vm2999 = vcmp.lt.s32.totalorder %v2998, 0
    %v3000 = vsub.s32 0, %v2998
    %v3001 = vsel %vm2999, %v3000, %v2998
    %v3002 = vclz %v3001
    %v3003 = vsub.s32 %v3002, 2
    %vm3004 = vcmp.gt.s32.totalorder 0, %v3003
    %v3005 = vsel %vm3004, 0, %v3003
    %v3006 = vsub.s32 32, %v3005
    %v3007 = vshll.u32 %v2998, %v3005
    %v3008 = vshrl.u32 %v2990, %v3006
    %v3009 = vor.u32 %v3007, %v3008
    %v3010 = vsub.s32 4294967266, %v3005
    %v3011 = vadd.s32 %v3010, 127
    %v3012 = vshll.u32 %v3011, 23
    %v3013 = vor.u32 4788187, %v3012
    %v3014 = vand.u32 2147483647, %v3013
    %v3016 = vcvt.s32.f32 %v3009
    %v3017 = vmul.f32 %v3016, %v3014
    %v3018 = vxor.u32 %v3017, 2147483648
    %v3019 = vsel %vm2936, %v3018, %v3017
    %v3020 = vsub.s32 4, %v2996
    %v3021 = vsel %vm2936, %v3020, %v2996
    %v3022 = vsel %vm2935, %v327, %v3019
    %v3023 = vsel %vm2935, 0, %v3021
    %v3024 = vcosq.f32.pop %v3022
    %v3025 = vsinq.f32.pop %v3022
    %vm3026 = vweird.f32 %v327
    %v3027 = vadd.s32 %v3023, 3
    %v3028 = vand.u32 %v3027, 3
    %vm3029 = vcmp.lt.s32.totalorder %v3028, 2
    %vm3030 = vcmp.eq.s32.totalorder %v3028, 0
    %v3031 = vxor.u32 %v3025, 2147483648
    %v3032 = vsel %vm3030, %v3024, %v3031
    %vm3033 = vcmp.eq.s32.totalorder %v3028, 2
    %v3034 = vxor.u32 %v3024, 2147483648
    %v3035 = vsel %vm3033, %v3034, %v3025
    %v3036 = vsel %vm3029, %v3032, %v3035
    %v3037 = vsel %vm3026, nan, %v3036
    %v3038 = vand.u32 2147483647, %v328
    %vm3039 = vcmp.le.f32.partialorder %v3038, 0.7853982
    %vm3040 = vcmp.lt.s32.totalorder %v328, 0
    %v3041 = vand.u32 %v328, 2139095040
    %v3042 = vshrl.u32 %v3041, 23
    %v3043 = vsub.s32 %v3042, 127
    %v3044 = vand.u32 2147483647, %v328
    %v3045 = vand.u32 %v3044, 8388607
    %v3046 = vor.u32 %v3045, 8388608
    %v3047 = vsub.s32 0, %v3046
    %v3048 = vadd.s32 %v3043, 1
    %vm3049 = vcmp.gt.s32.totalorder %v3048, 0
    %v3050 = vsel %vm3049, %v3048, 0
    %v3051 = vshrl.u32 %v3050, 5
    %v3052 = vand.u32 %v3050, 31
    %v3053 = vsub.s32 32, %v3052
    %v3054 = vshrl.u32 683565275, %v3053
    %v3055 = vshll.u32 683565275, %v3052
    %v3056 = vshrl.u32 2475754826, %v3053
    %v3057 = vor.u32 %v3055, %v3056
    %v3058 = vshll.u32 2475754826, %v3052
    %v3059 = vshrl.u32 2131351028, %v3053
    %v3060 = vor.u32 %v3058, %v3059
    %v3061 = vshll.u32 2131351028, %v3052
    %v3062 = vshrl.u32 2102212464, %v3053
    %v3063 = vor.u32 %v3061, %v3062
    %v3064 = vshll.u32 2102212464, %v3052
    %v3065 = vshrl.u32 920167782, %v3053
    %v3066 = vor.u32 %v3064, %v3065
    %v3067 = vshll.u32 920167782, %v3052
    %v3068 = vshrl.u32 1326507024, %v3053
    %v3069 = vor.u32 %v3067, %v3068
    %vm3070 = vcmp.lt.s32.totalorder %v3051, 1
    %vm3071 = vcmp.lt.s32.totalorder %v3051, 2
    %vm3072 = vcmp.lt.s32.totalorder %v3051, 3
    %vm3073 = vcmp.lt.s32.totalorder %v3051, 4
    %v3074 = vsel %vm3070, %v3054, %v3057
    %v3075 = vsel %vm3073, %v3063, 2102212464
    %v3076 = vsel %vm3072, %v3060, %v3075
    %v3077 = vsel %vm3071, %v3074, %v3076
    %v3078 = vsel %vm3070, %v3057, %v3060
    %v3079 = vsel %vm3073, %v3066, 920167782
    %v3080 = vsel %vm3072, %v3063, %v3079
    %v3081 = vsel %vm3071, %v3078, %v3080
    %v3082 = vsel %vm3070, %v3060, %v3063
    %v3083 = vsel %vm3073, %v3069, 1326507024
    %v3084 = vsel %vm3072, %v3066, %v3083
    %v3085 = vsel %vm3071, %v3082, %v3084
    %v3086 = vshll.u32 %v3046, 8
    %v3087 = vmul.u32.u64.compose %v3086, %v3085
    %v3088 = vextract.low.u32 %v3087
    %v3089 = vextract.high.u32 %v3087
    %v3090 = vmul.u32.u64.compose %v3086, %v3081
    %v3091 = vextract.low.u32 %v3090
    %v3092 = vextract.high.u32 %v3090
    %v3093 = vmul.u32 %v3086, %v3077
    %v3094 = vadd.s32 %v3089, %v3091
    %vm3095 = vc.u32 %v3089, %v3091
    %v3096 = vadd.s32 %v3092, 1
    %v3097 = vsel %vm3095, %v3096, %v3092
    %v3098 = vadd.s32 %v3093, %v3097
    %v3099 = vadd.s32 %v3098, 536870912
    %v3100 = vshrl.u32 %v3099, 30
    %v3101 = vshll.u32 %v3100, 30
    %v3102 = vsub.s32 %v3098, %v3101
    %vm3103 = vcmp.lt.s32.totalorder %v3102, 0
    %v3104 = vsub.s32 0, %v3102
    %v3105 = vsel %vm3103, %v3104, %v3102
    %v3106 = vclz %v3105
    %v3107 = vsub.s32 %v3106, 2
    %vm3108 = vcmp.gt.s32.totalorder 0, %v3107
    %v3109 = vsel %vm3108, 0, %v3107
    %v3110 = vsub.s32 32, %v3109
    %v3111 = vshll.u32 %v3102, %v3109
    %v3112 = vshrl.u32 %v3094, %v3110
    %v3113 = vor.u32 %v3111, %v3112
    %v3114 = vsub.s32 4294967266, %v3109
    %v3115 = vadd.s32 %v3114, 127
    %v3116 = vshll.u32 %v3115, 23
    %v3117 = vor.u32 4788187, %v3116
    %v3118 = vand.u32 2147483647, %v3117
    %v3120 = vcvt.s32.f32 %v3113
    %v3121 = vmul.f32 %v3120, %v3118
    %v3122 = vxor.u32 %v3121, 2147483648
    %v3123 = vsel %vm3040, %v3122, %v3121
    %v3124 = vsub.s32 4, %v3100
    %v3125 = vsel %vm3040, %v3124, %v3100
    %v3126 = vsel %vm3039, %v328, %v3123
    %v3127 = vsel %vm3039, 0, %v3125
    %v3128 = vcosq.f32.pop %v3126
    %v3129 = vsinq.f32.pop %v3126
    %vm3130 = vweird.f32 %v328
    %v3131 = vadd.s32 %v3127, 3
    %v3132 = vand.u32 %v3131, 3
    %vm3133 = vcmp.lt.s32.totalorder %v3132, 2
    %vm3134 = vcmp.eq.s32.totalorder %v3132, 0
    %v3135 = vxor.u32 %v3129, 2147483648
    %v3136 = vsel %vm3134, %v3128, %v3135
    %vm3137 = vcmp.eq.s32.totalorder %v3132, 2
    %v3138 = vxor.u32 %v3128, 2147483648
    %v3139 = vsel %vm3137, %v3138, %v3129
    %v3140 = vsel %vm3133, %v3136, %v3139
    %v3141 = vsel %vm3130, nan, %v3140
    %v3142 = vand.u32 2147483647, %v329
    %vm3143 = vcmp.le.f32.partialorder %v3142, 0.7853982
    %vm3144 = vcmp.lt.s32.totalorder %v329, 0
    %v3145 = vand.u32 %v329, 2139095040
    %v3146 = vshrl.u32 %v3145, 23
    %v3147 = vsub.s32 %v3146, 127
    %v3148 = vand.u32 2147483647, %v329
    %v3149 = vand.u32 %v3148, 8388607
    %v3150 = vor.u32 %v3149, 8388608
    %v3151 = vsub.s32 0, %v3150
    %v3152 = vadd.s32 %v3147, 1
    %vm3153 = vcmp.gt.s32.totalorder %v3152, 0
    %v3154 = vsel %vm3153, %v3152, 0
    %v3155 = vshrl.u32 %v3154, 5
    %v3156 = vand.u32 %v3154, 31
    %v3157 = vsub.s32 32, %v3156
    %v3158 = vshrl.u32 683565275, %v3157
    %v3159 = vshll.u32 683565275, %v3156
    %v3160 = vshrl.u32 2475754826, %v3157
    %v3161 = vor.u32 %v3159, %v3160
    %v3162 = vshll.u32 2475754826, %v3156
    %v3163 = vshrl.u32 2131351028, %v3157
    %v3164 = vor.u32 %v3162, %v3163
    %v3165 = vshll.u32 2131351028, %v3156
    %v3166 = vshrl.u32 2102212464, %v3157
    %v3167 = vor.u32 %v3165, %v3166
    %v3168 = vshll.u32 2102212464, %v3156
    %v3169 = vshrl.u32 920167782, %v3157
    %v3170 = vor.u32 %v3168, %v3169
    %v3171 = vshll.u32 920167782, %v3156
    %v3172 = vshrl.u32 1326507024, %v3157
    %v3173 = vor.u32 %v3171, %v3172
    %vm3174 = vcmp.lt.s32.totalorder %v3155, 1
    %vm3175 = vcmp.lt.s32.totalorder %v3155, 2
    %vm3176 = vcmp.lt.s32.totalorder %v3155, 3
    %vm3177 = vcmp.lt.s32.totalorder %v3155, 4
    %v3178 = vsel %vm3174, %v3158, %v3161
    %v3179 = vsel %vm3177, %v3167, 2102212464
    %v3180 = vsel %vm3176, %v3164, %v3179
    %v3181 = vsel %vm3175, %v3178, %v3180
    %v3182 = vsel %vm3174, %v3161, %v3164
    %v3183 = vsel %vm3177, %v3170, 920167782
    %v3184 = vsel %vm3176, %v3167, %v3183
    %v3185 = vsel %vm3175, %v3182, %v3184
    %v3186 = vsel %vm3174, %v3164, %v3167
    %v3187 = vsel %vm3177, %v3173, 1326507024
    %v3188 = vsel %vm3176, %v3170, %v3187
    %v3189 = vsel %vm3175, %v3186, %v3188
    %v3190 = vshll.u32 %v3150, 8
    %v3191 = vmul.u32.u64.compose %v3190, %v3189
    %v3192 = vextract.low.u32 %v3191
    %v3193 = vextract.high.u32 %v3191
    %v3194 = vmul.u32.u64.compose %v3190, %v3185
    %v3195 = vextract.low.u32 %v3194
    %v3196 = vextract.high.u32 %v3194
    %v3197 = vmul.u32 %v3190, %v3181
    %v3198 = vadd.s32 %v3193, %v3195
    %vm3199 = vc.u32 %v3193, %v3195
    %v3200 = vadd.s32 %v3196, 1
    %v3201 = vsel %vm3199, %v3200, %v3196
    %v3202 = vadd.s32 %v3197, %v3201
    %v3203 = vadd.s32 %v3202, 536870912
    %v3204 = vshrl.u32 %v3203, 30
    %v3205 = vshll.u32 %v3204, 30
    %v3206 = vsub.s32 %v3202, %v3205
    %vm3207 = vcmp.lt.s32.totalorder %v3206, 0
    %v3208 = vsub.s32 0, %v3206
    %v3209 = vsel %vm3207, %v3208, %v3206
    %v3210 = vclz %v3209
    %v3211 = vsub.s32 %v3210, 2
    %vm3212 = vcmp.gt.s32.totalorder 0, %v3211
    %v3213 = vsel %vm3212, 0, %v3211
    %v3214 = vsub.s32 32, %v3213
    %v3215 = vshll.u32 %v3206, %v3213
    %v3216 = vshrl.u32 %v3198, %v3214
    %v3217 = vor.u32 %v3215, %v3216
    %v3218 = vsub.s32 4294967266, %v3213
    %v3219 = vadd.s32 %v3218, 127
    %v3220 = vshll.u32 %v3219, 23
    %v3221 = vor.u32 4788187, %v3220
    %v3222 = vand.u32 2147483647, %v3221
    %v3224 = vcvt.s32.f32 %v3217
    %v3225 = vmul.f32 %v3224, %v3222
    %v3226 = vxor.u32 %v3225, 2147483648
    %v3227 = vsel %vm3144, %v3226, %v3225
    %v3228 = vsub.s32 4, %v3204
    %v3229 = vsel %vm3144, %v3228, %v3204
    %v3230 = vsel %vm3143, %v329, %v3227
    %v3231 = vsel %vm3143, 0, %v3229
    %v3232 = vcosq.f32.pop %v3230
    %v3233 = vsinq.f32.pop %v3230
    %vm3234 = vweird.f32 %v329
    %v3235 = vadd.s32 %v3231, 3
    %v3236 = vand.u32 %v3235, 3
    %vm3237 = vcmp.lt.s32.totalorder %v3236, 2
    %vm3238 = vcmp.eq.s32.totalorder %v3236, 0
    %v3239 = vxor.u32 %v3233, 2147483648
    %v3240 = vsel %vm3238, %v3232, %v3239
    %vm3241 = vcmp.eq.s32.totalorder %v3236, 2
    %v3242 = vxor.u32 %v3232, 2147483648
    %v3243 = vsel %vm3241, %v3242, %v3233
    %v3244 = vsel %vm3237, %v3240, %v3243
    %v3245 = vsel %vm3234, nan, %v3244
    %v3246 = vand.u32 2147483647, %v330
    %vm3247 = vcmp.le.f32.partialorder %v3246, 0.7853982
    %vm3248 = vcmp.lt.s32.totalorder %v330, 0
    %v3249 = vand.u32 %v330, 2139095040
    %v3250 = vshrl.u32 %v3249, 23
    %v3251 = vsub.s32 %v3250, 127
    %v3252 = vand.u32 2147483647, %v330
    %v3253 = vand.u32 %v3252, 8388607
    %v3254 = vor.u32 %v3253, 8388608
    %v3255 = vsub.s32 0, %v3254
    %v3256 = vadd.s32 %v3251, 1
    %vm3257 = vcmp.gt.s32.totalorder %v3256, 0
    %v3258 = vsel %vm3257, %v3256, 0
    %v3259 = vshrl.u32 %v3258, 5
    %v3260 = vand.u32 %v3258, 31
    %v3261 = vsub.s32 32, %v3260
    %v3262 = vshrl.u32 683565275, %v3261
    %v3263 = vshll.u32 683565275, %v3260
    %v3264 = vshrl.u32 2475754826, %v3261
    %v3265 = vor.u32 %v3263, %v3264
    %v3266 = vshll.u32 2475754826, %v3260
    %v3267 = vshrl.u32 2131351028, %v3261
    %v3268 = vor.u32 %v3266, %v3267
    %v3269 = vshll.u32 2131351028, %v3260
    %v3270 = vshrl.u32 2102212464, %v3261
    %v3271 = vor.u32 %v3269, %v3270
    %v3272 = vshll.u32 2102212464, %v3260
    %v3273 = vshrl.u32 920167782, %v3261
    %v3274 = vor.u32 %v3272, %v3273
    %v3275 = vshll.u32 920167782, %v3260
    %v3276 = vshrl.u32 1326507024, %v3261
    %v3277 = vor.u32 %v3275, %v3276
    %vm3278 = vcmp.lt.s32.totalorder %v3259, 1
    %vm3279 = vcmp.lt.s32.totalorder %v3259, 2
    %vm3280 = vcmp.lt.s32.totalorder %v3259, 3
    %vm3281 = vcmp.lt.s32.totalorder %v3259, 4
    %v3282 = vsel %vm3278, %v3262, %v3265
    %v3283 = vsel %vm3281, %v3271, 2102212464
    %v3284 = vsel %vm3280, %v3268, %v3283
    %v3285 = vsel %vm3279, %v3282, %v3284
    %v3286 = vsel %vm3278, %v3265, %v3268
    %v3287 = vsel %vm3281, %v3274, 920167782
    %v3288 = vsel %vm3280, %v3271, %v3287
    %v3289 = vsel %vm3279, %v3286, %v3288
    %v3290 = vsel %vm3278, %v3268, %v3271
    %v3291 = vsel %vm3281, %v3277, 1326507024
    %v3292 = vsel %vm3280, %v3274, %v3291
    %v3293 = vsel %vm3279, %v3290, %v3292
    %v3294 = vshll.u32 %v3254, 8
    %v3295 = vmul.u32.u64.compose %v3294, %v3293
    %v3296 = vextract.low.u32 %v3295
    %v3297 = vextract.high.u32 %v3295
    %v3298 = vmul.u32.u64.compose %v3294, %v3289
    %v3299 = vextract.low.u32 %v3298
    %v3300 = vextract.high.u32 %v3298
    %v3301 = vmul.u32 %v3294, %v3285
    %v3302 = vadd.s32 %v3297, %v3299
    %vm3303 = vc.u32 %v3297, %v3299
    %v3304 = vadd.s32 %v3300, 1
    %v3305 = vsel %vm3303, %v3304, %v3300
    %v3306 = vadd.s32 %v3301, %v3305
    %v3307 = vadd.s32 %v3306, 536870912
    %v3308 = vshrl.u32 %v3307, 30
    %v3309 = vshll.u32 %v3308, 30
    %v3310 = vsub.s32 %v3306, %v3309
    %vm3311 = vcmp.lt.s32.totalorder %v3310, 0
    %v3312 = vsub.s32 0, %v3310
    %v3313 = vsel %vm3311, %v3312, %v3310
    %v3314 = vclz %v3313
    %v3315 = vsub.s32 %v3314, 2
    %vm3316 = vcmp.gt.s32.totalorder 0, %v3315
    %v3317 = vsel %vm3316, 0, %v3315
    %v3318 = vsub.s32 32, %v3317
    %v3319 = vshll.u32 %v3310, %v3317
    %v3320 = vshrl.u32 %v3302, %v3318
    %v3321 = vor.u32 %v3319, %v3320
    %v3322 = vsub.s32 4294967266, %v3317
    %v3323 = vadd.s32 %v3322, 127
    %v3324 = vshll.u32 %v3323, 23
    %v3325 = vor.u32 4788187, %v3324
    %v3326 = vand.u32 2147483647, %v3325
    %v3328 = vcvt.s32.f32 %v3321
    %v3329 = vmul.f32 %v3328, %v3326
    %v3330 = vxor.u32 %v3329, 2147483648
    %v3331 = vsel %vm3248, %v3330, %v3329
    %v3332 = vsub.s32 4, %v3308
    %v3333 = vsel %vm3248, %v3332, %v3308
    %v3334 = vsel %vm3247, %v330, %v3331
    %v3335 = vsel %vm3247, 0, %v3333
    %v3336 = vcosq.f32.pop %v3334
    %v3337 = vsinq.f32.pop %v3334
    %vm3338 = vweird.f32 %v330
    %v3339 = vadd.s32 %v3335, 3
    %v3340 = vand.u32 %v3339, 3
    %vm3341 = vcmp.lt.s32.totalorder %v3340, 2
    %vm3342 = vcmp.eq.s32.totalorder %v3340, 0
    %v3343 = vxor.u32 %v3337, 2147483648
    %v3344 = vsel %vm3342, %v3336, %v3343
    %vm3345 = vcmp.eq.s32.totalorder %v3340, 2
    %v3346 = vxor.u32 %v3336, 2147483648
    %v3347 = vsel %vm3345, %v3346, %v3337
    %v3348 = vsel %vm3341, %v3344, %v3347
    %v3349 = vsel %vm3338, nan, %v3348
    %v3350 = vand.u32 2147483647, %v331
    %vm3351 = vcmp.le.f32.partialorder %v3350, 0.7853982
    %vm3352 = vcmp.lt.s32.totalorder %v331, 0
    %v3353 = vand.u32 %v331, 2139095040
    %v3354 = vshrl.u32 %v3353, 23
    %v3355 = vsub.s32 %v3354, 127
    %v3356 = vand.u32 2147483647, %v331
    %v3357 = vand.u32 %v3356, 8388607
    %v3358 = vor.u32 %v3357, 8388608
    %v3359 = vsub.s32 0, %v3358
    %v3360 = vadd.s32 %v3355, 1
    %vm3361 = vcmp.gt.s32.totalorder %v3360, 0
    %v3362 = vsel %vm3361, %v3360, 0
    %v3363 = vshrl.u32 %v3362, 5
    %v3364 = vand.u32 %v3362, 31
    %v3365 = vsub.s32 32, %v3364
    %v3366 = vshrl.u32 683565275, %v3365
    %v3367 = vshll.u32 683565275, %v3364
    %v3368 = vshrl.u32 2475754826, %v3365
    %v3369 = vor.u32 %v3367, %v3368
    %v3370 = vshll.u32 2475754826, %v3364
    %v3371 = vshrl.u32 2131351028, %v3365
    %v3372 = vor.u32 %v3370, %v3371
    %v3373 = vshll.u32 2131351028, %v3364
    %v3374 = vshrl.u32 2102212464, %v3365
    %v3375 = vor.u32 %v3373, %v3374
    %v3376 = vshll.u32 2102212464, %v3364
    %v3377 = vshrl.u32 920167782, %v3365
    %v3378 = vor.u32 %v3376, %v3377
    %v3379 = vshll.u32 920167782, %v3364
    %v3380 = vshrl.u32 1326507024, %v3365
    %v3381 = vor.u32 %v3379, %v3380
    %vm3382 = vcmp.lt.s32.totalorder %v3363, 1
    %vm3383 = vcmp.lt.s32.totalorder %v3363, 2
    %vm3384 = vcmp.lt.s32.totalorder %v3363, 3
    %vm3385 = vcmp.lt.s32.totalorder %v3363, 4
    %v3386 = vsel %vm3382, %v3366, %v3369
    %v3387 = vsel %vm3385, %v3375, 2102212464
    %v3388 = vsel %vm3384, %v3372, %v3387
    %v3389 = vsel %vm3383, %v3386, %v3388
    %v3390 = vsel %vm3382, %v3369, %v3372
    %v3391 = vsel %vm3385, %v3378, 920167782
    %v3392 = vsel %vm3384, %v3375, %v3391
    %v3393 = vsel %vm3383, %v3390, %v3392
    %v3394 = vsel %vm3382, %v3372, %v3375
    %v3395 = vsel %vm3385, %v3381, 1326507024
    %v3396 = vsel %vm3384, %v3378, %v3395
    %v3397 = vsel %vm3383, %v3394, %v3396
    %v3398 = vshll.u32 %v3358, 8
    %v3399 = vmul.u32.u64.compose %v3398, %v3397
    %v3400 = vextract.low.u32 %v3399
    %v3401 = vextract.high.u32 %v3399
    %v3402 = vmul.u32.u64.compose %v3398, %v3393
    %v3403 = vextract.low.u32 %v3402
    %v3404 = vextract.high.u32 %v3402
    %v3405 = vmul.u32 %v3398, %v3389
    %v3406 = vadd.s32 %v3401, %v3403
    %vm3407 = vc.u32 %v3401, %v3403
    %v3408 = vadd.s32 %v3404, 1
    %v3409 = vsel %vm3407, %v3408, %v3404
    %v3410 = vadd.s32 %v3405, %v3409
    %v3411 = vadd.s32 %v3410, 536870912
    %v3412 = vshrl.u32 %v3411, 30
    %v3413 = vshll.u32 %v3412, 30
    %v3414 = vsub.s32 %v3410, %v3413
    %vm3415 = vcmp.lt.s32.totalorder %v3414, 0
    %v3416 = vsub.s32 0, %v3414
    %v3417 = vsel %vm3415, %v3416, %v3414
    %v3418 = vclz %v3417
    %v3419 = vsub.s32 %v3418, 2
    %vm3420 = vcmp.gt.s32.totalorder 0, %v3419
    %v3421 = vsel %vm3420, 0, %v3419
    %v3422 = vsub.s32 32, %v3421
    %v3423 = vshll.u32 %v3414, %v3421
    %v3424 = vshrl.u32 %v3406, %v3422
    %v3425 = vor.u32 %v3423, %v3424
    %v3426 = vsub.s32 4294967266, %v3421
    %v3427 = vadd.s32 %v3426, 127
    %v3428 = vshll.u32 %v3427, 23
    %v3429 = vor.u32 4788187, %v3428
    %v3430 = vand.u32 2147483647, %v3429
    %v3432 = vcvt.s32.f32 %v3425
    %v3433 = vmul.f32 %v3432, %v3430
    %v3434 = vxor.u32 %v3433, 2147483648
    %v3435 = vsel %vm3352, %v3434, %v3433
    %v3436 = vsub.s32 4, %v3412
    %v3437 = vsel %vm3352, %v3436, %v3412
    %v3438 = vsel %vm3351, %v331, %v3435
    %v3439 = vsel %vm3351, 0, %v3437
    %v3440 = vcosq.f32.pop %v3438
    %v3441 = vsinq.f32.pop %v3438
    %vm3442 = vweird.f32 %v331
    %v3443 = vadd.s32 %v3439, 3
    %v3444 = vand.u32 %v3443, 3
    %vm3445 = vcmp.lt.s32.totalorder %v3444, 2
    %vm3446 = vcmp.eq.s32.totalorder %v3444, 0
    %v3447 = vxor.u32 %v3441, 2147483648
    %v3448 = vsel %vm3446, %v3440, %v3447
    %vm3449 = vcmp.eq.s32.totalorder %v3444, 2
    %v3450 = vxor.u32 %v3440, 2147483648
    %v3451 = vsel %vm3449, %v3450, %v3441
    %v3452 = vsel %vm3445, %v3448, %v3451
    %v3453 = vsel %vm3442, nan, %v3452
    %v3454 = vand.u32 2147483647, %v332
    %vm3455 = vcmp.le.f32.partialorder %v3454, 0.7853982
    %vm3456 = vcmp.lt.s32.totalorder %v332, 0
    %v3457 = vand.u32 %v332, 2139095040
    %v3458 = vshrl.u32 %v3457, 23
    %v3459 = vsub.s32 %v3458, 127
    %v3460 = vand.u32 2147483647, %v332
    %v3461 = vand.u32 %v3460, 8388607
    %v3462 = vor.u32 %v3461, 8388608
    %v3463 = vsub.s32 0, %v3462
    %v3464 = vadd.s32 %v3459, 1
    %vm3465 = vcmp.gt.s32.totalorder %v3464, 0
    %v3466 = vsel %vm3465, %v3464, 0
    %v3467 = vshrl.u32 %v3466, 5
    %v3468 = vand.u32 %v3466, 31
    %v3469 = vsub.s32 32, %v3468
    %v3470 = vshrl.u32 683565275, %v3469
    %v3471 = vshll.u32 683565275, %v3468
    %v3472 = vshrl.u32 2475754826, %v3469
    %v3473 = vor.u32 %v3471, %v3472
    %v3474 = vshll.u32 2475754826, %v3468
    %v3475 = vshrl.u32 2131351028, %v3469
    %v3476 = vor.u32 %v3474, %v3475
    %v3477 = vshll.u32 2131351028, %v3468
    %v3478 = vshrl.u32 2102212464, %v3469
    %v3479 = vor.u32 %v3477, %v3478
    %v3480 = vshll.u32 2102212464, %v3468
    %v3481 = vshrl.u32 920167782, %v3469
    %v3482 = vor.u32 %v3480, %v3481
    %v3483 = vshll.u32 920167782, %v3468
    %v3484 = vshrl.u32 1326507024, %v3469
    %v3485 = vor.u32 %v3483, %v3484
    %vm3486 = vcmp.lt.s32.totalorder %v3467, 1
    %vm3487 = vcmp.lt.s32.totalorder %v3467, 2
    %vm3488 = vcmp.lt.s32.totalorder %v3467, 3
    %vm3489 = vcmp.lt.s32.totalorder %v3467, 4
    %v3490 = vsel %vm3486, %v3470, %v3473
    %v3491 = vsel %vm3489, %v3479, 2102212464
    %v3492 = vsel %vm3488, %v3476, %v3491
    %v3493 = vsel %vm3487, %v3490, %v3492
    %v3494 = vsel %vm3486, %v3473, %v3476
    %v3495 = vsel %vm3489, %v3482, 920167782
    %v3496 = vsel %vm3488, %v3479, %v3495
    %v3497 = vsel %vm3487, %v3494, %v3496
    %v3498 = vsel %vm3486, %v3476, %v3479
    %v3499 = vsel %vm3489, %v3485, 1326507024
    %v3500 = vsel %vm3488, %v3482, %v3499
    %v3501 = vsel %vm3487, %v3498, %v3500
    %v3502 = vshll.u32 %v3462, 8
    %v3503 = vmul.u32.u64.compose %v3502, %v3501
    %v3504 = vextract.low.u32 %v3503
    %v3505 = vextract.high.u32 %v3503
    %v3506 = vmul.u32.u64.compose %v3502, %v3497
    %v3507 = vextract.low.u32 %v3506
    %v3508 = vextract.high.u32 %v3506
    %v3509 = vmul.u32 %v3502, %v3493
    %v3510 = vadd.s32 %v3505, %v3507
    %vm3511 = vc.u32 %v3505, %v3507
    %v3512 = vadd.s32 %v3508, 1
    %v3513 = vsel %vm3511, %v3512, %v3508
    %v3514 = vadd.s32 %v3509, %v3513
    %v3515 = vadd.s32 %v3514, 536870912
    %v3516 = vshrl.u32 %v3515, 30
    %v3517 = vshll.u32 %v3516, 30
    %v3518 = vsub.s32 %v3514, %v3517
    %vm3519 = vcmp.lt.s32.totalorder %v3518, 0
    %v3520 = vsub.s32 0, %v3518
    %v3521 = vsel %vm3519, %v3520, %v3518
    %v3522 = vclz %v3521
    %v3523 = vsub.s32 %v3522, 2
    %vm3524 = vcmp.gt.s32.totalorder 0, %v3523
    %v3525 = vsel %vm3524, 0, %v3523
    %v3526 = vsub.s32 32, %v3525
    %v3527 = vshll.u32 %v3518, %v3525
    %v3528 = vshrl.u32 %v3510, %v3526
    %v3529 = vor.u32 %v3527, %v3528
    %v3530 = vsub.s32 4294967266, %v3525
    %v3531 = vadd.s32 %v3530, 127
    %v3532 = vshll.u32 %v3531, 23
    %v3533 = vor.u32 4788187, %v3532
    %v3534 = vand.u32 2147483647, %v3533
    %v3536 = vcvt.s32.f32 %v3529
    %v3537 = vmul.f32 %v3536, %v3534
    %v3538 = vxor.u32 %v3537, 2147483648
    %v3539 = vsel %vm3456, %v3538, %v3537
    %v3540 = vsub.s32 4, %v3516
    %v3541 = vsel %vm3456, %v3540, %v3516
    %v3542 = vsel %vm3455, %v332, %v3539
    %v3543 = vsel %vm3455, 0, %v3541
    %v3544 = vcosq.f32.pop %v3542
    %v3545 = vsinq.f32.pop %v3542
    %vm3546 = vweird.f32 %v332
    %v3547 = vadd.s32 %v3543, 3
    %v3548 = vand.u32 %v3547, 3
    %vm3549 = vcmp.lt.s32.totalorder %v3548, 2
    %vm3550 = vcmp.eq.s32.totalorder %v3548, 0
    %v3551 = vxor.u32 %v3545, 2147483648
    %v3552 = vsel %vm3550, %v3544, %v3551
    %vm3553 = vcmp.eq.s32.totalorder %v3548, 2
    %v3554 = vxor.u32 %v3544, 2147483648
    %v3555 = vsel %vm3553, %v3554, %v3545
    %v3556 = vsel %vm3549, %v3552, %v3555
    %v3557 = vsel %vm3546, nan, %v3556
    %v3558 = vand.u32 2147483647, %v333
    %vm3559 = vcmp.le.f32.partialorder %v3558, 0.7853982
    %vm3560 = vcmp.lt.s32.totalorder %v333, 0
    %v3561 = vand.u32 %v333, 2139095040
    %v3562 = vshrl.u32 %v3561, 23
    %v3563 = vsub.s32 %v3562, 127
    %v3564 = vand.u32 2147483647, %v333
    %v3565 = vand.u32 %v3564, 8388607
    %v3566 = vor.u32 %v3565, 8388608
    %v3567 = vsub.s32 0, %v3566
    %v3568 = vadd.s32 %v3563, 1
    %vm3569 = vcmp.gt.s32.totalorder %v3568, 0
    %v3570 = vsel %vm3569, %v3568, 0
    %v3571 = vshrl.u32 %v3570, 5
    %v3572 = vand.u32 %v3570, 31
    %v3573 = vsub.s32 32, %v3572
    %v3574 = vshrl.u32 683565275, %v3573
    %v3575 = vshll.u32 683565275, %v3572
    %v3576 = vshrl.u32 2475754826, %v3573
    %v3577 = vor.u32 %v3575, %v3576
    %v3578 = vshll.u32 2475754826, %v3572
    %v3579 = vshrl.u32 2131351028, %v3573
    %v3580 = vor.u32 %v3578, %v3579
    %v3581 = vshll.u32 2131351028, %v3572
    %v3582 = vshrl.u32 2102212464, %v3573
    %v3583 = vor.u32 %v3581, %v3582
    %v3584 = vshll.u32 2102212464, %v3572
    %v3585 = vshrl.u32 920167782, %v3573
    %v3586 = vor.u32 %v3584, %v3585
    %v3587 = vshll.u32 920167782, %v3572
    %v3588 = vshrl.u32 1326507024, %v3573
    %v3589 = vor.u32 %v3587, %v3588
    %vm3590 = vcmp.lt.s32.totalorder %v3571, 1
    %vm3591 = vcmp.lt.s32.totalorder %v3571, 2
    %vm3592 = vcmp.lt.s32.totalorder %v3571, 3
    %vm3593 = vcmp.lt.s32.totalorder %v3571, 4
    %v3594 = vsel %vm3590, %v3574, %v3577
    %v3595 = vsel %vm3593, %v3583, 2102212464
    %v3596 = vsel %vm3592, %v3580, %v3595
    %v3597 = vsel %vm3591, %v3594, %v3596
    %v3598 = vsel %vm3590, %v3577, %v3580
    %v3599 = vsel %vm3593, %v3586, 920167782
    %v3600 = vsel %vm3592, %v3583, %v3599
    %v3601 = vsel %vm3591, %v3598, %v3600
    %v3602 = vsel %vm3590, %v3580, %v3583
    %v3603 = vsel %vm3593, %v3589, 1326507024
    %v3604 = vsel %vm3592, %v3586, %v3603
    %v3605 = vsel %vm3591, %v3602, %v3604
    %v3606 = vshll.u32 %v3566, 8
    %v3607 = vmul.u32.u64.compose %v3606, %v3605
    %v3608 = vextract.low.u32 %v3607
    %v3609 = vextract.high.u32 %v3607
    %v3610 = vmul.u32.u64.compose %v3606, %v3601
    %v3611 = vextract.low.u32 %v3610
    %v3612 = vextract.high.u32 %v3610
    %v3613 = vmul.u32 %v3606, %v3597
    %v3614 = vadd.s32 %v3609, %v3611
    %vm3615 = vc.u32 %v3609, %v3611
    %v3616 = vadd.s32 %v3612, 1
    %v3617 = vsel %vm3615, %v3616, %v3612
    %v3618 = vadd.s32 %v3613, %v3617
    %v3619 = vadd.s32 %v3618, 536870912
    %v3620 = vshrl.u32 %v3619, 30
    %v3621 = vshll.u32 %v3620, 30
    %v3622 = vsub.s32 %v3618, %v3621
    %vm3623 = vcmp.lt.s32.totalorder %v3622, 0
    %v3624 = vsub.s32 0, %v3622
    %v3625 = vsel %vm3623, %v3624, %v3622
    %v3626 = vclz %v3625
    %v3627 = vsub.s32 %v3626, 2
    %vm3628 = vcmp.gt.s32.totalorder 0, %v3627
    %v3629 = vsel %vm3628, 0, %v3627
    %v3630 = vsub.s32 32, %v3629
    %v3631 = vshll.u32 %v3622, %v3629
    %v3632 = vshrl.u32 %v3614, %v3630
    %v3633 = vor.u32 %v3631, %v3632
    %v3634 = vsub.s32 4294967266, %v3629
    %v3635 = vadd.s32 %v3634, 127
    %v3636 = vshll.u32 %v3635, 23
    %v3637 = vor.u32 4788187, %v3636
    %v3638 = vand.u32 2147483647, %v3637
    %v3640 = vcvt.s32.f32 %v3633
    %v3641 = vmul.f32 %v3640, %v3638
    %v3642 = vxor.u32 %v3641, 2147483648
    %v3643 = vsel %vm3560, %v3642, %v3641
    %v3644 = vsub.s32 4, %v3620
    %v3645 = vsel %vm3560, %v3644, %v3620
    %v3646 = vsel %vm3559, %v333, %v3643
    %v3647 = vsel %vm3559, 0, %v3645
    %v3648 = vcosq.f32.pop %v3646
    %v3649 = vsinq.f32.pop %v3646
    %vm3650 = vweird.f32 %v333
    %v3651 = vadd.s32 %v3647, 3
    %v3652 = vand.u32 %v3651, 3
    %vm3653 = vcmp.lt.s32.totalorder %v3652, 2
    %vm3654 = vcmp.eq.s32.totalorder %v3652, 0
    %v3655 = vxor.u32 %v3649, 2147483648
    %v3656 = vsel %vm3654, %v3648, %v3655
    %vm3657 = vcmp.eq.s32.totalorder %v3652, 2
    %v3658 = vxor.u32 %v3648, 2147483648
    %v3659 = vsel %vm3657, %v3658, %v3649
    %v3660 = vsel %vm3653, %v3656, %v3659
    %v3661 = vsel %vm3650, nan, %v3660
    %v3662 = vpack.c.bf16 %v541, %v437
    %v3663 = vpack.c.bf16 %v749, %v645
    %v3664 = vpack.c.bf16 %v957, %v853
    %v3665 = vpack.c.bf16 %v1165, %v1061
    %v3666 = vpack.c.bf16 %v1373, %v1269
    %v3667 = vpack.c.bf16 %v1581, %v1477
    %v3668 = vpack.c.bf16 %v1789, %v1685
    %v3669 = vpack.c.bf16 %v1997, %v1893
    %v3670 = vpack.c.bf16 %v2205, %v2101
    %v3671 = vpack.c.bf16 %v2413, %v2309
    %v3672 = vpack.c.bf16 %v2621, %v2517
    %v3673 = vpack.c.bf16 %v2829, %v2725
    %v3674 = vpack.c.bf16 %v3037, %v2933
    %v3675 = vpack.c.bf16 %v3245, %v3141
    %v3676 = vpack.c.bf16 %v3453, %v3349
    %v3677 = vpack.c.bf16 %v3661, %v3557
    %v3678 = vld [vmem:[#allocation2] sm:$0xf]
    %v3679 = vld [vmem:[#allocation2 + $0x4] sm:$0xf]
    %v3680 = vld [vmem:[#allocation2 + $0x8] sm:$0x3]
    %v3681 = vld [vmem:[%s1] sm:$0x3]
    %3682 = vset.pattern.permute.xlu0 1
    %3683 = vperm.xlu0 %3682, %v68
    %v3684 = vpop.permute.xlu0 %3683
    %3686 = vset.pattern.permute.xlu0 1
    %3687 = vperm.xlu0 %3686, %v69
    %v3688 = vpop.permute.xlu0 %3687
    %3690 = vset.pattern.permute.xlu0 1
    %3691 = vperm.xlu0 %3690, %v70
    %v3692 = vpop.permute.xlu0 %3691
    %3694 = vset.pattern.permute.xlu0 1
    %3695 = vperm.xlu0 %3694, %v71
    %v3696 = vpop.permute.xlu0 %3695
    %3698 = vset.pattern.permute.xlu0 1
    %3699 = vperm.xlu0 %3698, %v72
    %v3700 = vpop.permute.xlu0 %3699
    %3702 = vset.pattern.permute.xlu0 1
    %3703 = vperm.xlu0 %3702, %v73
    %v3704 = vpop.permute.xlu0 %3703
    %3706 = vset.pattern.permute.xlu0 1
    %3707 = vperm.xlu0 %3706, %v74
    %v3708 = vpop.permute.xlu0 %3707
    %3710 = vset.pattern.permute.xlu0 1
    %3711 = vperm.xlu0 %3710, %v75
    %v3712 = vpop.permute.xlu0 %3711
    %3714 = vset.pattern.permute.xlu0 1
    %3715 = vperm.xlu0 %3714, %v76
    %v3716 = vpop.permute.xlu0 %3715
    %3718 = vset.pattern.permute.xlu0 1
    %3719 = vperm.xlu0 %3718, %v77
    %v3720 = vpop.permute.xlu0 %3719
    %3722 = vset.pattern.permute.xlu0 1
    %3723 = vperm.xlu0 %3722, %v78
    %v3724 = vpop.permute.xlu0 %3723
    %3726 = vset.pattern.permute.xlu0 1
    %3727 = vperm.xlu0 %3726, %v79
    %v3728 = vpop.permute.xlu0 %3727
    %3730 = vset.pattern.permute.xlu0 1
    %3731 = vperm.xlu0 %3730, %v80
    %v3732 = vpop.permute.xlu0 %3731
    %3734 = vset.pattern.permute.xlu0 1
    %3735 = vperm.xlu0 %3734, %v81
    %v3736 = vpop.permute.xlu0 %3735
    %3738 = vset.pattern.permute.xlu0 1
    %3739 = vperm.xlu0 %3738, %v82
    %v3740 = vpop.permute.xlu0 %3739
    %3742 = vset.pattern.permute.xlu0 1
    %3743 = vperm.xlu0 %3742, %v83
    %v3744 = vpop.permute.xlu0 %3743
    %3746 = vset.pattern.permute.xlu0 1
    %3747 = vperm.xlu0 %3746, %v84
    %v3748 = vpop.permute.xlu0 %3747
    %3750 = vset.pattern.permute.xlu0 1
    %3751 = vperm.xlu0 %3750, %v85
    %v3752 = vpop.permute.xlu0 %3751
    %3754 = vset.pattern.permute.xlu0 1
    %3755 = vperm.xlu0 %3754, %v86
    %v3756 = vpop.permute.xlu0 %3755
    %3758 = vset.pattern.permute.xlu0 1
    %3759 = vperm.xlu0 %3758, %v87
    %v3760 = vpop.permute.xlu0 %3759
    %3762 = vset.pattern.permute.xlu0 1
    %3763 = vperm.xlu0 %3762, %v88
    %v3764 = vpop.permute.xlu0 %3763
    %3766 = vset.pattern.permute.xlu0 1
    %3767 = vperm.xlu0 %3766, %v89
    %v3768 = vpop.permute.xlu0 %3767
    %3770 = vset.pattern.permute.xlu0 1
    %3771 = vperm.xlu0 %3770, %v90
    %v3772 = vpop.permute.xlu0 %3771
    %3774 = vset.pattern.permute.xlu0 1
    %3775 = vperm.xlu0 %3774, %v91
    %v3776 = vpop.permute.xlu0 %3775
    %3778 = vset.pattern.permute.xlu0 1
    %3779 = vperm.xlu0 %3778, %v92
    %v3780 = vpop.permute.xlu0 %3779
    %3782 = vset.pattern.permute.xlu0 1
    %3783 = vperm.xlu0 %3782, %v93
    %v3784 = vpop.permute.xlu0 %3783
    %3786 = vset.pattern.permute.xlu0 1
    %3787 = vperm.xlu0 %3786, %v94
    %v3788 = vpop.permute.xlu0 %3787
    %3790 = vset.pattern.permute.xlu0 1
    %3791 = vperm.xlu0 %3790, %v95
    %v3792 = vpop.permute.xlu0 %3791
    %3794 = vset.pattern.permute.xlu0 1
    %3795 = vperm.xlu0 %3794, %v96
    %v3796 = vpop.permute.xlu0 %3795
    %3798 = vset.pattern.permute.xlu0 1
    %3799 = vperm.xlu0 %3798, %v97
    %v3800 = vpop.permute.xlu0 %3799
    %3802 = vset.pattern.permute.xlu0 1
    %3803 = vperm.xlu0 %3802, %v98
    %v3804 = vpop.permute.xlu0 %3803
    %3806 = vset.pattern.permute.xlu0 1
    %3807 = vperm.xlu0 %3806, %v99
    %v3808 = vpop.permute.xlu0 %3807
    %v3810 = vlaneseq
    %v3811 = vshrl.u32 %v3810, 7
    %v3812 = vsub.s32 0, %v3811
    %v3813 = vrot.slane %v3681, %v3812
    %v3814 = vmul.f32 %v3684, %v3813
    %v3815 = vmul.f32 %v3688, %v3813
    %v3816 = vmul.f32 %v3692, %v3813
    %v3817 = vmul.f32 %v3696, %v3813
    %v3818 = vmul.f32 %v3700, %v3813
    %v3819 = vmul.f32 %v3704, %v3813
    %v3820 = vmul.f32 %v3708, %v3813
    %v3821 = vmul.f32 %v3712, %v3813
    %v3822 = vmul.f32 %v3716, %v3813
    %v3823 = vmul.f32 %v3720, %v3813
    %v3824 = vmul.f32 %v3724, %v3813
    %v3825 = vmul.f32 %v3728, %v3813
    %v3826 = vmul.f32 %v3732, %v3813
    %v3827 = vmul.f32 %v3736, %v3813
    %v3828 = vmul.f32 %v3740, %v3813
    %v3829 = vmul.f32 %v3744, %v3813
    %v3830 = vmul.f32 %v3748, %v3813
    %v3831 = vmul.f32 %v3752, %v3813
    %v3832 = vmul.f32 %v3756, %v3813
    %v3833 = vmul.f32 %v3760, %v3813
    %v3834 = vmul.f32 %v3764, %v3813
    %v3835 = vmul.f32 %v3768, %v3813
    %v3836 = vmul.f32 %v3772, %v3813
    %v3837 = vmul.f32 %v3776, %v3813
    %v3838 = vmul.f32 %v3780, %v3813
    %v3839 = vmul.f32 %v3784, %v3813
    %v3840 = vmul.f32 %v3788, %v3813
    %v3841 = vmul.f32 %v3792, %v3813
    %v3842 = vmul.f32 %v3796, %v3813
    %v3843 = vmul.f32 %v3800, %v3813
    %v3844 = vmul.f32 %v3804, %v3813
    %v3845 = vmul.f32 %v3808, %v3813
    %v3849 = vunpack.c.l.b16 %v3678
    %v3850 = vunpack.c.l.b16 %v3679
    %v3851 = vunpack.c.l.b16 %v3680
    %v3852 = vpack.c.b16 %v3850, %v3849
    %v3853 = vpack.c.b16 %v3851, %v3851
    %vm3855 = vcmask 162816
    %v3857 = vsel %vm3855, %v3662, 0
    %v3860 = vsel %vm3855, %v3663, 0
    %v3863 = vsel %vm3855, %v3664, 0
    %v3866 = vsel %vm3855, %v3665, 0
    %v3869 = vsel %vm3855, %v3666, 0
    %v3872 = vsel %vm3855, %v3667, 0
    %v3875 = vsel %vm3855, %v3668, 0
    %v3878 = vsel %vm3855, %v3669, 0
    %v3881 = vsel %vm3855, %v3670, 0
    %v3884 = vsel %vm3855, %v3671, 0
    %v3887 = vsel %vm3855, %v3672, 0
    %v3890 = vsel %vm3855, %v3673, 0
    %v3893 = vsel %vm3855, %v3674, 0
    %v3896 = vsel %vm3855, %v3675, 0
    %v3899 = vsel %vm3855, %v3676, 0
    %v3902 = vsel %vm3855, %v3677, 0
    %vm3904 = vcmask 1041408
    %v3906 = vsel %vm3904, %v3853, 0
    %3908 = vmatprep.subr.bf16.mxu0 0
    %3909 = vmatpush1.bf16.msra.mxu0 0
    %3910 = vmatprep.subr.bf16.mxu0 0
    %3911 = vmatpush1.bf16.msra.mxu0 0
    %3912 = vmatprep.subr.bf16.mxu0 0
    %3913 = vmatpush1.bf16.msra.mxu0 0
    %3914 = vmatprep.subr.bf16.mxu0 0
    %3915 = vmatpush1.bf16.msra.mxu0 0
    %3916 = vmatprep.subr.bf16.mxu0 0
    %3917 = vmatpush1.bf16.msra.mxu0 0
    %3918 = vmatprep.subr.bf16.mxu0 0
    %3919 = vmatpush1.bf16.msra.mxu0 0
    %3920 = vmatprep.subr.bf16.mxu0 0
    %3921 = vmatpush1.bf16.msra.mxu0 %v3906
    %3922 = vmatprep.subr.bf16.mxu0 0
    %3923 = vmatpush1.bf16.msra.mxu0 %v3852
    %3924 = vmatprep.subr.bf16.mxu0 0
    %3925 = vmatpush2.bf16.msra.mxu0 0
    %3926 = vmatprep.subr.bf16.mxu0 0
    %3927 = vmatpush2.bf16.msra.mxu0 0
    %3928 = vmatprep.subr.bf16.mxu0 0
    %3929 = vmatpush2.bf16.msra.mxu0 0
    %3930 = vmatprep.subr.bf16.mxu0 0
    %3931 = vmatpush2.bf16.msra.mxu0 0
    %3932 = vmatprep.subr.bf16.mxu0 0
    %3933 = vmatpush2.bf16.msra.mxu0 0
    %3934 = vmatprep.subr.bf16.mxu0 0
    %3935 = vmatpush2.bf16.msra.mxu0 0
    %3936 = vmatprep.subr.bf16.mxu0 0
    %3937 = vmatpush2.bf16.msra.mxu0 0
    %3938 = vmatprep.subr.bf16.mxu0 0
    %3939 = vmatpush2.bf16.msra.mxu0 0
    %3940 = vmatprep.mubr.bf16.mxu0 0
    %3941 = vmatmul.mubr.bf16.gmra.mxu0 %v3857
    %v3942 = vpop.f32.mrf.mxu0
    %v3943 = vadd.f32 %v3814, %v3942
    %v3944 = vpop.f32.mrf.mxu0
    %v3945 = vpop.f32.mrf.mxu0
    %v3946 = vadd.f32 %v3815, %v3945
    %v3947 = vpop.f32.mrf.mxu0
    %3948 = vmatprep.mubr.bf16.mxu0 0
    %3949 = vmatmul.mubr.bf16.gmra.mxu0 %v3860
    %v3950 = vpop.f32.mrf.mxu0
    %v3951 = vadd.f32 %v3816, %v3950
    %v3952 = vpop.f32.mrf.mxu0
    %v3953 = vpop.f32.mrf.mxu0
    %v3954 = vadd.f32 %v3817, %v3953
    %v3955 = vpop.f32.mrf.mxu0
    %3956 = vmatprep.mubr.bf16.mxu0 0
    %3957 = vmatmul.mubr.bf16.gmra.mxu0 %v3863
    %v3958 = vpop.f32.mrf.mxu0
    %v3959 = vadd.f32 %v3818, %v3958
    %v3960 = vpop.f32.mrf.mxu0
    %v3961 = vpop.f32.mrf.mxu0
    %v3962 = vadd.f32 %v3819, %v3961
    %v3963 = vpop.f32.mrf.mxu0
    %3964 = vmatprep.mubr.bf16.mxu0 0
    %3965 = vmatmul.mubr.bf16.gmra.mxu0 %v3866
    %v3966 = vpop.f32.mrf.mxu0
    %v3967 = vadd.f32 %v3820, %v3966
    %v3968 = vpop.f32.mrf.mxu0
    %v3969 = vpop.f32.mrf.mxu0
    %v3970 = vadd.f32 %v3821, %v3969
    %v3971 = vpop.f32.mrf.mxu0
    %3972 = vmatprep.mubr.bf16.mxu0 0
    %3973 = vmatmul.mubr.bf16.gmra.mxu0 %v3869
    %v3974 = vpop.f32.mrf.mxu0
    %v3975 = vadd.f32 %v3822, %v3974
    %v3976 = vpop.f32.mrf.mxu0
    %v3977 = vpop.f32.mrf.mxu0
    %v3978 = vadd.f32 %v3823, %v3977
    %v3979 = vpop.f32.mrf.mxu0
    %3980 = vmatprep.mubr.bf16.mxu0 0
    %3981 = vmatmul.mubr.bf16.gmra.mxu0 %v3872
    %v3982 = vpop.f32.mrf.mxu0
    %v3983 = vadd.f32 %v3824, %v3982
    %v3984 = vpop.f32.mrf.mxu0
    %v3985 = vpop.f32.mrf.mxu0
    %v3986 = vadd.f32 %v3825, %v3985
    %v3987 = vpop.f32.mrf.mxu0
    %3988 = vmatprep.mubr.bf16.mxu0 0
    %3989 = vmatmul.mubr.bf16.gmra.mxu0 %v3875
    %v3990 = vpop.f32.mrf.mxu0
    %v3991 = vadd.f32 %v3826, %v3990
    %v3992 = vpop.f32.mrf.mxu0
    %v3993 = vpop.f32.mrf.mxu0
    %v3994 = vadd.f32 %v3827, %v3993
    %v3995 = vpop.f32.mrf.mxu0
    %3996 = vmatprep.mubr.bf16.mxu0 0
    %3997 = vmatmul.mubr.bf16.gmra.mxu0 %v3878
    %v3998 = vpop.f32.mrf.mxu0
    %v3999 = vadd.f32 %v3828, %v3998
    %v4000 = vpop.f32.mrf.mxu0
    %v4001 = vpop.f32.mrf.mxu0
    %v4002 = vadd.f32 %v3829, %v4001
    %v4003 = vpop.f32.mrf.mxu0
    %4004 = vmatprep.mubr.bf16.mxu0 0
    %4005 = vmatmul.mubr.bf16.gmra.mxu0 %v3881
    %v4006 = vpop.f32.mrf.mxu0
    %v4007 = vadd.f32 %v3830, %v4006
    %v4008 = vpop.f32.mrf.mxu0
    %v4009 = vpop.f32.mrf.mxu0
    %v4010 = vadd.f32 %v3831, %v4009
    %v4011 = vpop.f32.mrf.mxu0
    %4012 = vmatprep.mubr.bf16.mxu0 0
    %4013 = vmatmul.mubr.bf16.gmra.mxu0 %v3884
    %v4014 = vpop.f32.mrf.mxu0
    %v4015 = vadd.f32 %v3832, %v4014
    %v4016 = vpop.f32.mrf.mxu0
    %v4017 = vpop.f32.mrf.mxu0
    %v4018 = vadd.f32 %v3833, %v4017
    %v4019 = vpop.f32.mrf.mxu0
    %4020 = vmatprep.mubr.bf16.mxu0 0
    %4021 = vmatmul.mubr.bf16.gmra.mxu0 %v3887
    %v4022 = vpop.f32.mrf.mxu0
    %v4023 = vadd.f32 %v3834, %v4022
    %v4024 = vpop.f32.mrf.mxu0
    %v4025 = vpop.f32.mrf.mxu0
    %v4026 = vadd.f32 %v3835, %v4025
    %v4027 = vpop.f32.mrf.mxu0
    %4028 = vmatprep.mubr.bf16.mxu0 0
    %4029 = vmatmul.mubr.bf16.gmra.mxu0 %v3890
    %v4030 = vpop.f32.mrf.mxu0
    %v4031 = vadd.f32 %v3836, %v4030
    %v4032 = vpop.f32.mrf.mxu0
    %v4033 = vpop.f32.mrf.mxu0
    %v4034 = vadd.f32 %v3837, %v4033
    %v4035 = vpop.f32.mrf.mxu0
    %4036 = vmatprep.mubr.bf16.mxu0 0
    %4037 = vmatmul.mubr.bf16.gmra.mxu0 %v3893
    %v4038 = vpop.f32.mrf.mxu0
    %v4039 = vadd.f32 %v3838, %v4038
    %v4040 = vpop.f32.mrf.mxu0
    %v4041 = vpop.f32.mrf.mxu0
    %v4042 = vadd.f32 %v3839, %v4041
    %v4043 = vpop.f32.mrf.mxu0
    %4044 = vmatprep.mubr.bf16.mxu0 0
    %4045 = vmatmul.mubr.bf16.gmra.mxu0 %v3896
    %v4046 = vpop.f32.mrf.mxu0
    %v4047 = vadd.f32 %v3840, %v4046
    %v4048 = vpop.f32.mrf.mxu0
    %v4049 = vpop.f32.mrf.mxu0
    %v4050 = vadd.f32 %v3841, %v4049
    %v4051 = vpop.f32.mrf.mxu0
    %4052 = vmatprep.mubr.bf16.mxu0 0
    %4053 = vmatmul.mubr.bf16.gmra.mxu0 %v3899
    %v4054 = vpop.f32.mrf.mxu0
    %v4055 = vadd.f32 %v3842, %v4054
    %v4056 = vpop.f32.mrf.mxu0
    %v4057 = vpop.f32.mrf.mxu0
    %v4058 = vadd.f32 %v3843, %v4057
    %v4059 = vpop.f32.mrf.mxu0
    %4060 = vmatprep.mubr.bf16.mxu0 0
    %4061 = vmatmul.mubr.bf16.gmra.mxu0 %v3902
    %v4062 = vpop.f32.mrf.mxu0
    %v4063 = vadd.f32 %v3844, %v4062
    %v4064 = vpop.f32.mrf.mxu0
    %v4065 = vpop.f32.mrf.mxu0
    %v4066 = vadd.f32 %v3845, %v4065
    %v4067 = vpop.f32.mrf.mxu0
    %4068 = vdwg.mxu0
    %4069 = vset.pattern.permute.xlu0 2
    %4070 = vperm.xlu0 %4069, %v68
    %v4071 = vpop.permute.xlu0 %4070
    %4073 = vset.pattern.permute.xlu0 2
    %4074 = vperm.xlu0 %4073, %v69
    %v4075 = vpop.permute.xlu0 %4074
    %4077 = vset.pattern.permute.xlu0 2
    %4078 = vperm.xlu0 %4077, %v70
    %v4079 = vpop.permute.xlu0 %4078
    %4081 = vset.pattern.permute.xlu0 2
    %4082 = vperm.xlu0 %4081, %v71
    %v4083 = vpop.permute.xlu0 %4082
    %4085 = vset.pattern.permute.xlu0 2
    %4086 = vperm.xlu0 %4085, %v72
    %v4087 = vpop.permute.xlu0 %4086
    %4089 = vset.pattern.permute.xlu0 2
    %4090 = vperm.xlu0 %4089, %v73
    %v4091 = vpop.permute.xlu0 %4090
    %4093 = vset.pattern.permute.xlu0 2
    %4094 = vperm.xlu0 %4093, %v74
    %v4095 = vpop.permute.xlu0 %4094
    %4097 = vset.pattern.permute.xlu0 2
    %4098 = vperm.xlu0 %4097, %v75
    %v4099 = vpop.permute.xlu0 %4098
    %4101 = vset.pattern.permute.xlu0 2
    %4102 = vperm.xlu0 %4101, %v76
    %v4103 = vpop.permute.xlu0 %4102
    %4105 = vset.pattern.permute.xlu0 2
    %4106 = vperm.xlu0 %4105, %v77
    %v4107 = vpop.permute.xlu0 %4106
    %4109 = vset.pattern.permute.xlu0 2
    %4110 = vperm.xlu0 %4109, %v78
    %v4111 = vpop.permute.xlu0 %4110
    %4113 = vset.pattern.permute.xlu0 2
    %4114 = vperm.xlu0 %4113, %v79
    %v4115 = vpop.permute.xlu0 %4114
    %4117 = vset.pattern.permute.xlu0 2
    %4118 = vperm.xlu0 %4117, %v80
    %v4119 = vpop.permute.xlu0 %4118
    %4121 = vset.pattern.permute.xlu0 2
    %4122 = vperm.xlu0 %4121, %v81
    %v4123 = vpop.permute.xlu0 %4122
    %4125 = vset.pattern.permute.xlu0 2
    %4126 = vperm.xlu0 %4125, %v82
    %v4127 = vpop.permute.xlu0 %4126
    %4129 = vset.pattern.permute.xlu0 2
    %4130 = vperm.xlu0 %4129, %v83
    %v4131 = vpop.permute.xlu0 %4130
    %4133 = vset.pattern.permute.xlu0 2
    %4134 = vperm.xlu0 %4133, %v84
    %v4135 = vpop.permute.xlu0 %4134
    %4137 = vset.pattern.permute.xlu0 2
    %4138 = vperm.xlu0 %4137, %v85
    %v4139 = vpop.permute.xlu0 %4138
    %4141 = vset.pattern.permute.xlu0 2
    %4142 = vperm.xlu0 %4141, %v86
    %v4143 = vpop.permute.xlu0 %4142
    %4145 = vset.pattern.permute.xlu0 2
    %4146 = vperm.xlu0 %4145, %v87
    %v4147 = vpop.permute.xlu0 %4146
    %4149 = vset.pattern.permute.xlu0 2
    %4150 = vperm.xlu0 %4149, %v88
    %v4151 = vpop.permute.xlu0 %4150
    %4153 = vset.pattern.permute.xlu0 2
    %4154 = vperm.xlu0 %4153, %v89
    %v4155 = vpop.permute.xlu0 %4154
    %4157 = vset.pattern.permute.xlu0 2
    %4158 = vperm.xlu0 %4157, %v90
    %v4159 = vpop.permute.xlu0 %4158
    %4161 = vset.pattern.permute.xlu0 2
    %4162 = vperm.xlu0 %4161, %v91
    %v4163 = vpop.permute.xlu0 %4162
    %4165 = vset.pattern.permute.xlu0 2
    %4166 = vperm.xlu0 %4165, %v92
    %v4167 = vpop.permute.xlu0 %4166
    %4169 = vset.pattern.permute.xlu0 2
    %4170 = vperm.xlu0 %4169, %v93
    %v4171 = vpop.permute.xlu0 %4170
    %4173 = vset.pattern.permute.xlu0 2
    %4174 = vperm.xlu0 %4173, %v94
    %v4175 = vpop.permute.xlu0 %4174
    %4177 = vset.pattern.permute.xlu0 2
    %4178 = vperm.xlu0 %4177, %v95
    %v4179 = vpop.permute.xlu0 %4178
    %4181 = vset.pattern.permute.xlu0 2
    %4182 = vperm.xlu0 %4181, %v96
    %v4183 = vpop.permute.xlu0 %4182
    %4185 = vset.pattern.permute.xlu0 2
    %4186 = vperm.xlu0 %4185, %v97
    %v4187 = vpop.permute.xlu0 %4186
    %4189 = vset.pattern.permute.xlu0 2
    %4190 = vperm.xlu0 %4189, %v98
    %v4191 = vpop.permute.xlu0 %4190
    %4193 = vset.pattern.permute.xlu0 2
    %4194 = vperm.xlu0 %4193, %v99
    %v4195 = vpop.permute.xlu0 %4194
    %v4197 = vlaneseq
    %v4198 = vshrl.u32 %v4197, 7
    %v4199 = vsub.s32 1, %v4198
    %v4200 = vrot.slane %v3681, %v4199
    %v4201 = vmul.f32 %v4071, %v4200
    %v4202 = vmul.f32 %v4075, %v4200
    %v4203 = vmul.f32 %v4079, %v4200
    %v4204 = vmul.f32 %v4083, %v4200
    %v4205 = vmul.f32 %v4087, %v4200
    %v4206 = vmul.f32 %v4091, %v4200
    %v4207 = vmul.f32 %v4095, %v4200
    %v4208 = vmul.f32 %v4099, %v4200
    %v4209 = vmul.f32 %v4103, %v4200
    %v4210 = vmul.f32 %v4107, %v4200
    %v4211 = vmul.f32 %v4111, %v4200
    %v4212 = vmul.f32 %v4115, %v4200
    %v4213 = vmul.f32 %v4119, %v4200
    %v4214 = vmul.f32 %v4123, %v4200
    %v4215 = vmul.f32 %v4127, %v4200
    %v4216 = vmul.f32 %v4131, %v4200
    %v4217 = vmul.f32 %v4135, %v4200
    %v4218 = vmul.f32 %v4139, %v4200
    %v4219 = vmul.f32 %v4143, %v4200
    %v4220 = vmul.f32 %v4147, %v4200
    %v4221 = vmul.f32 %v4151, %v4200
    %v4222 = vmul.f32 %v4155, %v4200
    %v4223 = vmul.f32 %v4159, %v4200
    %v4224 = vmul.f32 %v4163, %v4200
    %v4225 = vmul.f32 %v4167, %v4200
    %v4226 = vmul.f32 %v4171, %v4200
    %v4227 = vmul.f32 %v4175, %v4200
    %v4228 = vmul.f32 %v4179, %v4200
    %v4229 = vmul.f32 %v4183, %v4200
    %v4230 = vmul.f32 %v4187, %v4200
    %v4231 = vmul.f32 %v4191, %v4200
    %v4232 = vmul.f32 %v4195, %v4200
    %v4233 = vadd.f32 %v3943, %v4201
    %v4234 = vadd.f32 %v3946, %v4202
    %v4235 = vadd.f32 %v3951, %v4203
    %v4236 = vadd.f32 %v3954, %v4204
    %v4237 = vadd.f32 %v3959, %v4205
    %v4238 = vadd.f32 %v3962, %v4206
    %v4239 = vadd.f32 %v3967, %v4207
    %v4240 = vadd.f32 %v3970, %v4208
    %v4241 = vadd.f32 %v3975, %v4209
    %v4242 = vadd.f32 %v3978, %v4210
    %v4243 = vadd.f32 %v3983, %v4211
    %v4244 = vadd.f32 %v3986, %v4212
    %v4245 = vadd.f32 %v3991, %v4213
    %v4246 = vadd.f32 %v3994, %v4214
    %v4247 = vadd.f32 %v3999, %v4215
    %v4248 = vadd.f32 %v4002, %v4216
    %v4249 = vadd.f32 %v4007, %v4217
    %v4250 = vadd.f32 %v4010, %v4218
    %v4251 = vadd.f32 %v4015, %v4219
    %v4252 = vadd.f32 %v4018, %v4220
    %v4253 = vadd.f32 %v4023, %v4221
    %v4254 = vadd.f32 %v4026, %v4222
    %v4255 = vadd.f32 %v4031, %v4223
    %v4256 = vadd.f32 %v4034, %v4224
    %v4257 = vadd.f32 %v4039, %v4225
    %v4258 = vadd.f32 %v4042, %v4226
    %v4259 = vadd.f32 %v4047, %v4227
    %v4260 = vadd.f32 %v4050, %v4228
    %v4261 = vadd.f32 %v4055, %v4229
    %v4262 = vadd.f32 %v4058, %v4230
    %v4263 = vadd.f32 %v4063, %v4231
    %v4264 = vadd.f32 %v4066, %v4232
    %v4265 = vld [vmem:[%s3] sm:$0x1]
    %v4267 = vlaneseq
    %v4268 = vshrl.u32 %v4267, 7
    %v4269 = vsub.s32 0, %v4268
    %v4270 = vrot.slane %v4265, %v4269
    %v4272 = vadd.f32 %v4233, %v4270
    %v4273 = vadd.f32 %v4234, %v4270
    %v4274 = vadd.f32 %v4235, %v4270
    %v4275 = vadd.f32 %v4236, %v4270
    %v4276 = vadd.f32 %v4237, %v4270
    %v4277 = vadd.f32 %v4238, %v4270
    %v4278 = vadd.f32 %v4239, %v4270
    %v4279 = vadd.f32 %v4240, %v4270
    %v4280 = vadd.f32 %v4241, %v4270
    %v4281 = vadd.f32 %v4242, %v4270
    %v4282 = vadd.f32 %v4243, %v4270
    %v4283 = vadd.f32 %v4244, %v4270
    %v4284 = vadd.f32 %v4245, %v4270
    %v4285 = vadd.f32 %v4246, %v4270
    %v4286 = vadd.f32 %v4247, %v4270
    %v4287 = vadd.f32 %v4248, %v4270
    %v4288 = vadd.f32 %v4249, %v4270
    %v4289 = vadd.f32 %v4250, %v4270
    %v4290 = vadd.f32 %v4251, %v4270
    %v4291 = vadd.f32 %v4252, %v4270
    %v4292 = vadd.f32 %v4253, %v4270
    %v4293 = vadd.f32 %v4254, %v4270
    %v4294 = vadd.f32 %v4255, %v4270
    %v4295 = vadd.f32 %v4256, %v4270
    %v4296 = vadd.f32 %v4257, %v4270
    %v4297 = vadd.f32 %v4258, %v4270
    %v4298 = vadd.f32 %v4259, %v4270
    %v4299 = vadd.f32 %v4260, %v4270
    %v4300 = vadd.f32 %v4261, %v4270
    %v4301 = vadd.f32 %v4262, %v4270
    %v4302 = vadd.f32 %v4263, %v4270
    %v4303 = vadd.f32 %v4264, %v4270
    %vm4304 = vcmp.gt.f32.partialorder %v4272, 0.0
    %vm4305 = vcmp.gt.f32.partialorder %v4273, 0.0
    %vm4306 = vcmp.gt.f32.partialorder %v4274, 0.0
    %vm4307 = vcmp.gt.f32.partialorder %v4275, 0.0
    %vm4308 = vcmp.gt.f32.partialorder %v4276, 0.0
    %vm4309 = vcmp.gt.f32.partialorder %v4277, 0.0
    %vm4310 = vcmp.gt.f32.partialorder %v4278, 0.0
    %vm4311 = vcmp.gt.f32.partialorder %v4279, 0.0
    %vm4312 = vcmp.gt.f32.partialorder %v4280, 0.0
    %vm4313 = vcmp.gt.f32.partialorder %v4281, 0.0
    %vm4314 = vcmp.gt.f32.partialorder %v4282, 0.0
    %vm4315 = vcmp.gt.f32.partialorder %v4283, 0.0
    %vm4316 = vcmp.gt.f32.partialorder %v4284, 0.0
    %vm4317 = vcmp.gt.f32.partialorder %v4285, 0.0
    %vm4318 = vcmp.gt.f32.partialorder %v4286, 0.0
    %vm4319 = vcmp.gt.f32.partialorder %v4287, 0.0
    %vm4320 = vcmp.gt.f32.partialorder %v4288, 0.0
    %vm4321 = vcmp.gt.f32.partialorder %v4289, 0.0
    %vm4322 = vcmp.gt.f32.partialorder %v4290, 0.0
    %vm4323 = vcmp.gt.f32.partialorder %v4291, 0.0
    %vm4324 = vcmp.gt.f32.partialorder %v4292, 0.0
    %vm4325 = vcmp.gt.f32.partialorder %v4293, 0.0
    %vm4326 = vcmp.gt.f32.partialorder %v4294, 0.0
    %vm4327 = vcmp.gt.f32.partialorder %v4295, 0.0
    %vm4328 = vcmp.gt.f32.partialorder %v4296, 0.0
    %vm4329 = vcmp.gt.f32.partialorder %v4297, 0.0
    %vm4330 = vcmp.gt.f32.partialorder %v4298, 0.0
    %vm4331 = vcmp.gt.f32.partialorder %v4299, 0.0
    %vm4332 = vcmp.gt.f32.partialorder %v4300, 0.0
    %vm4333 = vcmp.gt.f32.partialorder %v4301, 0.0
    %vm4334 = vcmp.gt.f32.partialorder %v4302, 0.0
    %vm4335 = vcmp.gt.f32.partialorder %v4303, 0.0
    %v4336 = vmul.f32 %v4272, 0.01
    %v4337 = vmul.f32 %v4273, 0.01
    %v4338 = vmul.f32 %v4274, 0.01
    %v4339 = vmul.f32 %v4275, 0.01
    %v4340 = vmul.f32 %v4276, 0.01
    %v4341 = vmul.f32 %v4277, 0.01
    %v4342 = vmul.f32 %v4278, 0.01
    %v4343 = vmul.f32 %v4279, 0.01
    %v4344 = vmul.f32 %v4280, 0.01
    %v4345 = vmul.f32 %v4281, 0.01
    %v4346 = vmul.f32 %v4282, 0.01
    %v4347 = vmul.f32 %v4283, 0.01
    %v4348 = vmul.f32 %v4284, 0.01
    %v4349 = vmul.f32 %v4285, 0.01
    %v4350 = vmul.f32 %v4286, 0.01
    %v4351 = vmul.f32 %v4287, 0.01
    %v4352 = vmul.f32 %v4288, 0.01
    %v4353 = vmul.f32 %v4289, 0.01
    %v4354 = vmul.f32 %v4290, 0.01
    %v4355 = vmul.f32 %v4291, 0.01
    %v4356 = vmul.f32 %v4292, 0.01
    %v4357 = vmul.f32 %v4293, 0.01
    %v4358 = vmul.f32 %v4294, 0.01
    %v4359 = vmul.f32 %v4295, 0.01
    %v4360 = vmul.f32 %v4296, 0.01
    %v4361 = vmul.f32 %v4297, 0.01
    %v4362 = vmul.f32 %v4298, 0.01
    %v4363 = vmul.f32 %v4299, 0.01
    %v4364 = vmul.f32 %v4300, 0.01
    %v4365 = vmul.f32 %v4301, 0.01
    %v4366 = vmul.f32 %v4302, 0.01
    %v4367 = vmul.f32 %v4303, 0.01
    %v4368 = vsel %vm4304, %v4272, %v4336
    %v4369 = vsel %vm4305, %v4273, %v4337
    %v4370 = vsel %vm4306, %v4274, %v4338
    %v4371 = vsel %vm4307, %v4275, %v4339
    %v4372 = vsel %vm4308, %v4276, %v4340
    %v4373 = vsel %vm4309, %v4277, %v4341
    %v4374 = vsel %vm4310, %v4278, %v4342
    %v4375 = vsel %vm4311, %v4279, %v4343
    %v4376 = vsel %vm4312, %v4280, %v4344
    %v4377 = vsel %vm4313, %v4281, %v4345
    %v4378 = vsel %vm4314, %v4282, %v4346
    %v4379 = vsel %vm4315, %v4283, %v4347
    %v4380 = vsel %vm4316, %v4284, %v4348
    %v4381 = vsel %vm4317, %v4285, %v4349
    %v4382 = vsel %vm4318, %v4286, %v4350
    %v4383 = vsel %vm4319, %v4287, %v4351
    %v4384 = vsel %vm4320, %v4288, %v4352
    %v4385 = vsel %vm4321, %v4289, %v4353
    %v4386 = vsel %vm4322, %v4290, %v4354
    %v4387 = vsel %vm4323, %v4291, %v4355
    %v4388 = vsel %vm4324, %v4292, %v4356
    %v4389 = vsel %vm4325, %v4293, %v4357
    %v4390 = vsel %vm4326, %v4294, %v4358
    %v4391 = vsel %vm4327, %v4295, %v4359
    %v4392 = vsel %vm4328, %v4296, %v4360
    %v4393 = vsel %vm4329, %v4297, %v4361
    %v4394 = vsel %vm4330, %v4298, %v4362
    %v4395 = vsel %vm4331, %v4299, %v4363
    %v4396 = vsel %vm4332, %v4300, %v4364
    %v4397 = vsel %vm4333, %v4301, %v4365
    %v4398 = vsel %vm4334, %v4302, %v4366
    %v4399 = vsel %vm4335, %v4303, %v4367
    %v4400 = vpack.c.bf16 %v4369, %v4368
    %v4401 = vpack.c.bf16 %v4371, %v4370
    %v4402 = vpack.c.bf16 %v4373, %v4372
    %v4403 = vpack.c.bf16 %v4375, %v4374
    %v4404 = vpack.c.bf16 %v4377, %v4376
    %v4405 = vpack.c.bf16 %v4379, %v4378
    %v4406 = vpack.c.bf16 %v4381, %v4380
    %v4407 = vpack.c.bf16 %v4383, %v4382
    %v4408 = vpack.c.bf16 %v4385, %v4384
    %v4409 = vpack.c.bf16 %v4387, %v4386
    %v4410 = vpack.c.bf16 %v4389, %v4388
    %v4411 = vpack.c.bf16 %v4391, %v4390
    %v4412 = vpack.c.bf16 %v4393, %v4392
    %v4413 = vpack.c.bf16 %v4395, %v4394
    %v4414 = vpack.c.bf16 %v4397, %v4396
    %v4415 = vpack.c.bf16 %v4399, %v4398
    %v4416 = vld [vmem:[%s4] sm:$0xf]
    %v4417 = vld [vmem:[%s4 + $0x4] sm:$0xf]
    %v4418 = vld [vmem:[%s4 + $0x8] sm:$0xf]
    %v4419 = vld [vmem:[%s4 + $0xc] sm:$0xf]
    %v4420 = vld [vmem:[%s4 + $0x10] sm:$0xf]
    %v4421 = vld [vmem:[%s4 + $0x14] sm:$0xf]
    %v4422 = vld [vmem:[%s4 + $0x18] sm:$0xf]
    %v4423 = vld [vmem:[%s4 + $0x1c] sm:$0xf]
    %v4424 = vld [vmem:[%s4 + $0x20] sm:$0xf]
    %v4425 = vld [vmem:[%s4 + $0x24] sm:$0xf]
    %v4426 = vld [vmem:[%s4 + $0x28] sm:$0xf]
    %v4427 = vld [vmem:[%s4 + $0x2c] sm:$0xf]
    %v4428 = vld [vmem:[%s4 + $0x30] sm:$0xf]
    %v4429 = vld [vmem:[%s4 + $0x34] sm:$0xf]
    %v4430 = vld [vmem:[%s4 + $0x38] sm:$0xf]
    %v4431 = vld [vmem:[%s4 + $0x3c] sm:$0xf]
    %v4432 = vld [vmem:[%s5] sm:$0x1]
    %v4434 = vlaneseq
    %v4435 = vshrl.u32 %v4434, 7
    %v4436 = vsub.s32 0, %v4435
    %v4437 = vrot.slane %v4432, %v4436
    %v4455 = vunpack.c.l.b16 %v4416
    %v4456 = vunpack.c.l.b16 %v4417
    %v4457 = vunpack.c.l.b16 %v4418
    %v4458 = vunpack.c.l.b16 %v4419
    %v4459 = vunpack.c.l.b16 %v4420
    %v4460 = vunpack.c.l.b16 %v4421
    %v4461 = vunpack.c.l.b16 %v4422
    %v4462 = vunpack.c.l.b16 %v4423
    %v4463 = vunpack.c.l.b16 %v4424
    %v4464 = vunpack.c.l.b16 %v4425
    %v4465 = vunpack.c.l.b16 %v4426
    %v4466 = vunpack.c.l.b16 %v4427
    %v4467 = vunpack.c.l.b16 %v4428
    %v4468 = vunpack.c.l.b16 %v4429
    %v4469 = vunpack.c.l.b16 %v4430
    %v4470 = vunpack.c.l.b16 %v4431
    %v4471 = vpack.c.b16 %v4456, %v4455
    %v4472 = vpack.c.b16 %v4458, %v4457
    %v4473 = vpack.c.b16 %v4460, %v4459
    %v4474 = vpack.c.b16 %v4462, %v4461
    %v4475 = vpack.c.b16 %v4464, %v4463
    %v4476 = vpack.c.b16 %v4466, %v4465
    %v4477 = vpack.c.b16 %v4468, %v4467
    %v4478 = vpack.c.b16 %v4470, %v4469
    %4487 = vmatprep.subr.bf16.mxu0 0
    %4488 = vmatpush1.bf16.msra.mxu0 %v4478
    %4489 = vmatprep.subr.bf16.mxu0 0
    %4490 = vmatpush1.bf16.msra.mxu0 %v4477
    %4491 = vmatprep.subr.bf16.mxu0 0
    %4492 = vmatpush1.bf16.msra.mxu0 %v4476
    %4493 = vmatprep.subr.bf16.mxu0 0
    %4494 = vmatpush1.bf16.msra.mxu0 %v4475
    %4495 = vmatprep.subr.bf16.mxu0 0
    %4496 = vmatpush1.bf16.msra.mxu0 %v4474
    %4497 = vmatprep.subr.bf16.mxu0 0
    %4498 = vmatpush1.bf16.msra.mxu0 %v4473
    %4499 = vmatprep.subr.bf16.mxu0 0
    %4500 = vmatpush1.bf16.msra.mxu0 %v4472
    %4501 = vmatprep.subr.bf16.mxu0 0
    %4502 = vmatpush1.bf16.msra.mxu0 %v4471
    %4503 = vmatprep.subr.bf16.mxu0 0
    %4504 = vmatpush2.bf16.msra.mxu0 0
    %4505 = vmatprep.subr.bf16.mxu0 0
    %4506 = vmatpush2.bf16.msra.mxu0 0
    %4507 = vmatprep.subr.bf16.mxu0 0
    %4508 = vmatpush2.bf16.msra.mxu0 0
    %4509 = vmatprep.subr.bf16.mxu0 0
    %4510 = vmatpush2.bf16.msra.mxu0 0
    %4511 = vmatprep.subr.bf16.mxu0 0
    %4512 = vmatpush2.bf16.msra.mxu0 0
    %4513 = vmatprep.subr.bf16.mxu0 0
    %4514 = vmatpush2.bf16.msra.mxu0 0
    %4515 = vmatprep.subr.bf16.mxu0 0
    %4516 = vmatpush2.bf16.msra.mxu0 0
    %4517 = vmatprep.subr.bf16.mxu0 0
    %4518 = vmatpush2.bf16.msra.mxu0 0
    %4519 = vmatprep.mubr.bf16.mxu0 0
    %4520 = vmatmul.mubr.bf16.gmra.mxu0 %v4400
    %v4521 = vpop.f32.mrf.mxu0
    %v4522 = vadd.f32 %v4437, %v4521
    %v4523 = vpop.f32.mrf.mxu0
    %v4524 = vpop.f32.mrf.mxu0
    %v4525 = vadd.f32 %v4437, %v4524
    %v4526 = vpop.f32.mrf.mxu0
    %4527 = vmatprep.mubr.bf16.mxu0 0
    %4528 = vmatmul.mubr.bf16.gmra.mxu0 %v4401
    %v4529 = vpop.f32.mrf.mxu0
    %v4530 = vadd.f32 %v4437, %v4529
    %v4531 = vpop.f32.mrf.mxu0
    %v4532 = vpop.f32.mrf.mxu0
    %v4533 = vadd.f32 %v4437, %v4532
    %v4534 = vpop.f32.mrf.mxu0
    %4535 = vmatprep.mubr.bf16.mxu0 0
    %4536 = vmatmul.mubr.bf16.gmra.mxu0 %v4402
    %v4537 = vpop.f32.mrf.mxu0
    %v4538 = vadd.f32 %v4437, %v4537
    %v4539 = vpop.f32.mrf.mxu0
    %v4540 = vpop.f32.mrf.mxu0
    %v4541 = vadd.f32 %v4437, %v4540
    %v4542 = vpop.f32.mrf.mxu0
    %4543 = vmatprep.mubr.bf16.mxu0 0
    %4544 = vmatmul.mubr.bf16.gmra.mxu0 %v4403
    %v4545 = vpop.f32.mrf.mxu0
    %v4546 = vadd.f32 %v4437, %v4545
    %v4547 = vpop.f32.mrf.mxu0
    %v4548 = vpop.f32.mrf.mxu0
    %v4549 = vadd.f32 %v4437, %v4548
    %v4550 = vpop.f32.mrf.mxu0
    %4551 = vmatprep.mubr.bf16.mxu0 0
    %4552 = vmatmul.mubr.bf16.gmra.mxu0 %v4404
    %v4553 = vpop.f32.mrf.mxu0
    %v4554 = vadd.f32 %v4437, %v4553
    %v4555 = vpop.f32.mrf.mxu0
    %v4556 = vpop.f32.mrf.mxu0
    %v4557 = vadd.f32 %v4437, %v4556
    %v4558 = vpop.f32.mrf.mxu0
    %4559 = vmatprep.mubr.bf16.mxu0 0
    %4560 = vmatmul.mubr.bf16.gmra.mxu0 %v4405
    %v4561 = vpop.f32.mrf.mxu0
    %v4562 = vadd.f32 %v4437, %v4561
    %v4563 = vpop.f32.mrf.mxu0
    %v4564 = vpop.f32.mrf.mxu0
    %v4565 = vadd.f32 %v4437, %v4564
    %v4566 = vpop.f32.mrf.mxu0
    %4567 = vmatprep.mubr.bf16.mxu0 0
    %4568 = vmatmul.mubr.bf16.gmra.mxu0 %v4406
    %v4569 = vpop.f32.mrf.mxu0
    %v4570 = vadd.f32 %v4437, %v4569
    %v4571 = vpop.f32.mrf.mxu0
    %v4572 = vpop.f32.mrf.mxu0
    %v4573 = vadd.f32 %v4437, %v4572
    %v4574 = vpop.f32.mrf.mxu0
    %4575 = vmatprep.mubr.bf16.mxu0 0
    %4576 = vmatmul.mubr.bf16.gmra.mxu0 %v4407
    %v4577 = vpop.f32.mrf.mxu0
    %v4578 = vadd.f32 %v4437, %v4577
    %v4579 = vpop.f32.mrf.mxu0
    %v4580 = vpop.f32.mrf.mxu0
    %v4581 = vadd.f32 %v4437, %v4580
    %v4582 = vpop.f32.mrf.mxu0
    %4583 = vmatprep.mubr.bf16.mxu0 0
    %4584 = vmatmul.mubr.bf16.gmra.mxu0 %v4408
    %v4585 = vpop.f32.mrf.mxu0
    %v4586 = vadd.f32 %v4437, %v4585
    %v4587 = vpop.f32.mrf.mxu0
    %v4588 = vpop.f32.mrf.mxu0
    %v4589 = vadd.f32 %v4437, %v4588
    %v4590 = vpop.f32.mrf.mxu0
    %4591 = vmatprep.mubr.bf16.mxu0 0
    %4592 = vmatmul.mubr.bf16.gmra.mxu0 %v4409
    %v4593 = vpop.f32.mrf.mxu0
    %v4594 = vadd.f32 %v4437, %v4593
    %v4595 = vpop.f32.mrf.mxu0
    %v4596 = vpop.f32.mrf.mxu0
    %v4597 = vadd.f32 %v4437, %v4596
    %v4598 = vpop.f32.mrf.mxu0
    %4599 = vmatprep.mubr.bf16.mxu0 0
    %4600 = vmatmul.mubr.bf16.gmra.mxu0 %v4410
    %v4601 = vpop.f32.mrf.mxu0
    %v4602 = vadd.f32 %v4437, %v4601
    %v4603 = vpop.f32.mrf.mxu0
    %v4604 = vpop.f32.mrf.mxu0
    %v4605 = vadd.f32 %v4437, %v4604
    %v4606 = vpop.f32.mrf.mxu0
    %4607 = vmatprep.mubr.bf16.mxu0 0
    %4608 = vmatmul.mubr.bf16.gmra.mxu0 %v4411
    %v4609 = vpop.f32.mrf.mxu0
    %v4610 = vadd.f32 %v4437, %v4609
    %v4611 = vpop.f32.mrf.mxu0
    %v4612 = vpop.f32.mrf.mxu0
    %v4613 = vadd.f32 %v4437, %v4612
    %v4614 = vpop.f32.mrf.mxu0
    %4615 = vmatprep.mubr.bf16.mxu0 0
    %4616 = vmatmul.mubr.bf16.gmra.mxu0 %v4412
    %v4617 = vpop.f32.mrf.mxu0
    %v4618 = vadd.f32 %v4437, %v4617
    %v4619 = vpop.f32.mrf.mxu0
    %v4620 = vpop.f32.mrf.mxu0
    %v4621 = vadd.f32 %v4437, %v4620
    %v4622 = vpop.f32.mrf.mxu0
    %4623 = vmatprep.mubr.bf16.mxu0 0
    %4624 = vmatmul.mubr.bf16.gmra.mxu0 %v4413
    %v4625 = vpop.f32.mrf.mxu0
    %v4626 = vadd.f32 %v4437, %v4625
    %v4627 = vpop.f32.mrf.mxu0
    %v4628 = vpop.f32.mrf.mxu0
    %v4629 = vadd.f32 %v4437, %v4628
    %v4630 = vpop.f32.mrf.mxu0
    %4631 = vmatprep.mubr.bf16.mxu0 0
    %4632 = vmatmul.mubr.bf16.gmra.mxu0 %v4414
    %v4633 = vpop.f32.mrf.mxu0
    %v4634 = vadd.f32 %v4437, %v4633
    %v4635 = vpop.f32.mrf.mxu0
    %v4636 = vpop.f32.mrf.mxu0
    %v4637 = vadd.f32 %v4437, %v4636
    %v4638 = vpop.f32.mrf.mxu0
    %4639 = vmatprep.mubr.bf16.mxu0 0
    %4640 = vmatmul.mubr.bf16.gmra.mxu0 %v4415
    %v4641 = vpop.f32.mrf.mxu0
    %v4642 = vadd.f32 %v4437, %v4641
    %v4643 = vpop.f32.mrf.mxu0
    %v4644 = vpop.f32.mrf.mxu0
    %v4645 = vadd.f32 %v4437, %v4644
    %v4646 = vpop.f32.mrf.mxu0
    %4647 = vdwg.mxu0
    %vm4648 = vcmp.gt.f32.partialorder %v4522, 0.0
    %vm4649 = vcmp.gt.f32.partialorder %v4525, 0.0
    %vm4650 = vcmp.gt.f32.partialorder %v4530, 0.0
    %vm4651 = vcmp.gt.f32.partialorder %v4533, 0.0
    %vm4652 = vcmp.gt.f32.partialorder %v4538, 0.0
    %vm4653 = vcmp.gt.f32.partialorder %v4541, 0.0
    %vm4654 = vcmp.gt.f32.partialorder %v4546, 0.0
    %vm4655 = vcmp.gt.f32.partialorder %v4549, 0.0
    %vm4656 = vcmp.gt.f32.partialorder %v4554, 0.0
    %vm4657 = vcmp.gt.f32.partialorder %v4557, 0.0
    %vm4658 = vcmp.gt.f32.partialorder %v4562, 0.0
    %vm4659 = vcmp.gt.f32.partialorder %v4565, 0.0
    %vm4660 = vcmp.gt.f32.partialorder %v4570, 0.0
    %vm4661 = vcmp.gt.f32.partialorder %v4573, 0.0
    %vm4662 = vcmp.gt.f32.partialorder %v4578, 0.0
    %vm4663 = vcmp.gt.f32.partialorder %v4581, 0.0
    %vm4664 = vcmp.gt.f32.partialorder %v4586, 0.0
    %vm4665 = vcmp.gt.f32.partialorder %v4589, 0.0
    %vm4666 = vcmp.gt.f32.partialorder %v4594, 0.0
    %vm4667 = vcmp.gt.f32.partialorder %v4597, 0.0
    %vm4668 = vcmp.gt.f32.partialorder %v4602, 0.0
    %vm4669 = vcmp.gt.f32.partialorder %v4605, 0.0
    %vm4670 = vcmp.gt.f32.partialorder %v4610, 0.0
    %vm4671 = vcmp.gt.f32.partialorder %v4613, 0.0
    %vm4672 = vcmp.gt.f32.partialorder %v4618, 0.0
    %vm4673 = vcmp.gt.f32.partialorder %v4621, 0.0
    %vm4674 = vcmp.gt.f32.partialorder %v4626, 0.0
    %vm4675 = vcmp.gt.f32.partialorder %v4629, 0.0
    %vm4676 = vcmp.gt.f32.partialorder %v4634, 0.0
    %vm4677 = vcmp.gt.f32.partialorder %v4637, 0.0
    %vm4678 = vcmp.gt.f32.partialorder %v4642, 0.0
    %vm4679 = vcmp.gt.f32.partialorder %v4645, 0.0
    %v4680 = vmul.f32 %v4522, 0.01
    %v4681 = vmul.f32 %v4525, 0.01
    %v4682 = vmul.f32 %v4530, 0.01
    %v4683 = vmul.f32 %v4533, 0.01
    %v4684 = vmul.f32 %v4538, 0.01
    %v4685 = vmul.f32 %v4541, 0.01
    %v4686 = vmul.f32 %v4546, 0.01
    %v4687 = vmul.f32 %v4549, 0.01
    %v4688 = vmul.f32 %v4554, 0.01
    %v4689 = vmul.f32 %v4557, 0.01
    %v4690 = vmul.f32 %v4562, 0.01
    %v4691 = vmul.f32 %v4565, 0.01
    %v4692 = vmul.f32 %v4570, 0.01
    %v4693 = vmul.f32 %v4573, 0.01
    %v4694 = vmul.f32 %v4578, 0.01
    %v4695 = vmul.f32 %v4581, 0.01
    %v4696 = vmul.f32 %v4586, 0.01
    %v4697 = vmul.f32 %v4589, 0.01
    %v4698 = vmul.f32 %v4594, 0.01
    %v4699 = vmul.f32 %v4597, 0.01
    %v4700 = vmul.f32 %v4602, 0.01
    %v4701 = vmul.f32 %v4605, 0.01
    %v4702 = vmul.f32 %v4610, 0.01
    %v4703 = vmul.f32 %v4613, 0.01
    %v4704 = vmul.f32 %v4618, 0.01
    %v4705 = vmul.f32 %v4621, 0.01
    %v4706 = vmul.f32 %v4626, 0.01
    %v4707 = vmul.f32 %v4629, 0.01
    %v4708 = vmul.f32 %v4634, 0.01
    %v4709 = vmul.f32 %v4637, 0.01
    %v4710 = vmul.f32 %v4642, 0.01
    %v4711 = vmul.f32 %v4645, 0.01
    %v4712 = vsel %vm4648, %v4522, %v4680
    %v4713 = vsel %vm4649, %v4525, %v4681
    %v4714 = vsel %vm4650, %v4530, %v4682
    %v4715 = vsel %vm4651, %v4533, %v4683
    %v4716 = vsel %vm4652, %v4538, %v4684
    %v4717 = vsel %vm4653, %v4541, %v4685
    %v4718 = vsel %vm4654, %v4546, %v4686
    %v4719 = vsel %vm4655, %v4549, %v4687
    %v4720 = vsel %vm4656, %v4554, %v4688
    %v4721 = vsel %vm4657, %v4557, %v4689
    %v4722 = vsel %vm4658, %v4562, %v4690
    %v4723 = vsel %vm4659, %v4565, %v4691
    %v4724 = vsel %vm4660, %v4570, %v4692
    %v4725 = vsel %vm4661, %v4573, %v4693
    %v4726 = vsel %vm4662, %v4578, %v4694
    %v4727 = vsel %vm4663, %v4581, %v4695
    %v4728 = vsel %vm4664, %v4586, %v4696
    %v4729 = vsel %vm4665, %v4589, %v4697
    %v4730 = vsel %vm4666, %v4594, %v4698
    %v4731 = vsel %vm4667, %v4597, %v4699
    %v4732 = vsel %vm4668, %v4602, %v4700
    %v4733 = vsel %vm4669, %v4605, %v4701
    %v4734 = vsel %vm4670, %v4610, %v4702
    %v4735 = vsel %vm4671, %v4613, %v4703
    %v4736 = vsel %vm4672, %v4618, %v4704
    %v4737 = vsel %vm4673, %v4621, %v4705
    %v4738 = vsel %vm4674, %v4626, %v4706
    %v4739 = vsel %vm4675, %v4629, %v4707
    %v4740 = vsel %vm4676, %v4634, %v4708
    %v4741 = vsel %vm4677, %v4637, %v4709
    %v4742 = vsel %vm4678, %v4642, %v4710
    %v4743 = vsel %vm4679, %v4645, %v4711
    %v4744 = vpack.c.bf16 %v4713, %v4712
    %v4745 = vpack.c.bf16 %v4715, %v4714
    %v4746 = vpack.c.bf16 %v4717, %v4716
    %v4747 = vpack.c.bf16 %v4719, %v4718
    %v4748 = vpack.c.bf16 %v4721, %v4720
    %v4749 = vpack.c.bf16 %v4723, %v4722
    %v4750 = vpack.c.bf16 %v4725, %v4724
    %v4751 = vpack.c.bf16 %v4727, %v4726
    %v4752 = vpack.c.bf16 %v4729, %v4728
    %v4753 = vpack.c.bf16 %v4731, %v4730
    %v4754 = vpack.c.bf16 %v4733, %v4732
    %v4755 = vpack.c.bf16 %v4735, %v4734
    %v4756 = vpack.c.bf16 %v4737, %v4736
    %v4757 = vpack.c.bf16 %v4739, %v4738
    %v4758 = vpack.c.bf16 %v4741, %v4740
    %v4759 = vpack.c.bf16 %v4743, %v4742
    %v4760 = vld [vmem:[%s6] sm:$0xf]
    %v4761 = vld [vmem:[%s6 + $0x4] sm:$0xf]
    %v4762 = vld [vmem:[%s6 + $0x8] sm:$0xf]
    %v4763 = vld [vmem:[%s6 + $0xc] sm:$0xf]
    %v4764 = vld [vmem:[%s6 + $0x10] sm:$0xf]
    %v4765 = vld [vmem:[%s6 + $0x14] sm:$0xf]
    %v4766 = vld [vmem:[%s6 + $0x18] sm:$0xf]
    %v4767 = vld [vmem:[%s6 + $0x1c] sm:$0xf]
    %v4768 = vld [vmem:[%s6 + $0x20] sm:$0xf]
    %v4769 = vld [vmem:[%s6 + $0x24] sm:$0xf]
    %v4770 = vld [vmem:[%s6 + $0x28] sm:$0xf]
    %v4771 = vld [vmem:[%s6 + $0x2c] sm:$0xf]
    %v4772 = vld [vmem:[%s6 + $0x30] sm:$0xf]
    %v4773 = vld [vmem:[%s6 + $0x34] sm:$0xf]
    %v4774 = vld [vmem:[%s6 + $0x38] sm:$0xf]
    %v4775 = vld [vmem:[%s6 + $0x3c] sm:$0xf]
    %v4776 = vld [vmem:[%s7] sm:$0x1]
    %v4778 = vlaneseq
    %v4779 = vshrl.u32 %v4778, 7
    %v4780 = vsub.s32 0, %v4779
    %v4781 = vrot.slane %v4776, %v4780
    %v4799 = vunpack.c.l.b16 %v4760
    %v4800 = vunpack.c.l.b16 %v4761
    %v4801 = vunpack.c.l.b16 %v4762
    %v4802 = vunpack.c.l.b16 %v4763
    %v4803 = vunpack.c.l.b16 %v4764
    %v4804 = vunpack.c.l.b16 %v4765
    %v4805 = vunpack.c.l.b16 %v4766
    %v4806 = vunpack.c.l.b16 %v4767
    %v4807 = vunpack.c.l.b16 %v4768
    %v4808 = vunpack.c.l.b16 %v4769
    %v4809 = vunpack.c.l.b16 %v4770
    %v4810 = vunpack.c.l.b16 %v4771
    %v4811 = vunpack.c.l.b16 %v4772
    %v4812 = vunpack.c.l.b16 %v4773
    %v4813 = vunpack.c.l.b16 %v4774
    %v4814 = vunpack.c.l.b16 %v4775
    %v4815 = vpack.c.b16 %v4800, %v4799
    %v4816 = vpack.c.b16 %v4802, %v4801
    %v4817 = vpack.c.b16 %v4804, %v4803
    %v4818 = vpack.c.b16 %v4806, %v4805
    %v4819 = vpack.c.b16 %v4808, %v4807
    %v4820 = vpack.c.b16 %v4810, %v4809
    %v4821 = vpack.c.b16 %v4812, %v4811
    %v4822 = vpack.c.b16 %v4814, %v4813
    %4831 = vmatprep.subr.bf16.mxu0 0
    %4832 = vmatpush1.bf16.msra.mxu0 %v4822
    %4833 = vmatprep.subr.bf16.mxu0 0
    %4834 = vmatpush1.bf16.msra.mxu0 %v4821
    %4835 = vmatprep.subr.bf16.mxu0 0
    %4836 = vmatpush1.bf16.msra.mxu0 %v4820
    %4837 = vmatprep.subr.bf16.mxu0 0
    %4838 = vmatpush1.bf16.msra.mxu0 %v4819
    %4839 = vmatprep.subr.bf16.mxu0 0
    %4840 = vmatpush1.bf16.msra.mxu0 %v4818
    %4841 = vmatprep.subr.bf16.mxu0 0
    %4842 = vmatpush1.bf16.msra.mxu0 %v4817
    %4843 = vmatprep.subr.bf16.mxu0 0
    %4844 = vmatpush1.bf16.msra.mxu0 %v4816
    %4845 = vmatprep.subr.bf16.mxu0 0
    %4846 = vmatpush1.bf16.msra.mxu0 %v4815
    %4847 = vmatprep.subr.bf16.mxu0 0
    %4848 = vmatpush2.bf16.msra.mxu0 0
    %4849 = vmatprep.subr.bf16.mxu0 0
    %4850 = vmatpush2.bf16.msra.mxu0 0
    %4851 = vmatprep.subr.bf16.mxu0 0
    %4852 = vmatpush2.bf16.msra.mxu0 0
    %4853 = vmatprep.subr.bf16.mxu0 0
    %4854 = vmatpush2.bf16.msra.mxu0 0
    %4855 = vmatprep.subr.bf16.mxu0 0
    %4856 = vmatpush2.bf16.msra.mxu0 0
    %4857 = vmatprep.subr.bf16.mxu0 0
    %4858 = vmatpush2.bf16.msra.mxu0 0
    %4859 = vmatprep.subr.bf16.mxu0 0
    %4860 = vmatpush2.bf16.msra.mxu0 0
    %4861 = vmatprep.subr.bf16.mxu0 0
    %4862 = vmatpush2.bf16.msra.mxu0 0
    %4863 = vmatprep.mubr.bf16.mxu0 0
    %4864 = vmatmul.mubr.bf16.gmra.mxu0 %v4744
    %v4865 = vpop.f32.mrf.mxu0
    %v4866 = vadd.f32 %v4781, %v4865
    %v4867 = vpop.f32.mrf.mxu0
    %v4868 = vpop.f32.mrf.mxu0
    %v4869 = vadd.f32 %v4781, %v4868
    %v4870 = vpop.f32.mrf.mxu0
    %4871 = vmatprep.mubr.bf16.mxu0 0
    %4872 = vmatmul.mubr.bf16.gmra.mxu0 %v4745
    %v4873 = vpop.f32.mrf.mxu0
    %v4874 = vadd.f32 %v4781, %v4873
    %v4875 = vpop.f32.mrf.mxu0
    %v4876 = vpop.f32.mrf.mxu0
    %v4877 = vadd.f32 %v4781, %v4876
    %v4878 = vpop.f32.mrf.mxu0
    %4879 = vmatprep.mubr.bf16.mxu0 0
    %4880 = vmatmul.mubr.bf16.gmra.mxu0 %v4746
    %v4881 = vpop.f32.mrf.mxu0
    %v4882 = vadd.f32 %v4781, %v4881
    %v4883 = vpop.f32.mrf.mxu0
    %v4884 = vpop.f32.mrf.mxu0
    %v4885 = vadd.f32 %v4781, %v4884
    %v4886 = vpop.f32.mrf.mxu0
    %4887 = vmatprep.mubr.bf16.mxu0 0
    %4888 = vmatmul.mubr.bf16.gmra.mxu0 %v4747
    %v4889 = vpop.f32.mrf.mxu0
    %v4890 = vadd.f32 %v4781, %v4889
    %v4891 = vpop.f32.mrf.mxu0
    %v4892 = vpop.f32.mrf.mxu0
    %v4893 = vadd.f32 %v4781, %v4892
    %v4894 = vpop.f32.mrf.mxu0
    %4895 = vmatprep.mubr.bf16.mxu0 0
    %4896 = vmatmul.mubr.bf16.gmra.mxu0 %v4748
    %v4897 = vpop.f32.mrf.mxu0
    %v4898 = vadd.f32 %v4781, %v4897
    %v4899 = vpop.f32.mrf.mxu0
    %v4900 = vpop.f32.mrf.mxu0
    %v4901 = vadd.f32 %v4781, %v4900
    %v4902 = vpop.f32.mrf.mxu0
    %4903 = vmatprep.mubr.bf16.mxu0 0
    %4904 = vmatmul.mubr.bf16.gmra.mxu0 %v4749
    %v4905 = vpop.f32.mrf.mxu0
    %v4906 = vadd.f32 %v4781, %v4905
    %v4907 = vpop.f32.mrf.mxu0
    %v4908 = vpop.f32.mrf.mxu0
    %v4909 = vadd.f32 %v4781, %v4908
    %v4910 = vpop.f32.mrf.mxu0
    %4911 = vmatprep.mubr.bf16.mxu0 0
    %4912 = vmatmul.mubr.bf16.gmra.mxu0 %v4750
    %v4913 = vpop.f32.mrf.mxu0
    %v4914 = vadd.f32 %v4781, %v4913
    %v4915 = vpop.f32.mrf.mxu0
    %v4916 = vpop.f32.mrf.mxu0
    %v4917 = vadd.f32 %v4781, %v4916
    %v4918 = vpop.f32.mrf.mxu0
    %4919 = vmatprep.mubr.bf16.mxu0 0
    %4920 = vmatmul.mubr.bf16.gmra.mxu0 %v4751
    %v4921 = vpop.f32.mrf.mxu0
    %v4922 = vadd.f32 %v4781, %v4921
    %v4923 = vpop.f32.mrf.mxu0
    %v4924 = vpop.f32.mrf.mxu0
    %v4925 = vadd.f32 %v4781, %v4924
    %v4926 = vpop.f32.mrf.mxu0
    %4927 = vmatprep.mubr.bf16.mxu0 0
    %4928 = vmatmul.mubr.bf16.gmra.mxu0 %v4752
    %v4929 = vpop.f32.mrf.mxu0
    %v4930 = vadd.f32 %v4781, %v4929
    %v4931 = vpop.f32.mrf.mxu0
    %v4932 = vpop.f32.mrf.mxu0
    %v4933 = vadd.f32 %v4781, %v4932
    %v4934 = vpop.f32.mrf.mxu0
    %4935 = vmatprep.mubr.bf16.mxu0 0
    %4936 = vmatmul.mubr.bf16.gmra.mxu0 %v4753
    %v4937 = vpop.f32.mrf.mxu0
    %v4938 = vadd.f32 %v4781, %v4937
    %v4939 = vpop.f32.mrf.mxu0
    %v4940 = vpop.f32.mrf.mxu0
    %v4941 = vadd.f32 %v4781, %v4940
    %v4942 = vpop.f32.mrf.mxu0
    %4943 = vmatprep.mubr.bf16.mxu0 0
    %4944 = vmatmul.mubr.bf16.gmra.mxu0 %v4754
    %v4945 = vpop.f32.mrf.mxu0
    %v4946 = vadd.f32 %v4781, %v4945
    %v4947 = vpop.f32.mrf.mxu0
    %v4948 = vpop.f32.mrf.mxu0
    %v4949 = vadd.f32 %v4781, %v4948
    %v4950 = vpop.f32.mrf.mxu0
    %4951 = vmatprep.mubr.bf16.mxu0 0
    %4952 = vmatmul.mubr.bf16.gmra.mxu0 %v4755
    %v4953 = vpop.f32.mrf.mxu0
    %v4954 = vadd.f32 %v4781, %v4953
    %v4955 = vpop.f32.mrf.mxu0
    %v4956 = vpop.f32.mrf.mxu0
    %v4957 = vadd.f32 %v4781, %v4956
    %v4958 = vpop.f32.mrf.mxu0
    %4959 = vmatprep.mubr.bf16.mxu0 0
    %4960 = vmatmul.mubr.bf16.gmra.mxu0 %v4756
    %v4961 = vpop.f32.mrf.mxu0
    %v4962 = vadd.f32 %v4781, %v4961
    %v4963 = vpop.f32.mrf.mxu0
    %v4964 = vpop.f32.mrf.mxu0
    %v4965 = vadd.f32 %v4781, %v4964
    %v4966 = vpop.f32.mrf.mxu0
    %4967 = vmatprep.mubr.bf16.mxu0 0
    %4968 = vmatmul.mubr.bf16.gmra.mxu0 %v4757
    %v4969 = vpop.f32.mrf.mxu0
    %v4970 = vadd.f32 %v4781, %v4969
    %v4971 = vpop.f32.mrf.mxu0
    %v4972 = vpop.f32.mrf.mxu0
    %v4973 = vadd.f32 %v4781, %v4972
    %v4974 = vpop.f32.mrf.mxu0
    %4975 = vmatprep.mubr.bf16.mxu0 0
    %4976 = vmatmul.mubr.bf16.gmra.mxu0 %v4758
    %v4977 = vpop.f32.mrf.mxu0
    %v4978 = vadd.f32 %v4781, %v4977
    %v4979 = vpop.f32.mrf.mxu0
    %v4980 = vpop.f32.mrf.mxu0
    %v4981 = vadd.f32 %v4781, %v4980
    %v4982 = vpop.f32.mrf.mxu0
    %4983 = vmatprep.mubr.bf16.mxu0 0
    %4984 = vmatmul.mubr.bf16.gmra.mxu0 %v4759
    %v4985 = vpop.f32.mrf.mxu0
    %v4986 = vadd.f32 %v4781, %v4985
    %v4987 = vpop.f32.mrf.mxu0
    %v4988 = vpop.f32.mrf.mxu0
    %v4989 = vadd.f32 %v4781, %v4988
    %v4990 = vpop.f32.mrf.mxu0
    %4991 = vdwg.mxu0
    %vm4992 = vcmp.gt.f32.partialorder %v4866, 0.0
    %vm4993 = vcmp.gt.f32.partialorder %v4869, 0.0
    %vm4994 = vcmp.gt.f32.partialorder %v4874, 0.0
    %vm4995 = vcmp.gt.f32.partialorder %v4877, 0.0
    %vm4996 = vcmp.gt.f32.partialorder %v4882, 0.0
    %vm4997 = vcmp.gt.f32.partialorder %v4885, 0.0
    %vm4998 = vcmp.gt.f32.partialorder %v4890, 0.0
    %vm4999 = vcmp.gt.f32.partialorder %v4893, 0.0
    %vm5000 = vcmp.gt.f32.partialorder %v4898, 0.0
    %vm5001 = vcmp.gt.f32.partialorder %v4901, 0.0
    %vm5002 = vcmp.gt.f32.partialorder %v4906, 0.0
    %vm5003 = vcmp.gt.f32.partialorder %v4909, 0.0
    %vm5004 = vcmp.gt.f32.partialorder %v4914, 0.0
    %vm5005 = vcmp.gt.f32.partialorder %v4917, 0.0
    %vm5006 = vcmp.gt.f32.partialorder %v4922, 0.0
    %vm5007 = vcmp.gt.f32.partialorder %v4925, 0.0
    %vm5008 = vcmp.gt.f32.partialorder %v4930, 0.0
    %vm5009 = vcmp.gt.f32.partialorder %v4933, 0.0
    %vm5010 = vcmp.gt.f32.partialorder %v4938, 0.0
    %vm5011 = vcmp.gt.f32.partialorder %v4941, 0.0
    %vm5012 = vcmp.gt.f32.partialorder %v4946, 0.0
    %vm5013 = vcmp.gt.f32.partialorder %v4949, 0.0
    %vm5014 = vcmp.gt.f32.partialorder %v4954, 0.0
    %vm5015 = vcmp.gt.f32.partialorder %v4957, 0.0
    %vm5016 = vcmp.gt.f32.partialorder %v4962, 0.0
    %vm5017 = vcmp.gt.f32.partialorder %v4965, 0.0
    %vm5018 = vcmp.gt.f32.partialorder %v4970, 0.0
    %vm5019 = vcmp.gt.f32.partialorder %v4973, 0.0
    %vm5020 = vcmp.gt.f32.partialorder %v4978, 0.0
    %vm5021 = vcmp.gt.f32.partialorder %v4981, 0.0
    %vm5022 = vcmp.gt.f32.partialorder %v4986, 0.0
    %vm5023 = vcmp.gt.f32.partialorder %v4989, 0.0
    %v5024 = vmul.f32 %v4866, 0.01
    %v5025 = vmul.f32 %v4869, 0.01
    %v5026 = vmul.f32 %v4874, 0.01
    %v5027 = vmul.f32 %v4877, 0.01
    %v5028 = vmul.f32 %v4882, 0.01
    %v5029 = vmul.f32 %v4885, 0.01
    %v5030 = vmul.f32 %v4890, 0.01
    %v5031 = vmul.f32 %v4893, 0.01
    %v5032 = vmul.f32 %v4898, 0.01
    %v5033 = vmul.f32 %v4901, 0.01
    %v5034 = vmul.f32 %v4906, 0.01
    %v5035 = vmul.f32 %v4909, 0.01
    %v5036 = vmul.f32 %v4914, 0.01
    %v5037 = vmul.f32 %v4917, 0.01
    %v5038 = vmul.f32 %v4922, 0.01
    %v5039 = vmul.f32 %v4925, 0.01
    %v5040 = vmul.f32 %v4930, 0.01
    %v5041 = vmul.f32 %v4933, 0.01
    %v5042 = vmul.f32 %v4938, 0.01
    %v5043 = vmul.f32 %v4941, 0.01
    %v5044 = vmul.f32 %v4946, 0.01
    %v5045 = vmul.f32 %v4949, 0.01
    %v5046 = vmul.f32 %v4954, 0.01
    %v5047 = vmul.f32 %v4957, 0.01
    %v5048 = vmul.f32 %v4962, 0.01
    %v5049 = vmul.f32 %v4965, 0.01
    %v5050 = vmul.f32 %v4970, 0.01
    %v5051 = vmul.f32 %v4973, 0.01
    %v5052 = vmul.f32 %v4978, 0.01
    %v5053 = vmul.f32 %v4981, 0.01
    %v5054 = vmul.f32 %v4986, 0.01
    %v5055 = vmul.f32 %v4989, 0.01
    %v5056 = vsel %vm4992, %v4866, %v5024
    %v5057 = vsel %vm4993, %v4869, %v5025
    %v5058 = vsel %vm4994, %v4874, %v5026
    %v5059 = vsel %vm4995, %v4877, %v5027
    %v5060 = vsel %vm4996, %v4882, %v5028
    %v5061 = vsel %vm4997, %v4885, %v5029
    %v5062 = vsel %vm4998, %v4890, %v5030
    %v5063 = vsel %vm4999, %v4893, %v5031
    %v5064 = vsel %vm5000, %v4898, %v5032
    %v5065 = vsel %vm5001, %v4901, %v5033
    %v5066 = vsel %vm5002, %v4906, %v5034
    %v5067 = vsel %vm5003, %v4909, %v5035
    %v5068 = vsel %vm5004, %v4914, %v5036
    %v5069 = vsel %vm5005, %v4917, %v5037
    %v5070 = vsel %vm5006, %v4922, %v5038
    %v5071 = vsel %vm5007, %v4925, %v5039
    %v5072 = vsel %vm5008, %v4930, %v5040
    %v5073 = vsel %vm5009, %v4933, %v5041
    %v5074 = vsel %vm5010, %v4938, %v5042
    %v5075 = vsel %vm5011, %v4941, %v5043
    %v5076 = vsel %vm5012, %v4946, %v5044
    %v5077 = vsel %vm5013, %v4949, %v5045
    %v5078 = vsel %vm5014, %v4954, %v5046
    %v5079 = vsel %vm5015, %v4957, %v5047
    %v5080 = vsel %vm5016, %v4962, %v5048
    %v5081 = vsel %vm5017, %v4965, %v5049
    %v5082 = vsel %vm5018, %v4970, %v5050
    %v5083 = vsel %vm5019, %v4973, %v5051
    %v5084 = vsel %vm5020, %v4978, %v5052
    %v5085 = vsel %vm5021, %v4981, %v5053
    %v5086 = vsel %vm5022, %v4986, %v5054
    %v5087 = vsel %vm5023, %v4989, %v5055
    %v5088 = vpack.c.bf16 %v5057, %v5056
    %v5089 = vpack.c.bf16 %v5059, %v5058
    %v5090 = vpack.c.bf16 %v5061, %v5060
    %v5091 = vpack.c.bf16 %v5063, %v5062
    %v5092 = vpack.c.bf16 %v5065, %v5064
    %v5093 = vpack.c.bf16 %v5067, %v5066
    %v5094 = vpack.c.bf16 %v5069, %v5068
    %v5095 = vpack.c.bf16 %v5071, %v5070
    %v5096 = vpack.c.bf16 %v5073, %v5072
    %v5097 = vpack.c.bf16 %v5075, %v5074
    %v5098 = vpack.c.bf16 %v5077, %v5076
    %v5099 = vpack.c.bf16 %v5079, %v5078
    %v5100 = vpack.c.bf16 %v5081, %v5080
    %v5101 = vpack.c.bf16 %v5083, %v5082
    %v5102 = vpack.c.bf16 %v5085, %v5084
    %v5103 = vpack.c.bf16 %v5087, %v5086
    %v5104 = vld [vmem:[%s8] sm:$0xf]
    %v5105 = vld [vmem:[%s8 + $0x4] sm:$0xf]
    %v5106 = vld [vmem:[%s8 + $0x8] sm:$0xf]
    %v5107 = vld [vmem:[%s8 + $0xc] sm:$0xf]
    %v5108 = vld [vmem:[%s8 + $0x10] sm:$0xf]
    %v5109 = vld [vmem:[%s8 + $0x14] sm:$0xf]
    %v5110 = vld [vmem:[%s8 + $0x18] sm:$0xf]
    %v5111 = vld [vmem:[%s8 + $0x1c] sm:$0xf]
    %v5112 = vld [vmem:[%s8 + $0x20] sm:$0xf]
    %v5113 = vld [vmem:[%s8 + $0x24] sm:$0xf]
    %v5114 = vld [vmem:[%s8 + $0x28] sm:$0xf]
    %v5115 = vld [vmem:[%s8 + $0x2c] sm:$0xf]
    %v5116 = vld [vmem:[%s8 + $0x30] sm:$0xf]
    %v5117 = vld [vmem:[%s8 + $0x34] sm:$0xf]
    %v5118 = vld [vmem:[%s8 + $0x38] sm:$0xf]
    %v5119 = vld [vmem:[%s8 + $0x3c] sm:$0xf]
    %v5120 = vld [vmem:[%s9] sm:$0x1]
    %v5122 = vlaneseq
    %v5123 = vshrl.u32 %v5122, 7
    %v5124 = vsub.s32 0, %v5123
    %v5125 = vrot.slane %v5120, %v5124
    %v5143 = vunpack.c.l.b16 %v5104
    %v5144 = vunpack.c.l.b16 %v5105
    %v5145 = vunpack.c.l.b16 %v5106
    %v5146 = vunpack.c.l.b16 %v5107
    %v5147 = vunpack.c.l.b16 %v5108
    %v5148 = vunpack.c.l.b16 %v5109
    %v5149 = vunpack.c.l.b16 %v5110
    %v5150 = vunpack.c.l.b16 %v5111
    %v5151 = vunpack.c.l.b16 %v5112
    %v5152 = vunpack.c.l.b16 %v5113
    %v5153 = vunpack.c.l.b16 %v5114
    %v5154 = vunpack.c.l.b16 %v5115
    %v5155 = vunpack.c.l.b16 %v5116
    %v5156 = vunpack.c.l.b16 %v5117
    %v5157 = vunpack.c.l.b16 %v5118
    %v5158 = vunpack.c.l.b16 %v5119
    %v5159 = vpack.c.b16 %v5144, %v5143
    %v5160 = vpack.c.b16 %v5146, %v5145
    %v5161 = vpack.c.b16 %v5148, %v5147
    %v5162 = vpack.c.b16 %v5150, %v5149
    %v5163 = vpack.c.b16 %v5152, %v5151
    %v5164 = vpack.c.b16 %v5154, %v5153
    %v5165 = vpack.c.b16 %v5156, %v5155
    %v5166 = vpack.c.b16 %v5158, %v5157
    %5175 = vmatprep.subr.bf16.mxu0 0
    %5176 = vmatpush1.bf16.msra.mxu0 %v5166
    %5177 = vmatprep.subr.bf16.mxu0 0
    %5178 = vmatpush1.bf16.msra.mxu0 %v5165
    %5179 = vmatprep.subr.bf16.mxu0 0
    %5180 = vmatpush1.bf16.msra.mxu0 %v5164
    %5181 = vmatprep.subr.bf16.mxu0 0
    %5182 = vmatpush1.bf16.msra.mxu0 %v5163
    %5183 = vmatprep.subr.bf16.mxu0 0
    %5184 = vmatpush1.bf16.msra.mxu0 %v5162
    %5185 = vmatprep.subr.bf16.mxu0 0
    %5186 = vmatpush1.bf16.msra.mxu0 %v5161
    %5187 = vmatprep.subr.bf16.mxu0 0
    %5188 = vmatpush1.bf16.msra.mxu0 %v5160
    %5189 = vmatprep.subr.bf16.mxu0 0
    %5190 = vmatpush1.bf16.msra.mxu0 %v5159
    %5191 = vmatprep.subr.bf16.mxu0 0
    %5192 = vmatpush2.bf16.msra.mxu0 0
    %5193 = vmatprep.subr.bf16.mxu0 0
    %5194 = vmatpush2.bf16.msra.mxu0 0
    %5195 = vmatprep.subr.bf16.mxu0 0
    %5196 = vmatpush2.bf16.msra.mxu0 0
    %5197 = vmatprep.subr.bf16.mxu0 0
    %5198 = vmatpush2.bf16.msra.mxu0 0
    %5199 = vmatprep.subr.bf16.mxu0 0
    %5200 = vmatpush2.bf16.msra.mxu0 0
    %5201 = vmatprep.subr.bf16.mxu0 0
    %5202 = vmatpush2.bf16.msra.mxu0 0
    %5203 = vmatprep.subr.bf16.mxu0 0
    %5204 = vmatpush2.bf16.msra.mxu0 0
    %5205 = vmatprep.subr.bf16.mxu0 0
    %5206 = vmatpush2.bf16.msra.mxu0 0
    %5207 = vmatprep.mubr.bf16.mxu0 0
    %5208 = vmatmul.mubr.bf16.gmra.mxu0 %v5088
    %v5209 = vpop.f32.mrf.mxu0
    %v5210 = vadd.f32 %v5125, %v5209
    %v5211 = vpop.f32.mrf.mxu0
    %v5212 = vpop.f32.mrf.mxu0
    %v5213 = vadd.f32 %v5125, %v5212
    %v5214 = vpop.f32.mrf.mxu0
    %5215 = vmatprep.mubr.bf16.mxu0 0
    %5216 = vmatmul.mubr.bf16.gmra.mxu0 %v5089
    %v5217 = vpop.f32.mrf.mxu0
    %v5218 = vadd.f32 %v5125, %v5217
    %v5219 = vpop.f32.mrf.mxu0
    %v5220 = vpop.f32.mrf.mxu0
    %v5221 = vadd.f32 %v5125, %v5220
    %v5222 = vpop.f32.mrf.mxu0
    %5223 = vmatprep.mubr.bf16.mxu0 0
    %5224 = vmatmul.mubr.bf16.gmra.mxu0 %v5090
    %v5225 = vpop.f32.mrf.mxu0
    %v5226 = vadd.f32 %v5125, %v5225
    %v5227 = vpop.f32.mrf.mxu0
    %v5228 = vpop.f32.mrf.mxu0
    %v5229 = vadd.f32 %v5125, %v5228
    %v5230 = vpop.f32.mrf.mxu0
    %5231 = vmatprep.mubr.bf16.mxu0 0
    %5232 = vmatmul.mubr.bf16.gmra.mxu0 %v5091
    %v5233 = vpop.f32.mrf.mxu0
    %v5234 = vadd.f32 %v5125, %v5233
    %v5235 = vpop.f32.mrf.mxu0
    %v5236 = vpop.f32.mrf.mxu0
    %v5237 = vadd.f32 %v5125, %v5236
    %v5238 = vpop.f32.mrf.mxu0
    %5239 = vmatprep.mubr.bf16.mxu0 0
    %5240 = vmatmul.mubr.bf16.gmra.mxu0 %v5092
    %v5241 = vpop.f32.mrf.mxu0
    %v5242 = vadd.f32 %v5125, %v5241
    %v5243 = vpop.f32.mrf.mxu0
    %v5244 = vpop.f32.mrf.mxu0
    %v5245 = vadd.f32 %v5125, %v5244
    %v5246 = vpop.f32.mrf.mxu0
    %5247 = vmatprep.mubr.bf16.mxu0 0
    %5248 = vmatmul.mubr.bf16.gmra.mxu0 %v5093
    %v5249 = vpop.f32.mrf.mxu0
    %v5250 = vadd.f32 %v5125, %v5249
    %v5251 = vpop.f32.mrf.mxu0
    %v5252 = vpop.f32.mrf.mxu0
    %v5253 = vadd.f32 %v5125, %v5252
    %v5254 = vpop.f32.mrf.mxu0
    %5255 = vmatprep.mubr.bf16.mxu0 0
    %5256 = vmatmul.mubr.bf16.gmra.mxu0 %v5094
    %v5257 = vpop.f32.mrf.mxu0
    %v5258 = vadd.f32 %v5125, %v5257
    %v5259 = vpop.f32.mrf.mxu0
    %v5260 = vpop.f32.mrf.mxu0
    %v5261 = vadd.f32 %v5125, %v5260
    %v5262 = vpop.f32.mrf.mxu0
    %5263 = vmatprep.mubr.bf16.mxu0 0
    %5264 = vmatmul.mubr.bf16.gmra.mxu0 %v5095
    %v5265 = vpop.f32.mrf.mxu0
    %v5266 = vadd.f32 %v5125, %v5265
    %v5267 = vpop.f32.mrf.mxu0
    %v5268 = vpop.f32.mrf.mxu0
    %v5269 = vadd.f32 %v5125, %v5268
    %v5270 = vpop.f32.mrf.mxu0
    %5271 = vmatprep.mubr.bf16.mxu0 0
    %5272 = vmatmul.mubr.bf16.gmra.mxu0 %v5096
    %v5273 = vpop.f32.mrf.mxu0
    %v5274 = vadd.f32 %v5125, %v5273
    %v5275 = vpop.f32.mrf.mxu0
    %v5276 = vpop.f32.mrf.mxu0
    %v5277 = vadd.f32 %v5125, %v5276
    %v5278 = vpop.f32.mrf.mxu0
    %5279 = vmatprep.mubr.bf16.mxu0 0
    %5280 = vmatmul.mubr.bf16.gmra.mxu0 %v5097
    %v5281 = vpop.f32.mrf.mxu0
    %v5282 = vadd.f32 %v5125, %v5281
    %v5283 = vpop.f32.mrf.mxu0
    %v5284 = vpop.f32.mrf.mxu0
    %v5285 = vadd.f32 %v5125, %v5284
    %v5286 = vpop.f32.mrf.mxu0
    %5287 = vmatprep.mubr.bf16.mxu0 0
    %5288 = vmatmul.mubr.bf16.gmra.mxu0 %v5098
    %v5289 = vpop.f32.mrf.mxu0
    %v5290 = vadd.f32 %v5125, %v5289
    %v5291 = vpop.f32.mrf.mxu0
    %v5292 = vpop.f32.mrf.mxu0
    %v5293 = vadd.f32 %v5125, %v5292
    %v5294 = vpop.f32.mrf.mxu0
    %5295 = vmatprep.mubr.bf16.mxu0 0
    %5296 = vmatmul.mubr.bf16.gmra.mxu0 %v5099
    %v5297 = vpop.f32.mrf.mxu0
    %v5298 = vadd.f32 %v5125, %v5297
    %v5299 = vpop.f32.mrf.mxu0
    %v5300 = vpop.f32.mrf.mxu0
    %v5301 = vadd.f32 %v5125, %v5300
    %v5302 = vpop.f32.mrf.mxu0
    %5303 = vmatprep.mubr.bf16.mxu0 0
    %5304 = vmatmul.mubr.bf16.gmra.mxu0 %v5100
    %v5305 = vpop.f32.mrf.mxu0
    %v5306 = vadd.f32 %v5125, %v5305
    %v5307 = vpop.f32.mrf.mxu0
    %v5308 = vpop.f32.mrf.mxu0
    %v5309 = vadd.f32 %v5125, %v5308
    %v5310 = vpop.f32.mrf.mxu0
    %5311 = vmatprep.mubr.bf16.mxu0 0
    %5312 = vmatmul.mubr.bf16.gmra.mxu0 %v5101
    %v5313 = vpop.f32.mrf.mxu0
    %v5314 = vadd.f32 %v5125, %v5313
    %v5315 = vpop.f32.mrf.mxu0
    %v5316 = vpop.f32.mrf.mxu0
    %v5317 = vadd.f32 %v5125, %v5316
    %v5318 = vpop.f32.mrf.mxu0
    %5319 = vmatprep.mubr.bf16.mxu0 0
    %5320 = vmatmul.mubr.bf16.gmra.mxu0 %v5102
    %v5321 = vpop.f32.mrf.mxu0
    %v5322 = vadd.f32 %v5125, %v5321
    %v5323 = vpop.f32.mrf.mxu0
    %v5324 = vpop.f32.mrf.mxu0
    %v5325 = vadd.f32 %v5125, %v5324
    %v5326 = vpop.f32.mrf.mxu0
    %5327 = vmatprep.mubr.bf16.mxu0 0
    %5328 = vmatmul.mubr.bf16.gmra.mxu0 %v5103
    %v5329 = vpop.f32.mrf.mxu0
    %v5330 = vadd.f32 %v5125, %v5329
    %v5331 = vpop.f32.mrf.mxu0
    %v5332 = vpop.f32.mrf.mxu0
    %v5333 = vadd.f32 %v5125, %v5332
    %v5334 = vpop.f32.mrf.mxu0
    %5335 = vdwg.mxu0
    %vm5336 = vcmp.gt.f32.partialorder %v5210, 0.0
    %vm5337 = vcmp.gt.f32.partialorder %v5213, 0.0
    %vm5338 = vcmp.gt.f32.partialorder %v5218, 0.0
    %vm5339 = vcmp.gt.f32.partialorder %v5221, 0.0
    %vm5340 = vcmp.gt.f32.partialorder %v5226, 0.0
    %vm5341 = vcmp.gt.f32.partialorder %v5229, 0.0
    %vm5342 = vcmp.gt.f32.partialorder %v5234, 0.0
    %vm5343 = vcmp.gt.f32.partialorder %v5237, 0.0
    %vm5344 = vcmp.gt.f32.partialorder %v5242, 0.0
    %vm5345 = vcmp.gt.f32.partialorder %v5245, 0.0
    %vm5346 = vcmp.gt.f32.partialorder %v5250, 0.0
    %vm5347 = vcmp.gt.f32.partialorder %v5253, 0.0
    %vm5348 = vcmp.gt.f32.partialorder %v5258, 0.0
    %vm5349 = vcmp.gt.f32.partialorder %v5261, 0.0
    %vm5350 = vcmp.gt.f32.partialorder %v5266, 0.0
    %vm5351 = vcmp.gt.f32.partialorder %v5269, 0.0
    %vm5352 = vcmp.gt.f32.partialorder %v5274, 0.0
    %vm5353 = vcmp.gt.f32.partialorder %v5277, 0.0
    %vm5354 = vcmp.gt.f32.partialorder %v5282, 0.0
    %vm5355 = vcmp.gt.f32.partialorder %v5285, 0.0
    %vm5356 = vcmp.gt.f32.partialorder %v5290, 0.0
    %vm5357 = vcmp.gt.f32.partialorder %v5293, 0.0
    %vm5358 = vcmp.gt.f32.partialorder %v5298, 0.0
    %vm5359 = vcmp.gt.f32.partialorder %v5301, 0.0
    %vm5360 = vcmp.gt.f32.partialorder %v5306, 0.0
    %vm5361 = vcmp.gt.f32.partialorder %v5309, 0.0
    %vm5362 = vcmp.gt.f32.partialorder %v5314, 0.0
    %vm5363 = vcmp.gt.f32.partialorder %v5317, 0.0
    %vm5364 = vcmp.gt.f32.partialorder %v5322, 0.0
    %vm5365 = vcmp.gt.f32.partialorder %v5325, 0.0
    %vm5366 = vcmp.gt.f32.partialorder %v5330, 0.0
    %vm5367 = vcmp.gt.f32.partialorder %v5333, 0.0
    %v5368 = vmul.f32 %v5210, 0.01
    %v5369 = vmul.f32 %v5213, 0.01
    %v5370 = vmul.f32 %v5218, 0.01
    %v5371 = vmul.f32 %v5221, 0.01
    %v5372 = vmul.f32 %v5226, 0.01
    %v5373 = vmul.f32 %v5229, 0.01
    %v5374 = vmul.f32 %v5234, 0.01
    %v5375 = vmul.f32 %v5237, 0.01
    %v5376 = vmul.f32 %v5242, 0.01
    %v5377 = vmul.f32 %v5245, 0.01
    %v5378 = vmul.f32 %v5250, 0.01
    %v5379 = vmul.f32 %v5253, 0.01
    %v5380 = vmul.f32 %v5258, 0.01
    %v5381 = vmul.f32 %v5261, 0.01
    %v5382 = vmul.f32 %v5266, 0.01
    %v5383 = vmul.f32 %v5269, 0.01
    %v5384 = vmul.f32 %v5274, 0.01
    %v5385 = vmul.f32 %v5277, 0.01
    %v5386 = vmul.f32 %v5282, 0.01
    %v5387 = vmul.f32 %v5285, 0.01
    %v5388 = vmul.f32 %v5290, 0.01
    %v5389 = vmul.f32 %v5293, 0.01
    %v5390 = vmul.f32 %v5298, 0.01
    %v5391 = vmul.f32 %v5301, 0.01
    %v5392 = vmul.f32 %v5306, 0.01
    %v5393 = vmul.f32 %v5309, 0.01
    %v5394 = vmul.f32 %v5314, 0.01
    %v5395 = vmul.f32 %v5317, 0.01
    %v5396 = vmul.f32 %v5322, 0.01
    %v5397 = vmul.f32 %v5325, 0.01
    %v5398 = vmul.f32 %v5330, 0.01
    %v5399 = vmul.f32 %v5333, 0.01
    %v5400 = vsel %vm5336, %v5210, %v5368
    %v5401 = vsel %vm5337, %v5213, %v5369
    %v5402 = vsel %vm5338, %v5218, %v5370
    %v5403 = vsel %vm5339, %v5221, %v5371
    %v5404 = vsel %vm5340, %v5226, %v5372
    %v5405 = vsel %vm5341, %v5229, %v5373
    %v5406 = vsel %vm5342, %v5234, %v5374
    %v5407 = vsel %vm5343, %v5237, %v5375
    %v5408 = vsel %vm5344, %v5242, %v5376
    %v5409 = vsel %vm5345, %v5245, %v5377
    %v5410 = vsel %vm5346, %v5250, %v5378
    %v5411 = vsel %vm5347, %v5253, %v5379
    %v5412 = vsel %vm5348, %v5258, %v5380
    %v5413 = vsel %vm5349, %v5261, %v5381
    %v5414 = vsel %vm5350, %v5266, %v5382
    %v5415 = vsel %vm5351, %v5269, %v5383
    %v5416 = vsel %vm5352, %v5274, %v5384
    %v5417 = vsel %vm5353, %v5277, %v5385
    %v5418 = vsel %vm5354, %v5282, %v5386
    %v5419 = vsel %vm5355, %v5285, %v5387
    %v5420 = vsel %vm5356, %v5290, %v5388
    %v5421 = vsel %vm5357, %v5293, %v5389
    %v5422 = vsel %vm5358, %v5298, %v5390
    %v5423 = vsel %vm5359, %v5301, %v5391
    %v5424 = vsel %vm5360, %v5306, %v5392
    %v5425 = vsel %vm5361, %v5309, %v5393
    %v5426 = vsel %vm5362, %v5314, %v5394
    %v5427 = vsel %vm5363, %v5317, %v5395
    %v5428 = vsel %vm5364, %v5322, %v5396
    %v5429 = vsel %vm5365, %v5325, %v5397
    %v5430 = vsel %vm5366, %v5330, %v5398
    %v5431 = vsel %vm5367, %v5333, %v5399
    %v5432 = vpack.c.bf16 %v5401, %v5400
    %v5433 = vpack.c.bf16 %v5403, %v5402
    %v5434 = vpack.c.bf16 %v5405, %v5404
    %v5435 = vpack.c.bf16 %v5407, %v5406
    %v5436 = vpack.c.bf16 %v5409, %v5408
    %v5437 = vpack.c.bf16 %v5411, %v5410
    %v5438 = vpack.c.bf16 %v5413, %v5412
    %v5439 = vpack.c.bf16 %v5415, %v5414
    %v5440 = vpack.c.bf16 %v5417, %v5416
    %v5441 = vpack.c.bf16 %v5419, %v5418
    %v5442 = vpack.c.bf16 %v5421, %v5420
    %v5443 = vpack.c.bf16 %v5423, %v5422
    %v5444 = vpack.c.bf16 %v5425, %v5424
    %v5445 = vpack.c.bf16 %v5427, %v5426
    %v5446 = vpack.c.bf16 %v5429, %v5428
    %v5447 = vpack.c.bf16 %v5431, %v5430
    %v5448 = vld [vmem:[%s10] sm:$0xf]
    %v5449 = vld [vmem:[%s10 + $0x4] sm:$0xf]
    %v5450 = vld [vmem:[%s10 + $0x8] sm:$0xf]
    %v5451 = vld [vmem:[%s10 + $0xc] sm:$0xf]
    %v5452 = vld [vmem:[%s10 + $0x10] sm:$0xf]
    %v5453 = vld [vmem:[%s10 + $0x14] sm:$0xf]
    %v5454 = vld [vmem:[%s10 + $0x18] sm:$0xf]
    %v5455 = vld [vmem:[%s10 + $0x1c] sm:$0xf]
    %v5456 = vld [vmem:[%s10 + $0x20] sm:$0xf]
    %v5457 = vld [vmem:[%s10 + $0x24] sm:$0xf]
    %v5458 = vld [vmem:[%s10 + $0x28] sm:$0xf]
    %v5459 = vld [vmem:[%s10 + $0x2c] sm:$0xf]
    %v5460 = vld [vmem:[%s10 + $0x30] sm:$0xf]
    %v5461 = vld [vmem:[%s10 + $0x34] sm:$0xf]
    %v5462 = vld [vmem:[%s10 + $0x38] sm:$0xf]
    %v5463 = vld [vmem:[%s10 + $0x3c] sm:$0xf]
    %v5464 = vld [vmem:[%s11] sm:$0x1]
    %v5466 = vlaneseq
    %v5467 = vshrl.u32 %v5466, 7
    %v5468 = vsub.s32 0, %v5467
    %v5469 = vrot.slane %v5464, %v5468
    %v5487 = vunpack.c.l.b16 %v5448
    %v5488 = vunpack.c.l.b16 %v5449
    %v5489 = vunpack.c.l.b16 %v5450
    %v5490 = vunpack.c.l.b16 %v5451
    %v5491 = vunpack.c.l.b16 %v5452
    %v5492 = vunpack.c.l.b16 %v5453
    %v5493 = vunpack.c.l.b16 %v5454
    %v5494 = vunpack.c.l.b16 %v5455
    %v5495 = vunpack.c.l.b16 %v5456
    %v5496 = vunpack.c.l.b16 %v5457
    %v5497 = vunpack.c.l.b16 %v5458
    %v5498 = vunpack.c.l.b16 %v5459
    %v5499 = vunpack.c.l.b16 %v5460
    %v5500 = vunpack.c.l.b16 %v5461
    %v5501 = vunpack.c.l.b16 %v5462
    %v5502 = vunpack.c.l.b16 %v5463
    %v5503 = vpack.c.b16 %v5488, %v5487
    %v5504 = vpack.c.b16 %v5490, %v5489
    %v5505 = vpack.c.b16 %v5492, %v5491
    %v5506 = vpack.c.b16 %v5494, %v5493
    %v5507 = vpack.c.b16 %v5496, %v5495
    %v5508 = vpack.c.b16 %v5498, %v5497
    %v5509 = vpack.c.b16 %v5500, %v5499
    %v5510 = vpack.c.b16 %v5502, %v5501
    %5519 = vmatprep.subr.bf16.mxu0 0
    %5520 = vmatpush1.bf16.msra.mxu0 %v5510
    %5521 = vmatprep.subr.bf16.mxu0 0
    %5522 = vmatpush1.bf16.msra.mxu0 %v5509
    %5523 = vmatprep.subr.bf16.mxu0 0
    %5524 = vmatpush1.bf16.msra.mxu0 %v5508
    %5525 = vmatprep.subr.bf16.mxu0 0
    %5526 = vmatpush1.bf16.msra.mxu0 %v5507
    %5527 = vmatprep.subr.bf16.mxu0 0
    %5528 = vmatpush1.bf16.msra.mxu0 %v5506
    %5529 = vmatprep.subr.bf16.mxu0 0
    %5530 = vmatpush1.bf16.msra.mxu0 %v5505
    %5531 = vmatprep.subr.bf16.mxu0 0
    %5532 = vmatpush1.bf16.msra.mxu0 %v5504
    %5533 = vmatprep.subr.bf16.mxu0 0
    %5534 = vmatpush1.bf16.msra.mxu0 %v5503
    %5535 = vmatprep.subr.bf16.mxu0 0
    %5536 = vmatpush2.bf16.msra.mxu0 0
    %5537 = vmatprep.subr.bf16.mxu0 0
    %5538 = vmatpush2.bf16.msra.mxu0 0
    %5539 = vmatprep.subr.bf16.mxu0 0
    %5540 = vmatpush2.bf16.msra.mxu0 0
    %5541 = vmatprep.subr.bf16.mxu0 0
    %5542 = vmatpush2.bf16.msra.mxu0 0
    %5543 = vmatprep.subr.bf16.mxu0 0
    %5544 = vmatpush2.bf16.msra.mxu0 0
    %5545 = vmatprep.subr.bf16.mxu0 0
    %5546 = vmatpush2.bf16.msra.mxu0 0
    %5547 = vmatprep.subr.bf16.mxu0 0
    %5548 = vmatpush2.bf16.msra.mxu0 0
    %5549 = vmatprep.subr.bf16.mxu0 0
    %5550 = vmatpush2.bf16.msra.mxu0 0
    %5551 = vmatprep.mubr.bf16.mxu0 0
    %5552 = vmatmul.mubr.bf16.gmra.mxu0 %v5432
    %v5553 = vpop.f32.mrf.mxu0
    %v5554 = vadd.f32 %v5469, %v5553
    %v5555 = vpop.f32.mrf.mxu0
    %v5556 = vpop.f32.mrf.mxu0
    %v5557 = vadd.f32 %v5469, %v5556
    %v5558 = vpop.f32.mrf.mxu0
    %5559 = vmatprep.mubr.bf16.mxu0 0
    %5560 = vmatmul.mubr.bf16.gmra.mxu0 %v5433
    %v5561 = vpop.f32.mrf.mxu0
    %v5562 = vadd.f32 %v5469, %v5561
    %v5563 = vpop.f32.mrf.mxu0
    %v5564 = vpop.f32.mrf.mxu0
    %v5565 = vadd.f32 %v5469, %v5564
    %v5566 = vpop.f32.mrf.mxu0
    %5567 = vmatprep.mubr.bf16.mxu0 0
    %5568 = vmatmul.mubr.bf16.gmra.mxu0 %v5434
    %v5569 = vpop.f32.mrf.mxu0
    %v5570 = vadd.f32 %v5469, %v5569
    %v5571 = vpop.f32.mrf.mxu0
    %v5572 = vpop.f32.mrf.mxu0
    %v5573 = vadd.f32 %v5469, %v5572
    %v5574 = vpop.f32.mrf.mxu0
    %5575 = vmatprep.mubr.bf16.mxu0 0
    %5576 = vmatmul.mubr.bf16.gmra.mxu0 %v5435
    %v5577 = vpop.f32.mrf.mxu0
    %v5578 = vadd.f32 %v5469, %v5577
    %v5579 = vpop.f32.mrf.mxu0
    %v5580 = vpop.f32.mrf.mxu0
    %v5581 = vadd.f32 %v5469, %v5580
    %v5582 = vpop.f32.mrf.mxu0
    %5583 = vmatprep.mubr.bf16.mxu0 0
    %5584 = vmatmul.mubr.bf16.gmra.mxu0 %v5436
    %v5585 = vpop.f32.mrf.mxu0
    %v5586 = vadd.f32 %v5469, %v5585
    %v5587 = vpop.f32.mrf.mxu0
    %v5588 = vpop.f32.mrf.mxu0
    %v5589 = vadd.f32 %v5469, %v5588
    %v5590 = vpop.f32.mrf.mxu0
    %5591 = vmatprep.mubr.bf16.mxu0 0
    %5592 = vmatmul.mubr.bf16.gmra.mxu0 %v5437
    %v5593 = vpop.f32.mrf.mxu0
    %v5594 = vadd.f32 %v5469, %v5593
    %v5595 = vpop.f32.mrf.mxu0
    %v5596 = vpop.f32.mrf.mxu0
    %v5597 = vadd.f32 %v5469, %v5596
    %v5598 = vpop.f32.mrf.mxu0
    %5599 = vmatprep.mubr.bf16.mxu0 0
    %5600 = vmatmul.mubr.bf16.gmra.mxu0 %v5438
    %v5601 = vpop.f32.mrf.mxu0
    %v5602 = vadd.f32 %v5469, %v5601
    %v5603 = vpop.f32.mrf.mxu0
    %v5604 = vpop.f32.mrf.mxu0
    %v5605 = vadd.f32 %v5469, %v5604
    %v5606 = vpop.f32.mrf.mxu0
    %5607 = vmatprep.mubr.bf16.mxu0 0
    %5608 = vmatmul.mubr.bf16.gmra.mxu0 %v5439
    %v5609 = vpop.f32.mrf.mxu0
    %v5610 = vadd.f32 %v5469, %v5609
    %v5611 = vpop.f32.mrf.mxu0
    %v5612 = vpop.f32.mrf.mxu0
    %v5613 = vadd.f32 %v5469, %v5612
    %v5614 = vpop.f32.mrf.mxu0
    %5615 = vmatprep.mubr.bf16.mxu0 0
    %5616 = vmatmul.mubr.bf16.gmra.mxu0 %v5440
    %v5617 = vpop.f32.mrf.mxu0
    %v5618 = vadd.f32 %v5469, %v5617
    %v5619 = vpop.f32.mrf.mxu0
    %v5620 = vpop.f32.mrf.mxu0
    %v5621 = vadd.f32 %v5469, %v5620
    %v5622 = vpop.f32.mrf.mxu0
    %5623 = vmatprep.mubr.bf16.mxu0 0
    %5624 = vmatmul.mubr.bf16.gmra.mxu0 %v5441
    %v5625 = vpop.f32.mrf.mxu0
    %v5626 = vadd.f32 %v5469, %v5625
    %v5627 = vpop.f32.mrf.mxu0
    %v5628 = vpop.f32.mrf.mxu0
    %v5629 = vadd.f32 %v5469, %v5628
    %v5630 = vpop.f32.mrf.mxu0
    %5631 = vmatprep.mubr.bf16.mxu0 0
    %5632 = vmatmul.mubr.bf16.gmra.mxu0 %v5442
    %v5633 = vpop.f32.mrf.mxu0
    %v5634 = vadd.f32 %v5469, %v5633
    %v5635 = vpop.f32.mrf.mxu0
    %v5636 = vpop.f32.mrf.mxu0
    %v5637 = vadd.f32 %v5469, %v5636
    %v5638 = vpop.f32.mrf.mxu0
    %5639 = vmatprep.mubr.bf16.mxu0 0
    %5640 = vmatmul.mubr.bf16.gmra.mxu0 %v5443
    %v5641 = vpop.f32.mrf.mxu0
    %v5642 = vadd.f32 %v5469, %v5641
    %v5643 = vpop.f32.mrf.mxu0
    %v5644 = vpop.f32.mrf.mxu0
    %v5645 = vadd.f32 %v5469, %v5644
    %v5646 = vpop.f32.mrf.mxu0
    %5647 = vmatprep.mubr.bf16.mxu0 0
    %5648 = vmatmul.mubr.bf16.gmra.mxu0 %v5444
    %v5649 = vpop.f32.mrf.mxu0
    %v5650 = vadd.f32 %v5469, %v5649
    %v5651 = vpop.f32.mrf.mxu0
    %v5652 = vpop.f32.mrf.mxu0
    %v5653 = vadd.f32 %v5469, %v5652
    %v5654 = vpop.f32.mrf.mxu0
    %5655 = vmatprep.mubr.bf16.mxu0 0
    %5656 = vmatmul.mubr.bf16.gmra.mxu0 %v5445
    %v5657 = vpop.f32.mrf.mxu0
    %v5658 = vadd.f32 %v5469, %v5657
    %v5659 = vpop.f32.mrf.mxu0
    %v5660 = vpop.f32.mrf.mxu0
    %v5661 = vadd.f32 %v5469, %v5660
    %v5662 = vpop.f32.mrf.mxu0
    %5663 = vmatprep.mubr.bf16.mxu0 0
    %5664 = vmatmul.mubr.bf16.gmra.mxu0 %v5446
    %v5665 = vpop.f32.mrf.mxu0
    %v5666 = vadd.f32 %v5469, %v5665
    %v5667 = vpop.f32.mrf.mxu0
    %v5668 = vpop.f32.mrf.mxu0
    %v5669 = vadd.f32 %v5469, %v5668
    %v5670 = vpop.f32.mrf.mxu0
    %5671 = vmatprep.mubr.bf16.mxu0 0
    %5672 = vmatmul.mubr.bf16.gmra.mxu0 %v5447
    %v5673 = vpop.f32.mrf.mxu0
    %v5674 = vadd.f32 %v5469, %v5673
    %v5675 = vpop.f32.mrf.mxu0
    %v5676 = vpop.f32.mrf.mxu0
    %v5677 = vadd.f32 %v5469, %v5676
    %v5678 = vpop.f32.mrf.mxu0
    %5679 = vdwg.mxu0
    %vm5680 = vcmp.gt.f32.partialorder %v5554, 0.0
    %vm5681 = vcmp.gt.f32.partialorder %v5557, 0.0
    %vm5682 = vcmp.gt.f32.partialorder %v5562, 0.0
    %vm5683 = vcmp.gt.f32.partialorder %v5565, 0.0
    %vm5684 = vcmp.gt.f32.partialorder %v5570, 0.0
    %vm5685 = vcmp.gt.f32.partialorder %v5573, 0.0
    %vm5686 = vcmp.gt.f32.partialorder %v5578, 0.0
    %vm5687 = vcmp.gt.f32.partialorder %v5581, 0.0
    %vm5688 = vcmp.gt.f32.partialorder %v5586, 0.0
    %vm5689 = vcmp.gt.f32.partialorder %v5589, 0.0
    %vm5690 = vcmp.gt.f32.partialorder %v5594, 0.0
    %vm5691 = vcmp.gt.f32.partialorder %v5597, 0.0
    %vm5692 = vcmp.gt.f32.partialorder %v5602, 0.0
    %vm5693 = vcmp.gt.f32.partialorder %v5605, 0.0
    %vm5694 = vcmp.gt.f32.partialorder %v5610, 0.0
    %vm5695 = vcmp.gt.f32.partialorder %v5613, 0.0
    %vm5696 = vcmp.gt.f32.partialorder %v5618, 0.0
    %vm5697 = vcmp.gt.f32.partialorder %v5621, 0.0
    %vm5698 = vcmp.gt.f32.partialorder %v5626, 0.0
    %vm5699 = vcmp.gt.f32.partialorder %v5629, 0.0
    %vm5700 = vcmp.gt.f32.partialorder %v5634, 0.0
    %vm5701 = vcmp.gt.f32.partialorder %v5637, 0.0
    %vm5702 = vcmp.gt.f32.partialorder %v5642, 0.0
    %vm5703 = vcmp.gt.f32.partialorder %v5645, 0.0
    %vm5704 = vcmp.gt.f32.partialorder %v5650, 0.0
    %vm5705 = vcmp.gt.f32.partialorder %v5653, 0.0
    %vm5706 = vcmp.gt.f32.partialorder %v5658, 0.0
    %vm5707 = vcmp.gt.f32.partialorder %v5661, 0.0
    %vm5708 = vcmp.gt.f32.partialorder %v5666, 0.0
    %vm5709 = vcmp.gt.f32.partialorder %v5669, 0.0
    %vm5710 = vcmp.gt.f32.partialorder %v5674, 0.0
    %vm5711 = vcmp.gt.f32.partialorder %v5677, 0.0
    %v5712 = vmul.f32 %v5554, 0.01
    %v5713 = vmul.f32 %v5557, 0.01
    %v5714 = vmul.f32 %v5562, 0.01
    %v5715 = vmul.f32 %v5565, 0.01
    %v5716 = vmul.f32 %v5570, 0.01
    %v5717 = vmul.f32 %v5573, 0.01
    %v5718 = vmul.f32 %v5578, 0.01
    %v5719 = vmul.f32 %v5581, 0.01
    %v5720 = vmul.f32 %v5586, 0.01
    %v5721 = vmul.f32 %v5589, 0.01
    %v5722 = vmul.f32 %v5594, 0.01
    %v5723 = vmul.f32 %v5597, 0.01
    %v5724 = vmul.f32 %v5602, 0.01
    %v5725 = vmul.f32 %v5605, 0.01
    %v5726 = vmul.f32 %v5610, 0.01
    %v5727 = vmul.f32 %v5613, 0.01
    %v5728 = vmul.f32 %v5618, 0.01
    %v5729 = vmul.f32 %v5621, 0.01
    %v5730 = vmul.f32 %v5626, 0.01
    %v5731 = vmul.f32 %v5629, 0.01
    %v5732 = vmul.f32 %v5634, 0.01
    %v5733 = vmul.f32 %v5637, 0.01
    %v5734 = vmul.f32 %v5642, 0.01
    %v5735 = vmul.f32 %v5645, 0.01
    %v5736 = vmul.f32 %v5650, 0.01
    %v5737 = vmul.f32 %v5653, 0.01
    %v5738 = vmul.f32 %v5658, 0.01
    %v5739 = vmul.f32 %v5661, 0.01
    %v5740 = vmul.f32 %v5666, 0.01
    %v5741 = vmul.f32 %v5669, 0.01
    %v5742 = vmul.f32 %v5674, 0.01
    %v5743 = vmul.f32 %v5677, 0.01
    %v5744 = vsel %vm5680, %v5554, %v5712
    %v5745 = vsel %vm5681, %v5557, %v5713
    %v5746 = vsel %vm5682, %v5562, %v5714
    %v5747 = vsel %vm5683, %v5565, %v5715
    %v5748 = vsel %vm5684, %v5570, %v5716
    %v5749 = vsel %vm5685, %v5573, %v5717
    %v5750 = vsel %vm5686, %v5578, %v5718
    %v5751 = vsel %vm5687, %v5581, %v5719
    %v5752 = vsel %vm5688, %v5586, %v5720
    %v5753 = vsel %vm5689, %v5589, %v5721
    %v5754 = vsel %vm5690, %v5594, %v5722
    %v5755 = vsel %vm5691, %v5597, %v5723
    %v5756 = vsel %vm5692, %v5602, %v5724
    %v5757 = vsel %vm5693, %v5605, %v5725
    %v5758 = vsel %vm5694, %v5610, %v5726
    %v5759 = vsel %vm5695, %v5613, %v5727
    %v5760 = vsel %vm5696, %v5618, %v5728
    %v5761 = vsel %vm5697, %v5621, %v5729
    %v5762 = vsel %vm5698, %v5626, %v5730
    %v5763 = vsel %vm5699, %v5629, %v5731
    %v5764 = vsel %vm5700, %v5634, %v5732
    %v5765 = vsel %vm5701, %v5637, %v5733
    %v5766 = vsel %vm5702, %v5642, %v5734
    %v5767 = vsel %vm5703, %v5645, %v5735
    %v5768 = vsel %vm5704, %v5650, %v5736
    %v5769 = vsel %vm5705, %v5653, %v5737
    %v5770 = vsel %vm5706, %v5658, %v5738
    %v5771 = vsel %vm5707, %v5661, %v5739
    %v5772 = vsel %vm5708, %v5666, %v5740
    %v5773 = vsel %vm5709, %v5669, %v5741
    %v5774 = vsel %vm5710, %v5674, %v5742
    %v5775 = vsel %vm5711, %v5677, %v5743
    %v5776 = vld [vmem:[%s12] sm:$0x3]
    %v5777 = vld [vmem:[%s13] sm:$0x1]
    %v5778 = vlaneseq
    %v5779 = vshrl.u32 %v5778, 7
    %v5780 = vsub.s32 0, %v5779
    %v5781 = vrot.slane %v5776, %v5780
    %v5782 = vmul.f32 %v5744, %v5781
    %v5783 = vmul.f32 %v5745, %v5781
    %v5784 = vmul.f32 %v5746, %v5781
    %v5785 = vmul.f32 %v5747, %v5781
    %v5786 = vmul.f32 %v5748, %v5781
    %v5787 = vmul.f32 %v5749, %v5781
    %v5788 = vmul.f32 %v5750, %v5781
    %v5789 = vmul.f32 %v5751, %v5781
    %v5790 = vmul.f32 %v5752, %v5781
    %v5791 = vmul.f32 %v5753, %v5781
    %v5792 = vmul.f32 %v5754, %v5781
    %v5793 = vmul.f32 %v5755, %v5781
    %v5794 = vmul.f32 %v5756, %v5781
    %v5795 = vmul.f32 %v5757, %v5781
    %v5796 = vmul.f32 %v5758, %v5781
    %v5797 = vmul.f32 %v5759, %v5781
    %v5798 = vmul.f32 %v5760, %v5781
    %v5799 = vmul.f32 %v5761, %v5781
    %v5800 = vmul.f32 %v5762, %v5781
    %v5801 = vmul.f32 %v5763, %v5781
    %v5802 = vmul.f32 %v5764, %v5781
    %v5803 = vmul.f32 %v5765, %v5781
    %v5804 = vmul.f32 %v5766, %v5781
    %v5805 = vmul.f32 %v5767, %v5781
    %v5806 = vmul.f32 %v5768, %v5781
    %v5807 = vmul.f32 %v5769, %v5781
    %v5808 = vmul.f32 %v5770, %v5781
    %v5809 = vmul.f32 %v5771, %v5781
    %v5810 = vmul.f32 %v5772, %v5781
    %v5811 = vmul.f32 %v5773, %v5781
    %v5812 = vmul.f32 %v5774, %v5781
    %v5813 = vmul.f32 %v5775, %v5781
    %5814 = vadd.xlane.f32.xlu0 %v5782
    %v5815 = vpop.xlane.xlu0 %5814
    %5816 = vadd.xlane.f32.xlu0 %v5783
    %v5817 = vpop.xlane.xlu0 %5816
    %5818 = vadd.xlane.f32.xlu0 %v5784
    %v5819 = vpop.xlane.xlu0 %5818
    %5820 = vadd.xlane.f32.xlu0 %v5785
    %v5821 = vpop.xlane.xlu0 %5820
    %5822 = vadd.xlane.f32.xlu0 %v5786
    %v5823 = vpop.xlane.xlu0 %5822
    %5824 = vadd.xlane.f32.xlu0 %v5787
    %v5825 = vpop.xlane.xlu0 %5824
    %5826 = vadd.xlane.f32.xlu0 %v5788
    %v5827 = vpop.xlane.xlu0 %5826
    %5828 = vadd.xlane.f32.xlu0 %v5789
    %v5829 = vpop.xlane.xlu0 %5828
    %5830 = vadd.xlane.f32.xlu0 %v5790
    %v5831 = vpop.xlane.xlu0 %5830
    %5832 = vadd.xlane.f32.xlu0 %v5791
    %v5833 = vpop.xlane.xlu0 %5832
    %5834 = vadd.xlane.f32.xlu0 %v5792
    %v5835 = vpop.xlane.xlu0 %5834
    %5836 = vadd.xlane.f32.xlu0 %v5793
    %v5837 = vpop.xlane.xlu0 %5836
    %5838 = vadd.xlane.f32.xlu0 %v5794
    %v5839 = vpop.xlane.xlu0 %5838
    %5840 = vadd.xlane.f32.xlu0 %v5795
    %v5841 = vpop.xlane.xlu0 %5840
    %5842 = vadd.xlane.f32.xlu0 %v5796
    %v5843 = vpop.xlane.xlu0 %5842
    %5844 = vadd.xlane.f32.xlu0 %v5797
    %v5845 = vpop.xlane.xlu0 %5844
    %5846 = vadd.xlane.f32.xlu0 %v5798
    %v5847 = vpop.xlane.xlu0 %5846
    %5848 = vadd.xlane.f32.xlu0 %v5799
    %v5849 = vpop.xlane.xlu0 %5848
    %5850 = vadd.xlane.f32.xlu0 %v5800
    %v5851 = vpop.xlane.xlu0 %5850
    %5852 = vadd.xlane.f32.xlu0 %v5801
    %v5853 = vpop.xlane.xlu0 %5852
    %5854 = vadd.xlane.f32.xlu0 %v5802
    %v5855 = vpop.xlane.xlu0 %5854
    %5856 = vadd.xlane.f32.xlu0 %v5803
    %v5857 = vpop.xlane.xlu0 %5856
    %5858 = vadd.xlane.f32.xlu0 %v5804
    %v5859 = vpop.xlane.xlu0 %5858
    %5860 = vadd.xlane.f32.xlu0 %v5805
    %v5861 = vpop.xlane.xlu0 %5860
    %5862 = vadd.xlane.f32.xlu0 %v5806
    %v5863 = vpop.xlane.xlu0 %5862
    %5864 = vadd.xlane.f32.xlu0 %v5807
    %v5865 = vpop.xlane.xlu0 %5864
    %5866 = vadd.xlane.f32.xlu0 %v5808
    %v5867 = vpop.xlane.xlu0 %5866
    %5868 = vadd.xlane.f32.xlu0 %v5809
    %v5869 = vpop.xlane.xlu0 %5868
    %5870 = vadd.xlane.f32.xlu0 %v5810
    %v5871 = vpop.xlane.xlu0 %5870
    %5872 = vadd.xlane.f32.xlu0 %v5811
    %v5873 = vpop.xlane.xlu0 %5872
    %5874 = vadd.xlane.f32.xlu0 %v5812
    %v5875 = vpop.xlane.xlu0 %5874
    %5876 = vadd.xlane.f32.xlu0 %v5813
    %v5877 = vpop.xlane.xlu0 %5876
    %v5879 = vlaneseq
    %v5880 = vshrl.u32 %v5879, 7
    %v5881 = vsub.s32 0, %v5880
    %v5882 = vrot.slane %v5777, %v5881
    %v5884 = vadd.f32 %v5815, %v5882
    %v5885 = vadd.f32 %v5817, %v5882
    %v5886 = vadd.f32 %v5819, %v5882
    %v5887 = vadd.f32 %v5821, %v5882
    %v5888 = vadd.f32 %v5823, %v5882
    %v5889 = vadd.f32 %v5825, %v5882
    %v5890 = vadd.f32 %v5827, %v5882
    %v5891 = vadd.f32 %v5829, %v5882
    %v5892 = vadd.f32 %v5831, %v5882
    %v5893 = vadd.f32 %v5833, %v5882
    %v5894 = vadd.f32 %v5835, %v5882
    %v5895 = vadd.f32 %v5837, %v5882
    %v5896 = vadd.f32 %v5839, %v5882
    %v5897 = vadd.f32 %v5841, %v5882
    %v5898 = vadd.f32 %v5843, %v5882
    %v5899 = vadd.f32 %v5845, %v5882
    %v5900 = vadd.f32 %v5847, %v5882
    %v5901 = vadd.f32 %v5849, %v5882
    %v5902 = vadd.f32 %v5851, %v5882
    %v5903 = vadd.f32 %v5853, %v5882
    %v5904 = vadd.f32 %v5855, %v5882
    %v5905 = vadd.f32 %v5857, %v5882
    %v5906 = vadd.f32 %v5859, %v5882
    %v5907 = vadd.f32 %v5861, %v5882
    %v5908 = vadd.f32 %v5863, %v5882
    %v5909 = vadd.f32 %v5865, %v5882
    %v5910 = vadd.f32 %v5867, %v5882
    %v5911 = vadd.f32 %v5869, %v5882
    %v5912 = vadd.f32 %v5871, %v5882
    %v5913 = vadd.f32 %v5873, %v5882
    %v5914 = vadd.f32 %v5875, %v5882
    %v5915 = vadd.f32 %v5877, %v5882
    %vm5916 = vcmp.gt.f32.partialorder %v5884, 0.0
    %vm5917 = vcmp.gt.f32.partialorder %v5885, 0.0
    %vm5918 = vcmp.gt.f32.partialorder %v5886, 0.0
    %vm5919 = vcmp.gt.f32.partialorder %v5887, 0.0
    %vm5920 = vcmp.gt.f32.partialorder %v5888, 0.0
    %vm5921 = vcmp.gt.f32.partialorder %v5889, 0.0
    %vm5922 = vcmp.gt.f32.partialorder %v5890, 0.0
    %vm5923 = vcmp.gt.f32.partialorder %v5891, 0.0
    %vm5924 = vcmp.gt.f32.partialorder %v5892, 0.0
    %vm5925 = vcmp.gt.f32.partialorder %v5893, 0.0
    %vm5926 = vcmp.gt.f32.partialorder %v5894, 0.0
    %vm5927 = vcmp.gt.f32.partialorder %v5895, 0.0
    %vm5928 = vcmp.gt.f32.partialorder %v5896, 0.0
    %vm5929 = vcmp.gt.f32.partialorder %v5897, 0.0
    %vm5930 = vcmp.gt.f32.partialorder %v5898, 0.0
    %vm5931 = vcmp.gt.f32.partialorder %v5899, 0.0
    %vm5932 = vcmp.gt.f32.partialorder %v5900, 0.0
    %vm5933 = vcmp.gt.f32.partialorder %v5901, 0.0
    %vm5934 = vcmp.gt.f32.partialorder %v5902, 0.0
    %vm5935 = vcmp.gt.f32.partialorder %v5903, 0.0
    %vm5936 = vcmp.gt.f32.partialorder %v5904, 0.0
    %vm5937 = vcmp.gt.f32.partialorder %v5905, 0.0
    %vm5938 = vcmp.gt.f32.partialorder %v5906, 0.0
    %vm5939 = vcmp.gt.f32.partialorder %v5907, 0.0
    %vm5940 = vcmp.gt.f32.partialorder %v5908, 0.0
    %vm5941 = vcmp.gt.f32.partialorder %v5909, 0.0
    %vm5942 = vcmp.gt.f32.partialorder %v5910, 0.0
    %vm5943 = vcmp.gt.f32.partialorder %v5911, 0.0
    %vm5944 = vcmp.gt.f32.partialorder %v5912, 0.0
    %vm5945 = vcmp.gt.f32.partialorder %v5913, 0.0
    %vm5946 = vcmp.gt.f32.partialorder %v5914, 0.0
    %vm5947 = vcmp.gt.f32.partialorder %v5915, 0.0
    %v5948 = vmul.f32 %v5884, 0.01
    %v5949 = vmul.f32 %v5885, 0.01
    %v5950 = vmul.f32 %v5886, 0.01
    %v5951 = vmul.f32 %v5887, 0.01
    %v5952 = vmul.f32 %v5888, 0.01
    %v5953 = vmul.f32 %v5889, 0.01
    %v5954 = vmul.f32 %v5890, 0.01
    %v5955 = vmul.f32 %v5891, 0.01
    %v5956 = vmul.f32 %v5892, 0.01
    %v5957 = vmul.f32 %v5893, 0.01
    %v5958 = vmul.f32 %v5894, 0.01
    %v5959 = vmul.f32 %v5895, 0.01
    %v5960 = vmul.f32 %v5896, 0.01
    %v5961 = vmul.f32 %v5897, 0.01
    %v5962 = vmul.f32 %v5898, 0.01
    %v5963 = vmul.f32 %v5899, 0.01
    %v5964 = vmul.f32 %v5900, 0.01
    %v5965 = vmul.f32 %v5901, 0.01
    %v5966 = vmul.f32 %v5902, 0.01
    %v5967 = vmul.f32 %v5903, 0.01
    %v5968 = vmul.f32 %v5904, 0.01
    %v5969 = vmul.f32 %v5905, 0.01
    %v5970 = vmul.f32 %v5906, 0.01
    %v5971 = vmul.f32 %v5907, 0.01
    %v5972 = vmul.f32 %v5908, 0.01
    %v5973 = vmul.f32 %v5909, 0.01
    %v5974 = vmul.f32 %v5910, 0.01
    %v5975 = vmul.f32 %v5911, 0.01
    %v5976 = vmul.f32 %v5912, 0.01
    %v5977 = vmul.f32 %v5913, 0.01
    %v5978 = vmul.f32 %v5914, 0.01
    %v5979 = vmul.f32 %v5915, 0.01
    %v5980 = vsel %vm5916, %v5884, %v5948
    %v5981 = vsel %vm5917, %v5885, %v5949
    %v5982 = vsel %vm5918, %v5886, %v5950
    %v5983 = vsel %vm5919, %v5887, %v5951
    %v5984 = vsel %vm5920, %v5888, %v5952
    %v5985 = vsel %vm5921, %v5889, %v5953
    %v5986 = vsel %vm5922, %v5890, %v5954
    %v5987 = vsel %vm5923, %v5891, %v5955
    %v5988 = vsel %vm5924, %v5892, %v5956
    %v5989 = vsel %vm5925, %v5893, %v5957
    %v5990 = vsel %vm5926, %v5894, %v5958
    %v5991 = vsel %vm5927, %v5895, %v5959
    %v5992 = vsel %vm5928, %v5896, %v5960
    %v5993 = vsel %vm5929, %v5897, %v5961
    %v5994 = vsel %vm5930, %v5898, %v5962
    %v5995 = vsel %vm5931, %v5899, %v5963
    %v5996 = vsel %vm5932, %v5900, %v5964
    %v5997 = vsel %vm5933, %v5901, %v5965
    %v5998 = vsel %vm5934, %v5902, %v5966
    %v5999 = vsel %vm5935, %v5903, %v5967
    %v6000 = vsel %vm5936, %v5904, %v5968
    %v6001 = vsel %vm5937, %v5905, %v5969
    %v6002 = vsel %vm5938, %v5906, %v5970
    %v6003 = vsel %vm5939, %v5907, %v5971
    %v6004 = vsel %vm5940, %v5908, %v5972
    %v6005 = vsel %vm5941, %v5909, %v5973
    %v6006 = vsel %vm5942, %v5910, %v5974
    %v6007 = vsel %vm5943, %v5911, %v5975
    %v6008 = vsel %vm5944, %v5912, %v5976
    %v6009 = vsel %vm5945, %v5913, %v5977
    %v6010 = vsel %vm5946, %v5914, %v5978
    %v6011 = vsel %vm5947, %v5915, %v5979
    %v6012 = vlaneseq
    %v6013 = vshrl.u32 %v6012, 7
    %v6014 = vsub.s32 1, %v6013
    %v6015 = vrot.slane %v5776, %v6014
    %v6016 = vmul.f32 %v5744, %v6015
    %v6017 = vmul.f32 %v5745, %v6015
    %v6018 = vmul.f32 %v5746, %v6015
    %v6019 = vmul.f32 %v5747, %v6015
    %v6020 = vmul.f32 %v5748, %v6015
    %v6021 = vmul.f32 %v5749, %v6015
    %v6022 = vmul.f32 %v5750, %v6015
    %v6023 = vmul.f32 %v5751, %v6015
    %v6024 = vmul.f32 %v5752, %v6015
    %v6025 = vmul.f32 %v5753, %v6015
    %v6026 = vmul.f32 %v5754, %v6015
    %v6027 = vmul.f32 %v5755, %v6015
    %v6028 = vmul.f32 %v5756, %v6015
    %v6029 = vmul.f32 %v5757, %v6015
    %v6030 = vmul.f32 %v5758, %v6015
    %v6031 = vmul.f32 %v5759, %v6015
    %v6032 = vmul.f32 %v5760, %v6015
    %v6033 = vmul.f32 %v5761, %v6015
    %v6034 = vmul.f32 %v5762, %v6015
    %v6035 = vmul.f32 %v5763, %v6015
    %v6036 = vmul.f32 %v5764, %v6015
    %v6037 = vmul.f32 %v5765, %v6015
    %v6038 = vmul.f32 %v5766, %v6015
    %v6039 = vmul.f32 %v5767, %v6015
    %v6040 = vmul.f32 %v5768, %v6015
    %v6041 = vmul.f32 %v5769, %v6015
    %v6042 = vmul.f32 %v5770, %v6015
    %v6043 = vmul.f32 %v5771, %v6015
    %v6044 = vmul.f32 %v5772, %v6015
    %v6045 = vmul.f32 %v5773, %v6015
    %v6046 = vmul.f32 %v5774, %v6015
    %v6047 = vmul.f32 %v5775, %v6015
    %6048 = vadd.xlane.f32.xlu0 %v6016
    %v6049 = vpop.xlane.xlu0 %6048
    %6050 = vadd.xlane.f32.xlu0 %v6017
    %v6051 = vpop.xlane.xlu0 %6050
    %6052 = vadd.xlane.f32.xlu0 %v6018
    %v6053 = vpop.xlane.xlu0 %6052
    %6054 = vadd.xlane.f32.xlu0 %v6019
    %v6055 = vpop.xlane.xlu0 %6054
    %6056 = vadd.xlane.f32.xlu0 %v6020
    %v6057 = vpop.xlane.xlu0 %6056
    %6058 = vadd.xlane.f32.xlu0 %v6021
    %v6059 = vpop.xlane.xlu0 %6058
    %6060 = vadd.xlane.f32.xlu0 %v6022
    %v6061 = vpop.xlane.xlu0 %6060
    %6062 = vadd.xlane.f32.xlu0 %v6023
    %v6063 = vpop.xlane.xlu0 %6062
    %6064 = vadd.xlane.f32.xlu0 %v6024
    %v6065 = vpop.xlane.xlu0 %6064
    %6066 = vadd.xlane.f32.xlu0 %v6025
    %v6067 = vpop.xlane.xlu0 %6066
    %6068 = vadd.xlane.f32.xlu0 %v6026
    %v6069 = vpop.xlane.xlu0 %6068
    %6070 = vadd.xlane.f32.xlu0 %v6027
    %v6071 = vpop.xlane.xlu0 %6070
    %6072 = vadd.xlane.f32.xlu0 %v6028
    %v6073 = vpop.xlane.xlu0 %6072
    %6074 = vadd.xlane.f32.xlu0 %v6029
    %v6075 = vpop.xlane.xlu0 %6074
    %6076 = vadd.xlane.f32.xlu0 %v6030
    %v6077 = vpop.xlane.xlu0 %6076
    %6078 = vadd.xlane.f32.xlu0 %v6031
    %v6079 = vpop.xlane.xlu0 %6078
    %6080 = vadd.xlane.f32.xlu0 %v6032
    %v6081 = vpop.xlane.xlu0 %6080
    %6082 = vadd.xlane.f32.xlu0 %v6033
    %v6083 = vpop.xlane.xlu0 %6082
    %6084 = vadd.xlane.f32.xlu0 %v6034
    %v6085 = vpop.xlane.xlu0 %6084
    %6086 = vadd.xlane.f32.xlu0 %v6035
    %v6087 = vpop.xlane.xlu0 %6086
    %6088 = vadd.xlane.f32.xlu0 %v6036
    %v6089 = vpop.xlane.xlu0 %6088
    %6090 = vadd.xlane.f32.xlu0 %v6037
    %v6091 = vpop.xlane.xlu0 %6090
    %6092 = vadd.xlane.f32.xlu0 %v6038
    %v6093 = vpop.xlane.xlu0 %6092
    %6094 = vadd.xlane.f32.xlu0 %v6039
    %v6095 = vpop.xlane.xlu0 %6094
    %6096 = vadd.xlane.f32.xlu0 %v6040
    %v6097 = vpop.xlane.xlu0 %6096
    %6098 = vadd.xlane.f32.xlu0 %v6041
    %v6099 = vpop.xlane.xlu0 %6098
    %6100 = vadd.xlane.f32.xlu0 %v6042
    %v6101 = vpop.xlane.xlu0 %6100
    %6102 = vadd.xlane.f32.xlu0 %v6043
    %v6103 = vpop.xlane.xlu0 %6102
    %6104 = vadd.xlane.f32.xlu0 %v6044
    %v6105 = vpop.xlane.xlu0 %6104
    %6106 = vadd.xlane.f32.xlu0 %v6045
    %v6107 = vpop.xlane.xlu0 %6106
    %6108 = vadd.xlane.f32.xlu0 %v6046
    %v6109 = vpop.xlane.xlu0 %6108
    %6110 = vadd.xlane.f32.xlu0 %v6047
    %v6111 = vpop.xlane.xlu0 %6110
    %v6112 = vadd.f32 %v6049, %v5882
    %v6113 = vadd.f32 %v6051, %v5882
    %v6114 = vadd.f32 %v6053, %v5882
    %v6115 = vadd.f32 %v6055, %v5882
    %v6116 = vadd.f32 %v6057, %v5882
    %v6117 = vadd.f32 %v6059, %v5882
    %v6118 = vadd.f32 %v6061, %v5882
    %v6119 = vadd.f32 %v6063, %v5882
    %v6120 = vadd.f32 %v6065, %v5882
    %v6121 = vadd.f32 %v6067, %v5882
    %v6122 = vadd.f32 %v6069, %v5882
    %v6123 = vadd.f32 %v6071, %v5882
    %v6124 = vadd.f32 %v6073, %v5882
    %v6125 = vadd.f32 %v6075, %v5882
    %v6126 = vadd.f32 %v6077, %v5882
    %v6127 = vadd.f32 %v6079, %v5882
    %v6128 = vadd.f32 %v6081, %v5882
    %v6129 = vadd.f32 %v6083, %v5882
    %v6130 = vadd.f32 %v6085, %v5882
    %v6131 = vadd.f32 %v6087, %v5882
    %v6132 = vadd.f32 %v6089, %v5882
    %v6133 = vadd.f32 %v6091, %v5882
    %v6134 = vadd.f32 %v6093, %v5882
    %v6135 = vadd.f32 %v6095, %v5882
    %v6136 = vadd.f32 %v6097, %v5882
    %v6137 = vadd.f32 %v6099, %v5882
    %v6138 = vadd.f32 %v6101, %v5882
    %v6139 = vadd.f32 %v6103, %v5882
    %v6140 = vadd.f32 %v6105, %v5882
    %v6141 = vadd.f32 %v6107, %v5882
    %v6142 = vadd.f32 %v6109, %v5882
    %v6143 = vadd.f32 %v6111, %v5882
    %vm6144 = vcmp.gt.f32.partialorder %v6112, 0.0
    %vm6145 = vcmp.gt.f32.partialorder %v6113, 0.0
    %vm6146 = vcmp.gt.f32.partialorder %v6114, 0.0
    %vm6147 = vcmp.gt.f32.partialorder %v6115, 0.0
    %vm6148 = vcmp.gt.f32.partialorder %v6116, 0.0
    %vm6149 = vcmp.gt.f32.partialorder %v6117, 0.0
    %vm6150 = vcmp.gt.f32.partialorder %v6118, 0.0
    %vm6151 = vcmp.gt.f32.partialorder %v6119, 0.0
    %vm6152 = vcmp.gt.f32.partialorder %v6120, 0.0
    %vm6153 = vcmp.gt.f32.partialorder %v6121, 0.0
    %vm6154 = vcmp.gt.f32.partialorder %v6122, 0.0
    %vm6155 = vcmp.gt.f32.partialorder %v6123, 0.0
    %vm6156 = vcmp.gt.f32.partialorder %v6124, 0.0
    %vm6157 = vcmp.gt.f32.partialorder %v6125, 0.0
    %vm6158 = vcmp.gt.f32.partialorder %v6126, 0.0
    %vm6159 = vcmp.gt.f32.partialorder %v6127, 0.0
    %vm6160 = vcmp.gt.f32.partialorder %v6128, 0.0
    %vm6161 = vcmp.gt.f32.partialorder %v6129, 0.0
    %vm6162 = vcmp.gt.f32.partialorder %v6130, 0.0
    %vm6163 = vcmp.gt.f32.partialorder %v6131, 0.0
    %vm6164 = vcmp.gt.f32.partialorder %v6132, 0.0
    %vm6165 = vcmp.gt.f32.partialorder %v6133, 0.0
    %vm6166 = vcmp.gt.f32.partialorder %v6134, 0.0
    %vm6167 = vcmp.gt.f32.partialorder %v6135, 0.0
    %vm6168 = vcmp.gt.f32.partialorder %v6136, 0.0
    %vm6169 = vcmp.gt.f32.partialorder %v6137, 0.0
    %vm6170 = vcmp.gt.f32.partialorder %v6138, 0.0
    %vm6171 = vcmp.gt.f32.partialorder %v6139, 0.0
    %vm6172 = vcmp.gt.f32.partialorder %v6140, 0.0
    %vm6173 = vcmp.gt.f32.partialorder %v6141, 0.0
    %vm6174 = vcmp.gt.f32.partialorder %v6142, 0.0
    %vm6175 = vcmp.gt.f32.partialorder %v6143, 0.0
    %v6176 = vmul.f32 %v6112, 0.01
    %v6177 = vmul.f32 %v6113, 0.01
    %v6178 = vmul.f32 %v6114, 0.01
    %v6179 = vmul.f32 %v6115, 0.01
    %v6180 = vmul.f32 %v6116, 0.01
    %v6181 = vmul.f32 %v6117, 0.01
    %v6182 = vmul.f32 %v6118, 0.01
    %v6183 = vmul.f32 %v6119, 0.01
    %v6184 = vmul.f32 %v6120, 0.01
    %v6185 = vmul.f32 %v6121, 0.01
    %v6186 = vmul.f32 %v6122, 0.01
    %v6187 = vmul.f32 %v6123, 0.01
    %v6188 = vmul.f32 %v6124, 0.01
    %v6189 = vmul.f32 %v6125, 0.01
    %v6190 = vmul.f32 %v6126, 0.01
    %v6191 = vmul.f32 %v6127, 0.01
    %v6192 = vmul.f32 %v6128, 0.01
    %v6193 = vmul.f32 %v6129, 0.01
    %v6194 = vmul.f32 %v6130, 0.01
    %v6195 = vmul.f32 %v6131, 0.01
    %v6196 = vmul.f32 %v6132, 0.01
    %v6197 = vmul.f32 %v6133, 0.01
    %v6198 = vmul.f32 %v6134, 0.01
    %v6199 = vmul.f32 %v6135, 0.01
    %v6200 = vmul.f32 %v6136, 0.01
    %v6201 = vmul.f32 %v6137, 0.01
    %v6202 = vmul.f32 %v6138, 0.01
    %v6203 = vmul.f32 %v6139, 0.01
    %v6204 = vmul.f32 %v6140, 0.01
    %v6205 = vmul.f32 %v6141, 0.01
    %v6206 = vmul.f32 %v6142, 0.01
    %v6207 = vmul.f32 %v6143, 0.01
    %v6208 = vsel %vm6144, %v6112, %v6176
    %v6209 = vsel %vm6145, %v6113, %v6177
    %v6210 = vsel %vm6146, %v6114, %v6178
    %v6211 = vsel %vm6147, %v6115, %v6179
    %v6212 = vsel %vm6148, %v6116, %v6180
    %v6213 = vsel %vm6149, %v6117, %v6181
    %v6214 = vsel %vm6150, %v6118, %v6182
    %v6215 = vsel %vm6151, %v6119, %v6183
    %v6216 = vsel %vm6152, %v6120, %v6184
    %v6217 = vsel %vm6153, %v6121, %v6185
    %v6218 = vsel %vm6154, %v6122, %v6186
    %v6219 = vsel %vm6155, %v6123, %v6187
    %v6220 = vsel %vm6156, %v6124, %v6188
    %v6221 = vsel %vm6157, %v6125, %v6189
    %v6222 = vsel %vm6158, %v6126, %v6190
    %v6223 = vsel %vm6159, %v6127, %v6191
    %v6224 = vsel %vm6160, %v6128, %v6192
    %v6225 = vsel %vm6161, %v6129, %v6193
    %v6226 = vsel %vm6162, %v6130, %v6194
    %v6227 = vsel %vm6163, %v6131, %v6195
    %v6228 = vsel %vm6164, %v6132, %v6196
    %v6229 = vsel %vm6165, %v6133, %v6197
    %v6230 = vsel %vm6166, %v6134, %v6198
    %v6231 = vsel %vm6167, %v6135, %v6199
    %v6232 = vsel %vm6168, %v6136, %v6200
    %v6233 = vsel %vm6169, %v6137, %v6201
    %v6234 = vsel %vm6170, %v6138, %v6202
    %v6235 = vsel %vm6171, %v6139, %v6203
    %v6236 = vsel %vm6172, %v6140, %v6204
    %v6237 = vsel %vm6173, %v6141, %v6205
    %v6238 = vsel %vm6174, %v6142, %v6206
    %v6239 = vsel %vm6175, %v6143, %v6207
    %v6240 = vld [vmem:[%s14] sm:$0x3]
    %6242 = vset.pattern.permute.xlu0 0
    %6243 = vperm.xlu0 %6242, %v5980
    %v6244 = vpop.permute.xlu0 %6243
    %6247 = vset.pattern.permute.xlu0 0
    %6248 = vperm.xlu0 %6247, %v5981
    %v6249 = vpop.permute.xlu0 %6248
    %6252 = vset.pattern.permute.xlu0 0
    %6253 = vperm.xlu0 %6252, %v5982
    %v6254 = vpop.permute.xlu0 %6253
    %6257 = vset.pattern.permute.xlu0 0
    %6258 = vperm.xlu0 %6257, %v5983
    %v6259 = vpop.permute.xlu0 %6258
    %6262 = vset.pattern.permute.xlu0 0
    %6263 = vperm.xlu0 %6262, %v5984
    %v6264 = vpop.permute.xlu0 %6263
    %6267 = vset.pattern.permute.xlu0 0
    %6268 = vperm.xlu0 %6267, %v5985
    %v6269 = vpop.permute.xlu0 %6268
    %6272 = vset.pattern.permute.xlu0 0
    %6273 = vperm.xlu0 %6272, %v5986
    %v6274 = vpop.permute.xlu0 %6273
    %6277 = vset.pattern.permute.xlu0 0
    %6278 = vperm.xlu0 %6277, %v5987
    %v6279 = vpop.permute.xlu0 %6278
    %6282 = vset.pattern.permute.xlu0 0
    %6283 = vperm.xlu0 %6282, %v5988
    %v6284 = vpop.permute.xlu0 %6283
    %6287 = vset.pattern.permute.xlu0 0
    %6288 = vperm.xlu0 %6287, %v5989
    %v6289 = vpop.permute.xlu0 %6288
    %6292 = vset.pattern.permute.xlu0 0
    %6293 = vperm.xlu0 %6292, %v5990
    %v6294 = vpop.permute.xlu0 %6293
    %6297 = vset.pattern.permute.xlu0 0
    %6298 = vperm.xlu0 %6297, %v5991
    %v6299 = vpop.permute.xlu0 %6298
    %6302 = vset.pattern.permute.xlu0 0
    %6303 = vperm.xlu0 %6302, %v5992
    %v6304 = vpop.permute.xlu0 %6303
    %6307 = vset.pattern.permute.xlu0 0
    %6308 = vperm.xlu0 %6307, %v5993
    %v6309 = vpop.permute.xlu0 %6308
    %6312 = vset.pattern.permute.xlu0 0
    %6313 = vperm.xlu0 %6312, %v5994
    %v6314 = vpop.permute.xlu0 %6313
    %6317 = vset.pattern.permute.xlu0 0
    %6318 = vperm.xlu0 %6317, %v5995
    %v6319 = vpop.permute.xlu0 %6318
    %6322 = vset.pattern.permute.xlu0 0
    %6323 = vperm.xlu0 %6322, %v5996
    %v6324 = vpop.permute.xlu0 %6323
    %6327 = vset.pattern.permute.xlu0 0
    %6328 = vperm.xlu0 %6327, %v5997
    %v6329 = vpop.permute.xlu0 %6328
    %6332 = vset.pattern.permute.xlu0 0
    %6333 = vperm.xlu0 %6332, %v5998
    %v6334 = vpop.permute.xlu0 %6333
    %6337 = vset.pattern.permute.xlu0 0
    %6338 = vperm.xlu0 %6337, %v5999
    %v6339 = vpop.permute.xlu0 %6338
    %6342 = vset.pattern.permute.xlu0 0
    %6343 = vperm.xlu0 %6342, %v6000
    %v6344 = vpop.permute.xlu0 %6343
    %6347 = vset.pattern.permute.xlu0 0
    %6348 = vperm.xlu0 %6347, %v6001
    %v6349 = vpop.permute.xlu0 %6348
    %6352 = vset.pattern.permute.xlu0 0
    %6353 = vperm.xlu0 %6352, %v6002
    %v6354 = vpop.permute.xlu0 %6353
    %6357 = vset.pattern.permute.xlu0 0
    %6358 = vperm.xlu0 %6357, %v6003
    %v6359 = vpop.permute.xlu0 %6358
    %6362 = vset.pattern.permute.xlu0 0
    %6363 = vperm.xlu0 %6362, %v6004
    %v6364 = vpop.permute.xlu0 %6363
    %6367 = vset.pattern.permute.xlu0 0
    %6368 = vperm.xlu0 %6367, %v6005
    %v6369 = vpop.permute.xlu0 %6368
    %6372 = vset.pattern.permute.xlu0 0
    %6373 = vperm.xlu0 %6372, %v6006
    %v6374 = vpop.permute.xlu0 %6373
    %6377 = vset.pattern.permute.xlu0 0
    %6378 = vperm.xlu0 %6377, %v6007
    %v6379 = vpop.permute.xlu0 %6378
    %6382 = vset.pattern.permute.xlu0 0
    %6383 = vperm.xlu0 %6382, %v6008
    %v6384 = vpop.permute.xlu0 %6383
    %6387 = vset.pattern.permute.xlu0 0
    %6388 = vperm.xlu0 %6387, %v6009
    %v6389 = vpop.permute.xlu0 %6388
    %6392 = vset.pattern.permute.xlu0 0
    %6393 = vperm.xlu0 %6392, %v6010
    %v6394 = vpop.permute.xlu0 %6393
    %6397 = vset.pattern.permute.xlu0 0
    %6398 = vperm.xlu0 %6397, %v6011
    %v6399 = vpop.permute.xlu0 %6398
    %v6401 = vlaneseq
    %v6402 = vshrl.u32 %v6401, 7
    %v6403 = vsub.s32 0, %v6402
    %v6404 = vrot.slane %v6240, %v6403
    %v6405 = vmul.f32 %v6244, %v6404
    %v6406 = vmul.f32 %v6249, %v6404
    %v6407 = vmul.f32 %v6254, %v6404
    %v6408 = vmul.f32 %v6259, %v6404
    %v6409 = vmul.f32 %v6264, %v6404
    %v6410 = vmul.f32 %v6269, %v6404
    %v6411 = vmul.f32 %v6274, %v6404
    %v6412 = vmul.f32 %v6279, %v6404
    %v6413 = vmul.f32 %v6284, %v6404
    %v6414 = vmul.f32 %v6289, %v6404
    %v6415 = vmul.f32 %v6294, %v6404
    %v6416 = vmul.f32 %v6299, %v6404
    %v6417 = vmul.f32 %v6304, %v6404
    %v6418 = vmul.f32 %v6309, %v6404
    %v6419 = vmul.f32 %v6314, %v6404
    %v6420 = vmul.f32 %v6319, %v6404
    %v6421 = vmul.f32 %v6324, %v6404
    %v6422 = vmul.f32 %v6329, %v6404
    %v6423 = vmul.f32 %v6334, %v6404
    %v6424 = vmul.f32 %v6339, %v6404
    %v6425 = vmul.f32 %v6344, %v6404
    %v6426 = vmul.f32 %v6349, %v6404
    %v6427 = vmul.f32 %v6354, %v6404
    %v6428 = vmul.f32 %v6359, %v6404
    %v6429 = vmul.f32 %v6364, %v6404
    %v6430 = vmul.f32 %v6369, %v6404
    %v6431 = vmul.f32 %v6374, %v6404
    %v6432 = vmul.f32 %v6379, %v6404
    %v6433 = vmul.f32 %v6384, %v6404
    %v6434 = vmul.f32 %v6389, %v6404
    %v6435 = vmul.f32 %v6394, %v6404
    %v6436 = vmul.f32 %v6399, %v6404
    %v6437 = vld [vmem:[%s15] sm:$0x1]
    %v6439 = vlaneseq
    %v6440 = vshrl.u32 %v6439, 7
    %v6441 = vsub.s32 0, %v6440
    %v6442 = vrot.slane %v6437, %v6441
    %v6444 = vadd.f32 %v6405, %v6442
    %v6445 = vadd.f32 %v6406, %v6442
    %v6446 = vadd.f32 %v6407, %v6442
    %v6447 = vadd.f32 %v6408, %v6442
    %v6448 = vadd.f32 %v6409, %v6442
    %v6449 = vadd.f32 %v6410, %v6442
    %v6450 = vadd.f32 %v6411, %v6442
    %v6451 = vadd.f32 %v6412, %v6442
    %v6452 = vadd.f32 %v6413, %v6442
    %v6453 = vadd.f32 %v6414, %v6442
    %v6454 = vadd.f32 %v6415, %v6442
    %v6455 = vadd.f32 %v6416, %v6442
    %v6456 = vadd.f32 %v6417, %v6442
    %v6457 = vadd.f32 %v6418, %v6442
    %v6458 = vadd.f32 %v6419, %v6442
    %v6459 = vadd.f32 %v6420, %v6442
    %v6460 = vadd.f32 %v6421, %v6442
    %v6461 = vadd.f32 %v6422, %v6442
    %v6462 = vadd.f32 %v6423, %v6442
    %v6463 = vadd.f32 %v6424, %v6442
    %v6464 = vadd.f32 %v6425, %v6442
    %v6465 = vadd.f32 %v6426, %v6442
    %v6466 = vadd.f32 %v6427, %v6442
    %v6467 = vadd.f32 %v6428, %v6442
    %v6468 = vadd.f32 %v6429, %v6442
    %v6469 = vadd.f32 %v6430, %v6442
    %v6470 = vadd.f32 %v6431, %v6442
    %v6471 = vadd.f32 %v6432, %v6442
    %v6472 = vadd.f32 %v6433, %v6442
    %v6473 = vadd.f32 %v6434, %v6442
    %v6474 = vadd.f32 %v6435, %v6442
    %v6475 = vadd.f32 %v6436, %v6442
    %6477 = vset.pattern.permute.xlu0 1
    %6478 = vperm.xlu0 %6477, %v6208
    %v6479 = vpop.permute.xlu0 %6478
    %6482 = vset.pattern.permute.xlu0 1
    %6483 = vperm.xlu0 %6482, %v6209
    %v6484 = vpop.permute.xlu0 %6483
    %6487 = vset.pattern.permute.xlu0 1
    %6488 = vperm.xlu0 %6487, %v6210
    %v6489 = vpop.permute.xlu0 %6488
    %6492 = vset.pattern.permute.xlu0 1
    %6493 = vperm.xlu0 %6492, %v6211
    %v6494 = vpop.permute.xlu0 %6493
    %6497 = vset.pattern.permute.xlu0 1
    %6498 = vperm.xlu0 %6497, %v6212
    %v6499 = vpop.permute.xlu0 %6498
    %6502 = vset.pattern.permute.xlu0 1
    %6503 = vperm.xlu0 %6502, %v6213
    %v6504 = vpop.permute.xlu0 %6503
    %6507 = vset.pattern.permute.xlu0 1
    %6508 = vperm.xlu0 %6507, %v6214
    %v6509 = vpop.permute.xlu0 %6508
    %6512 = vset.pattern.permute.xlu0 1
    %6513 = vperm.xlu0 %6512, %v6215
    %v6514 = vpop.permute.xlu0 %6513
    %6517 = vset.pattern.permute.xlu0 1
    %6518 = vperm.xlu0 %6517, %v6216
    %v6519 = vpop.permute.xlu0 %6518
    %6522 = vset.pattern.permute.xlu0 1
    %6523 = vperm.xlu0 %6522, %v6217
    %v6524 = vpop.permute.xlu0 %6523
    %6527 = vset.pattern.permute.xlu0 1
    %6528 = vperm.xlu0 %6527, %v6218
    %v6529 = vpop.permute.xlu0 %6528
    %6532 = vset.pattern.permute.xlu0 1
    %6533 = vperm.xlu0 %6532, %v6219
    %v6534 = vpop.permute.xlu0 %6533
    %6537 = vset.pattern.permute.xlu0 1
    %6538 = vperm.xlu0 %6537, %v6220
    %v6539 = vpop.permute.xlu0 %6538
    %6542 = vset.pattern.permute.xlu0 1
    %6543 = vperm.xlu0 %6542, %v6221
    %v6544 = vpop.permute.xlu0 %6543
    %6547 = vset.pattern.permute.xlu0 1
    %6548 = vperm.xlu0 %6547, %v6222
    %v6549 = vpop.permute.xlu0 %6548
    %6552 = vset.pattern.permute.xlu0 1
    %6553 = vperm.xlu0 %6552, %v6223
    %v6554 = vpop.permute.xlu0 %6553
    %6557 = vset.pattern.permute.xlu0 1
    %6558 = vperm.xlu0 %6557, %v6224
    %v6559 = vpop.permute.xlu0 %6558
    %6562 = vset.pattern.permute.xlu0 1
    %6563 = vperm.xlu0 %6562, %v6225
    %v6564 = vpop.permute.xlu0 %6563
    %6567 = vset.pattern.permute.xlu0 1
    %6568 = vperm.xlu0 %6567, %v6226
    %v6569 = vpop.permute.xlu0 %6568
    %6572 = vset.pattern.permute.xlu0 1
    %6573 = vperm.xlu0 %6572, %v6227
    %v6574 = vpop.permute.xlu0 %6573
    %6577 = vset.pattern.permute.xlu0 1
    %6578 = vperm.xlu0 %6577, %v6228
    %v6579 = vpop.permute.xlu0 %6578
    %6582 = vset.pattern.permute.xlu0 1
    %6583 = vperm.xlu0 %6582, %v6229
    %v6584 = vpop.permute.xlu0 %6583
    %6587 = vset.pattern.permute.xlu0 1
    %6588 = vperm.xlu0 %6587, %v6230
    %v6589 = vpop.permute.xlu0 %6588
    %6592 = vset.pattern.permute.xlu0 1
    %6593 = vperm.xlu0 %6592, %v6231
    %v6594 = vpop.permute.xlu0 %6593
    %6597 = vset.pattern.permute.xlu0 1
    %6598 = vperm.xlu0 %6597, %v6232
    %v6599 = vpop.permute.xlu0 %6598
    %6602 = vset.pattern.permute.xlu0 1
    %6603 = vperm.xlu0 %6602, %v6233
    %v6604 = vpop.permute.xlu0 %6603
    %6607 = vset.pattern.permute.xlu0 1
    %6608 = vperm.xlu0 %6607, %v6234
    %v6609 = vpop.permute.xlu0 %6608
    %6612 = vset.pattern.permute.xlu0 1
    %6613 = vperm.xlu0 %6612, %v6235
    %v6614 = vpop.permute.xlu0 %6613
    %6617 = vset.pattern.permute.xlu0 1
    %6618 = vperm.xlu0 %6617, %v6236
    %v6619 = vpop.permute.xlu0 %6618
    %6622 = vset.pattern.permute.xlu0 1
    %6623 = vperm.xlu0 %6622, %v6237
    %v6624 = vpop.permute.xlu0 %6623
    %6627 = vset.pattern.permute.xlu0 1
    %6628 = vperm.xlu0 %6627, %v6238
    %v6629 = vpop.permute.xlu0 %6628
    %6632 = vset.pattern.permute.xlu0 1
    %6633 = vperm.xlu0 %6632, %v6239
    %v6634 = vpop.permute.xlu0 %6633
    %v6636 = vlaneseq
    %v6637 = vshrl.u32 %v6636, 7
    %v6638 = vsub.s32 1, %v6637
    %v6639 = vrot.slane %v6240, %v6638
    %v6640 = vmul.f32 %v6479, %v6639
    %v6641 = vmul.f32 %v6484, %v6639
    %v6642 = vmul.f32 %v6489, %v6639
    %v6643 = vmul.f32 %v6494, %v6639
    %v6644 = vmul.f32 %v6499, %v6639
    %v6645 = vmul.f32 %v6504, %v6639
    %v6646 = vmul.f32 %v6509, %v6639
    %v6647 = vmul.f32 %v6514, %v6639
    %v6648 = vmul.f32 %v6519, %v6639
    %v6649 = vmul.f32 %v6524, %v6639
    %v6650 = vmul.f32 %v6529, %v6639
    %v6651 = vmul.f32 %v6534, %v6639
    %v6652 = vmul.f32 %v6539, %v6639
    %v6653 = vmul.f32 %v6544, %v6639
    %v6654 = vmul.f32 %v6549, %v6639
    %v6655 = vmul.f32 %v6554, %v6639
    %v6656 = vmul.f32 %v6559, %v6639
    %v6657 = vmul.f32 %v6564, %v6639
    %v6658 = vmul.f32 %v6569, %v6639
    %v6659 = vmul.f32 %v6574, %v6639
    %v6660 = vmul.f32 %v6579, %v6639
    %v6661 = vmul.f32 %v6584, %v6639
    %v6662 = vmul.f32 %v6589, %v6639
    %v6663 = vmul.f32 %v6594, %v6639
    %v6664 = vmul.f32 %v6599, %v6639
    %v6665 = vmul.f32 %v6604, %v6639
    %v6666 = vmul.f32 %v6609, %v6639
    %v6667 = vmul.f32 %v6614, %v6639
    %v6668 = vmul.f32 %v6619, %v6639
    %v6669 = vmul.f32 %v6624, %v6639
    %v6670 = vmul.f32 %v6629, %v6639
    %v6671 = vmul.f32 %v6634, %v6639
    %v6672 = vadd.f32 %v6444, %v6640
    %v6673 = vadd.f32 %v6445, %v6641
    %v6674 = vadd.f32 %v6446, %v6642
    %v6675 = vadd.f32 %v6447, %v6643
    %v6676 = vadd.f32 %v6448, %v6644
    %v6677 = vadd.f32 %v6449, %v6645
    %v6678 = vadd.f32 %v6450, %v6646
    %v6679 = vadd.f32 %v6451, %v6647
    %v6680 = vadd.f32 %v6452, %v6648
    %v6681 = vadd.f32 %v6453, %v6649
    %v6682 = vadd.f32 %v6454, %v6650
    %v6683 = vadd.f32 %v6455, %v6651
    %v6684 = vadd.f32 %v6456, %v6652
    %v6685 = vadd.f32 %v6457, %v6653
    %v6686 = vadd.f32 %v6458, %v6654
    %v6687 = vadd.f32 %v6459, %v6655
    %v6688 = vadd.f32 %v6460, %v6656
    %v6689 = vadd.f32 %v6461, %v6657
    %v6690 = vadd.f32 %v6462, %v6658
    %v6691 = vadd.f32 %v6463, %v6659
    %v6692 = vadd.f32 %v6464, %v6660
    %v6693 = vadd.f32 %v6465, %v6661
    %v6694 = vadd.f32 %v6466, %v6662
    %v6695 = vadd.f32 %v6467, %v6663
    %v6696 = vadd.f32 %v6468, %v6664
    %v6697 = vadd.f32 %v6469, %v6665
    %v6698 = vadd.f32 %v6470, %v6666
    %v6699 = vadd.f32 %v6471, %v6667
    %v6700 = vadd.f32 %v6472, %v6668
    %v6701 = vadd.f32 %v6473, %v6669
    %v6702 = vadd.f32 %v6474, %v6670
    %v6703 = vadd.f32 %v6475, %v6671
    %vm6704 = vcmask 15360
    %6705 = vst.msk [vmem:[%s16] sm:$0xff] %vm6704, %v6672
    %6706 = vst.msk [vmem:[%s16 + $0x8] sm:$0xff] %vm6704, %v6673
    %6707 = vst.msk [vmem:[%s16 + $0x10] sm:$0xff] %vm6704, %v6674
    %6708 = vst.msk [vmem:[%s16 + $0x18] sm:$0xff] %vm6704, %v6675
    %6709 = vst.msk [vmem:[%s16 + $0x20] sm:$0xff] %vm6704, %v6676
    %6710 = vst.msk [vmem:[%s16 + $0x28] sm:$0xff] %vm6704, %v6677
    %6711 = vst.msk [vmem:[%s16 + $0x30] sm:$0xff] %vm6704, %v6678
    %6712 = vst.msk [vmem:[%s16 + $0x38] sm:$0xff] %vm6704, %v6679
    %6713 = vst.msk [vmem:[%s16 + $0x40] sm:$0xff] %vm6704, %v6680
    %6714 = vst.msk [vmem:[%s16 + $0x48] sm:$0xff] %vm6704, %v6681
    %6715 = vst.msk [vmem:[%s16 + $0x50] sm:$0xff] %vm6704, %v6682
    %6716 = vst.msk [vmem:[%s16 + $0x58] sm:$0xff] %vm6704, %v6683
    %6717 = vst.msk [vmem:[%s16 + $0x60] sm:$0xff] %vm6704, %v6684
    %6718 = vst.msk [vmem:[%s16 + $0x68] sm:$0xff] %vm6704, %v6685
    %6719 = vst.msk [vmem:[%s16 + $0x70] sm:$0xff] %vm6704, %v6686
    %6720 = vst.msk [vmem:[%s16 + $0x78] sm:$0xff] %vm6704, %v6687
    %6721 = vst.msk [vmem:[%s16 + $0x80] sm:$0xff] %vm6704, %v6688
    %6722 = vst.msk [vmem:[%s16 + $0x88] sm:$0xff] %vm6704, %v6689
    %6723 = vst.msk [vmem:[%s16 + $0x90] sm:$0xff] %vm6704, %v6690
    %6724 = vst.msk [vmem:[%s16 + $0x98] sm:$0xff] %vm6704, %v6691
    %6725 = vst.msk [vmem:[%s16 + $0xa0] sm:$0xff] %vm6704, %v6692
    %6726 = vst.msk [vmem:[%s16 + $0xa8] sm:$0xff] %vm6704, %v6693
    %6727 = vst.msk [vmem:[%s16 + $0xb0] sm:$0xff] %vm6704, %v6694
    %6728 = vst.msk [vmem:[%s16 + $0xb8] sm:$0xff] %vm6704, %v6695
    %6729 = vst.msk [vmem:[%s16 + $0xc0] sm:$0xff] %vm6704, %v6696
    %6730 = vst.msk [vmem:[%s16 + $0xc8] sm:$0xff] %vm6704, %v6697
    %6731 = vst.msk [vmem:[%s16 + $0xd0] sm:$0xff] %vm6704, %v6698
    %6732 = vst.msk [vmem:[%s16 + $0xd8] sm:$0xff] %vm6704, %v6699
    %6733 = vst.msk [vmem:[%s16 + $0xe0] sm:$0xff] %vm6704, %v6700
    %6734 = vst.msk [vmem:[%s16 + $0xe8] sm:$0xff] %vm6704, %v6701
    %6735 = vst.msk [vmem:[%s16 + $0xf0] sm:$0xff] %vm6704, %v6702
    %6736 = vst.msk [vmem:[%s16 + $0xf8] sm:$0xff] %vm6704, %v6703
    // Predicated region
    $region70: #{tpu_custom_call.1} parent=1 // pred_check
      _
    $region71: #{tpu_custom_call.1} parent=1 // pred_check_branch
      %6738 = sbr.rel (0) target = $region73
    $region72: #{tpu_custom_call.1} parent=1 // pred_region
      _
    $region73: #{tpu_custom_call.1} parent=1 // pred_fallthru
      _
    // Predicated region
    $region74: #{tpu_custom_call.1} parent=1 // pred_check
      _
    $region75: #{tpu_custom_call.1} parent=1 // pred_check_branch
      %6740 = sbr.rel (0) target = $region77
    $region76: #{tpu_custom_call.1} parent=1 // pred_region
      _
    $region77: #{tpu_custom_call.1} parent=1 // pred_fallthru
      _
    %6741 = vsyncpa [#allocation3], 1

</llo_original>
